<compile_context>
chip_gen: v7x
topology: tpu7x:2x2x1
jax: 0.10.0
libtpu: 0.0.40
codegen_flags: <defaults>
</compile_context>

<pallas_src>
import functools

import jax
import jax.numpy as jnp
from jax.experimental import pallas as pl
from jax.experimental.pallas import tpu as pltpu


# -----------------------------------------------------------------------------
# exact GELU built from guaranteed-lowering primitives (exp/abs/where/poly).
# erf via Abramowitz & Stegun 7.1.26 (|err| <= 1.5e-7, i.e. f32-exact for GELU).
# -----------------------------------------------------------------------------
_SQRT_2 = 1.4142135623730951


def _erf_poly(x):
    a1, a2, a3, a4, a5 = (0.254829592, -0.284496736, 1.421413741,
                          -1.453152027, 1.061405429)
    p = 0.3275911
    s = jnp.where(x >= 0.0, 1.0, -1.0)
    ax = jnp.abs(x)
    t = 1.0 / (1.0 + p * ax)
    poly = ((((a5 * t + a4) * t + a3) * t + a2) * t + a1) * t
    return s * (1.0 - poly * jnp.exp(-ax * ax))


def _gelu_exact(x):
    return 0.5 * x * (1.0 + _erf_poly(x / _SQRT_2))


def _row_tile(n, max_rows):
    # full-array block when it fits (always layout-legal), else a large 8-aligned tile;
    # ragged last blocks are handled by Pallas (masked stores), so no jnp.pad copies.
    return n if n <= max_rows else max_rows


# -----------------------------------------------------------------------------
# Pallas kernel 1: pointwise 1x1 conv (lift layer):  out = x @ w + b
# -----------------------------------------------------------------------------
def _pointwise_kernel(x_ref, w_ref, b_ref, o_ref):
    o_ref[...] = (jnp.dot(x_ref[...], w_ref[...], preferred_element_type=jnp.float32)
                  + b_ref[...]).astype(o_ref.dtype)


def pointwise_linear(x2d, w, b, *, use_pallas=True, max_rows=1024):
    n, cin = x2d.shape
    cout = w.shape[1]
    if not use_pallas:  # pure-JAX reference path
        return x2d @ w + b[None, :]

    tile = _row_tile(n, max_rows)
    cost = pl.CostEstimate(
        flops=2 * n * cin * cout,
        transcendentals=0,
        bytes_accessed=4 * (n * cin + cin * cout + cout + n * cout))
    return pl.pallas_call(
        _pointwise_kernel,
        out_shape=jax.ShapeDtypeStruct((n, cout), jnp.float32),
        grid_spec=pltpu.PrefetchScalarGridSpec(
            num_scalar_prefetch=0,
            grid=(pl.cdiv(n, tile),),
            in_specs=[
                pl.BlockSpec((tile, cin), lambda i: (i, 0)),
                pl.BlockSpec((cin, cout), lambda i: (0, 0)),
                pl.BlockSpec((1, cout), lambda i: (0, 0)),
            ],
            out_specs=pl.BlockSpec((tile, cout), lambda i: (i, 0)),
        ),
        compiler_params=pltpu.CompilerParams(dimension_semantics=("parallel",)),
        cost_estimate=cost,
    )(x2d, w, b.reshape(1, cout))


def conv1x1_nhwc(x, w, b, *, use_pallas=True):
    """1x1 conv on channels-last input; the reshape is a free (layout-preserving) view."""
    bsz, hh, ww, c = x.shape
    y = pointwise_linear(x.reshape(-1, c), w, b, use_pallas=use_pallas)
    return y.reshape(bsz, hh, ww, w.shape[1])


# -----------------------------------------------------------------------------
# Pallas kernel 2: fused FeedForwardBlock
#   out = gelu(x @ w0 + b0) @ w1 + b1   (4*width intermediate stays in VMEM/vregs)
# -----------------------------------------------------------------------------
def _ff_kernel(x_ref, w0_ref, b0_ref, w1_ref, b1_ref, o_ref):
    h = jnp.dot(x_ref[...], w0_ref[...], preferred_element_type=jnp.float32) + b0_ref[...]
    h = _gelu_exact(h)
    o_ref[...] = (jnp.dot(h, w1_ref[...], preferred_element_type=jnp.float32)
                  + b1_ref[...]).astype(o_ref.dtype)


def feedforward_block(x, ffp, *, use_pallas=True, max_rows=1024):
    bsz, hh, ww, c = x.shape
    w0, b0, w1, b1 = ffp["w0"], ffp["b0"], ffp["w1"], ffp["b1"]
    hid, cout = w0.shape[1], w1.shape[1]
    xf = x.reshape(-1, c)
    n = xf.shape[0]

    if not use_pallas:  # pure-JAX reference path (exact erf GELU, matches nn.GELU())
        hmid = jax.nn.gelu(xf @ w0 + b0[None, :], approximate=False)
        return (hmid @ w1 + b1[None, :]).reshape(bsz, hh, ww, cout)

    tile = _row_tile(n, max_rows)
    cost = pl.CostEstimate(
        flops=2 * n * c * hid + 2 * n * hid * cout,
        transcendentals=n * hid,
        bytes_accessed=4 * (n * c + c * hid + hid + hid * cout + cout + n * cout))
    out = pl.pallas_call(
        _ff_kernel,
        out_shape=jax.ShapeDtypeStruct((n, cout), jnp.float32),
        grid_spec=pltpu.PrefetchScalarGridSpec(
            num_scalar_prefetch=0,
            grid=(pl.cdiv(n, tile),),
            in_specs=[
                pl.BlockSpec((tile, c), lambda i: (i, 0)),
                pl.BlockSpec((c, hid), lambda i: (0, 0)),
                pl.BlockSpec((1, hid), lambda i: (0, 0)),
                pl.BlockSpec((hid, cout), lambda i: (0, 0)),
                pl.BlockSpec((1, cout), lambda i: (0, 0)),
            ],
            out_specs=pl.BlockSpec((tile, cout), lambda i: (i, 0)),
        ),
        compiler_params=pltpu.CompilerParams(dimension_semantics=("parallel",)),
        cost_estimate=cost,
    )(xf, w0, b0.reshape(1, hid), w1, b1.reshape(1, cout))
    return out.reshape(bsz, hh, ww, cout)


# -----------------------------------------------------------------------------
# Pallas kernel 3: factorized spectral mode contraction (complex as one block matmul)
#   x_cat[m] = [xr | xi]   (n, 2C),  w_block[m] = [[wr, wi], [-wi, wr]]  (2C, 2C)
#   out[m]   = x_cat[m] @ w_block[m] = [out_r | out_i]   (n, 2C)
# Several modes per grid step; unrolled 2D MXU dots inside the block.
# -----------------------------------------------------------------------------
def _spectral_kernel(x_ref, w_ref, o_ref):
    for j in range(x_ref.shape[0]):  # static unroll over modes in this block
        o_ref[j] = jnp.dot(x_ref[j], w_ref[j],
                           preferred_element_type=jnp.float32).astype(o_ref.dtype)


def spectral_mode_mul(xcat, wblock, *, mode_block=4, max_rows=512):
    m, n, k2 = xcat.shape
    d2 = wblock.shape[-1]
    mb = min(mode_block, m)
    nt = _row_tile(n, max_rows)
    cost = pl.CostEstimate(
        flops=2 * m * n * k2 * d2,
        transcendentals=0,
        bytes_accessed=4 * (m * n * k2 + m * k2 * d2 + m * n * d2))
    return pl.pallas_call(
        _spectral_kernel,
        out_shape=jax.ShapeDtypeStruct((m, n, d2), jnp.float32),
        grid_spec=pltpu.PrefetchScalarGridSpec(
            num_scalar_prefetch=0,
            grid=(pl.cdiv(m, mb), pl.cdiv(n, nt)),
            in_specs=[
                pl.BlockSpec((mb, nt, k2), lambda i, j: (i, j, 0)),
                pl.BlockSpec((mb, k2, d2), lambda i, j: (i, 0, 0)),
            ],
            out_specs=pl.BlockSpec((mb, nt, d2), lambda i, j: (i, j, 0)),
        ),
        compiler_params=pltpu.CompilerParams(
            dimension_semantics=("parallel", "parallel")),
        cost_estimate=cost,
    )(xcat, wblock)


# -----------------------------------------------------------------------------
# FactorizedSpectralConv2d (F-FNO style), channels-last input (B, Hp, Wp, C)
# -----------------------------------------------------------------------------
def factorized_spectral_conv2d(x, wr1, wi1, wr2, wi2, *, use_pallas=True):
    bsz, hp, wp, c = x.shape
    m1 = min(wr1.shape[0], hp // 2 + 1)
    m2 = min(wr2.shape[0], wp // 2 + 1)

    def mode_mix(xs_c, wr, wi):
        # xs_c: (m, n, C) complex64  ->  (m, n, C) complex64
        if use_pallas:
            xcat = jnp.concatenate([jnp.real(xs_c), jnp.imag(xs_c)], axis=-1)
            wblock = jnp.concatenate(
                [jnp.concatenate([wr, wi], axis=-1),
                 jnp.concatenate([-wi, wr], axis=-1)], axis=-2)          # (m, 2C, 2C)
            o = spectral_mode_mul(xcat, wblock)                          # (m, n, 2C)
            return jax.lax.complex(o[..., :c], o[..., c:])
        wc = (wr + 1j * wi).astype(jnp.complex64)                        # reference path
        return jnp.einsum("mnc,mcd->mnd", xs_c, wc)

    # ---- branch along H (axis 1) ----
    fh = hp // 2 + 1
    xf = jnp.fft.rfft(x, axis=1)[:, :m1]                                 # (B, m1, Wp, C)
    xs = jnp.transpose(xf, (1, 0, 2, 3)).reshape(m1, bsz * wp, c)
    o = mode_mix(xs, wr1[:m1], wi1[:m1])
    o = jnp.transpose(o.reshape(m1, bsz, wp, c), (1, 0, 2, 3))           # (B, m1, Wp, C)
    spec_h = jnp.pad(o, ((0, 0), (0, fh - m1), (0, 0), (0, 0)))
    xx = jnp.fft.irfft(spec_h, n=hp, axis=1)

    # ---- branch along W (axis 2) ----
    fw = wp // 2 + 1
    yf = jnp.fft.rfft(x, axis=2)[:, :, :m2]                              # (B, Hp, m2, C)
    ys = jnp.transpose(yf, (2, 0, 1, 3)).reshape(m2, bsz * hp, c)
    p = mode_mix(ys, wr2[:m2], wi2[:m2])
    p = jnp.transpose(p.reshape(m2, bsz, hp, c), (1, 2, 0, 3))           # (B, Hp, m2, C)
    spec_w = jnp.pad(p, ((0, 0), (0, 0), (0, fw - m2), (0, 0)))
    xy = jnp.fft.irfft(spec_w, n=wp, axis=2)

    return (xx + xy).astype(jnp.float32)


# -----------------------------------------------------------------------------
# FactorizedFNO2DEncoder forward (public API keeps PyTorch NCHW; NHWC internally)
# -----------------------------------------------------------------------------
def fno2d_encoder_forward(x, params, *, pad=(4, 4), use_pallas=True):
    bsz, _, h, w = x.shape
    xh = jnp.transpose(x, (0, 2, 3, 1))                                  # NCHW -> NHWC once

    # coord features (meshgrid), concatenated on the channel axis
    gx = jnp.broadcast_to(jnp.linspace(0.0, 1.0, h, dtype=jnp.float32)[:, None], (h, w))
    gy = jnp.broadcast_to(jnp.linspace(0.0, 1.0, w, dtype=jnp.float32)[None, :], (h, w))
    coord = jnp.broadcast_to(jnp.stack([gx, gy], axis=-1)[None], (bsz, h, w, 2))
    xh = jnp.concatenate([xh, coord], axis=-1)

    # lift layer (1x1 conv)
    xh = conv1x1_nhwc(xh, params["lift_w"], params["lift_b"], use_pallas=use_pallas)

    # constant (zero) padding: W right by pad[0], H bottom by pad[1]
    xh = jnp.pad(xh, ((0, 0), (0, pad[1]), (0, pad[0]), (0, 0)))

    x_out = None
    for lp in params["layers"]:
        x_spconv = factorized_spectral_conv2d(
            xh, lp["wr1"], lp["wi1"], lp["wr2"], lp["wi2"], use_pallas=use_pallas)
        x_out = feedforward_block(x_spconv, lp["ff"], use_pallas=use_pallas)
        xh = xh + x_out

    # matches the PyTorch module: the *last FF output* is returned, cropped.
    out = x_out[:, :h, :w, :]
    return jnp.transpose(out, (0, 3, 1, 2))                              # NHWC -> NCHW once


# -----------------------------------------------------------------------------
# deterministic parameter initialization (synthetic; matches module shapes)
# -----------------------------------------------------------------------------
def init_params(key, in_channels, width, modes1, modes2, n_layers, factor=4):
    cin = in_channels + 2  # coord_features=True adds 2 channels
    keys = jax.random.split(key, 2 + n_layers)
    params = {
        "lift_w": jax.random.normal(keys[0], (cin, width), jnp.float32) / jnp.sqrt(cin),
        "lift_b": 0.01 * jax.random.normal(keys[1], (width,), jnp.float32),
        "layers": [],
    }
    scale = 1.0 / (width * width)
    for l in range(n_layers):
        lk = jax.random.split(keys[2 + l], 6)
        layer = dict(
            wr1=scale * jax.random.normal(lk[0], (modes1, width, width), jnp.float32),
            wi1=scale * jax.random.normal(lk[1], (modes1, width, width), jnp.float32),
            wr2=scale * jax.random.normal(lk[2], (modes2, width, width), jnp.float32),
            wi2=scale * jax.random.normal(lk[3], (modes2, width, width), jnp.float32),
            ff=dict(
                w0=jax.random.normal(lk[4], (width, width * factor), jnp.float32)
                / jnp.sqrt(width),
                b0=jnp.zeros((width * factor,), jnp.float32),
                w1=jax.random.normal(lk[5], (width * factor, width), jnp.float32)
                / jnp.sqrt(width * factor),
                b1=jnp.zeros((width,), jnp.float32),
            ),
        )
        params["layers"].append(layer)
    return params


if __name__ == "__main__":
    key = jax.random.PRNGKey(0)
    k_x, k_p = jax.random.split(key)

    # small config: batch=2, in_channels=1, 16x16 spatial, width=32, 2 FNO layers,
    # 8 Fourier modes per factorized axis, padding=4.
    B, CIN, H, W = 2, 1, 16, 16
    WIDTH, MODES, N_LAYERS, PAD = 32, 8, 2, 4

    x = jax.random.normal(k_x, (B, CIN, H, W), jnp.float32)
    params = init_params(k_p, CIN, WIDTH, MODES, MODES, N_LAYERS)

    fwd = jax.jit(functools.partial(fno2d_encoder_forward, pad=(PAD, PAD), use_pallas=True))
    ref_fwd = jax.jit(functools.partial(fno2d_encoder_forward, pad=(PAD, PAD), use_pallas=False))

    out = jax.block_until_ready(fwd(x, params))
    ref = jax.block_until_ready(ref_fwd(x, params))

    assert out.shape == (B, WIDTH, H, W), out.shape
    assert bool(jnp.all(jnp.isfinite(out)))
    max_err = float(jnp.max(jnp.abs(out - ref)))
    assert bool(jnp.allclose(out, ref, rtol=1e-2, atol=2e-4)), max_err

    print("KERNEL_OK")
</pallas_src>

<mosaic_0001>
module attributes {stable_mosaic.version = 11 : i64} {
  func.func @_pointwise_kernel(%arg0: i32, %arg1: memref<512x3xf32, #tpu.memory_space<vmem>>, %arg2: memref<3x32xf32, #tpu.memory_space<vmem>>, %arg3: memref<1x32xf32, #tpu.memory_space<vmem>>, %arg4: memref<512x32xf32, #tpu.memory_space<vmem>>) attributes {dimension_semantics = [#tpu.dimension_semantics<parallel>], iteration_bounds = array<i64: 1>, scalar_prefetch = 0 : i64, scratch_operands = 0 : i64, tpu.core_type = #tpu.core_type<tc>, window_params = [{transform_indices = @transform_0, window_bounds = array<i64: 512, 3>}, {pipeline_mode = #tpu.pipeline_mode<synchronous>, transform_indices = @transform_1, window_bounds = array<i64: 3, 32>}, {pipeline_mode = #tpu.pipeline_mode<synchronous>, transform_indices = @transform_2, window_bounds = array<i64: 1, 32>}, {transform_indices = @transform_3, window_bounds = array<i64: 512, 32>}]} {
    %c0 = arith.constant 0 : index
    %c0_0 = arith.constant 0 : index
    %0 = vector.load %arg1[%c0, %c0_0] : memref<512x3xf32, #tpu.memory_space<vmem>>, vector<512x3xf32>
    %c0_1 = arith.constant 0 : index
    %c0_2 = arith.constant 0 : index
    %1 = vector.load %arg2[%c0_1, %c0_2] : memref<3x32xf32, #tpu.memory_space<vmem>>, vector<3x32xf32>
    %cst = arith.constant dense<0.000000e+00> : vector<512x32xf32>
    %2 = tpu.matmul %0, %1, %cst {dimension_numbers = #tpu.dot_dimension_numbers<[1], [0], [0], [1], [0, 0, 1, 1], [], []>} : vector<512x3xf32>, vector<3x32xf32>, vector<512x32xf32> -> vector<512x32xf32>
    %c0_3 = arith.constant 0 : index
    %c0_4 = arith.constant 0 : index
    %3 = vector.load %arg3[%c0_3, %c0_4] : memref<1x32xf32, #tpu.memory_space<vmem>>, vector<1x32xf32>
    %4 = vector.broadcast %3 : vector<1x32xf32> to vector<512x32xf32>
    %5 = arith.addf %2, %4 : vector<512x32xf32>
    %c0_5 = arith.constant 0 : index
    %c0_6 = arith.constant 0 : index
    %6 = vector.load %arg4[%c0_5, %c0_6] : memref<512x32xf32, #tpu.memory_space<vmem>>, vector<512x32xf32>
    tpu.vector_store %arg4[%c0_5, %c0_6], %5 {strides = array<i32>} : memref<512x32xf32, #tpu.memory_space<vmem>>, vector<512x32xf32>,
    return
  }
  func.func @transform_0(%arg0: i32) -> (i32, i32) {
    %c0_i32 = arith.constant 0 : i32
    %c0_i32_0 = arith.constant 0 : i32
    return %arg0, %c0_i32 : i32, i32
  }
  func.func @transform_1(%arg0: i32) -> (i32, i32) {
    %c0_i32 = arith.constant 0 : i32
    %c0_i32_0 = arith.constant 0 : i32
    %c0_i32_1 = arith.constant 0 : i32
    return %c0_i32, %c0_i32_0 : i32, i32
  }
  func.func @transform_2(%arg0: i32) -> (i32, i32) {
    %c0_i32 = arith.constant 0 : i32
    %c0_i32_0 = arith.constant 0 : i32
    %c0_i32_1 = arith.constant 0 : i32
    return %c0_i32, %c0_i32_0 : i32, i32
  }
  func.func @transform_3(%arg0: i32) -> (i32, i32) {
    %c0_i32 = arith.constant 0 : i32
    %c0_i32_0 = arith.constant 0 : i32
    return %arg0, %c0_i32 : i32, i32
  }
}

module attributes {stable_mosaic.version = 11 : i64} {
  func.func @_spectral_kernel(%arg0: i32, %arg1: i32, %arg2: memref<4x40x64xf32, #tpu.memory_space<vmem>>, %arg3: memref<4x64x64xf32, #tpu.memory_space<vmem>>, %arg4: memref<4x40x64xf32, #tpu.memory_space<vmem>>) attributes {dimension_semantics = [#tpu.dimension_semantics<parallel>, #tpu.dimension_semantics<parallel>], iteration_bounds = array<i64: 2, 1>, scalar_prefetch = 0 : i64, scratch_operands = 0 : i64, tpu.core_type = #tpu.core_type<tc>, window_params = [{transform_indices = @transform_0, window_bounds = array<i64: 4, 40, 64>}, {transform_indices = @transform_1, window_bounds = array<i64: 4, 64, 64>}, {transform_indices = @transform_2, window_bounds = array<i64: 4, 40, 64>}]} {
    %c0 = arith.constant 0 : index
    %c0_0 = arith.constant 0 : index
    %c0_1 = arith.constant 0 : index
    %0 = vector.load %arg2[%c0, %c0_0, %c0_1] : memref<4x40x64xf32, #tpu.memory_space<vmem>>, vector<1x40x64xf32>
    %1 = vector.shape_cast %0 : vector<1x40x64xf32> to vector<40x64xf32>
    %c0_2 = arith.constant 0 : index
    %c0_3 = arith.constant 0 : index
    %c0_4 = arith.constant 0 : index
    %2 = vector.load %arg3[%c0_2, %c0_3, %c0_4] : memref<4x64x64xf32, #tpu.memory_space<vmem>>, vector<1x64x64xf32>
    %3 = vector.shape_cast %2 : vector<1x64x64xf32> to vector<64x64xf32>
    %cst = arith.constant dense<0.000000e+00> : vector<40x64xf32>
    %4 = tpu.matmul %1, %3, %cst {dimension_numbers = #tpu.dot_dimension_numbers<[1], [0], [0], [1], [0, 0, 1, 1], [], []>} : vector<40x64xf32>, vector<64x64xf32>, vector<40x64xf32> -> vector<40x64xf32>
    %c0_5 = arith.constant 0 : index
    %c0_6 = arith.constant 0 : index
    %c0_7 = arith.constant 0 : index
    %5 = vector.load %arg4[%c0_5, %c0_6, %c0_7] : memref<4x40x64xf32, #tpu.memory_space<vmem>>, vector<1x40x64xf32>
    %6 = vector.shape_cast %5 : vector<1x40x64xf32> to vector<40x64xf32>
    %7 = vector.shape_cast %4 : vector<40x64xf32> to vector<1x40x64xf32>
    tpu.vector_store %arg4[%c0_5, %c0_6, %c0_7], %7 {strides = array<i32>} : memref<4x40x64xf32, #tpu.memory_space<vmem>>, vector<1x40x64xf32>,
    %c1 = arith.constant 1 : index
    %c0_8 = arith.constant 0 : index
    %c0_9 = arith.constant 0 : index
    %8 = vector.load %arg2[%c1, %c0_8, %c0_9] : memref<4x40x64xf32, #tpu.memory_space<vmem>>, vector<1x40x64xf32>
    %9 = vector.shape_cast %8 : vector<1x40x64xf32> to vector<40x64xf32>
    %c1_10 = arith.constant 1 : index
    %c0_11 = arith.constant 0 : index
    %c0_12 = arith.constant 0 : index
    %10 = vector.load %arg3[%c1_10, %c0_11, %c0_12] : memref<4x64x64xf32, #tpu.memory_space<vmem>>, vector<1x64x64xf32>
    %11 = vector.shape_cast %10 : vector<1x64x64xf32> to vector<64x64xf32>
    %cst_13 = arith.constant dense<0.000000e+00> : vector<40x64xf32>
    %12 = tpu.matmul %9, %11, %cst_13 {dimension_numbers = #tpu.dot_dimension_numbers<[1], [0], [0], [1], [0, 0, 1, 1], [], []>} : vector<40x64xf32>, vector<64x64xf32>, vector<40x64xf32> -> vector<40x64xf32>
    %c1_14 = arith.constant 1 : index
    %c0_15 = arith.constant 0 : index
    %c0_16 = arith.constant 0 : index
    %13 = vector.load %arg4[%c1_14, %c0_15, %c0_16] : memref<4x40x64xf32, #tpu.memory_space<vmem>>, vector<1x40x64xf32>
    %14 = vector.shape_cast %13 : vector<1x40x64xf32> to vector<40x64xf32>
    %15 = vector.shape_cast %12 : vector<40x64xf32> to vector<1x40x64xf32>
    tpu.vector_store %arg4[%c1_14, %c0_15, %c0_16], %15 {strides = array<i32>} : memref<4x40x64xf32, #tpu.memory_space<vmem>>, vector<1x40x64xf32>,
    %c2 = arith.constant 2 : index
    %c0_17 = arith.constant 0 : index
    %c0_18 = arith.constant 0 : index
    %16 = vector.load %arg2[%c2, %c0_17, %c0_18] : memref<4x40x64xf32, #tpu.memory_space<vmem>>, vector<1x40x64xf32>
    %17 = vector.shape_cast %16 : vector<1x40x64xf32> to vector<40x64xf32>
    %c2_19 = arith.constant 2 : index
    %c0_20 = arith.constant 0 : index
    %c0_21 = arith.constant 0 : index
    %18 = vector.load %arg3[%c2_19, %c0_20, %c0_21] : memref<4x64x64xf32, #tpu.memory_space<vmem>>, vector<1x64x64xf32>
    %19 = vector.shape_cast %18 : vector<1x64x64xf32> to vector<64x64xf32>
    %cst_22 = arith.constant dense<0.000000e+00> : vector<40x64xf32>
    %20 = tpu.matmul %17, %19, %cst_22 {dimension_numbers = #tpu.dot_dimension_numbers<[1], [0], [0], [1], [0, 0, 1, 1], [], []>} : vector<40x64xf32>, vector<64x64xf32>, vector<40x64xf32> -> vector<40x64xf32>
    %c2_23 = arith.constant 2 : index
    %c0_24 = arith.constant 0 : index
    %c0_25 = arith.constant 0 : index
    %21 = vector.load %arg4[%c2_23, %c0_24, %c0_25] : memref<4x40x64xf32, #tpu.memory_space<vmem>>, vector<1x40x64xf32>
    %22 = vector.shape_cast %21 : vector<1x40x64xf32> to vector<40x64xf32>
    %23 = vector.shape_cast %20 : vector<40x64xf32> to vector<1x40x64xf32>
    tpu.vector_store %arg4[%c2_23, %c0_24, %c0_25], %23 {strides = array<i32>} : memref<4x40x64xf32, #tpu.memory_space<vmem>>, vector<1x40x64xf32>,
    %c3 = arith.constant 3 : index
    %c0_26 = arith.constant 0 : index
    %c0_27 = arith.constant 0 : index
    %24 = vector.load %arg2[%c3, %c0_26, %c0_27] : memref<4x40x64xf32, #tpu.memory_space<vmem>>, vector<1x40x64xf32>
    %25 = vector.shape_cast %24 : vector<1x40x64xf32> to vector<40x64xf32>
    %c3_28 = arith.constant 3 : index
    %c0_29 = arith.constant 0 : index
    %c0_30 = arith.constant 0 : index
    %26 = vector.load %arg3[%c3_28, %c0_29, %c0_30] : memref<4x64x64xf32, #tpu.memory_space<vmem>>, vector<1x64x64xf32>
    %27 = vector.shape_cast %26 : vector<1x64x64xf32> to vector<64x64xf32>
    %cst_31 = arith.constant dense<0.000000e+00> : vector<40x64xf32>
    %28 = tpu.matmul %25, %27, %cst_31 {dimension_numbers = #tpu.dot_dimension_numbers<[1], [0], [0], [1], [0, 0, 1, 1], [], []>} : vector<40x64xf32>, vector<64x64xf32>, vector<40x64xf32> -> vector<40x64xf32>
    %c3_32 = arith.constant 3 : index
    %c0_33 = arith.constant 0 : index
    %c0_34 = arith.constant 0 : index
    %29 = vector.load %arg4[%c3_32, %c0_33, %c0_34] : memref<4x40x64xf32, #tpu.memory_space<vmem>>, vector<1x40x64xf32>
    %30 = vector.shape_cast %29 : vector<1x40x64xf32> to vector<40x64xf32>
    %31 = vector.shape_cast %28 : vector<40x64xf32> to vector<1x40x64xf32>
    tpu.vector_store %arg4[%c3_32, %c0_33, %c0_34], %31 {strides = array<i32>} : memref<4x40x64xf32, #tpu.memory_space<vmem>>, vector<1x40x64xf32>,
    return
  }
  func.func @transform_0(%arg0: i32, %arg1: i32) -> (i32, i32, i32) {
    %c0_i32 = arith.constant 0 : i32
    %c0_i32_0 = arith.constant 0 : i32
    return %arg0, %arg1, %c0_i32 : i32, i32, i32
  }
  func.func @transform_1(%arg0: i32, %arg1: i32) -> (i32, i32, i32) {
    %c0_i32 = arith.constant 0 : i32
    %c0_i32_0 = arith.constant 0 : i32
    %c0_i32_1 = arith.constant 0 : i32
    return %arg0, %c0_i32, %c0_i32_0 : i32, i32, i32
  }
  func.func @transform_2(%arg0: i32, %arg1: i32) -> (i32, i32, i32) {
    %c0_i32 = arith.constant 0 : i32
    %c0_i32_0 = arith.constant 0 : i32
    return %arg0, %arg1, %c0_i32 : i32, i32, i32
  }
}

module attributes {stable_mosaic.version = 11 : i64} {
  func.func @_ff_kernel(%arg0: i32, %arg1: memref<800x32xf32, #tpu.memory_space<vmem>>, %arg2: memref<32x128xf32, #tpu.memory_space<vmem>>, %arg3: memref<1x128xf32, #tpu.memory_space<vmem>>, %arg4: memref<128x32xf32, #tpu.memory_space<vmem>>, %arg5: memref<1x32xf32, #tpu.memory_space<vmem>>, %arg6: memref<800x32xf32, #tpu.memory_space<vmem>>) attributes {dimension_semantics = [#tpu.dimension_semantics<parallel>], iteration_bounds = array<i64: 1>, scalar_prefetch = 0 : i64, scratch_operands = 0 : i64, tpu.core_type = #tpu.core_type<tc>, window_params = [{transform_indices = @transform_0, window_bounds = array<i64: 800, 32>}, {pipeline_mode = #tpu.pipeline_mode<synchronous>, transform_indices = @transform_1, window_bounds = array<i64: 32, 128>}, {pipeline_mode = #tpu.pipeline_mode<synchronous>, transform_indices = @transform_2, window_bounds = array<i64: 1, 128>}, {pipeline_mode = #tpu.pipeline_mode<synchronous>, transform_indices = @transform_3, window_bounds = array<i64: 128, 32>}, {pipeline_mode = #tpu.pipeline_mode<synchronous>, transform_indices = @transform_4, window_bounds = array<i64: 1, 32>}, {transform_indices = @transform_5, window_bounds = array<i64: 800, 32>}]} {
    %c0 = arith.constant 0 : index
    %c0_0 = arith.constant 0 : index
    %0 = vector.load %arg1[%c0, %c0_0] : memref<800x32xf32, #tpu.memory_space<vmem>>, vector<800x32xf32>
    %c0_1 = arith.constant 0 : index
    %c0_2 = arith.constant 0 : index
    %1 = vector.load %arg2[%c0_1, %c0_2] : memref<32x128xf32, #tpu.memory_space<vmem>>, vector<32x128xf32>
    %cst = arith.constant dense<0.000000e+00> : vector<800x128xf32>
    %2 = tpu.matmul %0, %1, %cst {dimension_numbers = #tpu.dot_dimension_numbers<[1], [0], [0], [1], [0, 0, 1, 1], [], []>} : vector<800x32xf32>, vector<32x128xf32>, vector<800x128xf32> -> vector<800x128xf32>
    %c0_3 = arith.constant 0 : index
    %c0_4 = arith.constant 0 : index
    %3 = vector.load %arg3[%c0_3, %c0_4] : memref<1x128xf32, #tpu.memory_space<vmem>>, vector<1x128xf32>
    %4 = vector.broadcast %3 : vector<1x128xf32> to vector<800x128xf32>
    %5 = arith.addf %2, %4 : vector<800x128xf32>
    %cst_5 = arith.constant 5.000000e-01 : f32
    %6 = vector.broadcast %cst_5 : f32 to vector<800x128xf32>
    %7 = arith.mulf %6, %5 : vector<800x128xf32>
    %cst_6 = arith.constant 1.41421354 : f32
    %8 = vector.broadcast %cst_6 : f32 to vector<800x128xf32>
    %9 = arith.divf %5, %8 : vector<800x128xf32>
    %cst_7 = arith.constant 0.000000e+00 : f32
    %10 = vector.broadcast %cst_7 : f32 to vector<800x128xf32>
    %11 = arith.cmpf oge, %9, %10 : vector<800x128xf32>
    %cst_8 = arith.constant 1.000000e+00 : f32
    %cst_9 = arith.constant -1.000000e+00 : f32
    %12 = vector.broadcast %cst_8 : f32 to vector<800x128xf32>
    %13 = vector.broadcast %cst_9 : f32 to vector<800x128xf32>
    %14 = arith.select %11, %12, %13 : vector<800x128xi1>, vector<800x128xf32>
    %15 = math.absf %9 : vector<800x128xf32>
    %cst_10 = arith.constant 0.327591091 : f32
    %16 = vector.broadcast %cst_10 : f32 to vector<800x128xf32>
    %17 = arith.mulf %16, %15 : vector<800x128xf32>
    %cst_11 = arith.constant 1.000000e+00 : f32
    %18 = vector.broadcast %cst_11 : f32 to vector<800x128xf32>
    %19 = arith.addf %18, %17 : vector<800x128xf32>
    %cst_12 = arith.constant 1.000000e+00 : f32
    %20 = vector.broadcast %cst_12 : f32 to vector<800x128xf32>
    %21 = arith.divf %20, %19 : vector<800x128xf32>
    %cst_13 = arith.constant 1.06140542 : f32
    %22 = vector.broadcast %cst_13 : f32 to vector<800x128xf32>
    %23 = arith.mulf %22, %21 : vector<800x128xf32>
    %cst_14 = arith.constant -1.45315206 : f32
    %24 = vector.broadcast %cst_14 : f32 to vector<800x128xf32>
    %25 = arith.addf %23, %24 : vector<800x128xf32>
    %26 = arith.mulf %25, %21 : vector<800x128xf32>
    %cst_15 = arith.constant 1.42141378 : f32
    %27 = vector.broadcast %cst_15 : f32 to vector<800x128xf32>
    %28 = arith.addf %26, %27 : vector<800x128xf32>
    %29 = arith.mulf %28, %21 : vector<800x128xf32>
    %cst_16 = arith.constant -0.284496725 : f32
    %30 = vector.broadcast %cst_16 : f32 to vector<800x128xf32>
    %31 = arith.addf %29, %30 : vector<800x128xf32>
    %32 = arith.mulf %31, %21 : vector<800x128xf32>
    %cst_17 = arith.constant 0.254829586 : f32
    %33 = vector.broadcast %cst_17 : f32 to vector<800x128xf32>
    %34 = arith.addf %32, %33 : vector<800x128xf32>
    %35 = arith.mulf %34, %21 : vector<800x128xf32>
    %cst_18 = arith.constant 0.000000e+00 : f32
    %36 = vector.broadcast %cst_18 : f32 to vector<800x128xf32>
    %37 = arith.subf %36, %15 : vector<800x128xf32>
    %38 = arith.mulf %37, %15 : vector<800x128xf32>
    %39 = math.exp %38 : vector<800x128xf32>
    %40 = arith.mulf %35, %39 : vector<800x128xf32>
    %cst_19 = arith.constant 1.000000e+00 : f32
    %41 = vector.broadcast %cst_19 : f32 to vector<800x128xf32>
    %42 = arith.subf %41, %40 : vector<800x128xf32>
    %43 = arith.mulf %14, %42 : vector<800x128xf32>
    %cst_20 = arith.constant 1.000000e+00 : f32
    %44 = vector.broadcast %cst_20 : f32 to vector<800x128xf32>
    %45 = arith.addf %44, %43 : vector<800x128xf32>
    %46 = arith.mulf %7, %45 : vector<800x128xf32>
    %c0_21 = arith.constant 0 : index
    %c0_22 = arith.constant 0 : index
    %47 = vector.load %arg4[%c0_21, %c0_22] : memref<128x32xf32, #tpu.memory_space<vmem>>, vector<128x32xf32>
    %cst_23 = arith.constant dense<0.000000e+00> : vector<800x32xf32>
    %48 = tpu.matmul %46, %47, %cst_23 {dimension_numbers = #tpu.dot_dimension_numbers<[1], [0], [0], [1], [0, 0, 1, 1], [], []>} : vector<800x128xf32>, vector<128x32xf32>, vector<800x32xf32> -> vector<800x32xf32>
    %c0_24 = arith.constant 0 : index
    %c0_25 = arith.constant 0 : index
    %49 = vector.load %arg5[%c0_24, %c0_25] : memref<1x32xf32, #tpu.memory_space<vmem>>, vector<1x32xf32>
    %50 = vector.broadcast %49 : vector<1x32xf32> to vector<800x32xf32>
    %51 = arith.addf %48, %50 : vector<800x32xf32>
    %c0_26 = arith.constant 0 : index
    %c0_27 = arith.constant 0 : index
    %52 = vector.load %arg6[%c0_26, %c0_27] : memref<800x32xf32, #tpu.memory_space<vmem>>, vector<800x32xf32>
    tpu.vector_store %arg6[%c0_26, %c0_27], %51 {strides = array<i32>} : memref<800x32xf32, #tpu.memory_space<vmem>>, vector<800x32xf32>,
    return
  }
  func.func @transform_0(%arg0: i32) -> (i32, i32) {
    %c0_i32 = arith.constant 0 : i32
    %c0_i32_0 = arith.constant 0 : i32
    return %arg0, %c0_i32 : i32, i32
  }
  func.func @transform_1(%arg0: i32) -> (i32, i32) {
    %c0_i32 = arith.constant 0 : i32
    %c0_i32_0 = arith.constant 0 : i32
    %c0_i32_1 = arith.constant 0 : i32
    return %c0_i32, %c0_i32_0 : i32, i32
  }
  func.func @transform_2(%arg0: i32) -> (i32, i32) {
    %c0_i32 = arith.constant 0 : i32
    %c0_i32_0 = arith.constant 0 : i32
    %c0_i32_1 = arith.constant 0 : i32
    return %c0_i32, %c0_i32_0 : i32, i32
  }
  func.func @transform_3(%arg0: i32) -> (i32, i32) {
    %c0_i32 = arith.constant 0 : i32
    %c0_i32_0 = arith.constant 0 : i32
    %c0_i32_1 = arith.constant 0 : i32
    return %c0_i32, %c0_i32_0 : i32, i32
  }
  func.func @transform_4(%arg0: i32) -> (i32, i32) {
    %c0_i32 = arith.constant 0 : i32
    %c0_i32_0 = arith.constant 0 : i32
    %c0_i32_1 = arith.constant 0 : i32
    return %c0_i32, %c0_i32_0 : i32, i32
  }
  func.func @transform_5(%arg0: i32) -> (i32, i32) {
    %c0_i32 = arith.constant 0 : i32
    %c0_i32_0 = arith.constant 0 : i32
    return %arg0, %c0_i32 : i32, i32
  }
}

</mosaic_0001>

<llo_original>
// kernel: fno2d_encoder_forward.7
$region0: #{fno2d_encoder_forward.7}
  #allocation0 [shape = 'u32[]', space=smem, size = 0x4, offset = 0x4, fixed_abs, tag = 'smem constant byte address 0x4 - core index']
  #allocation1 [shape = 'u32[144,128]{1,0:T(1,128)}', space=vmem, size = 0x12000, scoped, tag = 'internal scratch']
  %s0 = inlined_call_operand.vmem [shape: f32[512,3], index: 0, kind: input, shape index: {}]
  %s1 = inlined_call_operand.vmem [shape: f32[3,32], index: 1, kind: input, shape index: {}]
  %s2 = inlined_call_operand.vmem [shape: f32[1,32], index: 2, kind: input, shape index: {}]
  %s3 = inlined_call_operand.vmem [shape: f32[512,32], index: 3, kind: output, shape index: {}]
  %s4 = sld [smem:[#allocation0]]
  $region22: #{fno2d_encoder_forward.7} parent=0
    _
  %s6 = ssub.s32 1, %s4
  %s7 = scalar_select 0, %s6, %s4
  // Predicated region
  $region2: #{fno2d_encoder_forward.7} parent=0 // pred_check
    _
  $region3: #{fno2d_encoder_forward.7} parent=0 // pred_check_branch
    %9 = sbr.rel (0) target = $region5
  $region4: #{fno2d_encoder_forward.7} parent=0 // pred_region
    _
  $region5: #{fno2d_encoder_forward.7} parent=0 // pred_fallthru
    _
  // Predicated region
  $region6: #{fno2d_encoder_forward.7} parent=0 // pred_check
    _
  $region7: #{fno2d_encoder_forward.7} parent=0 // pred_check_branch
    %11 = sbr.rel (0) target = $region9
  $region8: #{fno2d_encoder_forward.7} parent=0 // pred_region
    _
  $region9: #{fno2d_encoder_forward.7} parent=0 // pred_fallthru
    _
  // Predicated region
  $region10: #{fno2d_encoder_forward.7} parent=0 // pred_check
    _
  $region11: #{fno2d_encoder_forward.7} parent=0 // pred_check_branch
    %13 = sbr.rel (0) target = $region13
  $region12: #{fno2d_encoder_forward.7} parent=0 // pred_region
    _
  $region13: #{fno2d_encoder_forward.7} parent=0 // pred_fallthru
    _
  %v14 = vld [vmem:[%s0] sm:$0xff]
  %v15 = vld [vmem:[%s0 + $0x8] sm:$0xff]
  %v16 = vld [vmem:[%s0 + $0x10] sm:$0xff]
  %v17 = vld [vmem:[%s0 + $0x18] sm:$0xff]
  %v18 = vld [vmem:[%s0 + $0x20] sm:$0xff]
  %v19 = vld [vmem:[%s0 + $0x28] sm:$0xff]
  %v20 = vld [vmem:[%s0 + $0x30] sm:$0xff]
  %v21 = vld [vmem:[%s0 + $0x38] sm:$0xff]
  %v22 = vld [vmem:[%s0 + $0x40] sm:$0xff]
  %v23 = vld [vmem:[%s0 + $0x48] sm:$0xff]
  %v24 = vld [vmem:[%s0 + $0x50] sm:$0xff]
  %v25 = vld [vmem:[%s0 + $0x58] sm:$0xff]
  %v26 = vld [vmem:[%s0 + $0x60] sm:$0xff]
  %v27 = vld [vmem:[%s0 + $0x68] sm:$0xff]
  %v28 = vld [vmem:[%s0 + $0x70] sm:$0xff]
  %v29 = vld [vmem:[%s0 + $0x78] sm:$0xff]
  %v30 = vld [vmem:[%s0 + $0x80] sm:$0xff]
  %v31 = vld [vmem:[%s0 + $0x88] sm:$0xff]
  %v32 = vld [vmem:[%s0 + $0x90] sm:$0xff]
  %v33 = vld [vmem:[%s0 + $0x98] sm:$0xff]
  %v34 = vld [vmem:[%s0 + $0xa0] sm:$0xff]
  %v35 = vld [vmem:[%s0 + $0xa8] sm:$0xff]
  %v36 = vld [vmem:[%s0 + $0xb0] sm:$0xff]
  %v37 = vld [vmem:[%s0 + $0xb8] sm:$0xff]
  %v38 = vld [vmem:[%s0 + $0xc0] sm:$0xff]
  %v39 = vld [vmem:[%s0 + $0xc8] sm:$0xff]
  %v40 = vld [vmem:[%s0 + $0xd0] sm:$0xff]
  %v41 = vld [vmem:[%s0 + $0xd8] sm:$0xff]
  %v42 = vld [vmem:[%s0 + $0xe0] sm:$0xff]
  %v43 = vld [vmem:[%s0 + $0xe8] sm:$0xff]
  %v44 = vld [vmem:[%s0 + $0xf0] sm:$0xff]
  %v45 = vld [vmem:[%s0 + $0xf8] sm:$0xff]
  %v46 = vld [vmem:[%s0 + $0x100] sm:$0xff]
  %v47 = vld [vmem:[%s0 + $0x108] sm:$0xff]
  %v48 = vld [vmem:[%s0 + $0x110] sm:$0xff]
  %v49 = vld [vmem:[%s0 + $0x118] sm:$0xff]
  %v50 = vld [vmem:[%s0 + $0x120] sm:$0xff]
  %v51 = vld [vmem:[%s0 + $0x128] sm:$0xff]
  %v52 = vld [vmem:[%s0 + $0x130] sm:$0xff]
  %v53 = vld [vmem:[%s0 + $0x138] sm:$0xff]
  %v54 = vld [vmem:[%s0 + $0x140] sm:$0xff]
  %v55 = vld [vmem:[%s0 + $0x148] sm:$0xff]
  %v56 = vld [vmem:[%s0 + $0x150] sm:$0xff]
  %v57 = vld [vmem:[%s0 + $0x158] sm:$0xff]
  %v58 = vld [vmem:[%s0 + $0x160] sm:$0xff]
  %v59 = vld [vmem:[%s0 + $0x168] sm:$0xff]
  %v60 = vld [vmem:[%s0 + $0x170] sm:$0xff]
  %v61 = vld [vmem:[%s0 + $0x178] sm:$0xff]
  %v62 = vld [vmem:[%s0 + $0x180] sm:$0xff]
  %v63 = vld [vmem:[%s0 + $0x188] sm:$0xff]
  %v64 = vld [vmem:[%s0 + $0x190] sm:$0xff]
  %v65 = vld [vmem:[%s0 + $0x198] sm:$0xff]
  %v66 = vld [vmem:[%s0 + $0x1a0] sm:$0xff]
  %v67 = vld [vmem:[%s0 + $0x1a8] sm:$0xff]
  %v68 = vld [vmem:[%s0 + $0x1b0] sm:$0xff]
  %v69 = vld [vmem:[%s0 + $0x1b8] sm:$0xff]
  %v70 = vld [vmem:[%s0 + $0x1c0] sm:$0xff]
  %v71 = vld [vmem:[%s0 + $0x1c8] sm:$0xff]
  %v72 = vld [vmem:[%s0 + $0x1d0] sm:$0xff]
  %v73 = vld [vmem:[%s0 + $0x1d8] sm:$0xff]
  %v74 = vld [vmem:[%s0 + $0x1e0] sm:$0xff]
  %v75 = vld [vmem:[%s0 + $0x1e8] sm:$0xff]
  %v76 = vld [vmem:[%s0 + $0x1f0] sm:$0xff]
  %v77 = vld [vmem:[%s0 + $0x1f8] sm:$0xff]
  %v78 = vld [vmem:[%s1] sm:$0x7]
  %v79 = vld [vmem:[%s2] sm:$0x1]
  %v81 = vlaneseq
  %v82 = vshrl.u32 %v81, 7
  %v83 = vsub.s32 0, %v82
  %v84 = vrot.slane %v79, %v83
  %vm86 = vcmask 23552
  %v88 = vsel %vm86, %v14, 0
  %v91 = vsel %vm86, %v15, 0
  %v94 = vsel %vm86, %v16, 0
  %v97 = vsel %vm86, %v17, 0
  %v100 = vsel %vm86, %v18, 0
  %v103 = vsel %vm86, %v19, 0
  %v106 = vsel %vm86, %v20, 0
  %v109 = vsel %vm86, %v21, 0
  %v112 = vsel %vm86, %v22, 0
  %v115 = vsel %vm86, %v23, 0
  %v118 = vsel %vm86, %v24, 0
  %v121 = vsel %vm86, %v25, 0
  %v124 = vsel %vm86, %v26, 0
  %v127 = vsel %vm86, %v27, 0
  %v130 = vsel %vm86, %v28, 0
  %v133 = vsel %vm86, %v29, 0
  %v136 = vsel %vm86, %v30, 0
  %v139 = vsel %vm86, %v31, 0
  %v142 = vsel %vm86, %v32, 0
  %v145 = vsel %vm86, %v33, 0
  %v148 = vsel %vm86, %v34, 0
  %v151 = vsel %vm86, %v35, 0
  %v154 = vsel %vm86, %v36, 0
  %v157 = vsel %vm86, %v37, 0
  %v160 = vsel %vm86, %v38, 0
  %v163 = vsel %vm86, %v39, 0
  %v166 = vsel %vm86, %v40, 0
  %v169 = vsel %vm86, %v41, 0
  %v172 = vsel %vm86, %v42, 0
  %v175 = vsel %vm86, %v43, 0
  %v178 = vsel %vm86, %v44, 0
  %v181 = vsel %vm86, %v45, 0
  %v184 = vsel %vm86, %v46, 0
  %v187 = vsel %vm86, %v47, 0
  %v190 = vsel %vm86, %v48, 0
  %v193 = vsel %vm86, %v49, 0
  %v196 = vsel %vm86, %v50, 0
  %v199 = vsel %vm86, %v51, 0
  %v202 = vsel %vm86, %v52, 0
  %v205 = vsel %vm86, %v53, 0
  %v208 = vsel %vm86, %v54, 0
  %v211 = vsel %vm86, %v55, 0
  %v214 = vsel %vm86, %v56, 0
  %v217 = vsel %vm86, %v57, 0
  %v220 = vsel %vm86, %v58, 0
  %v223 = vsel %vm86, %v59, 0
  %v226 = vsel %vm86, %v60, 0
  %v229 = vsel %vm86, %v61, 0
  %v232 = vsel %vm86, %v62, 0
  %v235 = vsel %vm86, %v63, 0
  %v238 = vsel %vm86, %v64, 0
  %v241 = vsel %vm86, %v65, 0
  %v244 = vsel %vm86, %v66, 0
  %v247 = vsel %vm86, %v67, 0
  %v250 = vsel %vm86, %v68, 0
  %v253 = vsel %vm86, %v69, 0
  %v256 = vsel %vm86, %v70, 0
  %v259 = vsel %vm86, %v71, 0
  %v262 = vsel %vm86, %v72, 0
  %v265 = vsel %vm86, %v73, 0
  %v268 = vsel %vm86, %v74, 0
  %v271 = vsel %vm86, %v75, 0
  %v274 = vsel %vm86, %v76, 0
  %v277 = vsel %vm86, %v77, 0
  %vm279 = vcmask 1042432
  %v281 = vsel %vm279, %v78, 0
  %283 = vmatprep.subr.mxu0 0.0
  %284 = vmatpush1.msra.mxu0 %v281
  %285 = vmatprep.subr.mxu0 0.0
  %286 = vmatpush1.msra.mxu0 0.0
  %287 = vmatprep.subr.mxu0 0.0
  %288 = vmatpush1.msra.mxu0 0.0
  %289 = vmatprep.subr.mxu0 0.0
  %290 = vmatpush1.msra.mxu0 0.0
  %291 = vmatprep.subr.mxu0 0.0
  %292 = vmatpush1.msra.mxu0 0.0
  %293 = vmatprep.subr.mxu0 0.0
  %294 = vmatpush1.msra.mxu0 0.0
  %295 = vmatprep.subr.mxu0 0.0
  %296 = vmatpush1.msra.mxu0 0.0
  %297 = vmatprep.subr.mxu0 0.0
  %298 = vmatpush1.msra.mxu0 0.0
  %299 = vmatprep.subr.mxu0 0.0
  %300 = vmatpush1.msra.mxu0 0.0
  %301 = vmatprep.subr.mxu0 0.0
  %302 = vmatpush1.msra.mxu0 0.0
  %303 = vmatprep.subr.mxu0 0.0
  %304 = vmatpush1.msra.mxu0 0.0
  %305 = vmatprep.subr.mxu0 0.0
  %306 = vmatpush1.msra.mxu0 0.0
  %307 = vmatprep.subr.mxu0 0.0
  %308 = vmatpush1.msra.mxu0 0.0
  %309 = vmatprep.subr.mxu0 0.0
  %310 = vmatpush1.msra.mxu0 0.0
  %311 = vmatprep.subr.mxu0 0.0
  %312 = vmatpush1.msra.mxu0 0.0
  %313 = vmatprep.subr.mxu0 0.0
  %314 = vmatpush1.msra.mxu0 0.0
  %315 = vmatprep.subr.mxu0 0.0
  %316 = vmatpush1.msra.mxu0 0.0
  %317 = vmatprep.subr.mxu0 0.0
  %318 = vmatpush1.msra.mxu0 0.0
  %319 = vmatprep.subr.mxu0 0.0
  %320 = vmatpush1.msra.mxu0 0.0
  %321 = vmatprep.subr.mxu0 0.0
  %322 = vmatpush1.msra.mxu0 0.0
  %323 = vmatprep.subr.mxu0 0.0
  %324 = vmatpush1.msra.mxu0 0.0
  %325 = vmatprep.subr.mxu0 0.0
  %326 = vmatpush1.msra.mxu0 0.0
  %327 = vmatprep.subr.mxu0 0.0
  %328 = vmatpush1.msra.mxu0 0.0
  %329 = vmatprep.subr.mxu0 0.0
  %330 = vmatpush1.msra.mxu0 0.0
  %331 = vmatprep.subr.mxu0 0.0
  %332 = vmatpush1.msra.mxu0 0.0
  %333 = vmatprep.subr.mxu0 0.0
  %334 = vmatpush1.msra.mxu0 0.0
  %335 = vmatprep.subr.mxu0 0.0
  %336 = vmatpush1.msra.mxu0 0.0
  %337 = vmatprep.subr.mxu0 0.0
  %338 = vmatpush1.msra.mxu0 0.0
  %339 = vmatprep.subr.mxu0 0.0
  %340 = vmatpush1.msra.mxu0 0.0
  %341 = vmatprep.subr.mxu0 0.0
  %342 = vmatpush1.msra.mxu0 0.0
  %343 = vmatprep.subr.mxu0 0.0
  %344 = vmatpush1.msra.mxu0 0.0
  %345 = vmatprep.subr.mxu0 0.0
  %346 = vmatpush1.msra.mxu0 0.0
  %347 = vmatprep.mubr.f32.mxu0 0.0
  %348 = vmatmul.mubr.f32.gmra.mrb[0].mxu0 %v88
  %v349 = vpop.f32.mrb[0].mxu0
  %v350 = vadd.f32 %v84, %v349
  %v351 = vpop.f32.mrb[0].mxu0
  %352 = vmatprep.mubr.f32.mxu0 0.0
  %353 = vmatmul.mubr.f32.gmra.mrb[0].mxu0 %v91
  %v354 = vpop.f32.mrb[0].mxu0
  %v355 = vadd.f32 %v84, %v354
  %v356 = vpop.f32.mrb[0].mxu0
  %357 = vmatprep.mubr.f32.mxu0 0.0
  %358 = vmatmul.mubr.f32.gmra.mrb[0].mxu0 %v94
  %v359 = vpop.f32.mrb[0].mxu0
  %v360 = vadd.f32 %v84, %v359
  %v361 = vpop.f32.mrb[0].mxu0
  %362 = vmatprep.mubr.f32.mxu0 0.0
  %363 = vmatmul.mubr.f32.gmra.mrb[0].mxu0 %v97
  %v364 = vpop.f32.mrb[0].mxu0
  %v365 = vadd.f32 %v84, %v364
  %v366 = vpop.f32.mrb[0].mxu0
  %367 = vmatprep.mubr.f32.mxu0 0.0
  %368 = vmatmul.mubr.f32.gmra.mrb[0].mxu0 %v100
  %v369 = vpop.f32.mrb[0].mxu0
  %v370 = vadd.f32 %v84, %v369
  %v371 = vpop.f32.mrb[0].mxu0
  %372 = vmatprep.mubr.f32.mxu0 0.0
  %373 = vmatmul.mubr.f32.gmra.mrb[0].mxu0 %v103
  %v374 = vpop.f32.mrb[0].mxu0
  %v375 = vadd.f32 %v84, %v374
  %v376 = vpop.f32.mrb[0].mxu0
  %377 = vmatprep.mubr.f32.mxu0 0.0
  %378 = vmatmul.mubr.f32.gmra.mrb[0].mxu0 %v106
  %v379 = vpop.f32.mrb[0].mxu0
  %v380 = vadd.f32 %v84, %v379
  %v381 = vpop.f32.mrb[0].mxu0
  %382 = vmatprep.mubr.f32.mxu0 0.0
  %383 = vmatmul.mubr.f32.gmra.mrb[0].mxu0 %v109
  %v384 = vpop.f32.mrb[0].mxu0
  %v385 = vadd.f32 %v84, %v384
  %v386 = vpop.f32.mrb[0].mxu0
  %387 = vmatprep.mubr.f32.mxu0 0.0
  %388 = vmatmul.mubr.f32.gmra.mrb[0].mxu0 %v112
  %v389 = vpop.f32.mrb[0].mxu0
  %v390 = vadd.f32 %v84, %v389
  %v391 = vpop.f32.mrb[0].mxu0
  %392 = vmatprep.mubr.f32.mxu0 0.0
  %393 = vmatmul.mubr.f32.gmra.mrb[0].mxu0 %v115
  %v394 = vpop.f32.mrb[0].mxu0
  %v395 = vadd.f32 %v84, %v394
  %v396 = vpop.f32.mrb[0].mxu0
  %397 = vmatprep.mubr.f32.mxu0 0.0
  %398 = vmatmul.mubr.f32.gmra.mrb[0].mxu0 %v118
  %v399 = vpop.f32.mrb[0].mxu0
  %v400 = vadd.f32 %v84, %v399
  %v401 = vpop.f32.mrb[0].mxu0
  %402 = vmatprep.mubr.f32.mxu0 0.0
  %403 = vmatmul.mubr.f32.gmra.mrb[0].mxu0 %v121
  %v404 = vpop.f32.mrb[0].mxu0
  %v405 = vadd.f32 %v84, %v404
  %v406 = vpop.f32.mrb[0].mxu0
  %407 = vmatprep.mubr.f32.mxu0 0.0
  %408 = vmatmul.mubr.f32.gmra.mrb[0].mxu0 %v124
  %v409 = vpop.f32.mrb[0].mxu0
  %v410 = vadd.f32 %v84, %v409
  %v411 = vpop.f32.mrb[0].mxu0
  %412 = vmatprep.mubr.f32.mxu0 0.0
  %413 = vmatmul.mubr.f32.gmra.mrb[0].mxu0 %v127
  %v414 = vpop.f32.mrb[0].mxu0
  %v415 = vadd.f32 %v84, %v414
  %v416 = vpop.f32.mrb[0].mxu0
  %417 = vmatprep.mubr.f32.mxu0 0.0
  %418 = vmatmul.mubr.f32.gmra.mrb[0].mxu0 %v130
  %v419 = vpop.f32.mrb[0].mxu0
  %v420 = vadd.f32 %v84, %v419
  %v421 = vpop.f32.mrb[0].mxu0
  %422 = vmatprep.mubr.f32.mxu0 0.0
  %423 = vmatmul.mubr.f32.gmra.mrb[0].mxu0 %v133
  %v424 = vpop.f32.mrb[0].mxu0
  %v425 = vadd.f32 %v84, %v424
  %v426 = vpop.f32.mrb[0].mxu0
  %427 = vmatprep.mubr.f32.mxu0 0.0
  %428 = vmatmul.mubr.f32.gmra.mrb[0].mxu0 %v136
  %v429 = vpop.f32.mrb[0].mxu0
  %v430 = vadd.f32 %v84, %v429
  %v431 = vpop.f32.mrb[0].mxu0
  %432 = vmatprep.mubr.f32.mxu0 0.0
  %433 = vmatmul.mubr.f32.gmra.mrb[0].mxu0 %v139
  %v434 = vpop.f32.mrb[0].mxu0
  %v435 = vadd.f32 %v84, %v434
  %v436 = vpop.f32.mrb[0].mxu0
  %437 = vmatprep.mubr.f32.mxu0 0.0
  %438 = vmatmul.mubr.f32.gmra.mrb[0].mxu0 %v142
  %v439 = vpop.f32.mrb[0].mxu0
  %v440 = vadd.f32 %v84, %v439
  %v441 = vpop.f32.mrb[0].mxu0
  %442 = vmatprep.mubr.f32.mxu0 0.0
  %443 = vmatmul.mubr.f32.gmra.mrb[0].mxu0 %v145
  %v444 = vpop.f32.mrb[0].mxu0
  %v445 = vadd.f32 %v84, %v444
  %v446 = vpop.f32.mrb[0].mxu0
  %447 = vmatprep.mubr.f32.mxu0 0.0
  %448 = vmatmul.mubr.f32.gmra.mrb[0].mxu0 %v148
  %v449 = vpop.f32.mrb[0].mxu0
  %v450 = vadd.f32 %v84, %v449
  %v451 = vpop.f32.mrb[0].mxu0
  %452 = vmatprep.mubr.f32.mxu0 0.0
  %453 = vmatmul.mubr.f32.gmra.mrb[0].mxu0 %v151
  %v454 = vpop.f32.mrb[0].mxu0
  %v455 = vadd.f32 %v84, %v454
  %v456 = vpop.f32.mrb[0].mxu0
  %457 = vmatprep.mubr.f32.mxu0 0.0
  %458 = vmatmul.mubr.f32.gmra.mrb[0].mxu0 %v154
  %v459 = vpop.f32.mrb[0].mxu0
  %v460 = vadd.f32 %v84, %v459
  %v461 = vpop.f32.mrb[0].mxu0
  %462 = vmatprep.mubr.f32.mxu0 0.0
  %463 = vmatmul.mubr.f32.gmra.mrb[0].mxu0 %v157
  %v464 = vpop.f32.mrb[0].mxu0
  %v465 = vadd.f32 %v84, %v464
  %v466 = vpop.f32.mrb[0].mxu0
  %467 = vmatprep.mubr.f32.mxu0 0.0
  %468 = vmatmul.mubr.f32.gmra.mrb[0].mxu0 %v160
  %v469 = vpop.f32.mrb[0].mxu0
  %v470 = vadd.f32 %v84, %v469
  %v471 = vpop.f32.mrb[0].mxu0
  %472 = vmatprep.mubr.f32.mxu0 0.0
  %473 = vmatmul.mubr.f32.gmra.mrb[0].mxu0 %v163
  %v474 = vpop.f32.mrb[0].mxu0
  %v475 = vadd.f32 %v84, %v474
  %v476 = vpop.f32.mrb[0].mxu0
  %477 = vmatprep.mubr.f32.mxu0 0.0
  %478 = vmatmul.mubr.f32.gmra.mrb[0].mxu0 %v166
  %v479 = vpop.f32.mrb[0].mxu0
  %v480 = vadd.f32 %v84, %v479
  %v481 = vpop.f32.mrb[0].mxu0
  %482 = vmatprep.mubr.f32.mxu0 0.0
  %483 = vmatmul.mubr.f32.gmra.mrb[0].mxu0 %v169
  %v484 = vpop.f32.mrb[0].mxu0
  %v485 = vadd.f32 %v84, %v484
  %v486 = vpop.f32.mrb[0].mxu0
  %487 = vmatprep.mubr.f32.mxu0 0.0
  %488 = vmatmul.mubr.f32.gmra.mrb[0].mxu0 %v172
  %v489 = vpop.f32.mrb[0].mxu0
  %v490 = vadd.f32 %v84, %v489
  %v491 = vpop.f32.mrb[0].mxu0
  %492 = vmatprep.mubr.f32.mxu0 0.0
  %493 = vmatmul.mubr.f32.gmra.mrb[0].mxu0 %v175
  %v494 = vpop.f32.mrb[0].mxu0
  %v495 = vadd.f32 %v84, %v494
  %v496 = vpop.f32.mrb[0].mxu0
  %497 = vmatprep.mubr.f32.mxu0 0.0
  %498 = vmatmul.mubr.f32.gmra.mrb[0].mxu0 %v178
  %v499 = vpop.f32.mrb[0].mxu0
  %v500 = vadd.f32 %v84, %v499
  %v501 = vpop.f32.mrb[0].mxu0
  %502 = vmatprep.mubr.f32.mxu0 0.0
  %503 = vmatmul.mubr.f32.gmra.mrb[0].mxu0 %v181
  %v504 = vpop.f32.mrb[0].mxu0
  %v505 = vadd.f32 %v84, %v504
  %v506 = vpop.f32.mrb[0].mxu0
  %507 = vmatprep.mubr.f32.mxu0 0.0
  %508 = vmatmul.mubr.f32.gmra.mrb[0].mxu0 %v184
  %v509 = vpop.f32.mrb[0].mxu0
  %v510 = vadd.f32 %v84, %v509
  %v511 = vpop.f32.mrb[0].mxu0
  %512 = vmatprep.mubr.f32.mxu0 0.0
  %513 = vmatmul.mubr.f32.gmra.mrb[0].mxu0 %v187
  %v514 = vpop.f32.mrb[0].mxu0
  %v515 = vadd.f32 %v84, %v514
  %v516 = vpop.f32.mrb[0].mxu0
  %517 = vmatprep.mubr.f32.mxu0 0.0
  %518 = vmatmul.mubr.f32.gmra.mrb[0].mxu0 %v190
  %v519 = vpop.f32.mrb[0].mxu0
  %v520 = vadd.f32 %v84, %v519
  %v521 = vpop.f32.mrb[0].mxu0
  %522 = vmatprep.mubr.f32.mxu0 0.0
  %523 = vmatmul.mubr.f32.gmra.mrb[0].mxu0 %v193
  %v524 = vpop.f32.mrb[0].mxu0
  %v525 = vadd.f32 %v84, %v524
  %v526 = vpop.f32.mrb[0].mxu0
  %527 = vmatprep.mubr.f32.mxu0 0.0
  %528 = vmatmul.mubr.f32.gmra.mrb[0].mxu0 %v196
  %v529 = vpop.f32.mrb[0].mxu0
  %v530 = vadd.f32 %v84, %v529
  %v531 = vpop.f32.mrb[0].mxu0
  %532 = vmatprep.mubr.f32.mxu0 0.0
  %533 = vmatmul.mubr.f32.gmra.mrb[0].mxu0 %v199
  %v534 = vpop.f32.mrb[0].mxu0
  %v535 = vadd.f32 %v84, %v534
  %v536 = vpop.f32.mrb[0].mxu0
  %537 = vmatprep.mubr.f32.mxu0 0.0
  %538 = vmatmul.mubr.f32.gmra.mrb[0].mxu0 %v202
  %v539 = vpop.f32.mrb[0].mxu0
  %v540 = vadd.f32 %v84, %v539
  %v541 = vpop.f32.mrb[0].mxu0
  %542 = vmatprep.mubr.f32.mxu0 0.0
  %543 = vmatmul.mubr.f32.gmra.mrb[0].mxu0 %v205
  %v544 = vpop.f32.mrb[0].mxu0
  %v545 = vadd.f32 %v84, %v544
  %v546 = vpop.f32.mrb[0].mxu0
  %547 = vmatprep.mubr.f32.mxu0 0.0
  %548 = vmatmul.mubr.f32.gmra.mrb[0].mxu0 %v208
  %v549 = vpop.f32.mrb[0].mxu0
  %v550 = vadd.f32 %v84, %v549
  %v551 = vpop.f32.mrb[0].mxu0
  %552 = vmatprep.mubr.f32.mxu0 0.0
  %553 = vmatmul.mubr.f32.gmra.mrb[0].mxu0 %v211
  %v554 = vpop.f32.mrb[0].mxu0
  %v555 = vadd.f32 %v84, %v554
  %v556 = vpop.f32.mrb[0].mxu0
  %557 = vmatprep.mubr.f32.mxu0 0.0
  %558 = vmatmul.mubr.f32.gmra.mrb[0].mxu0 %v214
  %v559 = vpop.f32.mrb[0].mxu0
  %v560 = vadd.f32 %v84, %v559
  %v561 = vpop.f32.mrb[0].mxu0
  %562 = vmatprep.mubr.f32.mxu0 0.0
  %563 = vmatmul.mubr.f32.gmra.mrb[0].mxu0 %v217
  %v564 = vpop.f32.mrb[0].mxu0
  %v565 = vadd.f32 %v84, %v564
  %v566 = vpop.f32.mrb[0].mxu0
  %567 = vmatprep.mubr.f32.mxu0 0.0
  %568 = vmatmul.mubr.f32.gmra.mrb[0].mxu0 %v220
  %v569 = vpop.f32.mrb[0].mxu0
  %v570 = vadd.f32 %v84, %v569
  %v571 = vpop.f32.mrb[0].mxu0
  %572 = vmatprep.mubr.f32.mxu0 0.0
  %573 = vmatmul.mubr.f32.gmra.mrb[0].mxu0 %v223
  %v574 = vpop.f32.mrb[0].mxu0
  %v575 = vadd.f32 %v84, %v574
  %v576 = vpop.f32.mrb[0].mxu0
  %577 = vmatprep.mubr.f32.mxu0 0.0
  %578 = vmatmul.mubr.f32.gmra.mrb[0].mxu0 %v226
  %v579 = vpop.f32.mrb[0].mxu0
  %v580 = vadd.f32 %v84, %v579
  %v581 = vpop.f32.mrb[0].mxu0
  %582 = vmatprep.mubr.f32.mxu0 0.0
  %583 = vmatmul.mubr.f32.gmra.mrb[0].mxu0 %v229
  %v584 = vpop.f32.mrb[0].mxu0
  %v585 = vadd.f32 %v84, %v584
  %v586 = vpop.f32.mrb[0].mxu0
  %587 = vmatprep.mubr.f32.mxu0 0.0
  %588 = vmatmul.mubr.f32.gmra.mrb[0].mxu0 %v232
  %v589 = vpop.f32.mrb[0].mxu0
  %v590 = vadd.f32 %v84, %v589
  %v591 = vpop.f32.mrb[0].mxu0
  %592 = vmatprep.mubr.f32.mxu0 0.0
  %593 = vmatmul.mubr.f32.gmra.mrb[0].mxu0 %v235
  %v594 = vpop.f32.mrb[0].mxu0
  %v595 = vadd.f32 %v84, %v594
  %v596 = vpop.f32.mrb[0].mxu0
  %597 = vmatprep.mubr.f32.mxu0 0.0
  %598 = vmatmul.mubr.f32.gmra.mrb[0].mxu0 %v238
  %v599 = vpop.f32.mrb[0].mxu0
  %v600 = vadd.f32 %v84, %v599
  %v601 = vpop.f32.mrb[0].mxu0
  %602 = vmatprep.mubr.f32.mxu0 0.0
  %603 = vmatmul.mubr.f32.gmra.mrb[0].mxu0 %v241
  %v604 = vpop.f32.mrb[0].mxu0
  %v605 = vadd.f32 %v84, %v604
  %v606 = vpop.f32.mrb[0].mxu0
  %607 = vmatprep.mubr.f32.mxu0 0.0
  %608 = vmatmul.mubr.f32.gmra.mrb[0].mxu0 %v244
  %v609 = vpop.f32.mrb[0].mxu0
  %v610 = vadd.f32 %v84, %v609
  %v611 = vpop.f32.mrb[0].mxu0
  %612 = vmatprep.mubr.f32.mxu0 0.0
  %613 = vmatmul.mubr.f32.gmra.mrb[0].mxu0 %v247
  %v614 = vpop.f32.mrb[0].mxu0
  %v615 = vadd.f32 %v84, %v614
  %v616 = vpop.f32.mrb[0].mxu0
  %617 = vmatprep.mubr.f32.mxu0 0.0
  %618 = vmatmul.mubr.f32.gmra.mrb[0].mxu0 %v250
  %v619 = vpop.f32.mrb[0].mxu0
  %v620 = vadd.f32 %v84, %v619
  %v621 = vpop.f32.mrb[0].mxu0
  %622 = vmatprep.mubr.f32.mxu0 0.0
  %623 = vmatmul.mubr.f32.gmra.mrb[0].mxu0 %v253
  %v624 = vpop.f32.mrb[0].mxu0
  %v625 = vadd.f32 %v84, %v624
  %v626 = vpop.f32.mrb[0].mxu0
  %627 = vmatprep.mubr.f32.mxu0 0.0
  %628 = vmatmul.mubr.f32.gmra.mrb[0].mxu0 %v256
  %v629 = vpop.f32.mrb[0].mxu0
  %v630 = vadd.f32 %v84, %v629
  %v631 = vpop.f32.mrb[0].mxu0
  %632 = vmatprep.mubr.f32.mxu0 0.0
  %633 = vmatmul.mubr.f32.gmra.mrb[0].mxu0 %v259
  %v634 = vpop.f32.mrb[0].mxu0
  %v635 = vadd.f32 %v84, %v634
  %v636 = vpop.f32.mrb[0].mxu0
  %637 = vmatprep.mubr.f32.mxu0 0.0
  %638 = vmatmul.mubr.f32.gmra.mrb[0].mxu0 %v262
  %v639 = vpop.f32.mrb[0].mxu0
  %v640 = vadd.f32 %v84, %v639
  %v641 = vpop.f32.mrb[0].mxu0
  %642 = vmatprep.mubr.f32.mxu0 0.0
  %643 = vmatmul.mubr.f32.gmra.mrb[0].mxu0 %v265
  %v644 = vpop.f32.mrb[0].mxu0
  %v645 = vadd.f32 %v84, %v644
  %v646 = vpop.f32.mrb[0].mxu0
  %647 = vmatprep.mubr.f32.mxu0 0.0
  %648 = vmatmul.mubr.f32.gmra.mrb[0].mxu0 %v268
  %v649 = vpop.f32.mrb[0].mxu0
  %v650 = vadd.f32 %v84, %v649
  %v651 = vpop.f32.mrb[0].mxu0
  %652 = vmatprep.mubr.f32.mxu0 0.0
  %653 = vmatmul.mubr.f32.gmra.mrb[0].mxu0 %v271
  %v654 = vpop.f32.mrb[0].mxu0
  %v655 = vadd.f32 %v84, %v654
  %v656 = vpop.f32.mrb[0].mxu0
  %657 = vmatprep.mubr.f32.mxu0 0.0
  %658 = vmatmul.mubr.f32.gmra.mrb[0].mxu0 %v274
  %v659 = vpop.f32.mrb[0].mxu0
  %v660 = vadd.f32 %v84, %v659
  %v661 = vpop.f32.mrb[0].mxu0
  %662 = vmatprep.mubr.f32.mxu0 0.0
  %663 = vmatmul.mubr.f32.gmra.mrb[0].mxu0 %v277
  %v664 = vpop.f32.mrb[0].mxu0
  %v665 = vadd.f32 %v84, %v664
  %v666 = vpop.f32.mrb[0].mxu0
  %667 = vdwg.mxu0
  %vm668 = vcmask 261120
  %669 = vst.msk [vmem:[%s3] sm:$0xff] %vm668, %v350
  %670 = vst.msk [vmem:[%s3 + $0x8] sm:$0xff] %vm668, %v355
  %671 = vst.msk [vmem:[%s3 + $0x10] sm:$0xff] %vm668, %v360
  %672 = vst.msk [vmem:[%s3 + $0x18] sm:$0xff] %vm668, %v365
  %673 = vst.msk [vmem:[%s3 + $0x20] sm:$0xff] %vm668, %v370
  %674 = vst.msk [vmem:[%s3 + $0x28] sm:$0xff] %vm668, %v375
  %675 = vst.msk [vmem:[%s3 + $0x30] sm:$0xff] %vm668, %v380
  %676 = vst.msk [vmem:[%s3 + $0x38] sm:$0xff] %vm668, %v385
  %677 = vst.msk [vmem:[%s3 + $0x40] sm:$0xff] %vm668, %v390
  %678 = vst.msk [vmem:[%s3 + $0x48] sm:$0xff] %vm668, %v395
  %679 = vst.msk [vmem:[%s3 + $0x50] sm:$0xff] %vm668, %v400
  %680 = vst.msk [vmem:[%s3 + $0x58] sm:$0xff] %vm668, %v405
  %681 = vst.msk [vmem:[%s3 + $0x60] sm:$0xff] %vm668, %v410
  %682 = vst.msk [vmem:[%s3 + $0x68] sm:$0xff] %vm668, %v415
  %683 = vst.msk [vmem:[%s3 + $0x70] sm:$0xff] %vm668, %v420
  %684 = vst.msk [vmem:[%s3 + $0x78] sm:$0xff] %vm668, %v425
  %685 = vst.msk [vmem:[%s3 + $0x80] sm:$0xff] %vm668, %v430
  %686 = vst.msk [vmem:[%s3 + $0x88] sm:$0xff] %vm668, %v435
  %687 = vst.msk [vmem:[%s3 + $0x90] sm:$0xff] %vm668, %v440
  %688 = vst.msk [vmem:[%s3 + $0x98] sm:$0xff] %vm668, %v445
  %689 = vst.msk [vmem:[%s3 + $0xa0] sm:$0xff] %vm668, %v450
  %690 = vst.msk [vmem:[%s3 + $0xa8] sm:$0xff] %vm668, %v455
  %691 = vst.msk [vmem:[%s3 + $0xb0] sm:$0xff] %vm668, %v460
  %692 = vst.msk [vmem:[%s3 + $0xb8] sm:$0xff] %vm668, %v465
  %693 = vst.msk [vmem:[%s3 + $0xc0] sm:$0xff] %vm668, %v470
  %694 = vst.msk [vmem:[%s3 + $0xc8] sm:$0xff] %vm668, %v475
  %695 = vst.msk [vmem:[%s3 + $0xd0] sm:$0xff] %vm668, %v480
  %696 = vst.msk [vmem:[%s3 + $0xd8] sm:$0xff] %vm668, %v485
  %697 = vst.msk [vmem:[%s3 + $0xe0] sm:$0xff] %vm668, %v490
  %698 = vst.msk [vmem:[%s3 + $0xe8] sm:$0xff] %vm668, %v495
  %699 = vst.msk [vmem:[%s3 + $0xf0] sm:$0xff] %vm668, %v500
  %700 = vst.msk [vmem:[%s3 + $0xf8] sm:$0xff] %vm668, %v505
  %701 = vst.msk [vmem:[%s3 + $0x100] sm:$0xff] %vm668, %v510
  %702 = vst.msk [vmem:[%s3 + $0x108] sm:$0xff] %vm668, %v515
  %703 = vst.msk [vmem:[%s3 + $0x110] sm:$0xff] %vm668, %v520
  %704 = vst.msk [vmem:[%s3 + $0x118] sm:$0xff] %vm668, %v525
  %705 = vst.msk [vmem:[%s3 + $0x120] sm:$0xff] %vm668, %v530
  %706 = vst.msk [vmem:[%s3 + $0x128] sm:$0xff] %vm668, %v535
  %707 = vst.msk [vmem:[%s3 + $0x130] sm:$0xff] %vm668, %v540
  %708 = vst.msk [vmem:[%s3 + $0x138] sm:$0xff] %vm668, %v545
  %709 = vst.msk [vmem:[%s3 + $0x140] sm:$0xff] %vm668, %v550
  %710 = vst.msk [vmem:[%s3 + $0x148] sm:$0xff] %vm668, %v555
  %711 = vst.msk [vmem:[%s3 + $0x150] sm:$0xff] %vm668, %v560
  %712 = vst.msk [vmem:[%s3 + $0x158] sm:$0xff] %vm668, %v565
  %713 = vst.msk [vmem:[%s3 + $0x160] sm:$0xff] %vm668, %v570
  %714 = vst.msk [vmem:[%s3 + $0x168] sm:$0xff] %vm668, %v575
  %715 = vst.msk [vmem:[%s3 + $0x170] sm:$0xff] %vm668, %v580
  %716 = vst.msk [vmem:[%s3 + $0x178] sm:$0xff] %vm668, %v585
  %717 = vst.msk [vmem:[%s3 + $0x180] sm:$0xff] %vm668, %v590
  %718 = vst.msk [vmem:[%s3 + $0x188] sm:$0xff] %vm668, %v595
  %719 = vst.msk [vmem:[%s3 + $0x190] sm:$0xff] %vm668, %v600
  %720 = vst.msk [vmem:[%s3 + $0x198] sm:$0xff] %vm668, %v605
  %721 = vst.msk [vmem:[%s3 + $0x1a0] sm:$0xff] %vm668, %v610
  %722 = vst.msk [vmem:[%s3 + $0x1a8] sm:$0xff] %vm668, %v615
  %723 = vst.msk [vmem:[%s3 + $0x1b0] sm:$0xff] %vm668, %v620
  %724 = vst.msk [vmem:[%s3 + $0x1b8] sm:$0xff] %vm668, %v625
  %725 = vst.msk [vmem:[%s3 + $0x1c0] sm:$0xff] %vm668, %v630
  %726 = vst.msk [vmem:[%s3 + $0x1c8] sm:$0xff] %vm668, %v635
  %727 = vst.msk [vmem:[%s3 + $0x1d0] sm:$0xff] %vm668, %v640
  %728 = vst.msk [vmem:[%s3 + $0x1d8] sm:$0xff] %vm668, %v645
  %729 = vst.msk [vmem:[%s3 + $0x1e0] sm:$0xff] %vm668, %v650
  %730 = vst.msk [vmem:[%s3 + $0x1e8] sm:$0xff] %vm668, %v655
  %731 = vst.msk [vmem:[%s3 + $0x1f0] sm:$0xff] %vm668, %v660
  %732 = vst.msk [vmem:[%s3 + $0x1f8] sm:$0xff] %vm668, %v665
  // Predicated region
  $region14: #{fno2d_encoder_forward.7} parent=0 // pred_check
    _
  $region15: #{fno2d_encoder_forward.7} parent=0 // pred_check_branch
    %734 = sbr.rel (0) target = $region17
  $region16: #{fno2d_encoder_forward.7} parent=0 // pred_region
    _
  $region17: #{fno2d_encoder_forward.7} parent=0 // pred_fallthru
    _
  // Predicated region
  $region18: #{fno2d_encoder_forward.7} parent=0 // pred_check
    _
  $region19: #{fno2d_encoder_forward.7} parent=0 // pred_check_branch
    %736 = sbr.rel (0) target = $region21
  $region20: #{fno2d_encoder_forward.7} parent=0 // pred_region
    _
  $region21: #{fno2d_encoder_forward.7} parent=0 // pred_fallthru
    _

// kernel: neg.5
$region0: #{neg.5}
  #allocation0 [shape = 's32[1]{0}', space=sflag, size = 0x4, scoped, tag = 'scoped memory for neg.5']
  %s0 = inlined_call_operand.vmem [shape: f32[8,32,32], index: 0, kind: input, shape index: {}]
  %s1 = inlined_call_operand.vmem [shape: f32[8,32,32], index: 1, kind: output, shape index: {}]
  %v2 = vld [vmem:[%s0] sm:$0xff]
  %3 = xla_tuple %v2
  %4 = xla_tuple %3
  %v5 = vxor.u32 %v2, 2147483648
  %6 = xla_tuple %v5
  %7 = vst [vmem:[%s1] sm:$0xff] %v5
  %s8 = scalar_lea.vmem %s0, 32
  %v9 = vld [vmem:[%s8] sm:$0xff]
  %10 = xla_tuple %v9
  %11 = xla_tuple %10
  %v12 = vxor.u32 %v9, 2147483648
  %13 = xla_tuple %v12
  %s14 = scalar_lea.vmem %s1, 32
  %15 = vst [vmem:[%s14] sm:$0xff] %v12
  %s16 = scalar_lea.vmem %s0, 64
  %v17 = vld [vmem:[%s16] sm:$0xff]
  %18 = xla_tuple %v17
  %19 = xla_tuple %18
  %v20 = vxor.u32 %v17, 2147483648
  %21 = xla_tuple %v20
  %s22 = scalar_lea.vmem %s1, 64
  %23 = vst [vmem:[%s22] sm:$0xff] %v20
  %s24 = scalar_lea.vmem %s0, 96
  %v25 = vld [vmem:[%s24] sm:$0xff]
  %26 = xla_tuple %v25
  %27 = xla_tuple %26
  %v28 = vxor.u32 %v25, 2147483648
  %29 = xla_tuple %v28
  %s30 = scalar_lea.vmem %s1, 96
  %31 = vst [vmem:[%s30] sm:$0xff] %v28
  %s32 = scalar_lea.vmem %s0, 128
  %v33 = vld [vmem:[%s32] sm:$0xff]
  %34 = xla_tuple %v33
  %35 = xla_tuple %34
  %v36 = vxor.u32 %v33, 2147483648
  %37 = xla_tuple %v36
  %s38 = scalar_lea.vmem %s1, 128
  %39 = vst [vmem:[%s38] sm:$0xff] %v36
  %s40 = scalar_lea.vmem %s0, 160
  %v41 = vld [vmem:[%s40] sm:$0xff]
  %42 = xla_tuple %v41
  %43 = xla_tuple %42
  %v44 = vxor.u32 %v41, 2147483648
  %45 = xla_tuple %v44
  %s46 = scalar_lea.vmem %s1, 160
  %47 = vst [vmem:[%s46] sm:$0xff] %v44
  %s48 = scalar_lea.vmem %s0, 192
  %v49 = vld [vmem:[%s48] sm:$0xff]
  %50 = xla_tuple %v49
  %51 = xla_tuple %50
  %v52 = vxor.u32 %v49, 2147483648
  %53 = xla_tuple %v52
  %s54 = scalar_lea.vmem %s1, 192
  %55 = vst [vmem:[%s54] sm:$0xff] %v52
  %s56 = scalar_lea.vmem %s0, 224
  %v57 = vld [vmem:[%s56] sm:$0xff]
  %58 = xla_tuple %v57
  %59 = xla_tuple %58
  %v60 = vxor.u32 %v57, 2147483648
  %61 = xla_tuple %v60
  %s62 = scalar_lea.vmem %s1, 224
  %63 = vst [vmem:[%s62] sm:$0xff] %v60
  %s64 = scalar_lea.vmem %s0, 8
  %v65 = vld [vmem:[%s64] sm:$0xff]
  %66 = xla_tuple %v65
  %67 = xla_tuple %66
  %v68 = vxor.u32 %v65, 2147483648
  %69 = xla_tuple %v68
  %s70 = scalar_lea.vmem %s1, 8
  %71 = vst [vmem:[%s70] sm:$0xff] %v68
  %s72 = scalar_lea.vmem %s0, 40
  %v73 = vld [vmem:[%s72] sm:$0xff]
  %74 = xla_tuple %v73
  %75 = xla_tuple %74
  %v76 = vxor.u32 %v73, 2147483648
  %77 = xla_tuple %v76
  %s78 = scalar_lea.vmem %s1, 40
  %79 = vst [vmem:[%s78] sm:$0xff] %v76
  %s80 = scalar_lea.vmem %s0, 72
  %v81 = vld [vmem:[%s80] sm:$0xff]
  %82 = xla_tuple %v81
  %83 = xla_tuple %82
  %v84 = vxor.u32 %v81, 2147483648
  %85 = xla_tuple %v84
  %s86 = scalar_lea.vmem %s1, 72
  %87 = vst [vmem:[%s86] sm:$0xff] %v84
  %s88 = scalar_lea.vmem %s0, 104
  %v89 = vld [vmem:[%s88] sm:$0xff]
  %90 = xla_tuple %v89
  %91 = xla_tuple %90
  %v92 = vxor.u32 %v89, 2147483648
  %93 = xla_tuple %v92
  %s94 = scalar_lea.vmem %s1, 104
  %95 = vst [vmem:[%s94] sm:$0xff] %v92
  %s96 = scalar_lea.vmem %s0, 136
  %v97 = vld [vmem:[%s96] sm:$0xff]
  %98 = xla_tuple %v97
  %99 = xla_tuple %98
  %v100 = vxor.u32 %v97, 2147483648
  %101 = xla_tuple %v100
  %s102 = scalar_lea.vmem %s1, 136
  %103 = vst [vmem:[%s102] sm:$0xff] %v100
  %s104 = scalar_lea.vmem %s0, 168
  %v105 = vld [vmem:[%s104] sm:$0xff]
  %106 = xla_tuple %v105
  %107 = xla_tuple %106
  %v108 = vxor.u32 %v105, 2147483648
  %109 = xla_tuple %v108
  %s110 = scalar_lea.vmem %s1, 168
  %111 = vst [vmem:[%s110] sm:$0xff] %v108
  %s112 = scalar_lea.vmem %s0, 200
  %v113 = vld [vmem:[%s112] sm:$0xff]
  %114 = xla_tuple %v113
  %115 = xla_tuple %114
  %v116 = vxor.u32 %v113, 2147483648
  %117 = xla_tuple %v116
  %s118 = scalar_lea.vmem %s1, 200
  %119 = vst [vmem:[%s118] sm:$0xff] %v116
  %s120 = scalar_lea.vmem %s0, 232
  %v121 = vld [vmem:[%s120] sm:$0xff]
  %122 = xla_tuple %v121
  %123 = xla_tuple %122
  %v124 = vxor.u32 %v121, 2147483648
  %125 = xla_tuple %v124
  %s126 = scalar_lea.vmem %s1, 232
  %127 = vst [vmem:[%s126] sm:$0xff] %v124
  %s128 = scalar_lea.vmem %s0, 16
  %v129 = vld [vmem:[%s128] sm:$0xff]
  %130 = xla_tuple %v129
  %131 = xla_tuple %130
  %v132 = vxor.u32 %v129, 2147483648
  %133 = xla_tuple %v132
  %s134 = scalar_lea.vmem %s1, 16
  %135 = vst [vmem:[%s134] sm:$0xff] %v132
  %s136 = scalar_lea.vmem %s0, 48
  %v137 = vld [vmem:[%s136] sm:$0xff]
  %138 = xla_tuple %v137
  %139 = xla_tuple %138
  %v140 = vxor.u32 %v137, 2147483648
  %141 = xla_tuple %v140
  %s142 = scalar_lea.vmem %s1, 48
  %143 = vst [vmem:[%s142] sm:$0xff] %v140
  %s144 = scalar_lea.vmem %s0, 80
  %v145 = vld [vmem:[%s144] sm:$0xff]
  %146 = xla_tuple %v145
  %147 = xla_tuple %146
  %v148 = vxor.u32 %v145, 2147483648
  %149 = xla_tuple %v148
  %s150 = scalar_lea.vmem %s1, 80
  %151 = vst [vmem:[%s150] sm:$0xff] %v148
  %s152 = scalar_lea.vmem %s0, 112
  %v153 = vld [vmem:[%s152] sm:$0xff]
  %154 = xla_tuple %v153
  %155 = xla_tuple %154
  %v156 = vxor.u32 %v153, 2147483648
  %157 = xla_tuple %v156
  %s158 = scalar_lea.vmem %s1, 112
  %159 = vst [vmem:[%s158] sm:$0xff] %v156
  %s160 = scalar_lea.vmem %s0, 144
  %v161 = vld [vmem:[%s160] sm:$0xff]
  %162 = xla_tuple %v161
  %163 = xla_tuple %162
  %v164 = vxor.u32 %v161, 2147483648
  %165 = xla_tuple %v164
  %s166 = scalar_lea.vmem %s1, 144
  %167 = vst [vmem:[%s166] sm:$0xff] %v164
  %s168 = scalar_lea.vmem %s0, 176
  %v169 = vld [vmem:[%s168] sm:$0xff]
  %170 = xla_tuple %v169
  %171 = xla_tuple %170
  %v172 = vxor.u32 %v169, 2147483648
  %173 = xla_tuple %v172
  %s174 = scalar_lea.vmem %s1, 176
  %175 = vst [vmem:[%s174] sm:$0xff] %v172
  %s176 = scalar_lea.vmem %s0, 208
  %v177 = vld [vmem:[%s176] sm:$0xff]
  %178 = xla_tuple %v177
  %179 = xla_tuple %178
  %v180 = vxor.u32 %v177, 2147483648
  %181 = xla_tuple %v180
  %s182 = scalar_lea.vmem %s1, 208
  %183 = vst [vmem:[%s182] sm:$0xff] %v180
  %s184 = scalar_lea.vmem %s0, 240
  %v185 = vld [vmem:[%s184] sm:$0xff]
  %186 = xla_tuple %v185
  %187 = xla_tuple %186
  %v188 = vxor.u32 %v185, 2147483648
  %189 = xla_tuple %v188
  %s190 = scalar_lea.vmem %s1, 240
  %191 = vst [vmem:[%s190] sm:$0xff] %v188
  %s192 = scalar_lea.vmem %s0, 24
  %v193 = vld [vmem:[%s192] sm:$0xff]
  %194 = xla_tuple %v193
  %195 = xla_tuple %194
  %v196 = vxor.u32 %v193, 2147483648
  %197 = xla_tuple %v196
  %s198 = scalar_lea.vmem %s1, 24
  %199 = vst [vmem:[%s198] sm:$0xff] %v196
  %s200 = scalar_lea.vmem %s0, 56
  %v201 = vld [vmem:[%s200] sm:$0xff]
  %202 = xla_tuple %v201
  %203 = xla_tuple %202
  %v204 = vxor.u32 %v201, 2147483648
  %205 = xla_tuple %v204
  %s206 = scalar_lea.vmem %s1, 56
  %207 = vst [vmem:[%s206] sm:$0xff] %v204
  %s208 = scalar_lea.vmem %s0, 88
  %v209 = vld [vmem:[%s208] sm:$0xff]
  %210 = xla_tuple %v209
  %211 = xla_tuple %210
  %v212 = vxor.u32 %v209, 2147483648
  %213 = xla_tuple %v212
  %s214 = scalar_lea.vmem %s1, 88
  %215 = vst [vmem:[%s214] sm:$0xff] %v212
  %s216 = scalar_lea.vmem %s0, 120
  %v217 = vld [vmem:[%s216] sm:$0xff]
  %218 = xla_tuple %v217
  %219 = xla_tuple %218
  %v220 = vxor.u32 %v217, 2147483648
  %221 = xla_tuple %v220
  %s222 = scalar_lea.vmem %s1, 120
  %223 = vst [vmem:[%s222] sm:$0xff] %v220
  %s224 = scalar_lea.vmem %s0, 152
  %v225 = vld [vmem:[%s224] sm:$0xff]
  %226 = xla_tuple %v225
  %227 = xla_tuple %226
  %v228 = vxor.u32 %v225, 2147483648
  %229 = xla_tuple %v228
  %s230 = scalar_lea.vmem %s1, 152
  %231 = vst [vmem:[%s230] sm:$0xff] %v228
  %s232 = scalar_lea.vmem %s0, 184
  %v233 = vld [vmem:[%s232] sm:$0xff]
  %234 = xla_tuple %v233
  %235 = xla_tuple %234
  %v236 = vxor.u32 %v233, 2147483648
  %237 = xla_tuple %v236
  %s238 = scalar_lea.vmem %s1, 184
  %239 = vst [vmem:[%s238] sm:$0xff] %v236
  %s240 = scalar_lea.vmem %s0, 216
  %v241 = vld [vmem:[%s240] sm:$0xff]
  %242 = xla_tuple %v241
  %243 = xla_tuple %242
  %v244 = vxor.u32 %v241, 2147483648
  %245 = xla_tuple %v244
  %s246 = scalar_lea.vmem %s1, 216
  %247 = vst [vmem:[%s246] sm:$0xff] %v244
  %s248 = scalar_lea.vmem %s0, 248
  %v249 = vld [vmem:[%s248] sm:$0xff]
  %250 = xla_tuple %v249
  %251 = xla_tuple %250
  %v252 = vxor.u32 %v249, 2147483648
  %253 = xla_tuple %v252
  %s254 = scalar_lea.vmem %s1, 248
  %255 = vst [vmem:[%s254] sm:$0xff] %v252

// kernel: reverse.11
$region0: #{reverse.11}
  %s0 = inlined_call_operand.vmem [shape: f32[2,20,32,9], index: 0, kind: input, shape index: {}]
  %s1 = inlined_call_operand.vmem [shape: f32[2,20,32,9], index: 1, kind: output, shape index: {}]
  $region1: #{reverse.11} parent=0
    #allocation0 [shape = 'u8[491520]{0}', space=vmem, size = 0x78000, scoped, tag = 'operand span for operand 0']
    #allocation1 [shape = 'u8[327680]{0}', space=vmem, size = 0x50000, scoped, tag = 'operand span for operand 1']
    %s2 = scalar_lea.vmem [#allocation0], 8
    // Predicated region
    $region2: #{reverse.11} parent=1 // pred_check
      _
    $region3: #{reverse.11} parent=1 // pred_check_branch
      %4 = sbr.rel (0) target = $region5
    $region4: #{reverse.11} parent=1 // pred_region
      // Predicated region
      $region6: #{reverse.11} parent=4 // pred_check
        _
      $region7: #{reverse.11} parent=4 // pred_check_branch
        %6 = sbr.rel (0) target = $region9
      $region8: #{reverse.11} parent=4 // pred_region
        // Predicated region
        $region21: #{reverse.11} parent=8 // pred_check
          _
        $region22: #{reverse.11} parent=8 // pred_check_branch
          %179 = sbr.rel (0) target = $region24
        $region23: #{reverse.11} parent=8 // pred_region
          loop: start=0, step=1, limit=1
          $region25: #{reverse.11} parent=23 // loop_pre_header
            _
          $region26: #{reverse.11} parent=23 // loop_header
            %s181 = sphi 0, %s185
            %p182 = scmp.ge.s32.totalorder %s181, 1
            %s186 = sphi %s0, %s0
            %s187 = sphi %s2, %s2
          $region27: #{reverse.11} parent=23 // loop_header_branch
            %184 = sbr.rel (%p182) target = $region31
          $region28: #{reverse.11} parent=23 // loop_body
            %v188 = vld [vmem:[%s186] sm:$0xff]
            %189 = vst [vmem:[%s187] sm:$0xff] %v188
            %v190 = vld [vmem:[%s186 + $0x8] sm:$0xff]
            %191 = vst [vmem:[%s187 + $0x8] sm:$0xff] %v190
            %v192 = vld [vmem:[%s186 + $0x10] sm:$0xff]
            %193 = vst [vmem:[%s187 + $0x18] sm:$0xff] %v192
            %v194 = vld [vmem:[%s186 + $0x18] sm:$0xff]
            %195 = vst [vmem:[%s187 + $0x20] sm:$0xff] %v194
            %v196 = vld [vmem:[%s186 + $0x20] sm:$0xff]
            %197 = vst [vmem:[%s187 + $0x30] sm:$0xff] %v196
            %v198 = vld [vmem:[%s186 + $0x28] sm:$0xff]
            %199 = vst [vmem:[%s187 + $0x38] sm:$0xff] %v198
            %v200 = vld [vmem:[%s186 + $0x30] sm:$0xff]
            %201 = vst [vmem:[%s187 + $0x48] sm:$0xff] %v200
            %v202 = vld [vmem:[%s186 + $0x38] sm:$0xff]
            %203 = vst [vmem:[%s187 + $0x50] sm:$0xff] %v202
            %v204 = vld [vmem:[%s186 + $0x40] sm:$0xff]
            %205 = vst [vmem:[%s187 + $0x60] sm:$0xff] %v204
            %v206 = vld [vmem:[%s186 + $0x48] sm:$0xff]
            %207 = vst [vmem:[%s187 + $0x68] sm:$0xff] %v206
            %v208 = vld [vmem:[%s186 + $0x50] sm:$0xff]
            %209 = vst [vmem:[%s187 + $0x78] sm:$0xff] %v208
            %v210 = vld [vmem:[%s186 + $0x58] sm:$0xff]
            %211 = vst [vmem:[%s187 + $0x80] sm:$0xff] %v210
            %v212 = vld [vmem:[%s186 + $0x60] sm:$0xff]
            %213 = vst [vmem:[%s187 + $0x90] sm:$0xff] %v212
            %v214 = vld [vmem:[%s186 + $0x68] sm:$0xff]
            %215 = vst [vmem:[%s187 + $0x98] sm:$0xff] %v214
            %v216 = vld [vmem:[%s186 + $0x70] sm:$0xff]
            %217 = vst [vmem:[%s187 + $0xa8] sm:$0xff] %v216
            %v218 = vld [vmem:[%s186 + $0x78] sm:$0xff]
            %219 = vst [vmem:[%s187 + $0xb0] sm:$0xff] %v218
            %v220 = vld [vmem:[%s186 + $0x80] sm:$0xff]
            %221 = vst [vmem:[%s187 + $0xc0] sm:$0xff] %v220
            %v222 = vld [vmem:[%s186 + $0x88] sm:$0xff]
            %223 = vst [vmem:[%s187 + $0xc8] sm:$0xff] %v222
            %v224 = vld [vmem:[%s186 + $0x90] sm:$0xff]
            %225 = vst [vmem:[%s187 + $0xd8] sm:$0xff] %v224
            %v226 = vld [vmem:[%s186 + $0x98] sm:$0xff]
            %227 = vst [vmem:[%s187 + $0xe0] sm:$0xff] %v226
            %v228 = vld [vmem:[%s186 + $0xa0] sm:$0xff]
            %229 = vst [vmem:[%s187 + $0xf0] sm:$0xff] %v228
            %v230 = vld [vmem:[%s186 + $0xa8] sm:$0xff]
            %231 = vst [vmem:[%s187 + $0xf8] sm:$0xff] %v230
            %v232 = vld [vmem:[%s186 + $0xb0] sm:$0xff]
            %233 = vst [vmem:[%s187 + $0x108] sm:$0xff] %v232
            %v234 = vld [vmem:[%s186 + $0xb8] sm:$0xff]
            %235 = vst [vmem:[%s187 + $0x110] sm:$0xff] %v234
            %v236 = vld [vmem:[%s186 + $0xc0] sm:$0xff]
            %237 = vst [vmem:[%s187 + $0x120] sm:$0xff] %v236
            %v238 = vld [vmem:[%s186 + $0xc8] sm:$0xff]
            %239 = vst [vmem:[%s187 + $0x128] sm:$0xff] %v238
            %v240 = vld [vmem:[%s186 + $0xd0] sm:$0xff]
            %241 = vst [vmem:[%s187 + $0x138] sm:$0xff] %v240
            %v242 = vld [vmem:[%s186 + $0xd8] sm:$0xff]
            %243 = vst [vmem:[%s187 + $0x140] sm:$0xff] %v242
            %v244 = vld [vmem:[%s186 + $0xe0] sm:$0xff]
            %245 = vst [vmem:[%s187 + $0x150] sm:$0xff] %v244
            %v246 = vld [vmem:[%s186 + $0xe8] sm:$0xff]
            %247 = vst [vmem:[%s187 + $0x158] sm:$0xff] %v246
            %v248 = vld [vmem:[%s186 + $0xf0] sm:$0xff]
            %249 = vst [vmem:[%s187 + $0x168] sm:$0xff] %v248
            %v250 = vld [vmem:[%s186 + $0xf8] sm:$0xff]
            %251 = vst [vmem:[%s187 + $0x170] sm:$0xff] %v250
            %v252 = vld [vmem:[%s186 + $0x100] sm:$0xff]
            %253 = vst [vmem:[%s187 + $0x180] sm:$0xff] %v252
            %v254 = vld [vmem:[%s186 + $0x108] sm:$0xff]
            %255 = vst [vmem:[%s187 + $0x188] sm:$0xff] %v254
            %v256 = vld [vmem:[%s186 + $0x110] sm:$0xff]
            %257 = vst [vmem:[%s187 + $0x198] sm:$0xff] %v256
            %v258 = vld [vmem:[%s186 + $0x118] sm:$0xff]
            %259 = vst [vmem:[%s187 + $0x1a0] sm:$0xff] %v258
            %v260 = vld [vmem:[%s186 + $0x120] sm:$0xff]
            %261 = vst [vmem:[%s187 + $0x1b0] sm:$0xff] %v260
            %v262 = vld [vmem:[%s186 + $0x128] sm:$0xff]
            %263 = vst [vmem:[%s187 + $0x1b8] sm:$0xff] %v262
            %v264 = vld [vmem:[%s186 + $0x130] sm:$0xff]
            %265 = vst [vmem:[%s187 + $0x1c8] sm:$0xff] %v264
            %v266 = vld [vmem:[%s186 + $0x138] sm:$0xff]
            %267 = vst [vmem:[%s187 + $0x1d0] sm:$0xff] %v266
            %v268 = vld [vmem:[%s186 + $0x140] sm:$0xff]
            %269 = vst [vmem:[%s187 + $0x1e0] sm:$0xff] %v268
            %v270 = vld [vmem:[%s186 + $0x148] sm:$0xff]
            %271 = vst [vmem:[%s187 + $0x1e8] sm:$0xff] %v270
            %v272 = vld [vmem:[%s186 + $0x150] sm:$0xff]
            %273 = vst [vmem:[%s187 + $0x1f8] sm:$0xff] %v272
            %v274 = vld [vmem:[%s186 + $0x158] sm:$0xff]
            %275 = vst [vmem:[%s187 + $0x200] sm:$0xff] %v274
            %v276 = vld [vmem:[%s186 + $0x160] sm:$0xff]
            %277 = vst [vmem:[%s187 + $0x210] sm:$0xff] %v276
            %v278 = vld [vmem:[%s186 + $0x168] sm:$0xff]
            %279 = vst [vmem:[%s187 + $0x218] sm:$0xff] %v278
            %v280 = vld [vmem:[%s186 + $0x170] sm:$0xff]
            %281 = vst [vmem:[%s187 + $0x228] sm:$0xff] %v280
            %v282 = vld [vmem:[%s186 + $0x178] sm:$0xff]
            %283 = vst [vmem:[%s187 + $0x230] sm:$0xff] %v282
            %v284 = vld [vmem:[%s186 + $0x180] sm:$0xff]
            %285 = vst [vmem:[%s187 + $0x240] sm:$0xff] %v284
            %v286 = vld [vmem:[%s186 + $0x188] sm:$0xff]
            %287 = vst [vmem:[%s187 + $0x248] sm:$0xff] %v286
            %v288 = vld [vmem:[%s186 + $0x190] sm:$0xff]
            %289 = vst [vmem:[%s187 + $0x258] sm:$0xff] %v288
            %v290 = vld [vmem:[%s186 + $0x198] sm:$0xff]
            %291 = vst [vmem:[%s187 + $0x260] sm:$0xff] %v290
            %v292 = vld [vmem:[%s186 + $0x1a0] sm:$0xff]
            %293 = vst [vmem:[%s187 + $0x270] sm:$0xff] %v292
            %v294 = vld [vmem:[%s186 + $0x1a8] sm:$0xff]
            %295 = vst [vmem:[%s187 + $0x278] sm:$0xff] %v294
            %v296 = vld [vmem:[%s186 + $0x1b0] sm:$0xff]
            %297 = vst [vmem:[%s187 + $0x288] sm:$0xff] %v296
            %v298 = vld [vmem:[%s186 + $0x1b8] sm:$0xff]
            %299 = vst [vmem:[%s187 + $0x290] sm:$0xff] %v298
            %v300 = vld [vmem:[%s186 + $0x1c0] sm:$0xff]
            %301 = vst [vmem:[%s187 + $0x2a0] sm:$0xff] %v300
            %v302 = vld [vmem:[%s186 + $0x1c8] sm:$0xff]
            %303 = vst [vmem:[%s187 + $0x2a8] sm:$0xff] %v302
            %v304 = vld [vmem:[%s186 + $0x1d0] sm:$0xff]
            %305 = vst [vmem:[%s187 + $0x2b8] sm:$0xff] %v304
            %v306 = vld [vmem:[%s186 + $0x1d8] sm:$0xff]
            %307 = vst [vmem:[%s187 + $0x2c0] sm:$0xff] %v306
            %v308 = vld [vmem:[%s186 + $0x1e0] sm:$0xff]
            %309 = vst [vmem:[%s187 + $0x2d0] sm:$0xff] %v308
            %v310 = vld [vmem:[%s186 + $0x1e8] sm:$0xff]
            %311 = vst [vmem:[%s187 + $0x2d8] sm:$0xff] %v310
            %v312 = vld [vmem:[%s186 + $0x1f0] sm:$0xff]
            %313 = vst [vmem:[%s187 + $0x2e8] sm:$0xff] %v312
            %v314 = vld [vmem:[%s186 + $0x1f8] sm:$0xff]
            %315 = vst [vmem:[%s187 + $0x2f0] sm:$0xff] %v314
            %v316 = vld [vmem:[%s186 + $0x200] sm:$0xff]
            %317 = vst [vmem:[%s187 + $0x300] sm:$0xff] %v316
            %v318 = vld [vmem:[%s186 + $0x208] sm:$0xff]
            %319 = vst [vmem:[%s187 + $0x308] sm:$0xff] %v318
            %v320 = vld [vmem:[%s186 + $0x210] sm:$0xff]
            %321 = vst [vmem:[%s187 + $0x318] sm:$0xff] %v320
            %v322 = vld [vmem:[%s186 + $0x218] sm:$0xff]
            %323 = vst [vmem:[%s187 + $0x320] sm:$0xff] %v322
            %v324 = vld [vmem:[%s186 + $0x220] sm:$0xff]
            %325 = vst [vmem:[%s187 + $0x330] sm:$0xff] %v324
            %v326 = vld [vmem:[%s186 + $0x228] sm:$0xff]
            %327 = vst [vmem:[%s187 + $0x338] sm:$0xff] %v326
            %v328 = vld [vmem:[%s186 + $0x230] sm:$0xff]
            %329 = vst [vmem:[%s187 + $0x348] sm:$0xff] %v328
            %v330 = vld [vmem:[%s186 + $0x238] sm:$0xff]
            %331 = vst [vmem:[%s187 + $0x350] sm:$0xff] %v330
            %v332 = vld [vmem:[%s186 + $0x240] sm:$0xff]
            %333 = vst [vmem:[%s187 + $0x360] sm:$0xff] %v332
            %v334 = vld [vmem:[%s186 + $0x248] sm:$0xff]
            %335 = vst [vmem:[%s187 + $0x368] sm:$0xff] %v334
            %v336 = vld [vmem:[%s186 + $0x250] sm:$0xff]
            %337 = vst [vmem:[%s187 + $0x378] sm:$0xff] %v336
            %v338 = vld [vmem:[%s186 + $0x258] sm:$0xff]
            %339 = vst [vmem:[%s187 + $0x380] sm:$0xff] %v338
            %v340 = vld [vmem:[%s186 + $0x260] sm:$0xff]
            %341 = vst [vmem:[%s187 + $0x390] sm:$0xff] %v340
            %v342 = vld [vmem:[%s186 + $0x268] sm:$0xff]
            %343 = vst [vmem:[%s187 + $0x398] sm:$0xff] %v342
            %v344 = vld [vmem:[%s186 + $0x270] sm:$0xff]
            %345 = vst [vmem:[%s187 + $0x3a8] sm:$0xff] %v344
            %v346 = vld [vmem:[%s186 + $0x278] sm:$0xff]
            %347 = vst [vmem:[%s187 + $0x3b0] sm:$0xff] %v346
          $region29: #{reverse.11} parent=23 // loop_footer
            %s185 = sadd.s32 1, %s181
          $region30: #{reverse.11} parent=23 // loop_footer_branch
            %180 = sbr.rel target = $region26
          $region31: #{reverse.11} parent=23 // loop_exit
            _
        $region24: #{reverse.11} parent=8 // pred_fallthru
          _
        // Predicated region
        $region32: #{reverse.11} parent=8 // pred_check
          _
        $region33: #{reverse.11} parent=8 // pred_check_branch
          %349 = sbr.rel target = $region35
        $region34: #{reverse.11} parent=8 // pred_region
          _
        $region35: #{reverse.11} parent=8 // pred_fallthru
          _
      $region9: #{reverse.11} parent=4 // pred_fallthru
        _
      // Predicated region
      $region10: #{reverse.11} parent=4 // pred_check
        _
      $region11: #{reverse.11} parent=4 // pred_check_branch
        %8 = sbr.rel target = $region13
      $region12: #{reverse.11} parent=4 // pred_region
        loop: start=0, step=1, limit=1
        $region14: #{reverse.11} parent=12 // loop_pre_header
          _
        $region15: #{reverse.11} parent=12 // loop_header
          %s11 = sphi 0, %s15
          %p12 = scmp.ge.s32.totalorder %s11, 1
          %s16 = sphi %s0, %s0
          %s17 = sphi %s2, %s2
        $region16: #{reverse.11} parent=12 // loop_header_branch
          %14 = sbr.rel (%p12) target = $region20
        $region17: #{reverse.11} parent=12 // loop_body
          %v18 = vld [vmem:[%s16] sm:$0xff]
          %19 = vst [vmem:[%s17] sm:$0xff] %v18
          %v20 = vld [vmem:[%s16 + $0x8] sm:$0xff]
          %21 = vst [vmem:[%s17 + $0x8] sm:$0xff] %v20
          %v22 = vld [vmem:[%s16 + $0x10] sm:$0xff]
          %23 = vst [vmem:[%s17 + $0x18] sm:$0xff] %v22
          %v24 = vld [vmem:[%s16 + $0x18] sm:$0xff]
          %25 = vst [vmem:[%s17 + $0x20] sm:$0xff] %v24
          %v26 = vld [vmem:[%s16 + $0x20] sm:$0xff]
          %27 = vst [vmem:[%s17 + $0x30] sm:$0xff] %v26
          %v28 = vld [vmem:[%s16 + $0x28] sm:$0xff]
          %29 = vst [vmem:[%s17 + $0x38] sm:$0xff] %v28
          %v30 = vld [vmem:[%s16 + $0x30] sm:$0xff]
          %31 = vst [vmem:[%s17 + $0x48] sm:$0xff] %v30
          %v32 = vld [vmem:[%s16 + $0x38] sm:$0xff]
          %33 = vst [vmem:[%s17 + $0x50] sm:$0xff] %v32
          %v34 = vld [vmem:[%s16 + $0x40] sm:$0xff]
          %35 = vst [vmem:[%s17 + $0x60] sm:$0xff] %v34
          %v36 = vld [vmem:[%s16 + $0x48] sm:$0xff]
          %37 = vst [vmem:[%s17 + $0x68] sm:$0xff] %v36
          %v38 = vld [vmem:[%s16 + $0x50] sm:$0xff]
          %39 = vst [vmem:[%s17 + $0x78] sm:$0xff] %v38
          %v40 = vld [vmem:[%s16 + $0x58] sm:$0xff]
          %41 = vst [vmem:[%s17 + $0x80] sm:$0xff] %v40
          %v42 = vld [vmem:[%s16 + $0x60] sm:$0xff]
          %43 = vst [vmem:[%s17 + $0x90] sm:$0xff] %v42
          %v44 = vld [vmem:[%s16 + $0x68] sm:$0xff]
          %45 = vst [vmem:[%s17 + $0x98] sm:$0xff] %v44
          %v46 = vld [vmem:[%s16 + $0x70] sm:$0xff]
          %47 = vst [vmem:[%s17 + $0xa8] sm:$0xff] %v46
          %v48 = vld [vmem:[%s16 + $0x78] sm:$0xff]
          %49 = vst [vmem:[%s17 + $0xb0] sm:$0xff] %v48
          %v50 = vld [vmem:[%s16 + $0x80] sm:$0xff]
          %51 = vst [vmem:[%s17 + $0xc0] sm:$0xff] %v50
          %v52 = vld [vmem:[%s16 + $0x88] sm:$0xff]
          %53 = vst [vmem:[%s17 + $0xc8] sm:$0xff] %v52
          %v54 = vld [vmem:[%s16 + $0x90] sm:$0xff]
          %55 = vst [vmem:[%s17 + $0xd8] sm:$0xff] %v54
          %v56 = vld [vmem:[%s16 + $0x98] sm:$0xff]
          %57 = vst [vmem:[%s17 + $0xe0] sm:$0xff] %v56
          %v58 = vld [vmem:[%s16 + $0xa0] sm:$0xff]
          %59 = vst [vmem:[%s17 + $0xf0] sm:$0xff] %v58
          %v60 = vld [vmem:[%s16 + $0xa8] sm:$0xff]
          %61 = vst [vmem:[%s17 + $0xf8] sm:$0xff] %v60
          %v62 = vld [vmem:[%s16 + $0xb0] sm:$0xff]
          %63 = vst [vmem:[%s17 + $0x108] sm:$0xff] %v62
          %v64 = vld [vmem:[%s16 + $0xb8] sm:$0xff]
          %65 = vst [vmem:[%s17 + $0x110] sm:$0xff] %v64
          %v66 = vld [vmem:[%s16 + $0xc0] sm:$0xff]
          %67 = vst [vmem:[%s17 + $0x120] sm:$0xff] %v66
          %v68 = vld [vmem:[%s16 + $0xc8] sm:$0xff]
          %69 = vst [vmem:[%s17 + $0x128] sm:$0xff] %v68
          %v70 = vld [vmem:[%s16 + $0xd0] sm:$0xff]
          %71 = vst [vmem:[%s17 + $0x138] sm:$0xff] %v70
          %v72 = vld [vmem:[%s16 + $0xd8] sm:$0xff]
          %73 = vst [vmem:[%s17 + $0x140] sm:$0xff] %v72
          %v74 = vld [vmem:[%s16 + $0xe0] sm:$0xff]
          %75 = vst [vmem:[%s17 + $0x150] sm:$0xff] %v74
          %v76 = vld [vmem:[%s16 + $0xe8] sm:$0xff]
          %77 = vst [vmem:[%s17 + $0x158] sm:$0xff] %v76
          %v78 = vld [vmem:[%s16 + $0xf0] sm:$0xff]
          %79 = vst [vmem:[%s17 + $0x168] sm:$0xff] %v78
          %v80 = vld [vmem:[%s16 + $0xf8] sm:$0xff]
          %81 = vst [vmem:[%s17 + $0x170] sm:$0xff] %v80
          %v82 = vld [vmem:[%s16 + $0x100] sm:$0xff]
          %83 = vst [vmem:[%s17 + $0x180] sm:$0xff] %v82
          %v84 = vld [vmem:[%s16 + $0x108] sm:$0xff]
          %85 = vst [vmem:[%s17 + $0x188] sm:$0xff] %v84
          %v86 = vld [vmem:[%s16 + $0x110] sm:$0xff]
          %87 = vst [vmem:[%s17 + $0x198] sm:$0xff] %v86
          %v88 = vld [vmem:[%s16 + $0x118] sm:$0xff]
          %89 = vst [vmem:[%s17 + $0x1a0] sm:$0xff] %v88
          %v90 = vld [vmem:[%s16 + $0x120] sm:$0xff]
          %91 = vst [vmem:[%s17 + $0x1b0] sm:$0xff] %v90
          %v92 = vld [vmem:[%s16 + $0x128] sm:$0xff]
          %93 = vst [vmem:[%s17 + $0x1b8] sm:$0xff] %v92
          %v94 = vld [vmem:[%s16 + $0x130] sm:$0xff]
          %95 = vst [vmem:[%s17 + $0x1c8] sm:$0xff] %v94
          %v96 = vld [vmem:[%s16 + $0x138] sm:$0xff]
          %97 = vst [vmem:[%s17 + $0x1d0] sm:$0xff] %v96
          %v98 = vld [vmem:[%s16 + $0x140] sm:$0xff]
          %99 = vst [vmem:[%s17 + $0x1e0] sm:$0xff] %v98
          %v100 = vld [vmem:[%s16 + $0x148] sm:$0xff]
          %101 = vst [vmem:[%s17 + $0x1e8] sm:$0xff] %v100
          %v102 = vld [vmem:[%s16 + $0x150] sm:$0xff]
          %103 = vst [vmem:[%s17 + $0x1f8] sm:$0xff] %v102
          %v104 = vld [vmem:[%s16 + $0x158] sm:$0xff]
          %105 = vst [vmem:[%s17 + $0x200] sm:$0xff] %v104
          %v106 = vld [vmem:[%s16 + $0x160] sm:$0xff]
          %107 = vst [vmem:[%s17 + $0x210] sm:$0xff] %v106
          %v108 = vld [vmem:[%s16 + $0x168] sm:$0xff]
          %109 = vst [vmem:[%s17 + $0x218] sm:$0xff] %v108
          %v110 = vld [vmem:[%s16 + $0x170] sm:$0xff]
          %111 = vst [vmem:[%s17 + $0x228] sm:$0xff] %v110
          %v112 = vld [vmem:[%s16 + $0x178] sm:$0xff]
          %113 = vst [vmem:[%s17 + $0x230] sm:$0xff] %v112
          %v114 = vld [vmem:[%s16 + $0x180] sm:$0xff]
          %115 = vst [vmem:[%s17 + $0x240] sm:$0xff] %v114
          %v116 = vld [vmem:[%s16 + $0x188] sm:$0xff]
          %117 = vst [vmem:[%s17 + $0x248] sm:$0xff] %v116
          %v118 = vld [vmem:[%s16 + $0x190] sm:$0xff]
          %119 = vst [vmem:[%s17 + $0x258] sm:$0xff] %v118
          %v120 = vld [vmem:[%s16 + $0x198] sm:$0xff]
          %121 = vst [vmem:[%s17 + $0x260] sm:$0xff] %v120
          %v122 = vld [vmem:[%s16 + $0x1a0] sm:$0xff]
          %123 = vst [vmem:[%s17 + $0x270] sm:$0xff] %v122
          %v124 = vld [vmem:[%s16 + $0x1a8] sm:$0xff]
          %125 = vst [vmem:[%s17 + $0x278] sm:$0xff] %v124
          %v126 = vld [vmem:[%s16 + $0x1b0] sm:$0xff]
          %127 = vst [vmem:[%s17 + $0x288] sm:$0xff] %v126
          %v128 = vld [vmem:[%s16 + $0x1b8] sm:$0xff]
          %129 = vst [vmem:[%s17 + $0x290] sm:$0xff] %v128
          %v130 = vld [vmem:[%s16 + $0x1c0] sm:$0xff]
          %131 = vst [vmem:[%s17 + $0x2a0] sm:$0xff] %v130
          %v132 = vld [vmem:[%s16 + $0x1c8] sm:$0xff]
          %133 = vst [vmem:[%s17 + $0x2a8] sm:$0xff] %v132
          %v134 = vld [vmem:[%s16 + $0x1d0] sm:$0xff]
          %135 = vst [vmem:[%s17 + $0x2b8] sm:$0xff] %v134
          %v136 = vld [vmem:[%s16 + $0x1d8] sm:$0xff]
          %137 = vst [vmem:[%s17 + $0x2c0] sm:$0xff] %v136
          %v138 = vld [vmem:[%s16 + $0x1e0] sm:$0xff]
          %139 = vst [vmem:[%s17 + $0x2d0] sm:$0xff] %v138
          %v140 = vld [vmem:[%s16 + $0x1e8] sm:$0xff]
          %141 = vst [vmem:[%s17 + $0x2d8] sm:$0xff] %v140
          %v142 = vld [vmem:[%s16 + $0x1f0] sm:$0xff]
          %143 = vst [vmem:[%s17 + $0x2e8] sm:$0xff] %v142
          %v144 = vld [vmem:[%s16 + $0x1f8] sm:$0xff]
          %145 = vst [vmem:[%s17 + $0x2f0] sm:$0xff] %v144
          %v146 = vld [vmem:[%s16 + $0x200] sm:$0xff]
          %147 = vst [vmem:[%s17 + $0x300] sm:$0xff] %v146
          %v148 = vld [vmem:[%s16 + $0x208] sm:$0xff]
          %149 = vst [vmem:[%s17 + $0x308] sm:$0xff] %v148
          %v150 = vld [vmem:[%s16 + $0x210] sm:$0xff]
          %151 = vst [vmem:[%s17 + $0x318] sm:$0xff] %v150
          %v152 = vld [vmem:[%s16 + $0x218] sm:$0xff]
          %153 = vst [vmem:[%s17 + $0x320] sm:$0xff] %v152
          %v154 = vld [vmem:[%s16 + $0x220] sm:$0xff]
          %155 = vst [vmem:[%s17 + $0x330] sm:$0xff] %v154
          %v156 = vld [vmem:[%s16 + $0x228] sm:$0xff]
          %157 = vst [vmem:[%s17 + $0x338] sm:$0xff] %v156
          %v158 = vld [vmem:[%s16 + $0x230] sm:$0xff]
          %159 = vst [vmem:[%s17 + $0x348] sm:$0xff] %v158
          %v160 = vld [vmem:[%s16 + $0x238] sm:$0xff]
          %161 = vst [vmem:[%s17 + $0x350] sm:$0xff] %v160
          %v162 = vld [vmem:[%s16 + $0x240] sm:$0xff]
          %163 = vst [vmem:[%s17 + $0x360] sm:$0xff] %v162
          %v164 = vld [vmem:[%s16 + $0x248] sm:$0xff]
          %165 = vst [vmem:[%s17 + $0x368] sm:$0xff] %v164
          %v166 = vld [vmem:[%s16 + $0x250] sm:$0xff]
          %167 = vst [vmem:[%s17 + $0x378] sm:$0xff] %v166
          %v168 = vld [vmem:[%s16 + $0x258] sm:$0xff]
          %169 = vst [vmem:[%s17 + $0x380] sm:$0xff] %v168
          %v170 = vld [vmem:[%s16 + $0x260] sm:$0xff]
          %171 = vst [vmem:[%s17 + $0x390] sm:$0xff] %v170
          %v172 = vld [vmem:[%s16 + $0x268] sm:$0xff]
          %173 = vst [vmem:[%s17 + $0x398] sm:$0xff] %v172
          %v174 = vld [vmem:[%s16 + $0x270] sm:$0xff]
          %175 = vst [vmem:[%s17 + $0x3a8] sm:$0xff] %v174
          %v176 = vld [vmem:[%s16 + $0x278] sm:$0xff]
          %177 = vst [vmem:[%s17 + $0x3b0] sm:$0xff] %v176
        $region18: #{reverse.11} parent=12 // loop_footer
          %s15 = sadd.s32 1, %s11
        $region19: #{reverse.11} parent=12 // loop_footer_branch
          %10 = sbr.rel target = $region15
        $region20: #{reverse.11} parent=12 // loop_exit
          _
      $region13: #{reverse.11} parent=4 // pred_fallthru
        _
    $region5: #{reverse.11} parent=1 // pred_fallthru
      _
    %350 = vnop
    %s351 = scalar_lea.vmem [#allocation0], 8
    %s352 = scalar_lea.vmem %s351, 7 [#allocation0]
    %v353 = vld [vmem:[%s352] ss:$-1 sm:$0xff]
    %v354 = vrot.slane %v353, 7
    %355 = vst [vmem:[#allocation1] sm:$0xff] %v354
    %s356 = scalar_lea.vmem [#allocation0], 16
    %s357 = scalar_lea.vmem %s356, 7 [#allocation0]
    %v358 = vld [vmem:[%s357] ss:$-1 sm:$0xff]
    %v359 = vrot.slane %v358, 7
    %v360 = vlaneseq
    %v361 = vshrl.u32 %v360, 7
    %vm362 = vcmp.lt.s32.totalorder %v361, 1
    %363 = vst.msk [vmem:[#allocation1] sm:$0xff] %vm362, %v359
    %s364 = scalar_lea.vmem [#allocation1], 8
    %s365 = scalar_lea.vmem [#allocation0], 7
    %v366 = vld [vmem:[%s365] ss:$-1 sm:$0xff]
    %v367 = vrot.slane %v366, 7
    %368 = vst [vmem:[%s364] sm:$0xff] %v367
    %s369 = scalar_lea.vmem [#allocation0], 8
    %s370 = scalar_lea.vmem %s369, 7 [#allocation0]
    %v371 = vld [vmem:[%s370] ss:$-1 sm:$0xff]
    %v372 = vrot.slane %v371, 7
    %v373 = vlaneseq
    %v374 = vshrl.u32 %v373, 7
    %vm375 = vcmp.lt.s32.totalorder %v374, 1
    %376 = vst.msk [vmem:[%s364] sm:$0xff] %vm375, %v372
    %s377 = scalar_lea.vmem [#allocation1], 16
    %s378 = scalar_lea.vmem [#allocation0], 24
    %s379 = scalar_lea.vmem %s378, 8 [#allocation0]
    %s380 = scalar_lea.vmem %s379, 7 [#allocation0]
    %v381 = vld [vmem:[%s380] ss:$-1 sm:$0xff]
    %v382 = vrot.slane %v381, 7
    %383 = vst [vmem:[%s377] sm:$0xff] %v382
    %s384 = scalar_lea.vmem %s378, 16 [#allocation0]
    %s385 = scalar_lea.vmem %s384, 7 [#allocation0]
    %v386 = vld [vmem:[%s385] ss:$-1 sm:$0xff]
    %v387 = vrot.slane %v386, 7
    %v388 = vlaneseq
    %v389 = vshrl.u32 %v388, 7
    %vm390 = vcmp.lt.s32.totalorder %v389, 1
    %391 = vst.msk [vmem:[%s377] sm:$0xff] %vm390, %v387
    %s392 = scalar_lea.vmem %s377, 8 [#allocation1]
    %s393 = scalar_lea.vmem %s378, 7 [#allocation0]
    %v394 = vld [vmem:[%s393] ss:$-1 sm:$0xff]
    %v395 = vrot.slane %v394, 7
    %396 = vst [vmem:[%s392] sm:$0xff] %v395
    %s397 = scalar_lea.vmem %s378, 8 [#allocation0]
    %s398 = scalar_lea.vmem %s397, 7 [#allocation0]
    %v399 = vld [vmem:[%s398] ss:$-1 sm:$0xff]
    %v400 = vrot.slane %v399, 7
    %v401 = vlaneseq
    %v402 = vshrl.u32 %v401, 7
    %vm403 = vcmp.lt.s32.totalorder %v402, 1
    %404 = vst.msk [vmem:[%s392] sm:$0xff] %vm403, %v400
    %s405 = scalar_lea.vmem [#allocation1], 32
    %s406 = scalar_lea.vmem [#allocation0], 48
    %s407 = scalar_lea.vmem %s406, 8 [#allocation0]
    %s408 = scalar_lea.vmem %s407, 7 [#allocation0]
    %v409 = vld [vmem:[%s408] ss:$-1 sm:$0xff]
    %v410 = vrot.slane %v409, 7
    %411 = vst [vmem:[%s405] sm:$0xff] %v410
    %s412 = scalar_lea.vmem %s406, 16 [#allocation0]
    %s413 = scalar_lea.vmem %s412, 7 [#allocation0]
    %v414 = vld [vmem:[%s413] ss:$-1 sm:$0xff]
    %v415 = vrot.slane %v414, 7
    %v416 = vlaneseq
    %v417 = vshrl.u32 %v416, 7
    %vm418 = vcmp.lt.s32.totalorder %v417, 1
    %419 = vst.msk [vmem:[%s405] sm:$0xff] %vm418, %v415
    %s420 = scalar_lea.vmem %s405, 8 [#allocation1]
    %s421 = scalar_lea.vmem %s406, 7 [#allocation0]
    %v422 = vld [vmem:[%s421] ss:$-1 sm:$0xff]
    %v423 = vrot.slane %v422, 7
    %424 = vst [vmem:[%s420] sm:$0xff] %v423
    %s425 = scalar_lea.vmem %s406, 8 [#allocation0]
    %s426 = scalar_lea.vmem %s425, 7 [#allocation0]
    %v427 = vld [vmem:[%s426] ss:$-1 sm:$0xff]
    %v428 = vrot.slane %v427, 7
    %v429 = vlaneseq
    %v430 = vshrl.u32 %v429, 7
    %vm431 = vcmp.lt.s32.totalorder %v430, 1
    %432 = vst.msk [vmem:[%s420] sm:$0xff] %vm431, %v428
    %s433 = scalar_lea.vmem [#allocation1], 48
    %s434 = scalar_lea.vmem [#allocation0], 72
    %s435 = scalar_lea.vmem %s434, 8 [#allocation0]
    %s436 = scalar_lea.vmem %s435, 7 [#allocation0]
    %v437 = vld [vmem:[%s436] ss:$-1 sm:$0xff]
    %v438 = vrot.slane %v437, 7
    %439 = vst [vmem:[%s433] sm:$0xff] %v438
    %s440 = scalar_lea.vmem %s434, 16 [#allocation0]
    %s441 = scalar_lea.vmem %s440, 7 [#allocation0]
    %v442 = vld [vmem:[%s441] ss:$-1 sm:$0xff]
    %v443 = vrot.slane %v442, 7
    %v444 = vlaneseq
    %v445 = vshrl.u32 %v444, 7
    %vm446 = vcmp.lt.s32.totalorder %v445, 1
    %447 = vst.msk [vmem:[%s433] sm:$0xff] %vm446, %v443
    %s448 = scalar_lea.vmem %s433, 8 [#allocation1]
    %s449 = scalar_lea.vmem %s434, 7 [#allocation0]
    %v450 = vld [vmem:[%s449] ss:$-1 sm:$0xff]
    %v451 = vrot.slane %v450, 7
    %452 = vst [vmem:[%s448] sm:$0xff] %v451
    %s453 = scalar_lea.vmem %s434, 8 [#allocation0]
    %s454 = scalar_lea.vmem %s453, 7 [#allocation0]
    %v455 = vld [vmem:[%s454] ss:$-1 sm:$0xff]
    %v456 = vrot.slane %v455, 7
    %v457 = vlaneseq
    %v458 = vshrl.u32 %v457, 7
    %vm459 = vcmp.lt.s32.totalorder %v458, 1
    %460 = vst.msk [vmem:[%s448] sm:$0xff] %vm459, %v456
    %s461 = scalar_lea.vmem [#allocation1], 64
    %s462 = scalar_lea.vmem [#allocation0], 96
    %s463 = scalar_lea.vmem %s462, 8 [#allocation0]
    %s464 = scalar_lea.vmem %s463, 7 [#allocation0]
    %v465 = vld [vmem:[%s464] ss:$-1 sm:$0xff]
    %v466 = vrot.slane %v465, 7
    %467 = vst [vmem:[%s461] sm:$0xff] %v466
    %s468 = scalar_lea.vmem %s462, 16 [#allocation0]
    %s469 = scalar_lea.vmem %s468, 7 [#allocation0]
    %v470 = vld [vmem:[%s469] ss:$-1 sm:$0xff]
    %v471 = vrot.slane %v470, 7
    %v472 = vlaneseq
    %v473 = vshrl.u32 %v472, 7
    %vm474 = vcmp.lt.s32.totalorder %v473, 1
    %475 = vst.msk [vmem:[%s461] sm:$0xff] %vm474, %v471
    %s476 = scalar_lea.vmem %s461, 8 [#allocation1]
    %s477 = scalar_lea.vmem %s462, 7 [#allocation0]
    %v478 = vld [vmem:[%s477] ss:$-1 sm:$0xff]
    %v479 = vrot.slane %v478, 7
    %480 = vst [vmem:[%s476] sm:$0xff] %v479
    %s481 = scalar_lea.vmem %s462, 8 [#allocation0]
    %s482 = scalar_lea.vmem %s481, 7 [#allocation0]
    %v483 = vld [vmem:[%s482] ss:$-1 sm:$0xff]
    %v484 = vrot.slane %v483, 7
    %v485 = vlaneseq
    %v486 = vshrl.u32 %v485, 7
    %vm487 = vcmp.lt.s32.totalorder %v486, 1
    %488 = vst.msk [vmem:[%s476] sm:$0xff] %vm487, %v484
    %s489 = scalar_lea.vmem [#allocation1], 80
    %s490 = scalar_lea.vmem [#allocation0], 120
    %s491 = scalar_lea.vmem %s490, 8 [#allocation0]
    %s492 = scalar_lea.vmem %s491, 7 [#allocation0]
    %v493 = vld [vmem:[%s492] ss:$-1 sm:$0xff]
    %v494 = vrot.slane %v493, 7
    %495 = vst [vmem:[%s489] sm:$0xff] %v494
    %s496 = scalar_lea.vmem %s490, 16 [#allocation0]
    %s497 = scalar_lea.vmem %s496, 7 [#allocation0]
    %v498 = vld [vmem:[%s497] ss:$-1 sm:$0xff]
    %v499 = vrot.slane %v498, 7
    %v500 = vlaneseq
    %v501 = vshrl.u32 %v500, 7
    %vm502 = vcmp.lt.s32.totalorder %v501, 1
    %503 = vst.msk [vmem:[%s489] sm:$0xff] %vm502, %v499
    %s504 = scalar_lea.vmem %s489, 8 [#allocation1]
    %s505 = scalar_lea.vmem %s490, 7 [#allocation0]
    %v506 = vld [vmem:[%s505] ss:$-1 sm:$0xff]
    %v507 = vrot.slane %v506, 7
    %508 = vst [vmem:[%s504] sm:$0xff] %v507
    %s509 = scalar_lea.vmem %s490, 8 [#allocation0]
    %s510 = scalar_lea.vmem %s509, 7 [#allocation0]
    %v511 = vld [vmem:[%s510] ss:$-1 sm:$0xff]
    %v512 = vrot.slane %v511, 7
    %v513 = vlaneseq
    %v514 = vshrl.u32 %v513, 7
    %vm515 = vcmp.lt.s32.totalorder %v514, 1
    %516 = vst.msk [vmem:[%s504] sm:$0xff] %vm515, %v512
    %s517 = scalar_lea.vmem [#allocation1], 96
    %s518 = scalar_lea.vmem [#allocation0], 144
    %s519 = scalar_lea.vmem %s518, 8 [#allocation0]
    %s520 = scalar_lea.vmem %s519, 7 [#allocation0]
    %v521 = vld [vmem:[%s520] ss:$-1 sm:$0xff]
    %v522 = vrot.slane %v521, 7
    %523 = vst [vmem:[%s517] sm:$0xff] %v522
    %s524 = scalar_lea.vmem %s518, 16 [#allocation0]
    %s525 = scalar_lea.vmem %s524, 7 [#allocation0]
    %v526 = vld [vmem:[%s525] ss:$-1 sm:$0xff]
    %v527 = vrot.slane %v526, 7
    %v528 = vlaneseq
    %v529 = vshrl.u32 %v528, 7
    %vm530 = vcmp.lt.s32.totalorder %v529, 1
    %531 = vst.msk [vmem:[%s517] sm:$0xff] %vm530, %v527
    %s532 = scalar_lea.vmem %s517, 8 [#allocation1]
    %s533 = scalar_lea.vmem %s518, 7 [#allocation0]
    %v534 = vld [vmem:[%s533] ss:$-1 sm:$0xff]
    %v535 = vrot.slane %v534, 7
    %536 = vst [vmem:[%s532] sm:$0xff] %v535
    %s537 = scalar_lea.vmem %s518, 8 [#allocation0]
    %s538 = scalar_lea.vmem %s537, 7 [#allocation0]
    %v539 = vld [vmem:[%s538] ss:$-1 sm:$0xff]
    %v540 = vrot.slane %v539, 7
    %v541 = vlaneseq
    %v542 = vshrl.u32 %v541, 7
    %vm543 = vcmp.lt.s32.totalorder %v542, 1
    %544 = vst.msk [vmem:[%s532] sm:$0xff] %vm543, %v540
    %s545 = scalar_lea.vmem [#allocation1], 112
    %s546 = scalar_lea.vmem [#allocation0], 168
    %s547 = scalar_lea.vmem %s546, 8 [#allocation0]
    %s548 = scalar_lea.vmem %s547, 7 [#allocation0]
    %v549 = vld [vmem:[%s548] ss:$-1 sm:$0xff]
    %v550 = vrot.slane %v549, 7
    %551 = vst [vmem:[%s545] sm:$0xff] %v550
    %s552 = scalar_lea.vmem %s546, 16 [#allocation0]
    %s553 = scalar_lea.vmem %s552, 7 [#allocation0]
    %v554 = vld [vmem:[%s553] ss:$-1 sm:$0xff]
    %v555 = vrot.slane %v554, 7
    %v556 = vlaneseq
    %v557 = vshrl.u32 %v556, 7
    %vm558 = vcmp.lt.s32.totalorder %v557, 1
    %559 = vst.msk [vmem:[%s545] sm:$0xff] %vm558, %v555
    %s560 = scalar_lea.vmem %s545, 8 [#allocation1]
    %s561 = scalar_lea.vmem %s546, 7 [#allocation0]
    %v562 = vld [vmem:[%s561] ss:$-1 sm:$0xff]
    %v563 = vrot.slane %v562, 7
    %564 = vst [vmem:[%s560] sm:$0xff] %v563
    %s565 = scalar_lea.vmem %s546, 8 [#allocation0]
    %s566 = scalar_lea.vmem %s565, 7 [#allocation0]
    %v567 = vld [vmem:[%s566] ss:$-1 sm:$0xff]
    %v568 = vrot.slane %v567, 7
    %v569 = vlaneseq
    %v570 = vshrl.u32 %v569, 7
    %vm571 = vcmp.lt.s32.totalorder %v570, 1
    %572 = vst.msk [vmem:[%s560] sm:$0xff] %vm571, %v568
    %s573 = scalar_lea.vmem [#allocation1], 128
    %s574 = scalar_lea.vmem [#allocation0], 192
    %s575 = scalar_lea.vmem %s574, 8 [#allocation0]
    %s576 = scalar_lea.vmem %s575, 7 [#allocation0]
    %v577 = vld [vmem:[%s576] ss:$-1 sm:$0xff]
    %v578 = vrot.slane %v577, 7
    %579 = vst [vmem:[%s573] sm:$0xff] %v578
    %s580 = scalar_lea.vmem %s574, 16 [#allocation0]
    %s581 = scalar_lea.vmem %s580, 7 [#allocation0]
    %v582 = vld [vmem:[%s581] ss:$-1 sm:$0xff]
    %v583 = vrot.slane %v582, 7
    %v584 = vlaneseq
    %v585 = vshrl.u32 %v584, 7
    %vm586 = vcmp.lt.s32.totalorder %v585, 1
    %587 = vst.msk [vmem:[%s573] sm:$0xff] %vm586, %v583
    %s588 = scalar_lea.vmem %s573, 8 [#allocation1]
    %s589 = scalar_lea.vmem %s574, 7 [#allocation0]
    %v590 = vld [vmem:[%s589] ss:$-1 sm:$0xff]
    %v591 = vrot.slane %v590, 7
    %592 = vst [vmem:[%s588] sm:$0xff] %v591
    %s593 = scalar_lea.vmem %s574, 8 [#allocation0]
    %s594 = scalar_lea.vmem %s593, 7 [#allocation0]
    %v595 = vld [vmem:[%s594] ss:$-1 sm:$0xff]
    %v596 = vrot.slane %v595, 7
    %v597 = vlaneseq
    %v598 = vshrl.u32 %v597, 7
    %vm599 = vcmp.lt.s32.totalorder %v598, 1
    %600 = vst.msk [vmem:[%s588] sm:$0xff] %vm599, %v596
    %s601 = scalar_lea.vmem [#allocation1], 144
    %s602 = scalar_lea.vmem [#allocation0], 216
    %s603 = scalar_lea.vmem %s602, 8 [#allocation0]
    %s604 = scalar_lea.vmem %s603, 7 [#allocation0]
    %v605 = vld [vmem:[%s604] ss:$-1 sm:$0xff]
    %v606 = vrot.slane %v605, 7
    %607 = vst [vmem:[%s601] sm:$0xff] %v606
    %s608 = scalar_lea.vmem %s602, 16 [#allocation0]
    %s609 = scalar_lea.vmem %s608, 7 [#allocation0]
    %v610 = vld [vmem:[%s609] ss:$-1 sm:$0xff]
    %v611 = vrot.slane %v610, 7
    %v612 = vlaneseq
    %v613 = vshrl.u32 %v612, 7
    %vm614 = vcmp.lt.s32.totalorder %v613, 1
    %615 = vst.msk [vmem:[%s601] sm:$0xff] %vm614, %v611
    %s616 = scalar_lea.vmem %s601, 8 [#allocation1]
    %s617 = scalar_lea.vmem %s602, 7 [#allocation0]
    %v618 = vld [vmem:[%s617] ss:$-1 sm:$0xff]
    %v619 = vrot.slane %v618, 7
    %620 = vst [vmem:[%s616] sm:$0xff] %v619
    %s621 = scalar_lea.vmem %s602, 8 [#allocation0]
    %s622 = scalar_lea.vmem %s621, 7 [#allocation0]
    %v623 = vld [vmem:[%s622] ss:$-1 sm:$0xff]
    %v624 = vrot.slane %v623, 7
    %v625 = vlaneseq
    %v626 = vshrl.u32 %v625, 7
    %vm627 = vcmp.lt.s32.totalorder %v626, 1
    %628 = vst.msk [vmem:[%s616] sm:$0xff] %vm627, %v624
    %s629 = scalar_lea.vmem [#allocation1], 160
    %s630 = scalar_lea.vmem [#allocation0], 240
    %s631 = scalar_lea.vmem %s630, 8 [#allocation0]
    %s632 = scalar_lea.vmem %s631, 7 [#allocation0]
    %v633 = vld [vmem:[%s632] ss:$-1 sm:$0xff]
    %v634 = vrot.slane %v633, 7
    %635 = vst [vmem:[%s629] sm:$0xff] %v634
    %s636 = scalar_lea.vmem %s630, 16 [#allocation0]
    %s637 = scalar_lea.vmem %s636, 7 [#allocation0]
    %v638 = vld [vmem:[%s637] ss:$-1 sm:$0xff]
    %v639 = vrot.slane %v638, 7
    %v640 = vlaneseq
    %v641 = vshrl.u32 %v640, 7
    %vm642 = vcmp.lt.s32.totalorder %v641, 1
    %643 = vst.msk [vmem:[%s629] sm:$0xff] %vm642, %v639
    %s644 = scalar_lea.vmem %s629, 8 [#allocation1]
    %s645 = scalar_lea.vmem %s630, 7 [#allocation0]
    %v646 = vld [vmem:[%s645] ss:$-1 sm:$0xff]
    %v647 = vrot.slane %v646, 7
    %648 = vst [vmem:[%s644] sm:$0xff] %v647
    %s649 = scalar_lea.vmem %s630, 8 [#allocation0]
    %s650 = scalar_lea.vmem %s649, 7 [#allocation0]
    %v651 = vld [vmem:[%s650] ss:$-1 sm:$0xff]
    %v652 = vrot.slane %v651, 7
    %v653 = vlaneseq
    %v654 = vshrl.u32 %v653, 7
    %vm655 = vcmp.lt.s32.totalorder %v654, 1
    %656 = vst.msk [vmem:[%s644] sm:$0xff] %vm655, %v652
    %s657 = scalar_lea.vmem [#allocation1], 176
    %s658 = scalar_lea.vmem [#allocation0], 264
    %s659 = scalar_lea.vmem %s658, 8 [#allocation0]
    %s660 = scalar_lea.vmem %s659, 7 [#allocation0]
    %v661 = vld [vmem:[%s660] ss:$-1 sm:$0xff]
    %v662 = vrot.slane %v661, 7
    %663 = vst [vmem:[%s657] sm:$0xff] %v662
    %s664 = scalar_lea.vmem %s658, 16 [#allocation0]
    %s665 = scalar_lea.vmem %s664, 7 [#allocation0]
    %v666 = vld [vmem:[%s665] ss:$-1 sm:$0xff]
    %v667 = vrot.slane %v666, 7
    %v668 = vlaneseq
    %v669 = vshrl.u32 %v668, 7
    %vm670 = vcmp.lt.s32.totalorder %v669, 1
    %671 = vst.msk [vmem:[%s657] sm:$0xff] %vm670, %v667
    %s672 = scalar_lea.vmem %s657, 8 [#allocation1]
    %s673 = scalar_lea.vmem %s658, 7 [#allocation0]
    %v674 = vld [vmem:[%s673] ss:$-1 sm:$0xff]
    %v675 = vrot.slane %v674, 7
    %676 = vst [vmem:[%s672] sm:$0xff] %v675
    %s677 = scalar_lea.vmem %s658, 8 [#allocation0]
    %s678 = scalar_lea.vmem %s677, 7 [#allocation0]
    %v679 = vld [vmem:[%s678] ss:$-1 sm:$0xff]
    %v680 = vrot.slane %v679, 7
    %v681 = vlaneseq
    %v682 = vshrl.u32 %v681, 7
    %vm683 = vcmp.lt.s32.totalorder %v682, 1
    %684 = vst.msk [vmem:[%s672] sm:$0xff] %vm683, %v680
    %s685 = scalar_lea.vmem [#allocation1], 192
    %s686 = scalar_lea.vmem [#allocation0], 288
    %s687 = scalar_lea.vmem %s686, 8 [#allocation0]
    %s688 = scalar_lea.vmem %s687, 7 [#allocation0]
    %v689 = vld [vmem:[%s688] ss:$-1 sm:$0xff]
    %v690 = vrot.slane %v689, 7
    %691 = vst [vmem:[%s685] sm:$0xff] %v690
    %s692 = scalar_lea.vmem %s686, 16 [#allocation0]
    %s693 = scalar_lea.vmem %s692, 7 [#allocation0]
    %v694 = vld [vmem:[%s693] ss:$-1 sm:$0xff]
    %v695 = vrot.slane %v694, 7
    %v696 = vlaneseq
    %v697 = vshrl.u32 %v696, 7
    %vm698 = vcmp.lt.s32.totalorder %v697, 1
    %699 = vst.msk [vmem:[%s685] sm:$0xff] %vm698, %v695
    %s700 = scalar_lea.vmem %s685, 8 [#allocation1]
    %s701 = scalar_lea.vmem %s686, 7 [#allocation0]
    %v702 = vld [vmem:[%s701] ss:$-1 sm:$0xff]
    %v703 = vrot.slane %v702, 7
    %704 = vst [vmem:[%s700] sm:$0xff] %v703
    %s705 = scalar_lea.vmem %s686, 8 [#allocation0]
    %s706 = scalar_lea.vmem %s705, 7 [#allocation0]
    %v707 = vld [vmem:[%s706] ss:$-1 sm:$0xff]
    %v708 = vrot.slane %v707, 7
    %v709 = vlaneseq
    %v710 = vshrl.u32 %v709, 7
    %vm711 = vcmp.lt.s32.totalorder %v710, 1
    %712 = vst.msk [vmem:[%s700] sm:$0xff] %vm711, %v708
    %s713 = scalar_lea.vmem [#allocation1], 208
    %s714 = scalar_lea.vmem [#allocation0], 312
    %s715 = scalar_lea.vmem %s714, 8 [#allocation0]
    %s716 = scalar_lea.vmem %s715, 7 [#allocation0]
    %v717 = vld [vmem:[%s716] ss:$-1 sm:$0xff]
    %v718 = vrot.slane %v717, 7
    %719 = vst [vmem:[%s713] sm:$0xff] %v718
    %s720 = scalar_lea.vmem %s714, 16 [#allocation0]
    %s721 = scalar_lea.vmem %s720, 7 [#allocation0]
    %v722 = vld [vmem:[%s721] ss:$-1 sm:$0xff]
    %v723 = vrot.slane %v722, 7
    %v724 = vlaneseq
    %v725 = vshrl.u32 %v724, 7
    %vm726 = vcmp.lt.s32.totalorder %v725, 1
    %727 = vst.msk [vmem:[%s713] sm:$0xff] %vm726, %v723
    %s728 = scalar_lea.vmem %s713, 8 [#allocation1]
    %s729 = scalar_lea.vmem %s714, 7 [#allocation0]
    %v730 = vld [vmem:[%s729] ss:$-1 sm:$0xff]
    %v731 = vrot.slane %v730, 7
    %732 = vst [vmem:[%s728] sm:$0xff] %v731
    %s733 = scalar_lea.vmem %s714, 8 [#allocation0]
    %s734 = scalar_lea.vmem %s733, 7 [#allocation0]
    %v735 = vld [vmem:[%s734] ss:$-1 sm:$0xff]
    %v736 = vrot.slane %v735, 7
    %v737 = vlaneseq
    %v738 = vshrl.u32 %v737, 7
    %vm739 = vcmp.lt.s32.totalorder %v738, 1
    %740 = vst.msk [vmem:[%s728] sm:$0xff] %vm739, %v736
    %s741 = scalar_lea.vmem [#allocation1], 224
    %s742 = scalar_lea.vmem [#allocation0], 336
    %s743 = scalar_lea.vmem %s742, 8 [#allocation0]
    %s744 = scalar_lea.vmem %s743, 7 [#allocation0]
    %v745 = vld [vmem:[%s744] ss:$-1 sm:$0xff]
    %v746 = vrot.slane %v745, 7
    %747 = vst [vmem:[%s741] sm:$0xff] %v746
    %s748 = scalar_lea.vmem %s742, 16 [#allocation0]
    %s749 = scalar_lea.vmem %s748, 7 [#allocation0]
    %v750 = vld [vmem:[%s749] ss:$-1 sm:$0xff]
    %v751 = vrot.slane %v750, 7
    %v752 = vlaneseq
    %v753 = vshrl.u32 %v752, 7
    %vm754 = vcmp.lt.s32.totalorder %v753, 1
    %755 = vst.msk [vmem:[%s741] sm:$0xff] %vm754, %v751
    %s756 = scalar_lea.vmem %s741, 8 [#allocation1]
    %s757 = scalar_lea.vmem %s742, 7 [#allocation0]
    %v758 = vld [vmem:[%s757] ss:$-1 sm:$0xff]
    %v759 = vrot.slane %v758, 7
    %760 = vst [vmem:[%s756] sm:$0xff] %v759
    %s761 = scalar_lea.vmem %s742, 8 [#allocation0]
    %s762 = scalar_lea.vmem %s761, 7 [#allocation0]
    %v763 = vld [vmem:[%s762] ss:$-1 sm:$0xff]
    %v764 = vrot.slane %v763, 7
    %v765 = vlaneseq
    %v766 = vshrl.u32 %v765, 7
    %vm767 = vcmp.lt.s32.totalorder %v766, 1
    %768 = vst.msk [vmem:[%s756] sm:$0xff] %vm767, %v764
    %s769 = scalar_lea.vmem [#allocation1], 240
    %s770 = scalar_lea.vmem [#allocation0], 360
    %s771 = scalar_lea.vmem %s770, 8 [#allocation0]
    %s772 = scalar_lea.vmem %s771, 7 [#allocation0]
    %v773 = vld [vmem:[%s772] ss:$-1 sm:$0xff]
    %v774 = vrot.slane %v773, 7
    %775 = vst [vmem:[%s769] sm:$0xff] %v774
    %s776 = scalar_lea.vmem %s770, 16 [#allocation0]
    %s777 = scalar_lea.vmem %s776, 7 [#allocation0]
    %v778 = vld [vmem:[%s777] ss:$-1 sm:$0xff]
    %v779 = vrot.slane %v778, 7
    %v780 = vlaneseq
    %v781 = vshrl.u32 %v780, 7
    %vm782 = vcmp.lt.s32.totalorder %v781, 1
    %783 = vst.msk [vmem:[%s769] sm:$0xff] %vm782, %v779
    %s784 = scalar_lea.vmem %s769, 8 [#allocation1]
    %s785 = scalar_lea.vmem %s770, 7 [#allocation0]
    %v786 = vld [vmem:[%s785] ss:$-1 sm:$0xff]
    %v787 = vrot.slane %v786, 7
    %788 = vst [vmem:[%s784] sm:$0xff] %v787
    %s789 = scalar_lea.vmem %s770, 8 [#allocation0]
    %s790 = scalar_lea.vmem %s789, 7 [#allocation0]
    %v791 = vld [vmem:[%s790] ss:$-1 sm:$0xff]
    %v792 = vrot.slane %v791, 7
    %v793 = vlaneseq
    %v794 = vshrl.u32 %v793, 7
    %vm795 = vcmp.lt.s32.totalorder %v794, 1
    %796 = vst.msk [vmem:[%s784] sm:$0xff] %vm795, %v792
    %s797 = scalar_lea.vmem [#allocation1], 256
    %s798 = scalar_lea.vmem [#allocation0], 384
    %s799 = scalar_lea.vmem %s798, 8 [#allocation0]
    %s800 = scalar_lea.vmem %s799, 7 [#allocation0]
    %v801 = vld [vmem:[%s800] ss:$-1 sm:$0xff]
    %v802 = vrot.slane %v801, 7
    %803 = vst [vmem:[%s797] sm:$0xff] %v802
    %s804 = scalar_lea.vmem %s798, 16 [#allocation0]
    %s805 = scalar_lea.vmem %s804, 7 [#allocation0]
    %v806 = vld [vmem:[%s805] ss:$-1 sm:$0xff]
    %v807 = vrot.slane %v806, 7
    %v808 = vlaneseq
    %v809 = vshrl.u32 %v808, 7
    %vm810 = vcmp.lt.s32.totalorder %v809, 1
    %811 = vst.msk [vmem:[%s797] sm:$0xff] %vm810, %v807
    %s812 = scalar_lea.vmem %s797, 8 [#allocation1]
    %s813 = scalar_lea.vmem %s798, 7 [#allocation0]
    %v814 = vld [vmem:[%s813] ss:$-1 sm:$0xff]
    %v815 = vrot.slane %v814, 7
    %816 = vst [vmem:[%s812] sm:$0xff] %v815
    %s817 = scalar_lea.vmem %s798, 8 [#allocation0]
    %s818 = scalar_lea.vmem %s817, 7 [#allocation0]
    %v819 = vld [vmem:[%s818] ss:$-1 sm:$0xff]
    %v820 = vrot.slane %v819, 7
    %v821 = vlaneseq
    %v822 = vshrl.u32 %v821, 7
    %vm823 = vcmp.lt.s32.totalorder %v822, 1
    %824 = vst.msk [vmem:[%s812] sm:$0xff] %vm823, %v820
    %s825 = scalar_lea.vmem [#allocation1], 272
    %s826 = scalar_lea.vmem [#allocation0], 408
    %s827 = scalar_lea.vmem %s826, 8 [#allocation0]
    %s828 = scalar_lea.vmem %s827, 7 [#allocation0]
    %v829 = vld [vmem:[%s828] ss:$-1 sm:$0xff]
    %v830 = vrot.slane %v829, 7
    %831 = vst [vmem:[%s825] sm:$0xff] %v830
    %s832 = scalar_lea.vmem %s826, 16 [#allocation0]
    %s833 = scalar_lea.vmem %s832, 7 [#allocation0]
    %v834 = vld [vmem:[%s833] ss:$-1 sm:$0xff]
    %v835 = vrot.slane %v834, 7
    %v836 = vlaneseq
    %v837 = vshrl.u32 %v836, 7
    %vm838 = vcmp.lt.s32.totalorder %v837, 1
    %839 = vst.msk [vmem:[%s825] sm:$0xff] %vm838, %v835
    %s840 = scalar_lea.vmem %s825, 8 [#allocation1]
    %s841 = scalar_lea.vmem %s826, 7 [#allocation0]
    %v842 = vld [vmem:[%s841] ss:$-1 sm:$0xff]
    %v843 = vrot.slane %v842, 7
    %844 = vst [vmem:[%s840] sm:$0xff] %v843
    %s845 = scalar_lea.vmem %s826, 8 [#allocation0]
    %s846 = scalar_lea.vmem %s845, 7 [#allocation0]
    %v847 = vld [vmem:[%s846] ss:$-1 sm:$0xff]
    %v848 = vrot.slane %v847, 7
    %v849 = vlaneseq
    %v850 = vshrl.u32 %v849, 7
    %vm851 = vcmp.lt.s32.totalorder %v850, 1
    %852 = vst.msk [vmem:[%s840] sm:$0xff] %vm851, %v848
    %s853 = scalar_lea.vmem [#allocation1], 288
    %s854 = scalar_lea.vmem [#allocation0], 432
    %s855 = scalar_lea.vmem %s854, 8 [#allocation0]
    %s856 = scalar_lea.vmem %s855, 7 [#allocation0]
    %v857 = vld [vmem:[%s856] ss:$-1 sm:$0xff]
    %v858 = vrot.slane %v857, 7
    %859 = vst [vmem:[%s853] sm:$0xff] %v858
    %s860 = scalar_lea.vmem %s854, 16 [#allocation0]
    %s861 = scalar_lea.vmem %s860, 7 [#allocation0]
    %v862 = vld [vmem:[%s861] ss:$-1 sm:$0xff]
    %v863 = vrot.slane %v862, 7
    %v864 = vlaneseq
    %v865 = vshrl.u32 %v864, 7
    %vm866 = vcmp.lt.s32.totalorder %v865, 1
    %867 = vst.msk [vmem:[%s853] sm:$0xff] %vm866, %v863
    %s868 = scalar_lea.vmem %s853, 8 [#allocation1]
    %s869 = scalar_lea.vmem %s854, 7 [#allocation0]
    %v870 = vld [vmem:[%s869] ss:$-1 sm:$0xff]
    %v871 = vrot.slane %v870, 7
    %872 = vst [vmem:[%s868] sm:$0xff] %v871
    %s873 = scalar_lea.vmem %s854, 8 [#allocation0]
    %s874 = scalar_lea.vmem %s873, 7 [#allocation0]
    %v875 = vld [vmem:[%s874] ss:$-1 sm:$0xff]
    %v876 = vrot.slane %v875, 7
    %v877 = vlaneseq
    %v878 = vshrl.u32 %v877, 7
    %vm879 = vcmp.lt.s32.totalorder %v878, 1
    %880 = vst.msk [vmem:[%s868] sm:$0xff] %vm879, %v876
    %s881 = scalar_lea.vmem [#allocation1], 304
    %s882 = scalar_lea.vmem [#allocation0], 456
    %s883 = scalar_lea.vmem %s882, 8 [#allocation0]
    %s884 = scalar_lea.vmem %s883, 7 [#allocation0]
    %v885 = vld [vmem:[%s884] ss:$-1 sm:$0xff]
    %v886 = vrot.slane %v885, 7
    %887 = vst [vmem:[%s881] sm:$0xff] %v886
    %s888 = scalar_lea.vmem %s882, 16 [#allocation0]
    %s889 = scalar_lea.vmem %s888, 7 [#allocation0]
    %v890 = vld [vmem:[%s889] ss:$-1 sm:$0xff]
    %v891 = vrot.slane %v890, 7
    %v892 = vlaneseq
    %v893 = vshrl.u32 %v892, 7
    %vm894 = vcmp.lt.s32.totalorder %v893, 1
    %895 = vst.msk [vmem:[%s881] sm:$0xff] %vm894, %v891
    %s896 = scalar_lea.vmem %s881, 8 [#allocation1]
    %s897 = scalar_lea.vmem %s882, 7 [#allocation0]
    %v898 = vld [vmem:[%s897] ss:$-1 sm:$0xff]
    %v899 = vrot.slane %v898, 7
    %900 = vst [vmem:[%s896] sm:$0xff] %v899
    %s901 = scalar_lea.vmem %s882, 8 [#allocation0]
    %s902 = scalar_lea.vmem %s901, 7 [#allocation0]
    %v903 = vld [vmem:[%s902] ss:$-1 sm:$0xff]
    %v904 = vrot.slane %v903, 7
    %v905 = vlaneseq
    %v906 = vshrl.u32 %v905, 7
    %vm907 = vcmp.lt.s32.totalorder %v906, 1
    %908 = vst.msk [vmem:[%s896] sm:$0xff] %vm907, %v904
    %s909 = scalar_lea.vmem [#allocation1], 320
    %s910 = scalar_lea.vmem [#allocation0], 480
    %s911 = scalar_lea.vmem %s910, 8 [#allocation0]
    %s912 = scalar_lea.vmem %s911, 7 [#allocation0]
    %v913 = vld [vmem:[%s912] ss:$-1 sm:$0xff]
    %v914 = vrot.slane %v913, 7
    %915 = vst [vmem:[%s909] sm:$0xff] %v914
    %s916 = scalar_lea.vmem %s910, 16 [#allocation0]
    %s917 = scalar_lea.vmem %s916, 7 [#allocation0]
    %v918 = vld [vmem:[%s917] ss:$-1 sm:$0xff]
    %v919 = vrot.slane %v918, 7
    %v920 = vlaneseq
    %v921 = vshrl.u32 %v920, 7
    %vm922 = vcmp.lt.s32.totalorder %v921, 1
    %923 = vst.msk [vmem:[%s909] sm:$0xff] %vm922, %v919
    %s924 = scalar_lea.vmem %s909, 8 [#allocation1]
    %s925 = scalar_lea.vmem %s910, 7 [#allocation0]
    %v926 = vld [vmem:[%s925] ss:$-1 sm:$0xff]
    %v927 = vrot.slane %v926, 7
    %928 = vst [vmem:[%s924] sm:$0xff] %v927
    %s929 = scalar_lea.vmem %s910, 8 [#allocation0]
    %s930 = scalar_lea.vmem %s929, 7 [#allocation0]
    %v931 = vld [vmem:[%s930] ss:$-1 sm:$0xff]
    %v932 = vrot.slane %v931, 7
    %v933 = vlaneseq
    %v934 = vshrl.u32 %v933, 7
    %vm935 = vcmp.lt.s32.totalorder %v934, 1
    %936 = vst.msk [vmem:[%s924] sm:$0xff] %vm935, %v932
    %s937 = scalar_lea.vmem [#allocation1], 336
    %s938 = scalar_lea.vmem [#allocation0], 504
    %s939 = scalar_lea.vmem %s938, 8 [#allocation0]
    %s940 = scalar_lea.vmem %s939, 7 [#allocation0]
    %v941 = vld [vmem:[%s940] ss:$-1 sm:$0xff]
    %v942 = vrot.slane %v941, 7
    %943 = vst [vmem:[%s937] sm:$0xff] %v942
    %s944 = scalar_lea.vmem %s938, 16 [#allocation0]
    %s945 = scalar_lea.vmem %s944, 7 [#allocation0]
    %v946 = vld [vmem:[%s945] ss:$-1 sm:$0xff]
    %v947 = vrot.slane %v946, 7
    %v948 = vlaneseq
    %v949 = vshrl.u32 %v948, 7
    %vm950 = vcmp.lt.s32.totalorder %v949, 1
    %951 = vst.msk [vmem:[%s937] sm:$0xff] %vm950, %v947
    %s952 = scalar_lea.vmem %s937, 8 [#allocation1]
    %s953 = scalar_lea.vmem %s938, 7 [#allocation0]
    %v954 = vld [vmem:[%s953] ss:$-1 sm:$0xff]
    %v955 = vrot.slane %v954, 7
    %956 = vst [vmem:[%s952] sm:$0xff] %v955
    %s957 = scalar_lea.vmem %s938, 8 [#allocation0]
    %s958 = scalar_lea.vmem %s957, 7 [#allocation0]
    %v959 = vld [vmem:[%s958] ss:$-1 sm:$0xff]
    %v960 = vrot.slane %v959, 7
    %v961 = vlaneseq
    %v962 = vshrl.u32 %v961, 7
    %vm963 = vcmp.lt.s32.totalorder %v962, 1
    %964 = vst.msk [vmem:[%s952] sm:$0xff] %vm963, %v960
    %s965 = scalar_lea.vmem [#allocation1], 352
    %s966 = scalar_lea.vmem [#allocation0], 528
    %s967 = scalar_lea.vmem %s966, 8 [#allocation0]
    %s968 = scalar_lea.vmem %s967, 7 [#allocation0]
    %v969 = vld [vmem:[%s968] ss:$-1 sm:$0xff]
    %v970 = vrot.slane %v969, 7
    %971 = vst [vmem:[%s965] sm:$0xff] %v970
    %s972 = scalar_lea.vmem %s966, 16 [#allocation0]
    %s973 = scalar_lea.vmem %s972, 7 [#allocation0]
    %v974 = vld [vmem:[%s973] ss:$-1 sm:$0xff]
    %v975 = vrot.slane %v974, 7
    %v976 = vlaneseq
    %v977 = vshrl.u32 %v976, 7
    %vm978 = vcmp.lt.s32.totalorder %v977, 1
    %979 = vst.msk [vmem:[%s965] sm:$0xff] %vm978, %v975
    %s980 = scalar_lea.vmem %s965, 8 [#allocation1]
    %s981 = scalar_lea.vmem %s966, 7 [#allocation0]
    %v982 = vld [vmem:[%s981] ss:$-1 sm:$0xff]
    %v983 = vrot.slane %v982, 7
    %984 = vst [vmem:[%s980] sm:$0xff] %v983
    %s985 = scalar_lea.vmem %s966, 8 [#allocation0]
    %s986 = scalar_lea.vmem %s985, 7 [#allocation0]
    %v987 = vld [vmem:[%s986] ss:$-1 sm:$0xff]
    %v988 = vrot.slane %v987, 7
    %v989 = vlaneseq
    %v990 = vshrl.u32 %v989, 7
    %vm991 = vcmp.lt.s32.totalorder %v990, 1
    %992 = vst.msk [vmem:[%s980] sm:$0xff] %vm991, %v988
    %s993 = scalar_lea.vmem [#allocation1], 368
    %s994 = scalar_lea.vmem [#allocation0], 552
    %s995 = scalar_lea.vmem %s994, 8 [#allocation0]
    %s996 = scalar_lea.vmem %s995, 7 [#allocation0]
    %v997 = vld [vmem:[%s996] ss:$-1 sm:$0xff]
    %v998 = vrot.slane %v997, 7
    %999 = vst [vmem:[%s993] sm:$0xff] %v998
    %s1000 = scalar_lea.vmem %s994, 16 [#allocation0]
    %s1001 = scalar_lea.vmem %s1000, 7 [#allocation0]
    %v1002 = vld [vmem:[%s1001] ss:$-1 sm:$0xff]
    %v1003 = vrot.slane %v1002, 7
    %v1004 = vlaneseq
    %v1005 = vshrl.u32 %v1004, 7
    %vm1006 = vcmp.lt.s32.totalorder %v1005, 1
    %1007 = vst.msk [vmem:[%s993] sm:$0xff] %vm1006, %v1003
    %s1008 = scalar_lea.vmem %s993, 8 [#allocation1]
    %s1009 = scalar_lea.vmem %s994, 7 [#allocation0]
    %v1010 = vld [vmem:[%s1009] ss:$-1 sm:$0xff]
    %v1011 = vrot.slane %v1010, 7
    %1012 = vst [vmem:[%s1008] sm:$0xff] %v1011
    %s1013 = scalar_lea.vmem %s994, 8 [#allocation0]
    %s1014 = scalar_lea.vmem %s1013, 7 [#allocation0]
    %v1015 = vld [vmem:[%s1014] ss:$-1 sm:$0xff]
    %v1016 = vrot.slane %v1015, 7
    %v1017 = vlaneseq
    %v1018 = vshrl.u32 %v1017, 7
    %vm1019 = vcmp.lt.s32.totalorder %v1018, 1
    %1020 = vst.msk [vmem:[%s1008] sm:$0xff] %vm1019, %v1016
    %s1021 = scalar_lea.vmem [#allocation1], 384
    %s1022 = scalar_lea.vmem [#allocation0], 576
    %s1023 = scalar_lea.vmem %s1022, 8 [#allocation0]
    %s1024 = scalar_lea.vmem %s1023, 7 [#allocation0]
    %v1025 = vld [vmem:[%s1024] ss:$-1 sm:$0xff]
    %v1026 = vrot.slane %v1025, 7
    %1027 = vst [vmem:[%s1021] sm:$0xff] %v1026
    %s1028 = scalar_lea.vmem %s1022, 16 [#allocation0]
    %s1029 = scalar_lea.vmem %s1028, 7 [#allocation0]
    %v1030 = vld [vmem:[%s1029] ss:$-1 sm:$0xff]
    %v1031 = vrot.slane %v1030, 7
    %v1032 = vlaneseq
    %v1033 = vshrl.u32 %v1032, 7
    %vm1034 = vcmp.lt.s32.totalorder %v1033, 1
    %1035 = vst.msk [vmem:[%s1021] sm:$0xff] %vm1034, %v1031
    %s1036 = scalar_lea.vmem %s1021, 8 [#allocation1]
    %s1037 = scalar_lea.vmem %s1022, 7 [#allocation0]
    %v1038 = vld [vmem:[%s1037] ss:$-1 sm:$0xff]
    %v1039 = vrot.slane %v1038, 7
    %1040 = vst [vmem:[%s1036] sm:$0xff] %v1039
    %s1041 = scalar_lea.vmem %s1022, 8 [#allocation0]
    %s1042 = scalar_lea.vmem %s1041, 7 [#allocation0]
    %v1043 = vld [vmem:[%s1042] ss:$-1 sm:$0xff]
    %v1044 = vrot.slane %v1043, 7
    %v1045 = vlaneseq
    %v1046 = vshrl.u32 %v1045, 7
    %vm1047 = vcmp.lt.s32.totalorder %v1046, 1
    %1048 = vst.msk [vmem:[%s1036] sm:$0xff] %vm1047, %v1044
    %s1049 = scalar_lea.vmem [#allocation1], 400
    %s1050 = scalar_lea.vmem [#allocation0], 600
    %s1051 = scalar_lea.vmem %s1050, 8 [#allocation0]
    %s1052 = scalar_lea.vmem %s1051, 7 [#allocation0]
    %v1053 = vld [vmem:[%s1052] ss:$-1 sm:$0xff]
    %v1054 = vrot.slane %v1053, 7
    %1055 = vst [vmem:[%s1049] sm:$0xff] %v1054
    %s1056 = scalar_lea.vmem %s1050, 16 [#allocation0]
    %s1057 = scalar_lea.vmem %s1056, 7 [#allocation0]
    %v1058 = vld [vmem:[%s1057] ss:$-1 sm:$0xff]
    %v1059 = vrot.slane %v1058, 7
    %v1060 = vlaneseq
    %v1061 = vshrl.u32 %v1060, 7
    %vm1062 = vcmp.lt.s32.totalorder %v1061, 1
    %1063 = vst.msk [vmem:[%s1049] sm:$0xff] %vm1062, %v1059
    %s1064 = scalar_lea.vmem %s1049, 8 [#allocation1]
    %s1065 = scalar_lea.vmem %s1050, 7 [#allocation0]
    %v1066 = vld [vmem:[%s1065] ss:$-1 sm:$0xff]
    %v1067 = vrot.slane %v1066, 7
    %1068 = vst [vmem:[%s1064] sm:$0xff] %v1067
    %s1069 = scalar_lea.vmem %s1050, 8 [#allocation0]
    %s1070 = scalar_lea.vmem %s1069, 7 [#allocation0]
    %v1071 = vld [vmem:[%s1070] ss:$-1 sm:$0xff]
    %v1072 = vrot.slane %v1071, 7
    %v1073 = vlaneseq
    %v1074 = vshrl.u32 %v1073, 7
    %vm1075 = vcmp.lt.s32.totalorder %v1074, 1
    %1076 = vst.msk [vmem:[%s1064] sm:$0xff] %vm1075, %v1072
    %s1077 = scalar_lea.vmem [#allocation1], 416
    %s1078 = scalar_lea.vmem [#allocation0], 624
    %s1079 = scalar_lea.vmem %s1078, 8 [#allocation0]
    %s1080 = scalar_lea.vmem %s1079, 7 [#allocation0]
    %v1081 = vld [vmem:[%s1080] ss:$-1 sm:$0xff]
    %v1082 = vrot.slane %v1081, 7
    %1083 = vst [vmem:[%s1077] sm:$0xff] %v1082
    %s1084 = scalar_lea.vmem %s1078, 16 [#allocation0]
    %s1085 = scalar_lea.vmem %s1084, 7 [#allocation0]
    %v1086 = vld [vmem:[%s1085] ss:$-1 sm:$0xff]
    %v1087 = vrot.slane %v1086, 7
    %v1088 = vlaneseq
    %v1089 = vshrl.u32 %v1088, 7
    %vm1090 = vcmp.lt.s32.totalorder %v1089, 1
    %1091 = vst.msk [vmem:[%s1077] sm:$0xff] %vm1090, %v1087
    %s1092 = scalar_lea.vmem %s1077, 8 [#allocation1]
    %s1093 = scalar_lea.vmem %s1078, 7 [#allocation0]
    %v1094 = vld [vmem:[%s1093] ss:$-1 sm:$0xff]
    %v1095 = vrot.slane %v1094, 7
    %1096 = vst [vmem:[%s1092] sm:$0xff] %v1095
    %s1097 = scalar_lea.vmem %s1078, 8 [#allocation0]
    %s1098 = scalar_lea.vmem %s1097, 7 [#allocation0]
    %v1099 = vld [vmem:[%s1098] ss:$-1 sm:$0xff]
    %v1100 = vrot.slane %v1099, 7
    %v1101 = vlaneseq
    %v1102 = vshrl.u32 %v1101, 7
    %vm1103 = vcmp.lt.s32.totalorder %v1102, 1
    %1104 = vst.msk [vmem:[%s1092] sm:$0xff] %vm1103, %v1100
    %s1105 = scalar_lea.vmem [#allocation1], 432
    %s1106 = scalar_lea.vmem [#allocation0], 648
    %s1107 = scalar_lea.vmem %s1106, 8 [#allocation0]
    %s1108 = scalar_lea.vmem %s1107, 7 [#allocation0]
    %v1109 = vld [vmem:[%s1108] ss:$-1 sm:$0xff]
    %v1110 = vrot.slane %v1109, 7
    %1111 = vst [vmem:[%s1105] sm:$0xff] %v1110
    %s1112 = scalar_lea.vmem %s1106, 16 [#allocation0]
    %s1113 = scalar_lea.vmem %s1112, 7 [#allocation0]
    %v1114 = vld [vmem:[%s1113] ss:$-1 sm:$0xff]
    %v1115 = vrot.slane %v1114, 7
    %v1116 = vlaneseq
    %v1117 = vshrl.u32 %v1116, 7
    %vm1118 = vcmp.lt.s32.totalorder %v1117, 1
    %1119 = vst.msk [vmem:[%s1105] sm:$0xff] %vm1118, %v1115
    %s1120 = scalar_lea.vmem %s1105, 8 [#allocation1]
    %s1121 = scalar_lea.vmem %s1106, 7 [#allocation0]
    %v1122 = vld [vmem:[%s1121] ss:$-1 sm:$0xff]
    %v1123 = vrot.slane %v1122, 7
    %1124 = vst [vmem:[%s1120] sm:$0xff] %v1123
    %s1125 = scalar_lea.vmem %s1106, 8 [#allocation0]
    %s1126 = scalar_lea.vmem %s1125, 7 [#allocation0]
    %v1127 = vld [vmem:[%s1126] ss:$-1 sm:$0xff]
    %v1128 = vrot.slane %v1127, 7
    %v1129 = vlaneseq
    %v1130 = vshrl.u32 %v1129, 7
    %vm1131 = vcmp.lt.s32.totalorder %v1130, 1
    %1132 = vst.msk [vmem:[%s1120] sm:$0xff] %vm1131, %v1128
    %s1133 = scalar_lea.vmem [#allocation1], 448
    %s1134 = scalar_lea.vmem [#allocation0], 672
    %s1135 = scalar_lea.vmem %s1134, 8 [#allocation0]
    %s1136 = scalar_lea.vmem %s1135, 7 [#allocation0]
    %v1137 = vld [vmem:[%s1136] ss:$-1 sm:$0xff]
    %v1138 = vrot.slane %v1137, 7
    %1139 = vst [vmem:[%s1133] sm:$0xff] %v1138
    %s1140 = scalar_lea.vmem %s1134, 16 [#allocation0]
    %s1141 = scalar_lea.vmem %s1140, 7 [#allocation0]
    %v1142 = vld [vmem:[%s1141] ss:$-1 sm:$0xff]
    %v1143 = vrot.slane %v1142, 7
    %v1144 = vlaneseq
    %v1145 = vshrl.u32 %v1144, 7
    %vm1146 = vcmp.lt.s32.totalorder %v1145, 1
    %1147 = vst.msk [vmem:[%s1133] sm:$0xff] %vm1146, %v1143
    %s1148 = scalar_lea.vmem %s1133, 8 [#allocation1]
    %s1149 = scalar_lea.vmem %s1134, 7 [#allocation0]
    %v1150 = vld [vmem:[%s1149] ss:$-1 sm:$0xff]
    %v1151 = vrot.slane %v1150, 7
    %1152 = vst [vmem:[%s1148] sm:$0xff] %v1151
    %s1153 = scalar_lea.vmem %s1134, 8 [#allocation0]
    %s1154 = scalar_lea.vmem %s1153, 7 [#allocation0]
    %v1155 = vld [vmem:[%s1154] ss:$-1 sm:$0xff]
    %v1156 = vrot.slane %v1155, 7
    %v1157 = vlaneseq
    %v1158 = vshrl.u32 %v1157, 7
    %vm1159 = vcmp.lt.s32.totalorder %v1158, 1
    %1160 = vst.msk [vmem:[%s1148] sm:$0xff] %vm1159, %v1156
    %s1161 = scalar_lea.vmem [#allocation1], 464
    %s1162 = scalar_lea.vmem [#allocation0], 696
    %s1163 = scalar_lea.vmem %s1162, 8 [#allocation0]
    %s1164 = scalar_lea.vmem %s1163, 7 [#allocation0]
    %v1165 = vld [vmem:[%s1164] ss:$-1 sm:$0xff]
    %v1166 = vrot.slane %v1165, 7
    %1167 = vst [vmem:[%s1161] sm:$0xff] %v1166
    %s1168 = scalar_lea.vmem %s1162, 16 [#allocation0]
    %s1169 = scalar_lea.vmem %s1168, 7 [#allocation0]
    %v1170 = vld [vmem:[%s1169] ss:$-1 sm:$0xff]
    %v1171 = vrot.slane %v1170, 7
    %v1172 = vlaneseq
    %v1173 = vshrl.u32 %v1172, 7
    %vm1174 = vcmp.lt.s32.totalorder %v1173, 1
    %1175 = vst.msk [vmem:[%s1161] sm:$0xff] %vm1174, %v1171
    %s1176 = scalar_lea.vmem %s1161, 8 [#allocation1]
    %s1177 = scalar_lea.vmem %s1162, 7 [#allocation0]
    %v1178 = vld [vmem:[%s1177] ss:$-1 sm:$0xff]
    %v1179 = vrot.slane %v1178, 7
    %1180 = vst [vmem:[%s1176] sm:$0xff] %v1179
    %s1181 = scalar_lea.vmem %s1162, 8 [#allocation0]
    %s1182 = scalar_lea.vmem %s1181, 7 [#allocation0]
    %v1183 = vld [vmem:[%s1182] ss:$-1 sm:$0xff]
    %v1184 = vrot.slane %v1183, 7
    %v1185 = vlaneseq
    %v1186 = vshrl.u32 %v1185, 7
    %vm1187 = vcmp.lt.s32.totalorder %v1186, 1
    %1188 = vst.msk [vmem:[%s1176] sm:$0xff] %vm1187, %v1184
    %s1189 = scalar_lea.vmem [#allocation1], 480
    %s1190 = scalar_lea.vmem [#allocation0], 720
    %s1191 = scalar_lea.vmem %s1190, 8 [#allocation0]
    %s1192 = scalar_lea.vmem %s1191, 7 [#allocation0]
    %v1193 = vld [vmem:[%s1192] ss:$-1 sm:$0xff]
    %v1194 = vrot.slane %v1193, 7
    %1195 = vst [vmem:[%s1189] sm:$0xff] %v1194
    %s1196 = scalar_lea.vmem %s1190, 16 [#allocation0]
    %s1197 = scalar_lea.vmem %s1196, 7 [#allocation0]
    %v1198 = vld [vmem:[%s1197] ss:$-1 sm:$0xff]
    %v1199 = vrot.slane %v1198, 7
    %v1200 = vlaneseq
    %v1201 = vshrl.u32 %v1200, 7
    %vm1202 = vcmp.lt.s32.totalorder %v1201, 1
    %1203 = vst.msk [vmem:[%s1189] sm:$0xff] %vm1202, %v1199
    %s1204 = scalar_lea.vmem %s1189, 8 [#allocation1]
    %s1205 = scalar_lea.vmem %s1190, 7 [#allocation0]
    %v1206 = vld [vmem:[%s1205] ss:$-1 sm:$0xff]
    %v1207 = vrot.slane %v1206, 7
    %1208 = vst [vmem:[%s1204] sm:$0xff] %v1207
    %s1209 = scalar_lea.vmem %s1190, 8 [#allocation0]
    %s1210 = scalar_lea.vmem %s1209, 7 [#allocation0]
    %v1211 = vld [vmem:[%s1210] ss:$-1 sm:$0xff]
    %v1212 = vrot.slane %v1211, 7
    %v1213 = vlaneseq
    %v1214 = vshrl.u32 %v1213, 7
    %vm1215 = vcmp.lt.s32.totalorder %v1214, 1
    %1216 = vst.msk [vmem:[%s1204] sm:$0xff] %vm1215, %v1212
    %s1217 = scalar_lea.vmem [#allocation1], 496
    %s1218 = scalar_lea.vmem [#allocation0], 744
    %s1219 = scalar_lea.vmem %s1218, 8 [#allocation0]
    %s1220 = scalar_lea.vmem %s1219, 7 [#allocation0]
    %v1221 = vld [vmem:[%s1220] ss:$-1 sm:$0xff]
    %v1222 = vrot.slane %v1221, 7
    %1223 = vst [vmem:[%s1217] sm:$0xff] %v1222
    %s1224 = scalar_lea.vmem %s1218, 16 [#allocation0]
    %s1225 = scalar_lea.vmem %s1224, 7 [#allocation0]
    %v1226 = vld [vmem:[%s1225] ss:$-1 sm:$0xff]
    %v1227 = vrot.slane %v1226, 7
    %v1228 = vlaneseq
    %v1229 = vshrl.u32 %v1228, 7
    %vm1230 = vcmp.lt.s32.totalorder %v1229, 1
    %1231 = vst.msk [vmem:[%s1217] sm:$0xff] %vm1230, %v1227
    %s1232 = scalar_lea.vmem %s1217, 8 [#allocation1]
    %s1233 = scalar_lea.vmem %s1218, 7 [#allocation0]
    %v1234 = vld [vmem:[%s1233] ss:$-1 sm:$0xff]
    %v1235 = vrot.slane %v1234, 7
    %1236 = vst [vmem:[%s1232] sm:$0xff] %v1235
    %s1237 = scalar_lea.vmem %s1218, 8 [#allocation0]
    %s1238 = scalar_lea.vmem %s1237, 7 [#allocation0]
    %v1239 = vld [vmem:[%s1238] ss:$-1 sm:$0xff]
    %v1240 = vrot.slane %v1239, 7
    %v1241 = vlaneseq
    %v1242 = vshrl.u32 %v1241, 7
    %vm1243 = vcmp.lt.s32.totalorder %v1242, 1
    %1244 = vst.msk [vmem:[%s1232] sm:$0xff] %vm1243, %v1240
    %s1245 = scalar_lea.vmem [#allocation1], 512
    %s1246 = scalar_lea.vmem [#allocation0], 768
    %s1247 = scalar_lea.vmem %s1246, 8 [#allocation0]
    %s1248 = scalar_lea.vmem %s1247, 7 [#allocation0]
    %v1249 = vld [vmem:[%s1248] ss:$-1 sm:$0xff]
    %v1250 = vrot.slane %v1249, 7
    %1251 = vst [vmem:[%s1245] sm:$0xff] %v1250
    %s1252 = scalar_lea.vmem %s1246, 16 [#allocation0]
    %s1253 = scalar_lea.vmem %s1252, 7 [#allocation0]
    %v1254 = vld [vmem:[%s1253] ss:$-1 sm:$0xff]
    %v1255 = vrot.slane %v1254, 7
    %v1256 = vlaneseq
    %v1257 = vshrl.u32 %v1256, 7
    %vm1258 = vcmp.lt.s32.totalorder %v1257, 1
    %1259 = vst.msk [vmem:[%s1245] sm:$0xff] %vm1258, %v1255
    %s1260 = scalar_lea.vmem %s1245, 8 [#allocation1]
    %s1261 = scalar_lea.vmem %s1246, 7 [#allocation0]
    %v1262 = vld [vmem:[%s1261] ss:$-1 sm:$0xff]
    %v1263 = vrot.slane %v1262, 7
    %1264 = vst [vmem:[%s1260] sm:$0xff] %v1263
    %s1265 = scalar_lea.vmem %s1246, 8 [#allocation0]
    %s1266 = scalar_lea.vmem %s1265, 7 [#allocation0]
    %v1267 = vld [vmem:[%s1266] ss:$-1 sm:$0xff]
    %v1268 = vrot.slane %v1267, 7
    %v1269 = vlaneseq
    %v1270 = vshrl.u32 %v1269, 7
    %vm1271 = vcmp.lt.s32.totalorder %v1270, 1
    %1272 = vst.msk [vmem:[%s1260] sm:$0xff] %vm1271, %v1268
    %s1273 = scalar_lea.vmem [#allocation1], 528
    %s1274 = scalar_lea.vmem [#allocation0], 792
    %s1275 = scalar_lea.vmem %s1274, 8 [#allocation0]
    %s1276 = scalar_lea.vmem %s1275, 7 [#allocation0]
    %v1277 = vld [vmem:[%s1276] ss:$-1 sm:$0xff]
    %v1278 = vrot.slane %v1277, 7
    %1279 = vst [vmem:[%s1273] sm:$0xff] %v1278
    %s1280 = scalar_lea.vmem %s1274, 16 [#allocation0]
    %s1281 = scalar_lea.vmem %s1280, 7 [#allocation0]
    %v1282 = vld [vmem:[%s1281] ss:$-1 sm:$0xff]
    %v1283 = vrot.slane %v1282, 7
    %v1284 = vlaneseq
    %v1285 = vshrl.u32 %v1284, 7
    %vm1286 = vcmp.lt.s32.totalorder %v1285, 1
    %1287 = vst.msk [vmem:[%s1273] sm:$0xff] %vm1286, %v1283
    %s1288 = scalar_lea.vmem %s1273, 8 [#allocation1]
    %s1289 = scalar_lea.vmem %s1274, 7 [#allocation0]
    %v1290 = vld [vmem:[%s1289] ss:$-1 sm:$0xff]
    %v1291 = vrot.slane %v1290, 7
    %1292 = vst [vmem:[%s1288] sm:$0xff] %v1291
    %s1293 = scalar_lea.vmem %s1274, 8 [#allocation0]
    %s1294 = scalar_lea.vmem %s1293, 7 [#allocation0]
    %v1295 = vld [vmem:[%s1294] ss:$-1 sm:$0xff]
    %v1296 = vrot.slane %v1295, 7
    %v1297 = vlaneseq
    %v1298 = vshrl.u32 %v1297, 7
    %vm1299 = vcmp.lt.s32.totalorder %v1298, 1
    %1300 = vst.msk [vmem:[%s1288] sm:$0xff] %vm1299, %v1296
    %s1301 = scalar_lea.vmem [#allocation1], 544
    %s1302 = scalar_lea.vmem [#allocation0], 816
    %s1303 = scalar_lea.vmem %s1302, 8 [#allocation0]
    %s1304 = scalar_lea.vmem %s1303, 7 [#allocation0]
    %v1305 = vld [vmem:[%s1304] ss:$-1 sm:$0xff]
    %v1306 = vrot.slane %v1305, 7
    %1307 = vst [vmem:[%s1301] sm:$0xff] %v1306
    %s1308 = scalar_lea.vmem %s1302, 16 [#allocation0]
    %s1309 = scalar_lea.vmem %s1308, 7 [#allocation0]
    %v1310 = vld [vmem:[%s1309] ss:$-1 sm:$0xff]
    %v1311 = vrot.slane %v1310, 7
    %v1312 = vlaneseq
    %v1313 = vshrl.u32 %v1312, 7
    %vm1314 = vcmp.lt.s32.totalorder %v1313, 1
    %1315 = vst.msk [vmem:[%s1301] sm:$0xff] %vm1314, %v1311
    %s1316 = scalar_lea.vmem %s1301, 8 [#allocation1]
    %s1317 = scalar_lea.vmem %s1302, 7 [#allocation0]
    %v1318 = vld [vmem:[%s1317] ss:$-1 sm:$0xff]
    %v1319 = vrot.slane %v1318, 7
    %1320 = vst [vmem:[%s1316] sm:$0xff] %v1319
    %s1321 = scalar_lea.vmem %s1302, 8 [#allocation0]
    %s1322 = scalar_lea.vmem %s1321, 7 [#allocation0]
    %v1323 = vld [vmem:[%s1322] ss:$-1 sm:$0xff]
    %v1324 = vrot.slane %v1323, 7
    %v1325 = vlaneseq
    %v1326 = vshrl.u32 %v1325, 7
    %vm1327 = vcmp.lt.s32.totalorder %v1326, 1
    %1328 = vst.msk [vmem:[%s1316] sm:$0xff] %vm1327, %v1324
    %s1329 = scalar_lea.vmem [#allocation1], 560
    %s1330 = scalar_lea.vmem [#allocation0], 840
    %s1331 = scalar_lea.vmem %s1330, 8 [#allocation0]
    %s1332 = scalar_lea.vmem %s1331, 7 [#allocation0]
    %v1333 = vld [vmem:[%s1332] ss:$-1 sm:$0xff]
    %v1334 = vrot.slane %v1333, 7
    %1335 = vst [vmem:[%s1329] sm:$0xff] %v1334
    %s1336 = scalar_lea.vmem %s1330, 16 [#allocation0]
    %s1337 = scalar_lea.vmem %s1336, 7 [#allocation0]
    %v1338 = vld [vmem:[%s1337] ss:$-1 sm:$0xff]
    %v1339 = vrot.slane %v1338, 7
    %v1340 = vlaneseq
    %v1341 = vshrl.u32 %v1340, 7
    %vm1342 = vcmp.lt.s32.totalorder %v1341, 1
    %1343 = vst.msk [vmem:[%s1329] sm:$0xff] %vm1342, %v1339
    %s1344 = scalar_lea.vmem %s1329, 8 [#allocation1]
    %s1345 = scalar_lea.vmem %s1330, 7 [#allocation0]
    %v1346 = vld [vmem:[%s1345] ss:$-1 sm:$0xff]
    %v1347 = vrot.slane %v1346, 7
    %1348 = vst [vmem:[%s1344] sm:$0xff] %v1347
    %s1349 = scalar_lea.vmem %s1330, 8 [#allocation0]
    %s1350 = scalar_lea.vmem %s1349, 7 [#allocation0]
    %v1351 = vld [vmem:[%s1350] ss:$-1 sm:$0xff]
    %v1352 = vrot.slane %v1351, 7
    %v1353 = vlaneseq
    %v1354 = vshrl.u32 %v1353, 7
    %vm1355 = vcmp.lt.s32.totalorder %v1354, 1
    %1356 = vst.msk [vmem:[%s1344] sm:$0xff] %vm1355, %v1352
    %s1357 = scalar_lea.vmem [#allocation1], 576
    %s1358 = scalar_lea.vmem [#allocation0], 864
    %s1359 = scalar_lea.vmem %s1358, 8 [#allocation0]
    %s1360 = scalar_lea.vmem %s1359, 7 [#allocation0]
    %v1361 = vld [vmem:[%s1360] ss:$-1 sm:$0xff]
    %v1362 = vrot.slane %v1361, 7
    %1363 = vst [vmem:[%s1357] sm:$0xff] %v1362
    %s1364 = scalar_lea.vmem %s1358, 16 [#allocation0]
    %s1365 = scalar_lea.vmem %s1364, 7 [#allocation0]
    %v1366 = vld [vmem:[%s1365] ss:$-1 sm:$0xff]
    %v1367 = vrot.slane %v1366, 7
    %v1368 = vlaneseq
    %v1369 = vshrl.u32 %v1368, 7
    %vm1370 = vcmp.lt.s32.totalorder %v1369, 1
    %1371 = vst.msk [vmem:[%s1357] sm:$0xff] %vm1370, %v1367
    %s1372 = scalar_lea.vmem %s1357, 8 [#allocation1]
    %s1373 = scalar_lea.vmem %s1358, 7 [#allocation0]
    %v1374 = vld [vmem:[%s1373] ss:$-1 sm:$0xff]
    %v1375 = vrot.slane %v1374, 7
    %1376 = vst [vmem:[%s1372] sm:$0xff] %v1375
    %s1377 = scalar_lea.vmem %s1358, 8 [#allocation0]
    %s1378 = scalar_lea.vmem %s1377, 7 [#allocation0]
    %v1379 = vld [vmem:[%s1378] ss:$-1 sm:$0xff]
    %v1380 = vrot.slane %v1379, 7
    %v1381 = vlaneseq
    %v1382 = vshrl.u32 %v1381, 7
    %vm1383 = vcmp.lt.s32.totalorder %v1382, 1
    %1384 = vst.msk [vmem:[%s1372] sm:$0xff] %vm1383, %v1380
    %s1385 = scalar_lea.vmem [#allocation1], 592
    %s1386 = scalar_lea.vmem [#allocation0], 888
    %s1387 = scalar_lea.vmem %s1386, 8 [#allocation0]
    %s1388 = scalar_lea.vmem %s1387, 7 [#allocation0]
    %v1389 = vld [vmem:[%s1388] ss:$-1 sm:$0xff]
    %v1390 = vrot.slane %v1389, 7
    %1391 = vst [vmem:[%s1385] sm:$0xff] %v1390
    %s1392 = scalar_lea.vmem %s1386, 16 [#allocation0]
    %s1393 = scalar_lea.vmem %s1392, 7 [#allocation0]
    %v1394 = vld [vmem:[%s1393] ss:$-1 sm:$0xff]
    %v1395 = vrot.slane %v1394, 7
    %v1396 = vlaneseq
    %v1397 = vshrl.u32 %v1396, 7
    %vm1398 = vcmp.lt.s32.totalorder %v1397, 1
    %1399 = vst.msk [vmem:[%s1385] sm:$0xff] %vm1398, %v1395
    %s1400 = scalar_lea.vmem %s1385, 8 [#allocation1]
    %s1401 = scalar_lea.vmem %s1386, 7 [#allocation0]
    %v1402 = vld [vmem:[%s1401] ss:$-1 sm:$0xff]
    %v1403 = vrot.slane %v1402, 7
    %1404 = vst [vmem:[%s1400] sm:$0xff] %v1403
    %s1405 = scalar_lea.vmem %s1386, 8 [#allocation0]
    %s1406 = scalar_lea.vmem %s1405, 7 [#allocation0]
    %v1407 = vld [vmem:[%s1406] ss:$-1 sm:$0xff]
    %v1408 = vrot.slane %v1407, 7
    %v1409 = vlaneseq
    %v1410 = vshrl.u32 %v1409, 7
    %vm1411 = vcmp.lt.s32.totalorder %v1410, 1
    %1412 = vst.msk [vmem:[%s1400] sm:$0xff] %vm1411, %v1408
    %s1413 = scalar_lea.vmem [#allocation1], 608
    %s1414 = scalar_lea.vmem [#allocation0], 912
    %s1415 = scalar_lea.vmem %s1414, 8 [#allocation0]
    %s1416 = scalar_lea.vmem %s1415, 7 [#allocation0]
    %v1417 = vld [vmem:[%s1416] ss:$-1 sm:$0xff]
    %v1418 = vrot.slane %v1417, 7
    %1419 = vst [vmem:[%s1413] sm:$0xff] %v1418
    %s1420 = scalar_lea.vmem %s1414, 16 [#allocation0]
    %s1421 = scalar_lea.vmem %s1420, 7 [#allocation0]
    %v1422 = vld [vmem:[%s1421] ss:$-1 sm:$0xff]
    %v1423 = vrot.slane %v1422, 7
    %v1424 = vlaneseq
    %v1425 = vshrl.u32 %v1424, 7
    %vm1426 = vcmp.lt.s32.totalorder %v1425, 1
    %1427 = vst.msk [vmem:[%s1413] sm:$0xff] %vm1426, %v1423
    %s1428 = scalar_lea.vmem %s1413, 8 [#allocation1]
    %s1429 = scalar_lea.vmem %s1414, 7 [#allocation0]
    %v1430 = vld [vmem:[%s1429] ss:$-1 sm:$0xff]
    %v1431 = vrot.slane %v1430, 7
    %1432 = vst [vmem:[%s1428] sm:$0xff] %v1431
    %s1433 = scalar_lea.vmem %s1414, 8 [#allocation0]
    %s1434 = scalar_lea.vmem %s1433, 7 [#allocation0]
    %v1435 = vld [vmem:[%s1434] ss:$-1 sm:$0xff]
    %v1436 = vrot.slane %v1435, 7
    %v1437 = vlaneseq
    %v1438 = vshrl.u32 %v1437, 7
    %vm1439 = vcmp.lt.s32.totalorder %v1438, 1
    %1440 = vst.msk [vmem:[%s1428] sm:$0xff] %vm1439, %v1436
    %s1441 = scalar_lea.vmem [#allocation1], 624
    %s1442 = scalar_lea.vmem [#allocation0], 936
    %s1443 = scalar_lea.vmem %s1442, 8 [#allocation0]
    %s1444 = scalar_lea.vmem %s1443, 7 [#allocation0]
    %v1445 = vld [vmem:[%s1444] ss:$-1 sm:$0xff]
    %v1446 = vrot.slane %v1445, 7
    %1447 = vst [vmem:[%s1441] sm:$0xff] %v1446
    %s1448 = scalar_lea.vmem %s1442, 16 [#allocation0]
    %s1449 = scalar_lea.vmem %s1448, 7 [#allocation0]
    %v1450 = vld [vmem:[%s1449] ss:$-1 sm:$0xff]
    %v1451 = vrot.slane %v1450, 7
    %v1452 = vlaneseq
    %v1453 = vshrl.u32 %v1452, 7
    %vm1454 = vcmp.lt.s32.totalorder %v1453, 1
    %1455 = vst.msk [vmem:[%s1441] sm:$0xff] %vm1454, %v1451
    %s1456 = scalar_lea.vmem %s1441, 8 [#allocation1]
    %s1457 = scalar_lea.vmem %s1442, 7 [#allocation0]
    %v1458 = vld [vmem:[%s1457] ss:$-1 sm:$0xff]
    %v1459 = vrot.slane %v1458, 7
    %1460 = vst [vmem:[%s1456] sm:$0xff] %v1459
    %s1461 = scalar_lea.vmem %s1442, 8 [#allocation0]
    %s1462 = scalar_lea.vmem %s1461, 7 [#allocation0]
    %v1463 = vld [vmem:[%s1462] ss:$-1 sm:$0xff]
    %v1464 = vrot.slane %v1463, 7
    %v1465 = vlaneseq
    %v1466 = vshrl.u32 %v1465, 7
    %vm1467 = vcmp.lt.s32.totalorder %v1466, 1
    %1468 = vst.msk [vmem:[%s1456] sm:$0xff] %vm1467, %v1464
    // Predicated region
    $region36: #{reverse.11} parent=1 // pred_check
      _
    $region37: #{reverse.11} parent=1 // pred_check_branch
      %1470 = sbr.rel (0) target = $region39
    $region38: #{reverse.11} parent=1 // pred_region
      // Predicated region
      $region40: #{reverse.11} parent=38 // pred_check
        _
      $region41: #{reverse.11} parent=38 // pred_check_branch
        %1472 = sbr.rel (0) target = $region43
      $region42: #{reverse.11} parent=38 // pred_region
        // Predicated region
        $region55: #{reverse.11} parent=42 // pred_check
          _
        $region56: #{reverse.11} parent=42 // pred_check_branch
          %1645 = sbr.rel (0) target = $region58
        $region57: #{reverse.11} parent=42 // pred_region
          loop: start=0, step=1, limit=1
          $region59: #{reverse.11} parent=57 // loop_pre_header
            _
          $region60: #{reverse.11} parent=57 // loop_header
            %s1647 = sphi 0, %s1651
            %p1648 = scmp.ge.s32.totalorder %s1647, 1
            %s1652 = sphi [#allocation1], [#allocation1]
            %s1653 = sphi %s1, %s1
          $region61: #{reverse.11} parent=57 // loop_header_branch
            %1650 = sbr.rel (%p1648) target = $region65
          $region62: #{reverse.11} parent=57 // loop_body
            %v1654 = vld [vmem:[%s1652] sm:$0xff]
            %1655 = vst [vmem:[%s1653] sm:$0xff] %v1654
            %v1656 = vld [vmem:[%s1652 + $0x8] sm:$0xff]
            %1657 = vst [vmem:[%s1653 + $0x8] sm:$0xff] %v1656
            %v1658 = vld [vmem:[%s1652 + $0x10] sm:$0xff]
            %1659 = vst [vmem:[%s1653 + $0x10] sm:$0xff] %v1658
            %v1660 = vld [vmem:[%s1652 + $0x18] sm:$0xff]
            %1661 = vst [vmem:[%s1653 + $0x18] sm:$0xff] %v1660
            %v1662 = vld [vmem:[%s1652 + $0x20] sm:$0xff]
            %1663 = vst [vmem:[%s1653 + $0x20] sm:$0xff] %v1662
            %v1664 = vld [vmem:[%s1652 + $0x28] sm:$0xff]
            %1665 = vst [vmem:[%s1653 + $0x28] sm:$0xff] %v1664
            %v1666 = vld [vmem:[%s1652 + $0x30] sm:$0xff]
            %1667 = vst [vmem:[%s1653 + $0x30] sm:$0xff] %v1666
            %v1668 = vld [vmem:[%s1652 + $0x38] sm:$0xff]
            %1669 = vst [vmem:[%s1653 + $0x38] sm:$0xff] %v1668
            %v1670 = vld [vmem:[%s1652 + $0x40] sm:$0xff]
            %1671 = vst [vmem:[%s1653 + $0x40] sm:$0xff] %v1670
            %v1672 = vld [vmem:[%s1652 + $0x48] sm:$0xff]
            %1673 = vst [vmem:[%s1653 + $0x48] sm:$0xff] %v1672
            %v1674 = vld [vmem:[%s1652 + $0x50] sm:$0xff]
            %1675 = vst [vmem:[%s1653 + $0x50] sm:$0xff] %v1674
            %v1676 = vld [vmem:[%s1652 + $0x58] sm:$0xff]
            %1677 = vst [vmem:[%s1653 + $0x58] sm:$0xff] %v1676
            %v1678 = vld [vmem:[%s1652 + $0x60] sm:$0xff]
            %1679 = vst [vmem:[%s1653 + $0x60] sm:$0xff] %v1678
            %v1680 = vld [vmem:[%s1652 + $0x68] sm:$0xff]
            %1681 = vst [vmem:[%s1653 + $0x68] sm:$0xff] %v1680
            %v1682 = vld [vmem:[%s1652 + $0x70] sm:$0xff]
            %1683 = vst [vmem:[%s1653 + $0x70] sm:$0xff] %v1682
            %v1684 = vld [vmem:[%s1652 + $0x78] sm:$0xff]
            %1685 = vst [vmem:[%s1653 + $0x78] sm:$0xff] %v1684
            %v1686 = vld [vmem:[%s1652 + $0x80] sm:$0xff]
            %1687 = vst [vmem:[%s1653 + $0x80] sm:$0xff] %v1686
            %v1688 = vld [vmem:[%s1652 + $0x88] sm:$0xff]
            %1689 = vst [vmem:[%s1653 + $0x88] sm:$0xff] %v1688
            %v1690 = vld [vmem:[%s1652 + $0x90] sm:$0xff]
            %1691 = vst [vmem:[%s1653 + $0x90] sm:$0xff] %v1690
            %v1692 = vld [vmem:[%s1652 + $0x98] sm:$0xff]
            %1693 = vst [vmem:[%s1653 + $0x98] sm:$0xff] %v1692
            %v1694 = vld [vmem:[%s1652 + $0xa0] sm:$0xff]
            %1695 = vst [vmem:[%s1653 + $0xa0] sm:$0xff] %v1694
            %v1696 = vld [vmem:[%s1652 + $0xa8] sm:$0xff]
            %1697 = vst [vmem:[%s1653 + $0xa8] sm:$0xff] %v1696
            %v1698 = vld [vmem:[%s1652 + $0xb0] sm:$0xff]
            %1699 = vst [vmem:[%s1653 + $0xb0] sm:$0xff] %v1698
            %v1700 = vld [vmem:[%s1652 + $0xb8] sm:$0xff]
            %1701 = vst [vmem:[%s1653 + $0xb8] sm:$0xff] %v1700
            %v1702 = vld [vmem:[%s1652 + $0xc0] sm:$0xff]
            %1703 = vst [vmem:[%s1653 + $0xc0] sm:$0xff] %v1702
            %v1704 = vld [vmem:[%s1652 + $0xc8] sm:$0xff]
            %1705 = vst [vmem:[%s1653 + $0xc8] sm:$0xff] %v1704
            %v1706 = vld [vmem:[%s1652 + $0xd0] sm:$0xff]
            %1707 = vst [vmem:[%s1653 + $0xd0] sm:$0xff] %v1706
            %v1708 = vld [vmem:[%s1652 + $0xd8] sm:$0xff]
            %1709 = vst [vmem:[%s1653 + $0xd8] sm:$0xff] %v1708
            %v1710 = vld [vmem:[%s1652 + $0xe0] sm:$0xff]
            %1711 = vst [vmem:[%s1653 + $0xe0] sm:$0xff] %v1710
            %v1712 = vld [vmem:[%s1652 + $0xe8] sm:$0xff]
            %1713 = vst [vmem:[%s1653 + $0xe8] sm:$0xff] %v1712
            %v1714 = vld [vmem:[%s1652 + $0xf0] sm:$0xff]
            %1715 = vst [vmem:[%s1653 + $0xf0] sm:$0xff] %v1714
            %v1716 = vld [vmem:[%s1652 + $0xf8] sm:$0xff]
            %1717 = vst [vmem:[%s1653 + $0xf8] sm:$0xff] %v1716
            %v1718 = vld [vmem:[%s1652 + $0x100] sm:$0xff]
            %1719 = vst [vmem:[%s1653 + $0x100] sm:$0xff] %v1718
            %v1720 = vld [vmem:[%s1652 + $0x108] sm:$0xff]
            %1721 = vst [vmem:[%s1653 + $0x108] sm:$0xff] %v1720
            %v1722 = vld [vmem:[%s1652 + $0x110] sm:$0xff]
            %1723 = vst [vmem:[%s1653 + $0x110] sm:$0xff] %v1722
            %v1724 = vld [vmem:[%s1652 + $0x118] sm:$0xff]
            %1725 = vst [vmem:[%s1653 + $0x118] sm:$0xff] %v1724
            %v1726 = vld [vmem:[%s1652 + $0x120] sm:$0xff]
            %1727 = vst [vmem:[%s1653 + $0x120] sm:$0xff] %v1726
            %v1728 = vld [vmem:[%s1652 + $0x128] sm:$0xff]
            %1729 = vst [vmem:[%s1653 + $0x128] sm:$0xff] %v1728
            %v1730 = vld [vmem:[%s1652 + $0x130] sm:$0xff]
            %1731 = vst [vmem:[%s1653 + $0x130] sm:$0xff] %v1730
            %v1732 = vld [vmem:[%s1652 + $0x138] sm:$0xff]
            %1733 = vst [vmem:[%s1653 + $0x138] sm:$0xff] %v1732
            %v1734 = vld [vmem:[%s1652 + $0x140] sm:$0xff]
            %1735 = vst [vmem:[%s1653 + $0x140] sm:$0xff] %v1734
            %v1736 = vld [vmem:[%s1652 + $0x148] sm:$0xff]
            %1737 = vst [vmem:[%s1653 + $0x148] sm:$0xff] %v1736
            %v1738 = vld [vmem:[%s1652 + $0x150] sm:$0xff]
            %1739 = vst [vmem:[%s1653 + $0x150] sm:$0xff] %v1738
            %v1740 = vld [vmem:[%s1652 + $0x158] sm:$0xff]
            %1741 = vst [vmem:[%s1653 + $0x158] sm:$0xff] %v1740
            %v1742 = vld [vmem:[%s1652 + $0x160] sm:$0xff]
            %1743 = vst [vmem:[%s1653 + $0x160] sm:$0xff] %v1742
            %v1744 = vld [vmem:[%s1652 + $0x168] sm:$0xff]
            %1745 = vst [vmem:[%s1653 + $0x168] sm:$0xff] %v1744
            %v1746 = vld [vmem:[%s1652 + $0x170] sm:$0xff]
            %1747 = vst [vmem:[%s1653 + $0x170] sm:$0xff] %v1746
            %v1748 = vld [vmem:[%s1652 + $0x178] sm:$0xff]
            %1749 = vst [vmem:[%s1653 + $0x178] sm:$0xff] %v1748
            %v1750 = vld [vmem:[%s1652 + $0x180] sm:$0xff]
            %1751 = vst [vmem:[%s1653 + $0x180] sm:$0xff] %v1750
            %v1752 = vld [vmem:[%s1652 + $0x188] sm:$0xff]
            %1753 = vst [vmem:[%s1653 + $0x188] sm:$0xff] %v1752
            %v1754 = vld [vmem:[%s1652 + $0x190] sm:$0xff]
            %1755 = vst [vmem:[%s1653 + $0x190] sm:$0xff] %v1754
            %v1756 = vld [vmem:[%s1652 + $0x198] sm:$0xff]
            %1757 = vst [vmem:[%s1653 + $0x198] sm:$0xff] %v1756
            %v1758 = vld [vmem:[%s1652 + $0x1a0] sm:$0xff]
            %1759 = vst [vmem:[%s1653 + $0x1a0] sm:$0xff] %v1758
            %v1760 = vld [vmem:[%s1652 + $0x1a8] sm:$0xff]
            %1761 = vst [vmem:[%s1653 + $0x1a8] sm:$0xff] %v1760
            %v1762 = vld [vmem:[%s1652 + $0x1b0] sm:$0xff]
            %1763 = vst [vmem:[%s1653 + $0x1b0] sm:$0xff] %v1762
            %v1764 = vld [vmem:[%s1652 + $0x1b8] sm:$0xff]
            %1765 = vst [vmem:[%s1653 + $0x1b8] sm:$0xff] %v1764
            %v1766 = vld [vmem:[%s1652 + $0x1c0] sm:$0xff]
            %1767 = vst [vmem:[%s1653 + $0x1c0] sm:$0xff] %v1766
            %v1768 = vld [vmem:[%s1652 + $0x1c8] sm:$0xff]
            %1769 = vst [vmem:[%s1653 + $0x1c8] sm:$0xff] %v1768
            %v1770 = vld [vmem:[%s1652 + $0x1d0] sm:$0xff]
            %1771 = vst [vmem:[%s1653 + $0x1d0] sm:$0xff] %v1770
            %v1772 = vld [vmem:[%s1652 + $0x1d8] sm:$0xff]
            %1773 = vst [vmem:[%s1653 + $0x1d8] sm:$0xff] %v1772
            %v1774 = vld [vmem:[%s1652 + $0x1e0] sm:$0xff]
            %1775 = vst [vmem:[%s1653 + $0x1e0] sm:$0xff] %v1774
            %v1776 = vld [vmem:[%s1652 + $0x1e8] sm:$0xff]
            %1777 = vst [vmem:[%s1653 + $0x1e8] sm:$0xff] %v1776
            %v1778 = vld [vmem:[%s1652 + $0x1f0] sm:$0xff]
            %1779 = vst [vmem:[%s1653 + $0x1f0] sm:$0xff] %v1778
            %v1780 = vld [vmem:[%s1652 + $0x1f8] sm:$0xff]
            %1781 = vst [vmem:[%s1653 + $0x1f8] sm:$0xff] %v1780
            %v1782 = vld [vmem:[%s1652 + $0x200] sm:$0xff]
            %1783 = vst [vmem:[%s1653 + $0x200] sm:$0xff] %v1782
            %v1784 = vld [vmem:[%s1652 + $0x208] sm:$0xff]
            %1785 = vst [vmem:[%s1653 + $0x208] sm:$0xff] %v1784
            %v1786 = vld [vmem:[%s1652 + $0x210] sm:$0xff]
            %1787 = vst [vmem:[%s1653 + $0x210] sm:$0xff] %v1786
            %v1788 = vld [vmem:[%s1652 + $0x218] sm:$0xff]
            %1789 = vst [vmem:[%s1653 + $0x218] sm:$0xff] %v1788
            %v1790 = vld [vmem:[%s1652 + $0x220] sm:$0xff]
            %1791 = vst [vmem:[%s1653 + $0x220] sm:$0xff] %v1790
            %v1792 = vld [vmem:[%s1652 + $0x228] sm:$0xff]
            %1793 = vst [vmem:[%s1653 + $0x228] sm:$0xff] %v1792
            %v1794 = vld [vmem:[%s1652 + $0x230] sm:$0xff]
            %1795 = vst [vmem:[%s1653 + $0x230] sm:$0xff] %v1794
            %v1796 = vld [vmem:[%s1652 + $0x238] sm:$0xff]
            %1797 = vst [vmem:[%s1653 + $0x238] sm:$0xff] %v1796
            %v1798 = vld [vmem:[%s1652 + $0x240] sm:$0xff]
            %1799 = vst [vmem:[%s1653 + $0x240] sm:$0xff] %v1798
            %v1800 = vld [vmem:[%s1652 + $0x248] sm:$0xff]
            %1801 = vst [vmem:[%s1653 + $0x248] sm:$0xff] %v1800
            %v1802 = vld [vmem:[%s1652 + $0x250] sm:$0xff]
            %1803 = vst [vmem:[%s1653 + $0x250] sm:$0xff] %v1802
            %v1804 = vld [vmem:[%s1652 + $0x258] sm:$0xff]
            %1805 = vst [vmem:[%s1653 + $0x258] sm:$0xff] %v1804
            %v1806 = vld [vmem:[%s1652 + $0x260] sm:$0xff]
            %1807 = vst [vmem:[%s1653 + $0x260] sm:$0xff] %v1806
            %v1808 = vld [vmem:[%s1652 + $0x268] sm:$0xff]
            %1809 = vst [vmem:[%s1653 + $0x268] sm:$0xff] %v1808
            %v1810 = vld [vmem:[%s1652 + $0x270] sm:$0xff]
            %1811 = vst [vmem:[%s1653 + $0x270] sm:$0xff] %v1810
            %v1812 = vld [vmem:[%s1652 + $0x278] sm:$0xff]
            %1813 = vst [vmem:[%s1653 + $0x278] sm:$0xff] %v1812
          $region63: #{reverse.11} parent=57 // loop_footer
            %s1651 = sadd.s32 1, %s1647
          $region64: #{reverse.11} parent=57 // loop_footer_branch
            %1646 = sbr.rel target = $region60
          $region65: #{reverse.11} parent=57 // loop_exit
            _
        $region58: #{reverse.11} parent=42 // pred_fallthru
          _
        // Predicated region
        $region66: #{reverse.11} parent=42 // pred_check
          _
        $region67: #{reverse.11} parent=42 // pred_check_branch
          %1815 = sbr.rel target = $region69
        $region68: #{reverse.11} parent=42 // pred_region
          _
        $region69: #{reverse.11} parent=42 // pred_fallthru
          _
      $region43: #{reverse.11} parent=38 // pred_fallthru
        _
      // Predicated region
      $region44: #{reverse.11} parent=38 // pred_check
        _
      $region45: #{reverse.11} parent=38 // pred_check_branch
        %1474 = sbr.rel target = $region47
      $region46: #{reverse.11} parent=38 // pred_region
        loop: start=0, step=1, limit=1
        $region48: #{reverse.11} parent=46 // loop_pre_header
          _
        $region49: #{reverse.11} parent=46 // loop_header
          %s1477 = sphi 0, %s1481
          %p1478 = scmp.ge.s32.totalorder %s1477, 1
          %s1482 = sphi [#allocation1], [#allocation1]
          %s1483 = sphi %s1, %s1
        $region50: #{reverse.11} parent=46 // loop_header_branch
          %1480 = sbr.rel (%p1478) target = $region54
        $region51: #{reverse.11} parent=46 // loop_body
          %v1484 = vld [vmem:[%s1482] sm:$0xff]
          %1485 = vst [vmem:[%s1483] sm:$0xff] %v1484
          %v1486 = vld [vmem:[%s1482 + $0x8] sm:$0xff]
          %1487 = vst [vmem:[%s1483 + $0x8] sm:$0xff] %v1486
          %v1488 = vld [vmem:[%s1482 + $0x10] sm:$0xff]
          %1489 = vst [vmem:[%s1483 + $0x10] sm:$0xff] %v1488
          %v1490 = vld [vmem:[%s1482 + $0x18] sm:$0xff]
          %1491 = vst [vmem:[%s1483 + $0x18] sm:$0xff] %v1490
          %v1492 = vld [vmem:[%s1482 + $0x20] sm:$0xff]
          %1493 = vst [vmem:[%s1483 + $0x20] sm:$0xff] %v1492
          %v1494 = vld [vmem:[%s1482 + $0x28] sm:$0xff]
          %1495 = vst [vmem:[%s1483 + $0x28] sm:$0xff] %v1494
          %v1496 = vld [vmem:[%s1482 + $0x30] sm:$0xff]
          %1497 = vst [vmem:[%s1483 + $0x30] sm:$0xff] %v1496
          %v1498 = vld [vmem:[%s1482 + $0x38] sm:$0xff]
          %1499 = vst [vmem:[%s1483 + $0x38] sm:$0xff] %v1498
          %v1500 = vld [vmem:[%s1482 + $0x40] sm:$0xff]
          %1501 = vst [vmem:[%s1483 + $0x40] sm:$0xff] %v1500
          %v1502 = vld [vmem:[%s1482 + $0x48] sm:$0xff]
          %1503 = vst [vmem:[%s1483 + $0x48] sm:$0xff] %v1502
          %v1504 = vld [vmem:[%s1482 + $0x50] sm:$0xff]
          %1505 = vst [vmem:[%s1483 + $0x50] sm:$0xff] %v1504
          %v1506 = vld [vmem:[%s1482 + $0x58] sm:$0xff]
          %1507 = vst [vmem:[%s1483 + $0x58] sm:$0xff] %v1506
          %v1508 = vld [vmem:[%s1482 + $0x60] sm:$0xff]
          %1509 = vst [vmem:[%s1483 + $0x60] sm:$0xff] %v1508
          %v1510 = vld [vmem:[%s1482 + $0x68] sm:$0xff]
          %1511 = vst [vmem:[%s1483 + $0x68] sm:$0xff] %v1510
          %v1512 = vld [vmem:[%s1482 + $0x70] sm:$0xff]
          %1513 = vst [vmem:[%s1483 + $0x70] sm:$0xff] %v1512
          %v1514 = vld [vmem:[%s1482 + $0x78] sm:$0xff]
          %1515 = vst [vmem:[%s1483 + $0x78] sm:$0xff] %v1514
          %v1516 = vld [vmem:[%s1482 + $0x80] sm:$0xff]
          %1517 = vst [vmem:[%s1483 + $0x80] sm:$0xff] %v1516
          %v1518 = vld [vmem:[%s1482 + $0x88] sm:$0xff]
          %1519 = vst [vmem:[%s1483 + $0x88] sm:$0xff] %v1518
          %v1520 = vld [vmem:[%s1482 + $0x90] sm:$0xff]
          %1521 = vst [vmem:[%s1483 + $0x90] sm:$0xff] %v1520
          %v1522 = vld [vmem:[%s1482 + $0x98] sm:$0xff]
          %1523 = vst [vmem:[%s1483 + $0x98] sm:$0xff] %v1522
          %v1524 = vld [vmem:[%s1482 + $0xa0] sm:$0xff]
          %1525 = vst [vmem:[%s1483 + $0xa0] sm:$0xff] %v1524
          %v1526 = vld [vmem:[%s1482 + $0xa8] sm:$0xff]
          %1527 = vst [vmem:[%s1483 + $0xa8] sm:$0xff] %v1526
          %v1528 = vld [vmem:[%s1482 + $0xb0] sm:$0xff]
          %1529 = vst [vmem:[%s1483 + $0xb0] sm:$0xff] %v1528
          %v1530 = vld [vmem:[%s1482 + $0xb8] sm:$0xff]
          %1531 = vst [vmem:[%s1483 + $0xb8] sm:$0xff] %v1530
          %v1532 = vld [vmem:[%s1482 + $0xc0] sm:$0xff]
          %1533 = vst [vmem:[%s1483 + $0xc0] sm:$0xff] %v1532
          %v1534 = vld [vmem:[%s1482 + $0xc8] sm:$0xff]
          %1535 = vst [vmem:[%s1483 + $0xc8] sm:$0xff] %v1534
          %v1536 = vld [vmem:[%s1482 + $0xd0] sm:$0xff]
          %1537 = vst [vmem:[%s1483 + $0xd0] sm:$0xff] %v1536
          %v1538 = vld [vmem:[%s1482 + $0xd8] sm:$0xff]
          %1539 = vst [vmem:[%s1483 + $0xd8] sm:$0xff] %v1538
          %v1540 = vld [vmem:[%s1482 + $0xe0] sm:$0xff]
          %1541 = vst [vmem:[%s1483 + $0xe0] sm:$0xff] %v1540
          %v1542 = vld [vmem:[%s1482 + $0xe8] sm:$0xff]
          %1543 = vst [vmem:[%s1483 + $0xe8] sm:$0xff] %v1542
          %v1544 = vld [vmem:[%s1482 + $0xf0] sm:$0xff]
          %1545 = vst [vmem:[%s1483 + $0xf0] sm:$0xff] %v1544
          %v1546 = vld [vmem:[%s1482 + $0xf8] sm:$0xff]
          %1547 = vst [vmem:[%s1483 + $0xf8] sm:$0xff] %v1546
          %v1548 = vld [vmem:[%s1482 + $0x100] sm:$0xff]
          %1549 = vst [vmem:[%s1483 + $0x100] sm:$0xff] %v1548
          %v1550 = vld [vmem:[%s1482 + $0x108] sm:$0xff]
          %1551 = vst [vmem:[%s1483 + $0x108] sm:$0xff] %v1550
          %v1552 = vld [vmem:[%s1482 + $0x110] sm:$0xff]
          %1553 = vst [vmem:[%s1483 + $0x110] sm:$0xff] %v1552
          %v1554 = vld [vmem:[%s1482 + $0x118] sm:$0xff]
          %1555 = vst [vmem:[%s1483 + $0x118] sm:$0xff] %v1554
          %v1556 = vld [vmem:[%s1482 + $0x120] sm:$0xff]
          %1557 = vst [vmem:[%s1483 + $0x120] sm:$0xff] %v1556
          %v1558 = vld [vmem:[%s1482 + $0x128] sm:$0xff]
          %1559 = vst [vmem:[%s1483 + $0x128] sm:$0xff] %v1558
          %v1560 = vld [vmem:[%s1482 + $0x130] sm:$0xff]
          %1561 = vst [vmem:[%s1483 + $0x130] sm:$0xff] %v1560
          %v1562 = vld [vmem:[%s1482 + $0x138] sm:$0xff]
          %1563 = vst [vmem:[%s1483 + $0x138] sm:$0xff] %v1562
          %v1564 = vld [vmem:[%s1482 + $0x140] sm:$0xff]
          %1565 = vst [vmem:[%s1483 + $0x140] sm:$0xff] %v1564
          %v1566 = vld [vmem:[%s1482 + $0x148] sm:$0xff]
          %1567 = vst [vmem:[%s1483 + $0x148] sm:$0xff] %v1566
          %v1568 = vld [vmem:[%s1482 + $0x150] sm:$0xff]
          %1569 = vst [vmem:[%s1483 + $0x150] sm:$0xff] %v1568
          %v1570 = vld [vmem:[%s1482 + $0x158] sm:$0xff]
          %1571 = vst [vmem:[%s1483 + $0x158] sm:$0xff] %v1570
          %v1572 = vld [vmem:[%s1482 + $0x160] sm:$0xff]
          %1573 = vst [vmem:[%s1483 + $0x160] sm:$0xff] %v1572
          %v1574 = vld [vmem:[%s1482 + $0x168] sm:$0xff]
          %1575 = vst [vmem:[%s1483 + $0x168] sm:$0xff] %v1574
          %v1576 = vld [vmem:[%s1482 + $0x170] sm:$0xff]
          %1577 = vst [vmem:[%s1483 + $0x170] sm:$0xff] %v1576
          %v1578 = vld [vmem:[%s1482 + $0x178] sm:$0xff]
          %1579 = vst [vmem:[%s1483 + $0x178] sm:$0xff] %v1578
          %v1580 = vld [vmem:[%s1482 + $0x180] sm:$0xff]
          %1581 = vst [vmem:[%s1483 + $0x180] sm:$0xff] %v1580
          %v1582 = vld [vmem:[%s1482 + $0x188] sm:$0xff]
          %1583 = vst [vmem:[%s1483 + $0x188] sm:$0xff] %v1582
          %v1584 = vld [vmem:[%s1482 + $0x190] sm:$0xff]
          %1585 = vst [vmem:[%s1483 + $0x190] sm:$0xff] %v1584
          %v1586 = vld [vmem:[%s1482 + $0x198] sm:$0xff]
          %1587 = vst [vmem:[%s1483 + $0x198] sm:$0xff] %v1586
          %v1588 = vld [vmem:[%s1482 + $0x1a0] sm:$0xff]
          %1589 = vst [vmem:[%s1483 + $0x1a0] sm:$0xff] %v1588
          %v1590 = vld [vmem:[%s1482 + $0x1a8] sm:$0xff]
          %1591 = vst [vmem:[%s1483 + $0x1a8] sm:$0xff] %v1590
          %v1592 = vld [vmem:[%s1482 + $0x1b0] sm:$0xff]
          %1593 = vst [vmem:[%s1483 + $0x1b0] sm:$0xff] %v1592
          %v1594 = vld [vmem:[%s1482 + $0x1b8] sm:$0xff]
          %1595 = vst [vmem:[%s1483 + $0x1b8] sm:$0xff] %v1594
          %v1596 = vld [vmem:[%s1482 + $0x1c0] sm:$0xff]
          %1597 = vst [vmem:[%s1483 + $0x1c0] sm:$0xff] %v1596
          %v1598 = vld [vmem:[%s1482 + $0x1c8] sm:$0xff]
          %1599 = vst [vmem:[%s1483 + $0x1c8] sm:$0xff] %v1598
          %v1600 = vld [vmem:[%s1482 + $0x1d0] sm:$0xff]
          %1601 = vst [vmem:[%s1483 + $0x1d0] sm:$0xff] %v1600
          %v1602 = vld [vmem:[%s1482 + $0x1d8] sm:$0xff]
          %1603 = vst [vmem:[%s1483 + $0x1d8] sm:$0xff] %v1602
          %v1604 = vld [vmem:[%s1482 + $0x1e0] sm:$0xff]
          %1605 = vst [vmem:[%s1483 + $0x1e0] sm:$0xff] %v1604
          %v1606 = vld [vmem:[%s1482 + $0x1e8] sm:$0xff]
          %1607 = vst [vmem:[%s1483 + $0x1e8] sm:$0xff] %v1606
          %v1608 = vld [vmem:[%s1482 + $0x1f0] sm:$0xff]
          %1609 = vst [vmem:[%s1483 + $0x1f0] sm:$0xff] %v1608
          %v1610 = vld [vmem:[%s1482 + $0x1f8] sm:$0xff]
          %1611 = vst [vmem:[%s1483 + $0x1f8] sm:$0xff] %v1610
          %v1612 = vld [vmem:[%s1482 + $0x200] sm:$0xff]
          %1613 = vst [vmem:[%s1483 + $0x200] sm:$0xff] %v1612
          %v1614 = vld [vmem:[%s1482 + $0x208] sm:$0xff]
          %1615 = vst [vmem:[%s1483 + $0x208] sm:$0xff] %v1614
          %v1616 = vld [vmem:[%s1482 + $0x210] sm:$0xff]
          %1617 = vst [vmem:[%s1483 + $0x210] sm:$0xff] %v1616
          %v1618 = vld [vmem:[%s1482 + $0x218] sm:$0xff]
          %1619 = vst [vmem:[%s1483 + $0x218] sm:$0xff] %v1618
          %v1620 = vld [vmem:[%s1482 + $0x220] sm:$0xff]
          %1621 = vst [vmem:[%s1483 + $0x220] sm:$0xff] %v1620
          %v1622 = vld [vmem:[%s1482 + $0x228] sm:$0xff]
          %1623 = vst [vmem:[%s1483 + $0x228] sm:$0xff] %v1622
          %v1624 = vld [vmem:[%s1482 + $0x230] sm:$0xff]
          %1625 = vst [vmem:[%s1483 + $0x230] sm:$0xff] %v1624
          %v1626 = vld [vmem:[%s1482 + $0x238] sm:$0xff]
          %1627 = vst [vmem:[%s1483 + $0x238] sm:$0xff] %v1626
          %v1628 = vld [vmem:[%s1482 + $0x240] sm:$0xff]
          %1629 = vst [vmem:[%s1483 + $0x240] sm:$0xff] %v1628
          %v1630 = vld [vmem:[%s1482 + $0x248] sm:$0xff]
          %1631 = vst [vmem:[%s1483 + $0x248] sm:$0xff] %v1630
          %v1632 = vld [vmem:[%s1482 + $0x250] sm:$0xff]
          %1633 = vst [vmem:[%s1483 + $0x250] sm:$0xff] %v1632
          %v1634 = vld [vmem:[%s1482 + $0x258] sm:$0xff]
          %1635 = vst [vmem:[%s1483 + $0x258] sm:$0xff] %v1634
          %v1636 = vld [vmem:[%s1482 + $0x260] sm:$0xff]
          %1637 = vst [vmem:[%s1483 + $0x260] sm:$0xff] %v1636
          %v1638 = vld [vmem:[%s1482 + $0x268] sm:$0xff]
          %1639 = vst [vmem:[%s1483 + $0x268] sm:$0xff] %v1638
          %v1640 = vld [vmem:[%s1482 + $0x270] sm:$0xff]
          %1641 = vst [vmem:[%s1483 + $0x270] sm:$0xff] %v1640
          %v1642 = vld [vmem:[%s1482 + $0x278] sm:$0xff]
          %1643 = vst [vmem:[%s1483 + $0x278] sm:$0xff] %v1642
        $region52: #{reverse.11} parent=46 // loop_footer
          %s1481 = sadd.s32 1, %s1477
        $region53: #{reverse.11} parent=46 // loop_footer_branch
          %1476 = sbr.rel target = $region49
        $region54: #{reverse.11} parent=46 // loop_exit
          _
      $region47: #{reverse.11} parent=38 // pred_fallthru
        _
    $region39: #{reverse.11} parent=1 // pred_fallthru
      _
    %1816 = vnop

// kernel: fno2d_encoder_forward.9
$region0: #{fno2d_encoder_forward.9}
  #allocation0 [shape = 'u32[]', space=smem, size = 0x4, offset = 0x4, fixed_abs, tag = 'smem constant byte address 0x4 - core index']
  #allocation1 [shape = 'u32[144,128]{1,0:T(1,128)}', space=vmem, size = 0x12000, scoped, tag = 'internal scratch']
  %s0 = inlined_call_operand.vmem [shape: f32[8,40,64], index: 0, kind: input, shape index: {}]
  %s1 = inlined_call_operand.vmem [shape: f32[8,64,64], index: 1, kind: input, shape index: {}]
  %s2 = inlined_call_operand.vmem [shape: f32[8,40,64], index: 2, kind: output, shape index: {}]
  %s3 = sld [smem:[#allocation0]]
  $region41: #{fno2d_encoder_forward.9} parent=0
    _
  %s5 = ssub.s32 1, %s3
  %s6 = scalar_select 0, %s5, %s3
  loop: start=0, step=1, limit=4
  $region2: #{fno2d_encoder_forward.9} parent=0 // loop_pre_header
    _
  $region3: #{fno2d_encoder_forward.9} parent=0 // loop_header
    %s8 = sphi 0, %s12
    %p9 = scmp.ge.s32.totalorder %s8, 4
    %s15 = sphi 0, %s27
    %s16 = sphi 0, %s23
    %s17 = sphi 0, %s15
    %s18 = sphi 0, %s16
    %s19 = sphi 0, %s17
    %s20 = sphi 0, %s18
    %s32 = sphi 0, %s34
    %s35 = sphi 0, %s32
    %s36 = sphi 0, %s35
    %s52 = sphi 0, %s36
    %s58 = sphi 0, %s60
    %s61 = sphi 0, %s58
    %s62 = sphi 0, %s61
    %s78 = sphi 0, %s62
    %s86 = sphi 0, %s88
    %s89 = sphi 0, %s86
    %s90 = sphi 0, %s89
    %s106 = sphi 0, %s90
  $region4: #{fno2d_encoder_forward.9} parent=0 // loop_header_branch
    %11 = sbr.rel (%p9) target = $region8
  $region5: #{fno2d_encoder_forward.9} parent=0 // loop_body
    %s13 = ssub.s32 %s8, 1
    %s14 = ssub.s32 %s8, 2
    %s21 = sadd.s32 1, %s16
    %p22 = scmp.ge.s32.totalorder %s21, 1
    %s23 = scalar_select %p22, 0, %s21
    %s24 = sadd.s32 1, %s15
    %s25 = scalar_select %p22, %s24, %s15
    %p26 = scmp.ge.s32.totalorder %s25, 2
    %s27 = scalar_select %p26, 0, %s25
    %s28 = ssub.s32 %s15, %s27
    %s29 = ssub.s32 %s16, %s23
    %s30 = sor.u32 %s28, %s29
    %p31 = scmp.eq.s32.totalorder %s30, 0
    %s33 = sadd.s32 %s32, 1
    %s34 = scalar_select %p31, %s32, %s33
    %p37 = pneg %p31
    %p38 = scmp.eq.s32.totalorder %s8, 1
    %p39 = por %p37, %p38
    %p40 = scmp.ne.s32.totalorder %s32, %s35
    %p41 = scmp.eq.s32.totalorder %s8, 0
    %p42 = por %p40, %p41
    %p43 = scmp.ne.s32.totalorder %s32, %s35
    %p44 = scmp.eq.s32.totalorder %s13, 1
    %p45 = por %p43, %p44
    %p46 = scmp.ne.s32.totalorder %s35, %s36
    %p47 = scmp.eq.s32.totalorder %s13, 0
    %p48 = por %p46, %p47
    %p49 = scmp.ne.s32.totalorder %s35, %s36
    %p50 = scmp.eq.s32.totalorder %s14, 1
    %p51 = por %p49, %p50
    %p53 = scmp.ne.s32.totalorder %s36, %s52
    %p54 = scmp.eq.s32.totalorder %s14, 0
    %p55 = por %p53, %p54
    %s56 = ssub.s32 %s15, %s27
    %p57 = scmp.eq.s32.totalorder %s56, 0
    %s59 = sadd.s32 %s58, 1
    %s60 = scalar_select %p57, %s58, %s59
    %p63 = pneg %p57
    %p64 = scmp.eq.s32.totalorder %s8, 1
    %p65 = por %p63, %p64
    %p66 = scmp.ne.s32.totalorder %s58, %s61
    %p67 = scmp.eq.s32.totalorder %s8, 0
    %p68 = por %p66, %p67
    %p69 = scmp.ne.s32.totalorder %s58, %s61
    %p70 = scmp.eq.s32.totalorder %s13, 1
    %p71 = por %p69, %p70
    %p72 = scmp.ne.s32.totalorder %s61, %s62
    %p73 = scmp.eq.s32.totalorder %s13, 0
    %p74 = por %p72, %p73
    %p75 = scmp.ne.s32.totalorder %s61, %s62
    %p76 = scmp.eq.s32.totalorder %s14, 1
    %p77 = por %p75, %p76
    %p79 = scmp.ne.s32.totalorder %s62, %s78
    %p80 = scmp.eq.s32.totalorder %s14, 0
    %p81 = por %p79, %p80
    %s82 = ssub.s32 %s15, %s27
    %s83 = ssub.s32 %s16, %s23
    %s84 = sor.u32 %s82, %s83
    %p85 = scmp.eq.s32.totalorder %s84, 0
    %s87 = sadd.s32 %s86, 1
    %s88 = scalar_select %p85, %s86, %s87
    %p91 = pneg %p85
    %p92 = scmp.eq.s32.totalorder %s8, 1
    %p93 = por %p91, %p92
    %p94 = scmp.ne.s32.totalorder %s86, %s89
    %p95 = scmp.eq.s32.totalorder %s8, 0
    %p96 = por %p94, %p95
    %p97 = scmp.ne.s32.totalorder %s86, %s89
    %p98 = scmp.eq.s32.totalorder %s13, 1
    %p99 = por %p97, %p98
    %p100 = scmp.ne.s32.totalorder %s89, %s90
    %p101 = scmp.eq.s32.totalorder %s13, 0
    %p102 = por %p100, %p101
    %p103 = scmp.ne.s32.totalorder %s89, %s90
    %p104 = scmp.eq.s32.totalorder %s14, 1
    %p105 = por %p103, %p104
    %p107 = scmp.ne.s32.totalorder %s90, %s106
    %p108 = scmp.eq.s32.totalorder %s14, 0
    %p109 = por %p107, %p108
    %p110 = scmp.le.s32.totalorder 1, %s8
    %p111 = scmp.lt.s32.totalorder %s8, 3
    %p112 = pnand %p110, %p111
    %p113 = pneg %p112
    // Predicated region
    $region9: #{fno2d_encoder_forward.9} parent=5 // pred_check
      _
    $region10: #{fno2d_encoder_forward.9} parent=5 // pred_check_branch
      %115 = sbr.rel (%p112) target = $region12
    $region11: #{fno2d_encoder_forward.9} parent=5 // pred_region
      %s116 = ssub.s32 %s8, 1
    $region12: #{fno2d_encoder_forward.9} parent=5 // pred_fallthru
      _
    %p117 = scmp.lt.s32.totalorder %s8, 2
    // Predicated region
    $region13: #{fno2d_encoder_forward.9} parent=5 // pred_check
      %p118 = pneg %p117
    $region14: #{fno2d_encoder_forward.9} parent=5 // pred_check_branch
      %120 = sbr.rel (%p118) target = $region16
    $region15: #{fno2d_encoder_forward.9} parent=5 // pred_region
      // Predicated region
      $region17: #{fno2d_encoder_forward.9} parent=15 // pred_check
        %p121 = pneg %p42
      $region18: #{fno2d_encoder_forward.9} parent=15 // pred_check_branch
        %123 = sbr.rel (%p121) target = $region20
      $region19: #{fno2d_encoder_forward.9} parent=15 // pred_region
        %s124 = smul.u32 4, %s15
        %s125 = smul.u32 5, %s16
        %p126 = scmp.lt.s32.totalorder %s124, 7
        %s127 = scalar_select %p126, %s124, 7
        %p128 = scmp.lt.s32.totalorder %s125, 4
        %s129 = scalar_select %p128, %s125, 4
        %s130 = smul.addr %s127, 5
        %s131 = sadd.s32 %s129, %s130
        %s132 = smul.addr %s131, 8
        %s133 = scalar_lea.vmem %s0, %s132
        %s134 = smul.u32 4, %s15
        %s135 = smul.u32 5, %s16
      $region20: #{fno2d_encoder_forward.9} parent=15 // pred_fallthru
        _
      // Predicated region
      $region21: #{fno2d_encoder_forward.9} parent=15 // pred_check
        %p136 = pneg %p68
      $region22: #{fno2d_encoder_forward.9} parent=15 // pred_check_branch
        %138 = sbr.rel (%p136) target = $region24
      $region23: #{fno2d_encoder_forward.9} parent=15 // pred_region
        %s139 = smul.u32 4, %s15
        %p140 = scmp.lt.s32.totalorder %s139, 7
        %s141 = scalar_select %p140, %s139, 7
        %s142 = smul.addr %s141, 8
        %s143 = smul.addr %s142, 8
        %s144 = scalar_lea.vmem %s1, %s143
        %s145 = smul.u32 4, %s15
      $region24: #{fno2d_encoder_forward.9} parent=15 // pred_fallthru
        _
    $region16: #{fno2d_encoder_forward.9} parent=5 // pred_fallthru
      _
    %p146 = scmp.le.s32.totalorder 1, %s8
    %p147 = scmp.lt.s32.totalorder %s8, 3
    %p148 = pnand %p146, %p147
    %p149 = pneg %p148
    // Predicated region
    $region25: #{fno2d_encoder_forward.9} parent=5 // pred_check
      _
    $region26: #{fno2d_encoder_forward.9} parent=5 // pred_check_branch
      %151 = sbr.rel (%p148) target = $region28
    $region27: #{fno2d_encoder_forward.9} parent=5 // pred_region
      %s152 = ssub.s32 %s8, 1
      %s153 = smul.u32 4, %s17
      %s154 = smul.u32 5, %s18
      %p155 = scmp.lt.s32.totalorder %s153, 7
      %s156 = scalar_select %p155, %s153, 7
      %p157 = scmp.lt.s32.totalorder %s154, 4
      %s158 = scalar_select %p157, %s154, 4
      %s159 = smul.addr %s156, 5
      %s160 = sadd.s32 %s158, %s159
      %s161 = smul.addr %s160, 8
      %s162 = scalar_lea.vmem %s0, %s161
      %p163 = pneg %p48
      %p164 = pneg %p45
      %s165 = smul.u32 4, %s17
      %p166 = scmp.lt.s32.totalorder %s165, 7
      %s167 = scalar_select %p166, %s165, 7
      %s168 = smul.addr %s167, 8
      %s169 = smul.addr %s168, 8
      %s170 = scalar_lea.vmem %s1, %s169
      %p171 = pneg %p74
      %p172 = pneg %p71
      %p173 = pneg %p102
      %p174 = pneg %p99
      %s175 = smul.u32 4, %s17
      %s176 = smul.u32 5, %s18
      %p177 = scmp.lt.s32.totalorder %s175, 7
      %s178 = scalar_select %p177, %s175, 7
      %p179 = scmp.lt.s32.totalorder %s176, 4
      %s180 = scalar_select %p179, %s176, 4
      %s181 = smul.addr %s178, 5
      %s182 = sadd.s32 %s180, %s181
      %s183 = smul.addr %s182, 8
      %s184 = scalar_lea.vmem %s2, %s183
      %s185 = smul.u32 4, %s17
      %s186 = smul.u32 5, %s18
      %p187 = scmp.lt.s32.totalorder %s185, 7
      %s188 = scalar_select %p187, %s185, 7
      %p189 = scmp.lt.s32.totalorder %s186, 4
      %s190 = scalar_select %p189, %s186, 4
      %s191 = smul.addr %s188, 5
      %s192 = sadd.s32 %s190, %s191
      %s193 = smul.addr %s192, 8
      %s194 = scalar_lea.vmem %s0, %s193
      %s195 = smul.u32 4, %s17
      %s196 = smul.u32 5, %s18
      %s197 = smul.u32 4, %s17
      %p198 = scmp.lt.s32.totalorder %s197, 7
      %s199 = scalar_select %p198, %s197, 7
      %s200 = smul.addr %s199, 8
      %s201 = smul.addr %s200, 8
      %s202 = scalar_lea.vmem %s1, %s201
      %s203 = smul.u32 4, %s17
      %s204 = smul.u32 4, %s17
      %s205 = smul.u32 5, %s18
      %p206 = scmp.lt.s32.totalorder %s204, 7
      %s207 = scalar_select %p206, %s204, 7
      %p208 = scmp.lt.s32.totalorder %s205, 4
      %s209 = scalar_select %p208, %s205, 4
      %s210 = smul.addr %s207, 5
      %s211 = sadd.s32 %s209, %s210
      %s212 = smul.addr %s211, 8
      %s213 = scalar_lea.vmem %s2, %s212
      %s214 = smul.u32 4, %s17
      %s215 = smul.u32 5, %s18
      %v216 = vld [vmem:[%s194] sm:$0xff]
      %v217 = vld [vmem:[%s194 + $0x8] sm:$0xff]
      %v218 = vld [vmem:[%s194 + $0x10] sm:$0xff]
      %v219 = vld [vmem:[%s194 + $0x18] sm:$0xff]
      %v220 = vld [vmem:[%s194 + $0x20] sm:$0xff]
      %v221 = vld [vmem:[%s202] sm:$0xff]
      %v222 = vld [vmem:[%s202 + $0x8] sm:$0xff]
      %v223 = vld [vmem:[%s202 + $0x10] sm:$0xff]
      %v224 = vld [vmem:[%s202 + $0x18] sm:$0xff]
      %v225 = vld [vmem:[%s202 + $0x20] sm:$0xff]
      %v226 = vld [vmem:[%s202 + $0x28] sm:$0xff]
      %v227 = vld [vmem:[%s202 + $0x30] sm:$0xff]
      %v228 = vld [vmem:[%s202 + $0x38] sm:$0xff]
      %vm229 = vcmask 523264
      %v231 = vsel %vm229, %v216, 0
      %v234 = vsel %vm229, %v217, 0
      %v237 = vsel %vm229, %v218, 0
      %v240 = vsel %vm229, %v219, 0
      %v243 = vsel %vm229, %v220, 0
      %245 = vmatprep.subr.mxu0 0.0
      %246 = vmatpush1.msra.mxu0 %v221
      %247 = vmatprep.subr.mxu0 0.0
      %248 = vmatpush1.msra.mxu0 %v222
      %249 = vmatprep.subr.mxu0 0.0
      %250 = vmatpush1.msra.mxu0 %v223
      %251 = vmatprep.subr.mxu0 0.0
      %252 = vmatpush1.msra.mxu0 %v224
      %253 = vmatprep.subr.mxu0 0.0
      %254 = vmatpush1.msra.mxu0 %v225
      %255 = vmatprep.subr.mxu0 0.0
      %256 = vmatpush1.msra.mxu0 %v226
      %257 = vmatprep.subr.mxu0 0.0
      %258 = vmatpush1.msra.mxu0 %v227
      %259 = vmatprep.subr.mxu0 0.0
      %260 = vmatpush1.msra.mxu0 %v228
      %261 = vmatprep.subr.mxu0 0.0
      %262 = vmatpush1.msra.mxu0 0.0
      %263 = vmatprep.subr.mxu0 0.0
      %264 = vmatpush1.msra.mxu0 0.0
      %265 = vmatprep.subr.mxu0 0.0
      %266 = vmatpush1.msra.mxu0 0.0
      %267 = vmatprep.subr.mxu0 0.0
      %268 = vmatpush1.msra.mxu0 0.0
      %269 = vmatprep.subr.mxu0 0.0
      %270 = vmatpush1.msra.mxu0 0.0
      %271 = vmatprep.subr.mxu0 0.0
      %272 = vmatpush1.msra.mxu0 0.0
      %273 = vmatprep.subr.mxu0 0.0
      %274 = vmatpush1.msra.mxu0 0.0
      %275 = vmatprep.subr.mxu0 0.0
      %276 = vmatpush1.msra.mxu0 0.0
      %277 = vmatprep.subr.mxu0 0.0
      %278 = vmatpush1.msra.mxu0 0.0
      %279 = vmatprep.subr.mxu0 0.0
      %280 = vmatpush1.msra.mxu0 0.0
      %281 = vmatprep.subr.mxu0 0.0
      %282 = vmatpush1.msra.mxu0 0.0
      %283 = vmatprep.subr.mxu0 0.0
      %284 = vmatpush1.msra.mxu0 0.0
      %285 = vmatprep.subr.mxu0 0.0
      %286 = vmatpush1.msra.mxu0 0.0
      %287 = vmatprep.subr.mxu0 0.0
      %288 = vmatpush1.msra.mxu0 0.0
      %289 = vmatprep.subr.mxu0 0.0
      %290 = vmatpush1.msra.mxu0 0.0
      %291 = vmatprep.subr.mxu0 0.0
      %292 = vmatpush1.msra.mxu0 0.0
      %293 = vmatprep.subr.mxu0 0.0
      %294 = vmatpush1.msra.mxu0 0.0
      %295 = vmatprep.subr.mxu0 0.0
      %296 = vmatpush1.msra.mxu0 0.0
      %297 = vmatprep.subr.mxu0 0.0
      %298 = vmatpush1.msra.mxu0 0.0
      %299 = vmatprep.subr.mxu0 0.0
      %300 = vmatpush1.msra.mxu0 0.0
      %301 = vmatprep.subr.mxu0 0.0
      %302 = vmatpush1.msra.mxu0 0.0
      %303 = vmatprep.subr.mxu0 0.0
      %304 = vmatpush1.msra.mxu0 0.0
      %305 = vmatprep.subr.mxu0 0.0
      %306 = vmatpush1.msra.mxu0 0.0
      %307 = vmatprep.subr.mxu0 0.0
      %308 = vmatpush1.msra.mxu0 0.0
      %309 = vmatprep.mubr.f32.mxu0 0.0
      %310 = vmatmul.mubr.f32.gmra.mrb[0].mxu0 %v231
      %v311 = vpop.f32.mrb[0].mxu0
      %v312 = vadd.f32 0.0, %v311
      %v313 = vpop.f32.mrb[0].mxu0
      %314 = vmatprep.mubr.f32.mxu0 0.0
      %315 = vmatmul.mubr.f32.gmra.mrb[0].mxu0 %v234
      %v316 = vpop.f32.mrb[0].mxu0
      %v317 = vadd.f32 0.0, %v316
      %v318 = vpop.f32.mrb[0].mxu0
      %319 = vmatprep.mubr.f32.mxu0 0.0
      %320 = vmatmul.mubr.f32.gmra.mrb[0].mxu0 %v237
      %v321 = vpop.f32.mrb[0].mxu0
      %v322 = vadd.f32 0.0, %v321
      %v323 = vpop.f32.mrb[0].mxu0
      %324 = vmatprep.mubr.f32.mxu0 0.0
      %325 = vmatmul.mubr.f32.gmra.mrb[0].mxu0 %v240
      %v326 = vpop.f32.mrb[0].mxu0
      %v327 = vadd.f32 0.0, %v326
      %v328 = vpop.f32.mrb[0].mxu0
      %329 = vmatprep.mubr.f32.mxu0 0.0
      %330 = vmatmul.mubr.f32.gmra.mrb[0].mxu0 %v243
      %v331 = vpop.f32.mrb[0].mxu0
      %v332 = vadd.f32 0.0, %v331
      %v333 = vpop.f32.mrb[0].mxu0
      %334 = vdwg.mxu0
      %335 = vst.msk [vmem:[%s213] sm:$0xff] %vm229, %v312
      %336 = vst.msk [vmem:[%s213 + $0x8] sm:$0xff] %vm229, %v317
      %337 = vst.msk [vmem:[%s213 + $0x10] sm:$0xff] %vm229, %v322
      %338 = vst.msk [vmem:[%s213 + $0x18] sm:$0xff] %vm229, %v327
      %339 = vst.msk [vmem:[%s213 + $0x20] sm:$0xff] %vm229, %v332
      %s340 = scalar_lea.vmem %s194, 40
      %v341 = vld [vmem:[%s340] sm:$0xff]
      %v342 = vld [vmem:[%s340 + $0x8] sm:$0xff]
      %v343 = vld [vmem:[%s340 + $0x10] sm:$0xff]
      %v344 = vld [vmem:[%s340 + $0x18] sm:$0xff]
      %v345 = vld [vmem:[%s340 + $0x20] sm:$0xff]
      %s346 = scalar_lea.vmem %s202, 64
      %v347 = vld [vmem:[%s346] sm:$0xff]
      %v348 = vld [vmem:[%s346 + $0x8] sm:$0xff]
      %v349 = vld [vmem:[%s346 + $0x10] sm:$0xff]
      %v350 = vld [vmem:[%s346 + $0x18] sm:$0xff]
      %v351 = vld [vmem:[%s346 + $0x20] sm:$0xff]
      %v352 = vld [vmem:[%s346 + $0x28] sm:$0xff]
      %v353 = vld [vmem:[%s346 + $0x30] sm:$0xff]
      %v354 = vld [vmem:[%s346 + $0x38] sm:$0xff]
      %v356 = vsel %vm229, %v341, 0
      %v359 = vsel %vm229, %v342, 0
      %v362 = vsel %vm229, %v343, 0
      %v365 = vsel %vm229, %v344, 0
      %v368 = vsel %vm229, %v345, 0
      %370 = vmatprep.subr.mxu0 0.0
      %371 = vmatpush1.msra.mxu0 %v347
      %372 = vmatprep.subr.mxu0 0.0
      %373 = vmatpush1.msra.mxu0 %v348
      %374 = vmatprep.subr.mxu0 0.0
      %375 = vmatpush1.msra.mxu0 %v349
      %376 = vmatprep.subr.mxu0 0.0
      %377 = vmatpush1.msra.mxu0 %v350
      %378 = vmatprep.subr.mxu0 0.0
      %379 = vmatpush1.msra.mxu0 %v351
      %380 = vmatprep.subr.mxu0 0.0
      %381 = vmatpush1.msra.mxu0 %v352
      %382 = vmatprep.subr.mxu0 0.0
      %383 = vmatpush1.msra.mxu0 %v353
      %384 = vmatprep.subr.mxu0 0.0
      %385 = vmatpush1.msra.mxu0 %v354
      %386 = vmatprep.subr.mxu0 0.0
      %387 = vmatpush1.msra.mxu0 0.0
      %388 = vmatprep.subr.mxu0 0.0
      %389 = vmatpush1.msra.mxu0 0.0
      %390 = vmatprep.subr.mxu0 0.0
      %391 = vmatpush1.msra.mxu0 0.0
      %392 = vmatprep.subr.mxu0 0.0
      %393 = vmatpush1.msra.mxu0 0.0
      %394 = vmatprep.subr.mxu0 0.0
      %395 = vmatpush1.msra.mxu0 0.0
      %396 = vmatprep.subr.mxu0 0.0
      %397 = vmatpush1.msra.mxu0 0.0
      %398 = vmatprep.subr.mxu0 0.0
      %399 = vmatpush1.msra.mxu0 0.0
      %400 = vmatprep.subr.mxu0 0.0
      %401 = vmatpush1.msra.mxu0 0.0
      %402 = vmatprep.subr.mxu0 0.0
      %403 = vmatpush1.msra.mxu0 0.0
      %404 = vmatprep.subr.mxu0 0.0
      %405 = vmatpush1.msra.mxu0 0.0
      %406 = vmatprep.subr.mxu0 0.0
      %407 = vmatpush1.msra.mxu0 0.0
      %408 = vmatprep.subr.mxu0 0.0
      %409 = vmatpush1.msra.mxu0 0.0
      %410 = vmatprep.subr.mxu0 0.0
      %411 = vmatpush1.msra.mxu0 0.0
      %412 = vmatprep.subr.mxu0 0.0
      %413 = vmatpush1.msra.mxu0 0.0
      %414 = vmatprep.subr.mxu0 0.0
      %415 = vmatpush1.msra.mxu0 0.0
      %416 = vmatprep.subr.mxu0 0.0
      %417 = vmatpush1.msra.mxu0 0.0
      %418 = vmatprep.subr.mxu0 0.0
      %419 = vmatpush1.msra.mxu0 0.0
      %420 = vmatprep.subr.mxu0 0.0
      %421 = vmatpush1.msra.mxu0 0.0
      %422 = vmatprep.subr.mxu0 0.0
      %423 = vmatpush1.msra.mxu0 0.0
      %424 = vmatprep.subr.mxu0 0.0
      %425 = vmatpush1.msra.mxu0 0.0
      %426 = vmatprep.subr.mxu0 0.0
      %427 = vmatpush1.msra.mxu0 0.0
      %428 = vmatprep.subr.mxu0 0.0
      %429 = vmatpush1.msra.mxu0 0.0
      %430 = vmatprep.subr.mxu0 0.0
      %431 = vmatpush1.msra.mxu0 0.0
      %432 = vmatprep.subr.mxu0 0.0
      %433 = vmatpush1.msra.mxu0 0.0
      %434 = vmatprep.mubr.f32.mxu0 0.0
      %435 = vmatmul.mubr.f32.gmra.mrb[0].mxu0 %v356
      %v436 = vpop.f32.mrb[0].mxu0
      %v437 = vadd.f32 0.0, %v436
      %v438 = vpop.f32.mrb[0].mxu0
      %439 = vmatprep.mubr.f32.mxu0 0.0
      %440 = vmatmul.mubr.f32.gmra.mrb[0].mxu0 %v359
      %v441 = vpop.f32.mrb[0].mxu0
      %v442 = vadd.f32 0.0, %v441
      %v443 = vpop.f32.mrb[0].mxu0
      %444 = vmatprep.mubr.f32.mxu0 0.0
      %445 = vmatmul.mubr.f32.gmra.mrb[0].mxu0 %v362
      %v446 = vpop.f32.mrb[0].mxu0
      %v447 = vadd.f32 0.0, %v446
      %v448 = vpop.f32.mrb[0].mxu0
      %449 = vmatprep.mubr.f32.mxu0 0.0
      %450 = vmatmul.mubr.f32.gmra.mrb[0].mxu0 %v365
      %v451 = vpop.f32.mrb[0].mxu0
      %v452 = vadd.f32 0.0, %v451
      %v453 = vpop.f32.mrb[0].mxu0
      %454 = vmatprep.mubr.f32.mxu0 0.0
      %455 = vmatmul.mubr.f32.gmra.mrb[0].mxu0 %v368
      %v456 = vpop.f32.mrb[0].mxu0
      %v457 = vadd.f32 0.0, %v456
      %v458 = vpop.f32.mrb[0].mxu0
      %459 = vdwg.mxu0
      %s460 = scalar_lea.vmem %s213, 40
      %461 = vst.msk [vmem:[%s460] sm:$0xff] %vm229, %v437
      %462 = vst.msk [vmem:[%s460 + $0x8] sm:$0xff] %vm229, %v442
      %463 = vst.msk [vmem:[%s460 + $0x10] sm:$0xff] %vm229, %v447
      %464 = vst.msk [vmem:[%s460 + $0x18] sm:$0xff] %vm229, %v452
      %465 = vst.msk [vmem:[%s460 + $0x20] sm:$0xff] %vm229, %v457
      %s466 = scalar_lea.vmem %s194, 80
      %v467 = vld [vmem:[%s466] sm:$0xff]
      %v468 = vld [vmem:[%s466 + $0x8] sm:$0xff]
      %v469 = vld [vmem:[%s466 + $0x10] sm:$0xff]
      %v470 = vld [vmem:[%s466 + $0x18] sm:$0xff]
      %v471 = vld [vmem:[%s466 + $0x20] sm:$0xff]
      %s472 = scalar_lea.vmem %s202, 128
      %v473 = vld [vmem:[%s472] sm:$0xff]
      %v474 = vld [vmem:[%s472 + $0x8] sm:$0xff]
      %v475 = vld [vmem:[%s472 + $0x10] sm:$0xff]
      %v476 = vld [vmem:[%s472 + $0x18] sm:$0xff]
      %v477 = vld [vmem:[%s472 + $0x20] sm:$0xff]
      %v478 = vld [vmem:[%s472 + $0x28] sm:$0xff]
      %v479 = vld [vmem:[%s472 + $0x30] sm:$0xff]
      %v480 = vld [vmem:[%s472 + $0x38] sm:$0xff]
      %v482 = vsel %vm229, %v467, 0
      %v485 = vsel %vm229, %v468, 0
      %v488 = vsel %vm229, %v469, 0
      %v491 = vsel %vm229, %v470, 0
      %v494 = vsel %vm229, %v471, 0
      %496 = vmatprep.subr.mxu0 0.0
      %497 = vmatpush1.msra.mxu0 %v473
      %498 = vmatprep.subr.mxu0 0.0
      %499 = vmatpush1.msra.mxu0 %v474
      %500 = vmatprep.subr.mxu0 0.0
      %501 = vmatpush1.msra.mxu0 %v475
      %502 = vmatprep.subr.mxu0 0.0
      %503 = vmatpush1.msra.mxu0 %v476
      %504 = vmatprep.subr.mxu0 0.0
      %505 = vmatpush1.msra.mxu0 %v477
      %506 = vmatprep.subr.mxu0 0.0
      %507 = vmatpush1.msra.mxu0 %v478
      %508 = vmatprep.subr.mxu0 0.0
      %509 = vmatpush1.msra.mxu0 %v479
      %510 = vmatprep.subr.mxu0 0.0
      %511 = vmatpush1.msra.mxu0 %v480
      %512 = vmatprep.subr.mxu0 0.0
      %513 = vmatpush1.msra.mxu0 0.0
      %514 = vmatprep.subr.mxu0 0.0
      %515 = vmatpush1.msra.mxu0 0.0
      %516 = vmatprep.subr.mxu0 0.0
      %517 = vmatpush1.msra.mxu0 0.0
      %518 = vmatprep.subr.mxu0 0.0
      %519 = vmatpush1.msra.mxu0 0.0
      %520 = vmatprep.subr.mxu0 0.0
      %521 = vmatpush1.msra.mxu0 0.0
      %522 = vmatprep.subr.mxu0 0.0
      %523 = vmatpush1.msra.mxu0 0.0
      %524 = vmatprep.subr.mxu0 0.0
      %525 = vmatpush1.msra.mxu0 0.0
      %526 = vmatprep.subr.mxu0 0.0
      %527 = vmatpush1.msra.mxu0 0.0
      %528 = vmatprep.subr.mxu0 0.0
      %529 = vmatpush1.msra.mxu0 0.0
      %530 = vmatprep.subr.mxu0 0.0
      %531 = vmatpush1.msra.mxu0 0.0
      %532 = vmatprep.subr.mxu0 0.0
      %533 = vmatpush1.msra.mxu0 0.0
      %534 = vmatprep.subr.mxu0 0.0
      %535 = vmatpush1.msra.mxu0 0.0
      %536 = vmatprep.subr.mxu0 0.0
      %537 = vmatpush1.msra.mxu0 0.0
      %538 = vmatprep.subr.mxu0 0.0
      %539 = vmatpush1.msra.mxu0 0.0
      %540 = vmatprep.subr.mxu0 0.0
      %541 = vmatpush1.msra.mxu0 0.0
      %542 = vmatprep.subr.mxu0 0.0
      %543 = vmatpush1.msra.mxu0 0.0
      %544 = vmatprep.subr.mxu0 0.0
      %545 = vmatpush1.msra.mxu0 0.0
      %546 = vmatprep.subr.mxu0 0.0
      %547 = vmatpush1.msra.mxu0 0.0
      %548 = vmatprep.subr.mxu0 0.0
      %549 = vmatpush1.msra.mxu0 0.0
      %550 = vmatprep.subr.mxu0 0.0
      %551 = vmatpush1.msra.mxu0 0.0
      %552 = vmatprep.subr.mxu0 0.0
      %553 = vmatpush1.msra.mxu0 0.0
      %554 = vmatprep.subr.mxu0 0.0
      %555 = vmatpush1.msra.mxu0 0.0
      %556 = vmatprep.subr.mxu0 0.0
      %557 = vmatpush1.msra.mxu0 0.0
      %558 = vmatprep.subr.mxu0 0.0
      %559 = vmatpush1.msra.mxu0 0.0
      %560 = vmatprep.mubr.f32.mxu0 0.0
      %561 = vmatmul.mubr.f32.gmra.mrb[0].mxu0 %v482
      %v562 = vpop.f32.mrb[0].mxu0
      %v563 = vadd.f32 0.0, %v562
      %v564 = vpop.f32.mrb[0].mxu0
      %565 = vmatprep.mubr.f32.mxu0 0.0
      %566 = vmatmul.mubr.f32.gmra.mrb[0].mxu0 %v485
      %v567 = vpop.f32.mrb[0].mxu0
      %v568 = vadd.f32 0.0, %v567
      %v569 = vpop.f32.mrb[0].mxu0
      %570 = vmatprep.mubr.f32.mxu0 0.0
      %571 = vmatmul.mubr.f32.gmra.mrb[0].mxu0 %v488
      %v572 = vpop.f32.mrb[0].mxu0
      %v573 = vadd.f32 0.0, %v572
      %v574 = vpop.f32.mrb[0].mxu0
      %575 = vmatprep.mubr.f32.mxu0 0.0
      %576 = vmatmul.mubr.f32.gmra.mrb[0].mxu0 %v491
      %v577 = vpop.f32.mrb[0].mxu0
      %v578 = vadd.f32 0.0, %v577
      %v579 = vpop.f32.mrb[0].mxu0
      %580 = vmatprep.mubr.f32.mxu0 0.0
      %581 = vmatmul.mubr.f32.gmra.mrb[0].mxu0 %v494
      %v582 = vpop.f32.mrb[0].mxu0
      %v583 = vadd.f32 0.0, %v582
      %v584 = vpop.f32.mrb[0].mxu0
      %585 = vdwg.mxu0
      %s586 = scalar_lea.vmem %s213, 80
      %587 = vst.msk [vmem:[%s586] sm:$0xff] %vm229, %v563
      %588 = vst.msk [vmem:[%s586 + $0x8] sm:$0xff] %vm229, %v568
      %589 = vst.msk [vmem:[%s586 + $0x10] sm:$0xff] %vm229, %v573
      %590 = vst.msk [vmem:[%s586 + $0x18] sm:$0xff] %vm229, %v578
      %591 = vst.msk [vmem:[%s586 + $0x20] sm:$0xff] %vm229, %v583
      %s592 = scalar_lea.vmem %s194, 120
      %v593 = vld [vmem:[%s592] sm:$0xff]
      %v594 = vld [vmem:[%s592 + $0x8] sm:$0xff]
      %v595 = vld [vmem:[%s592 + $0x10] sm:$0xff]
      %v596 = vld [vmem:[%s592 + $0x18] sm:$0xff]
      %v597 = vld [vmem:[%s592 + $0x20] sm:$0xff]
      %s598 = scalar_lea.vmem %s202, 192
      %v599 = vld [vmem:[%s598] sm:$0xff]
      %v600 = vld [vmem:[%s598 + $0x8] sm:$0xff]
      %v601 = vld [vmem:[%s598 + $0x10] sm:$0xff]
      %v602 = vld [vmem:[%s598 + $0x18] sm:$0xff]
      %v603 = vld [vmem:[%s598 + $0x20] sm:$0xff]
      %v604 = vld [vmem:[%s598 + $0x28] sm:$0xff]
      %v605 = vld [vmem:[%s598 + $0x30] sm:$0xff]
      %v606 = vld [vmem:[%s598 + $0x38] sm:$0xff]
      %v608 = vsel %vm229, %v593, 0
      %v611 = vsel %vm229, %v594, 0
      %v614 = vsel %vm229, %v595, 0
      %v617 = vsel %vm229, %v596, 0
      %v620 = vsel %vm229, %v597, 0
      %622 = vmatprep.subr.mxu0 0.0
      %623 = vmatpush1.msra.mxu0 %v599
      %624 = vmatprep.subr.mxu0 0.0
      %625 = vmatpush1.msra.mxu0 %v600
      %626 = vmatprep.subr.mxu0 0.0
      %627 = vmatpush1.msra.mxu0 %v601
      %628 = vmatprep.subr.mxu0 0.0
      %629 = vmatpush1.msra.mxu0 %v602
      %630 = vmatprep.subr.mxu0 0.0
      %631 = vmatpush1.msra.mxu0 %v603
      %632 = vmatprep.subr.mxu0 0.0
      %633 = vmatpush1.msra.mxu0 %v604
      %634 = vmatprep.subr.mxu0 0.0
      %635 = vmatpush1.msra.mxu0 %v605
      %636 = vmatprep.subr.mxu0 0.0
      %637 = vmatpush1.msra.mxu0 %v606
      %638 = vmatprep.subr.mxu0 0.0
      %639 = vmatpush1.msra.mxu0 0.0
      %640 = vmatprep.subr.mxu0 0.0
      %641 = vmatpush1.msra.mxu0 0.0
      %642 = vmatprep.subr.mxu0 0.0
      %643 = vmatpush1.msra.mxu0 0.0
      %644 = vmatprep.subr.mxu0 0.0
      %645 = vmatpush1.msra.mxu0 0.0
      %646 = vmatprep.subr.mxu0 0.0
      %647 = vmatpush1.msra.mxu0 0.0
      %648 = vmatprep.subr.mxu0 0.0
      %649 = vmatpush1.msra.mxu0 0.0
      %650 = vmatprep.subr.mxu0 0.0
      %651 = vmatpush1.msra.mxu0 0.0
      %652 = vmatprep.subr.mxu0 0.0
      %653 = vmatpush1.msra.mxu0 0.0
      %654 = vmatprep.subr.mxu0 0.0
      %655 = vmatpush1.msra.mxu0 0.0
      %656 = vmatprep.subr.mxu0 0.0
      %657 = vmatpush1.msra.mxu0 0.0
      %658 = vmatprep.subr.mxu0 0.0
      %659 = vmatpush1.msra.mxu0 0.0
      %660 = vmatprep.subr.mxu0 0.0
      %661 = vmatpush1.msra.mxu0 0.0
      %662 = vmatprep.subr.mxu0 0.0
      %663 = vmatpush1.msra.mxu0 0.0
      %664 = vmatprep.subr.mxu0 0.0
      %665 = vmatpush1.msra.mxu0 0.0
      %666 = vmatprep.subr.mxu0 0.0
      %667 = vmatpush1.msra.mxu0 0.0
      %668 = vmatprep.subr.mxu0 0.0
      %669 = vmatpush1.msra.mxu0 0.0
      %670 = vmatprep.subr.mxu0 0.0
      %671 = vmatpush1.msra.mxu0 0.0
      %672 = vmatprep.subr.mxu0 0.0
      %673 = vmatpush1.msra.mxu0 0.0
      %674 = vmatprep.subr.mxu0 0.0
      %675 = vmatpush1.msra.mxu0 0.0
      %676 = vmatprep.subr.mxu0 0.0
      %677 = vmatpush1.msra.mxu0 0.0
      %678 = vmatprep.subr.mxu0 0.0
      %679 = vmatpush1.msra.mxu0 0.0
      %680 = vmatprep.subr.mxu0 0.0
      %681 = vmatpush1.msra.mxu0 0.0
      %682 = vmatprep.subr.mxu0 0.0
      %683 = vmatpush1.msra.mxu0 0.0
      %684 = vmatprep.subr.mxu0 0.0
      %685 = vmatpush1.msra.mxu0 0.0
      %686 = vmatprep.mubr.f32.mxu0 0.0
      %687 = vmatmul.mubr.f32.gmra.mrb[0].mxu0 %v608
      %v688 = vpop.f32.mrb[0].mxu0
      %v689 = vadd.f32 0.0, %v688
      %v690 = vpop.f32.mrb[0].mxu0
      %691 = vmatprep.mubr.f32.mxu0 0.0
      %692 = vmatmul.mubr.f32.gmra.mrb[0].mxu0 %v611
      %v693 = vpop.f32.mrb[0].mxu0
      %v694 = vadd.f32 0.0, %v693
      %v695 = vpop.f32.mrb[0].mxu0
      %696 = vmatprep.mubr.f32.mxu0 0.0
      %697 = vmatmul.mubr.f32.gmra.mrb[0].mxu0 %v614
      %v698 = vpop.f32.mrb[0].mxu0
      %v699 = vadd.f32 0.0, %v698
      %v700 = vpop.f32.mrb[0].mxu0
      %701 = vmatprep.mubr.f32.mxu0 0.0
      %702 = vmatmul.mubr.f32.gmra.mrb[0].mxu0 %v617
      %v703 = vpop.f32.mrb[0].mxu0
      %v704 = vadd.f32 0.0, %v703
      %v705 = vpop.f32.mrb[0].mxu0
      %706 = vmatprep.mubr.f32.mxu0 0.0
      %707 = vmatmul.mubr.f32.gmra.mrb[0].mxu0 %v620
      %v708 = vpop.f32.mrb[0].mxu0
      %v709 = vadd.f32 0.0, %v708
      %v710 = vpop.f32.mrb[0].mxu0
      %711 = vdwg.mxu0
      %s712 = scalar_lea.vmem %s213, 120
      %713 = vst.msk [vmem:[%s712] sm:$0xff] %vm229, %v689
      %714 = vst.msk [vmem:[%s712 + $0x8] sm:$0xff] %vm229, %v694
      %715 = vst.msk [vmem:[%s712 + $0x10] sm:$0xff] %vm229, %v699
      %716 = vst.msk [vmem:[%s712 + $0x18] sm:$0xff] %vm229, %v704
      %717 = vst.msk [vmem:[%s712 + $0x20] sm:$0xff] %vm229, %v709
      %s718 = smul.u32 4, %s17
      %s719 = smul.u32 5, %s18
      %p720 = scmp.lt.s32.totalorder %s718, 7
      %s721 = scalar_select %p720, %s718, 7
      %p722 = scmp.lt.s32.totalorder %s719, 4
      %s723 = scalar_select %p722, %s719, 4
      %s724 = smul.addr %s721, 5
      %s725 = sadd.s32 %s723, %s724
      %s726 = smul.addr %s725, 8
      %s727 = scalar_lea.vmem %s2, %s726
      // Predicated region
      $region29: #{fno2d_encoder_forward.9} parent=27 // pred_check
        %p728 = pneg %p99
      $region30: #{fno2d_encoder_forward.9} parent=27 // pred_check_branch
        %730 = sbr.rel (%p728) target = $region32
      $region31: #{fno2d_encoder_forward.9} parent=27 // pred_region
        %s731 = smul.u32 4, %s17
        %s732 = smul.u32 5, %s18
      $region32: #{fno2d_encoder_forward.9} parent=27 // pred_fallthru
        _
    $region28: #{fno2d_encoder_forward.9} parent=5 // pred_fallthru
      _
    %p733 = scmp.le.s32.totalorder 2, %s8
    // Predicated region
    $region33: #{fno2d_encoder_forward.9} parent=5 // pred_check
      %p734 = pneg %p733
    $region34: #{fno2d_encoder_forward.9} parent=5 // pred_check_branch
      %736 = sbr.rel (%p734) target = $region36
    $region35: #{fno2d_encoder_forward.9} parent=5 // pred_region
      %s737 = ssub.s32 %s8, 2
      // Predicated region
      $region37: #{fno2d_encoder_forward.9} parent=35 // pred_check
        %p738 = pneg %p105
      $region38: #{fno2d_encoder_forward.9} parent=35 // pred_check_branch
        %740 = sbr.rel (%p738) target = $region40
      $region39: #{fno2d_encoder_forward.9} parent=35 // pred_region
        %s741 = smul.u32 4, %s19
        %s742 = smul.u32 5, %s20
        %p743 = scmp.lt.s32.totalorder %s741, 7
        %s744 = scalar_select %p743, %s741, 7
        %p745 = scmp.lt.s32.totalorder %s742, 4
        %s746 = scalar_select %p745, %s742, 4
        %s747 = smul.addr %s744, 5
        %s748 = sadd.s32 %s746, %s747
        %s749 = smul.addr %s748, 8
        %s750 = scalar_lea.vmem %s2, %s749
      $region40: #{fno2d_encoder_forward.9} parent=35 // pred_fallthru
        _
    $region36: #{fno2d_encoder_forward.9} parent=5 // pred_fallthru
      _
  $region6: #{fno2d_encoder_forward.9} parent=0 // loop_footer
    %s12 = sadd.s32 1, %s8
  $region7: #{fno2d_encoder_forward.9} parent=0 // loop_footer_branch
    %7 = sbr.rel target = $region3
  $region8: #{fno2d_encoder_forward.9} parent=0 // loop_exit
    _

// kernel: fno2d_encoder_forward.10
$region0: #{fno2d_encoder_forward.10}
  #allocation0 [shape = 'u32[]', space=smem, size = 0x4, offset = 0x4, fixed_abs, tag = 'smem constant byte address 0x4 - core index']
  #allocation1 [shape = 'u32[144,128]{1,0:T(1,128)}', space=vmem, size = 0x12000, scoped, tag = 'internal scratch']
  %s0 = inlined_call_operand.vmem [shape: f32[800,32], index: 0, kind: input, shape index: {}]
  %s1 = inlined_call_operand.vmem [shape: f32[32,128], index: 1, kind: input, shape index: {}]
  %s2 = inlined_call_operand.vmem [shape: f32[1,128], index: 2, kind: input, shape index: {}]
  %s3 = inlined_call_operand.vmem [shape: f32[128,32], index: 3, kind: input, shape index: {}]
  %s4 = inlined_call_operand.vmem [shape: f32[1,32], index: 4, kind: input, shape index: {}]
  %s5 = inlined_call_operand.vmem [shape: f32[800,32], index: 5, kind: output, shape index: {}]
  %s6 = sld [smem:[#allocation0]]
  $region30: #{fno2d_encoder_forward.10} parent=0
    _
  %s8 = ssub.s32 1, %s6
  %s9 = scalar_select 0, %s8, %s6
  // Predicated region
  $region2: #{fno2d_encoder_forward.10} parent=0 // pred_check
    _
  $region3: #{fno2d_encoder_forward.10} parent=0 // pred_check_branch
    %11 = sbr.rel (0) target = $region5
  $region4: #{fno2d_encoder_forward.10} parent=0 // pred_region
    _
  $region5: #{fno2d_encoder_forward.10} parent=0 // pred_fallthru
    _
  // Predicated region
  $region6: #{fno2d_encoder_forward.10} parent=0 // pred_check
    _
  $region7: #{fno2d_encoder_forward.10} parent=0 // pred_check_branch
    %13 = sbr.rel (0) target = $region9
  $region8: #{fno2d_encoder_forward.10} parent=0 // pred_region
    _
  $region9: #{fno2d_encoder_forward.10} parent=0 // pred_fallthru
    _
  // Predicated region
  $region10: #{fno2d_encoder_forward.10} parent=0 // pred_check
    _
  $region11: #{fno2d_encoder_forward.10} parent=0 // pred_check_branch
    %15 = sbr.rel (0) target = $region13
  $region12: #{fno2d_encoder_forward.10} parent=0 // pred_region
    _
  $region13: #{fno2d_encoder_forward.10} parent=0 // pred_fallthru
    _
  // Predicated region
  $region14: #{fno2d_encoder_forward.10} parent=0 // pred_check
    _
  $region15: #{fno2d_encoder_forward.10} parent=0 // pred_check_branch
    %17 = sbr.rel (0) target = $region17
  $region16: #{fno2d_encoder_forward.10} parent=0 // pred_region
    _
  $region17: #{fno2d_encoder_forward.10} parent=0 // pred_fallthru
    _
  // Predicated region
  $region18: #{fno2d_encoder_forward.10} parent=0 // pred_check
    _
  $region19: #{fno2d_encoder_forward.10} parent=0 // pred_check_branch
    %19 = sbr.rel (0) target = $region21
  $region20: #{fno2d_encoder_forward.10} parent=0 // pred_region
    _
  $region21: #{fno2d_encoder_forward.10} parent=0 // pred_fallthru
    _
  %v20 = vld [vmem:[%s0] sm:$0xff]
  %v21 = vld [vmem:[%s0 + $0x8] sm:$0xff]
  %v22 = vld [vmem:[%s0 + $0x10] sm:$0xff]
  %v23 = vld [vmem:[%s0 + $0x18] sm:$0xff]
  %v24 = vld [vmem:[%s0 + $0x20] sm:$0xff]
  %v25 = vld [vmem:[%s0 + $0x28] sm:$0xff]
  %v26 = vld [vmem:[%s0 + $0x30] sm:$0xff]
  %v27 = vld [vmem:[%s0 + $0x38] sm:$0xff]
  %v28 = vld [vmem:[%s0 + $0x40] sm:$0xff]
  %v29 = vld [vmem:[%s0 + $0x48] sm:$0xff]
  %v30 = vld [vmem:[%s0 + $0x50] sm:$0xff]
  %v31 = vld [vmem:[%s0 + $0x58] sm:$0xff]
  %v32 = vld [vmem:[%s0 + $0x60] sm:$0xff]
  %v33 = vld [vmem:[%s0 + $0x68] sm:$0xff]
  %v34 = vld [vmem:[%s0 + $0x70] sm:$0xff]
  %v35 = vld [vmem:[%s0 + $0x78] sm:$0xff]
  %v36 = vld [vmem:[%s0 + $0x80] sm:$0xff]
  %v37 = vld [vmem:[%s0 + $0x88] sm:$0xff]
  %v38 = vld [vmem:[%s0 + $0x90] sm:$0xff]
  %v39 = vld [vmem:[%s0 + $0x98] sm:$0xff]
  %v40 = vld [vmem:[%s0 + $0xa0] sm:$0xff]
  %v41 = vld [vmem:[%s0 + $0xa8] sm:$0xff]
  %v42 = vld [vmem:[%s0 + $0xb0] sm:$0xff]
  %v43 = vld [vmem:[%s0 + $0xb8] sm:$0xff]
  %v44 = vld [vmem:[%s0 + $0xc0] sm:$0xff]
  %v45 = vld [vmem:[%s0 + $0xc8] sm:$0xff]
  %v46 = vld [vmem:[%s0 + $0xd0] sm:$0xff]
  %v47 = vld [vmem:[%s0 + $0xd8] sm:$0xff]
  %v48 = vld [vmem:[%s0 + $0xe0] sm:$0xff]
  %v49 = vld [vmem:[%s0 + $0xe8] sm:$0xff]
  %v50 = vld [vmem:[%s0 + $0xf0] sm:$0xff]
  %v51 = vld [vmem:[%s0 + $0xf8] sm:$0xff]
  %v52 = vld [vmem:[%s0 + $0x100] sm:$0xff]
  %v53 = vld [vmem:[%s0 + $0x108] sm:$0xff]
  %v54 = vld [vmem:[%s0 + $0x110] sm:$0xff]
  %v55 = vld [vmem:[%s0 + $0x118] sm:$0xff]
  %v56 = vld [vmem:[%s0 + $0x120] sm:$0xff]
  %v57 = vld [vmem:[%s0 + $0x128] sm:$0xff]
  %v58 = vld [vmem:[%s0 + $0x130] sm:$0xff]
  %v59 = vld [vmem:[%s0 + $0x138] sm:$0xff]
  %v60 = vld [vmem:[%s0 + $0x140] sm:$0xff]
  %v61 = vld [vmem:[%s0 + $0x148] sm:$0xff]
  %v62 = vld [vmem:[%s0 + $0x150] sm:$0xff]
  %v63 = vld [vmem:[%s0 + $0x158] sm:$0xff]
  %v64 = vld [vmem:[%s0 + $0x160] sm:$0xff]
  %v65 = vld [vmem:[%s0 + $0x168] sm:$0xff]
  %v66 = vld [vmem:[%s0 + $0x170] sm:$0xff]
  %v67 = vld [vmem:[%s0 + $0x178] sm:$0xff]
  %v68 = vld [vmem:[%s0 + $0x180] sm:$0xff]
  %v69 = vld [vmem:[%s0 + $0x188] sm:$0xff]
  %v70 = vld [vmem:[%s0 + $0x190] sm:$0xff]
  %v71 = vld [vmem:[%s0 + $0x198] sm:$0xff]
  %v72 = vld [vmem:[%s0 + $0x1a0] sm:$0xff]
  %v73 = vld [vmem:[%s0 + $0x1a8] sm:$0xff]
  %v74 = vld [vmem:[%s0 + $0x1b0] sm:$0xff]
  %v75 = vld [vmem:[%s0 + $0x1b8] sm:$0xff]
  %v76 = vld [vmem:[%s0 + $0x1c0] sm:$0xff]
  %v77 = vld [vmem:[%s0 + $0x1c8] sm:$0xff]
  %v78 = vld [vmem:[%s0 + $0x1d0] sm:$0xff]
  %v79 = vld [vmem:[%s0 + $0x1d8] sm:$0xff]
  %v80 = vld [vmem:[%s0 + $0x1e0] sm:$0xff]
  %v81 = vld [vmem:[%s0 + $0x1e8] sm:$0xff]
  %v82 = vld [vmem:[%s0 + $0x1f0] sm:$0xff]
  %v83 = vld [vmem:[%s0 + $0x1f8] sm:$0xff]
  %v84 = vld [vmem:[%s0 + $0x200] sm:$0xff]
  %v85 = vld [vmem:[%s0 + $0x208] sm:$0xff]
  %v86 = vld [vmem:[%s0 + $0x210] sm:$0xff]
  %v87 = vld [vmem:[%s0 + $0x218] sm:$0xff]
  %v88 = vld [vmem:[%s0 + $0x220] sm:$0xff]
  %v89 = vld [vmem:[%s0 + $0x228] sm:$0xff]
  %v90 = vld [vmem:[%s0 + $0x230] sm:$0xff]
  %v91 = vld [vmem:[%s0 + $0x238] sm:$0xff]
  %v92 = vld [vmem:[%s0 + $0x240] sm:$0xff]
  %v93 = vld [vmem:[%s0 + $0x248] sm:$0xff]
  %v94 = vld [vmem:[%s0 + $0x250] sm:$0xff]
  %v95 = vld [vmem:[%s0 + $0x258] sm:$0xff]
  %v96 = vld [vmem:[%s0 + $0x260] sm:$0xff]
  %v97 = vld [vmem:[%s0 + $0x268] sm:$0xff]
  %v98 = vld [vmem:[%s0 + $0x270] sm:$0xff]
  %v99 = vld [vmem:[%s0 + $0x278] sm:$0xff]
  %v100 = vld [vmem:[%s0 + $0x280] sm:$0xff]
  %v101 = vld [vmem:[%s0 + $0x288] sm:$0xff]
  %v102 = vld [vmem:[%s0 + $0x290] sm:$0xff]
  %v103 = vld [vmem:[%s0 + $0x298] sm:$0xff]
  %v104 = vld [vmem:[%s0 + $0x2a0] sm:$0xff]
  %v105 = vld [vmem:[%s0 + $0x2a8] sm:$0xff]
  %v106 = vld [vmem:[%s0 + $0x2b0] sm:$0xff]
  %v107 = vld [vmem:[%s0 + $0x2b8] sm:$0xff]
  %v108 = vld [vmem:[%s0 + $0x2c0] sm:$0xff]
  %v109 = vld [vmem:[%s0 + $0x2c8] sm:$0xff]
  %v110 = vld [vmem:[%s0 + $0x2d0] sm:$0xff]
  %v111 = vld [vmem:[%s0 + $0x2d8] sm:$0xff]
  %v112 = vld [vmem:[%s0 + $0x2e0] sm:$0xff]
  %v113 = vld [vmem:[%s0 + $0x2e8] sm:$0xff]
  %v114 = vld [vmem:[%s0 + $0x2f0] sm:$0xff]
  %v115 = vld [vmem:[%s0 + $0x2f8] sm:$0xff]
  %v116 = vld [vmem:[%s0 + $0x300] sm:$0xff]
  %v117 = vld [vmem:[%s0 + $0x308] sm:$0xff]
  %v118 = vld [vmem:[%s0 + $0x310] sm:$0xff]
  %v119 = vld [vmem:[%s0 + $0x318] sm:$0xff]
  %v120 = vld [vmem:[%s1] sm:$0xff]
  %v121 = vld [vmem:[%s1 + $0x8] sm:$0xff]
  %v122 = vld [vmem:[%s1 + $0x10] sm:$0xff]
  %v123 = vld [vmem:[%s1 + $0x18] sm:$0xff]
  %v124 = vld [vmem:[%s2] sm:$0x1]
  %v126 = vlaneseq
  %v127 = vshrl.u32 %v126, 7
  %v128 = vsub.s32 0, %v127
  %v129 = vrot.slane %v124, %v128
  %vm131 = vcmask 261120
  %v133 = vsel %vm131, %v20, 0
  %v136 = vsel %vm131, %v21, 0
  %v139 = vsel %vm131, %v22, 0
  %v142 = vsel %vm131, %v23, 0
  %v145 = vsel %vm131, %v24, 0
  %v148 = vsel %vm131, %v25, 0
  %v151 = vsel %vm131, %v26, 0
  %v154 = vsel %vm131, %v27, 0
  %v157 = vsel %vm131, %v28, 0
  %v160 = vsel %vm131, %v29, 0
  %v163 = vsel %vm131, %v30, 0
  %v166 = vsel %vm131, %v31, 0
  %v169 = vsel %vm131, %v32, 0
  %v172 = vsel %vm131, %v33, 0
  %v175 = vsel %vm131, %v34, 0
  %v178 = vsel %vm131, %v35, 0
  %v181 = vsel %vm131, %v36, 0
  %v184 = vsel %vm131, %v37, 0
  %v187 = vsel %vm131, %v38, 0
  %v190 = vsel %vm131, %v39, 0
  %v193 = vsel %vm131, %v40, 0
  %v196 = vsel %vm131, %v41, 0
  %v199 = vsel %vm131, %v42, 0
  %v202 = vsel %vm131, %v43, 0
  %v205 = vsel %vm131, %v44, 0
  %v208 = vsel %vm131, %v45, 0
  %v211 = vsel %vm131, %v46, 0
  %v214 = vsel %vm131, %v47, 0
  %v217 = vsel %vm131, %v48, 0
  %v220 = vsel %vm131, %v49, 0
  %v223 = vsel %vm131, %v50, 0
  %v226 = vsel %vm131, %v51, 0
  %v229 = vsel %vm131, %v52, 0
  %v232 = vsel %vm131, %v53, 0
  %v235 = vsel %vm131, %v54, 0
  %v238 = vsel %vm131, %v55, 0
  %v241 = vsel %vm131, %v56, 0
  %v244 = vsel %vm131, %v57, 0
  %v247 = vsel %vm131, %v58, 0
  %v250 = vsel %vm131, %v59, 0
  %v253 = vsel %vm131, %v60, 0
  %v256 = vsel %vm131, %v61, 0
  %v259 = vsel %vm131, %v62, 0
  %v262 = vsel %vm131, %v63, 0
  %v265 = vsel %vm131, %v64, 0
  %v268 = vsel %vm131, %v65, 0
  %v271 = vsel %vm131, %v66, 0
  %v274 = vsel %vm131, %v67, 0
  %v277 = vsel %vm131, %v68, 0
  %v280 = vsel %vm131, %v69, 0
  %v283 = vsel %vm131, %v70, 0
  %v286 = vsel %vm131, %v71, 0
  %v289 = vsel %vm131, %v72, 0
  %v292 = vsel %vm131, %v73, 0
  %v295 = vsel %vm131, %v74, 0
  %v298 = vsel %vm131, %v75, 0
  %v301 = vsel %vm131, %v76, 0
  %v304 = vsel %vm131, %v77, 0
  %v307 = vsel %vm131, %v78, 0
  %v310 = vsel %vm131, %v79, 0
  %v313 = vsel %vm131, %v80, 0
  %v316 = vsel %vm131, %v81, 0
  %v319 = vsel %vm131, %v82, 0
  %v322 = vsel %vm131, %v83, 0
  %v325 = vsel %vm131, %v84, 0
  %v328 = vsel %vm131, %v85, 0
  %v331 = vsel %vm131, %v86, 0
  %v334 = vsel %vm131, %v87, 0
  %v337 = vsel %vm131, %v88, 0
  %v340 = vsel %vm131, %v89, 0
  %v343 = vsel %vm131, %v90, 0
  %v346 = vsel %vm131, %v91, 0
  %v349 = vsel %vm131, %v92, 0
  %v352 = vsel %vm131, %v93, 0
  %v355 = vsel %vm131, %v94, 0
  %v358 = vsel %vm131, %v95, 0
  %v361 = vsel %vm131, %v96, 0
  %v364 = vsel %vm131, %v97, 0
  %v367 = vsel %vm131, %v98, 0
  %v370 = vsel %vm131, %v99, 0
  %v373 = vsel %vm131, %v100, 0
  %v376 = vsel %vm131, %v101, 0
  %v379 = vsel %vm131, %v102, 0
  %v382 = vsel %vm131, %v103, 0
  %v385 = vsel %vm131, %v104, 0
  %v388 = vsel %vm131, %v105, 0
  %v391 = vsel %vm131, %v106, 0
  %v394 = vsel %vm131, %v107, 0
  %v397 = vsel %vm131, %v108, 0
  %v400 = vsel %vm131, %v109, 0
  %v403 = vsel %vm131, %v110, 0
  %v406 = vsel %vm131, %v111, 0
  %v409 = vsel %vm131, %v112, 0
  %v412 = vsel %vm131, %v113, 0
  %v415 = vsel %vm131, %v114, 0
  %v418 = vsel %vm131, %v115, 0
  %v421 = vsel %vm131, %v116, 0
  %v424 = vsel %vm131, %v117, 0
  %v427 = vsel %vm131, %v118, 0
  %v430 = vsel %vm131, %v119, 0
  %432 = vmatprep.subr.mxu0 0.0
  %433 = vmatpush1.msra.mxu0 %v120
  %434 = vmatprep.subr.mxu0 0.0
  %435 = vmatpush1.msra.mxu0 %v121
  %436 = vmatprep.subr.mxu0 0.0
  %437 = vmatpush1.msra.mxu0 %v122
  %438 = vmatprep.subr.mxu0 0.0
  %439 = vmatpush1.msra.mxu0 %v123
  %440 = vmatprep.subr.mxu0 0.0
  %441 = vmatpush1.msra.mxu0 0.0
  %442 = vmatprep.subr.mxu0 0.0
  %443 = vmatpush1.msra.mxu0 0.0
  %444 = vmatprep.subr.mxu0 0.0
  %445 = vmatpush1.msra.mxu0 0.0
  %446 = vmatprep.subr.mxu0 0.0
  %447 = vmatpush1.msra.mxu0 0.0
  %448 = vmatprep.subr.mxu0 0.0
  %449 = vmatpush1.msra.mxu0 0.0
  %450 = vmatprep.subr.mxu0 0.0
  %451 = vmatpush1.msra.mxu0 0.0
  %452 = vmatprep.subr.mxu0 0.0
  %453 = vmatpush1.msra.mxu0 0.0
  %454 = vmatprep.subr.mxu0 0.0
  %455 = vmatpush1.msra.mxu0 0.0
  %456 = vmatprep.subr.mxu0 0.0
  %457 = vmatpush1.msra.mxu0 0.0
  %458 = vmatprep.subr.mxu0 0.0
  %459 = vmatpush1.msra.mxu0 0.0
  %460 = vmatprep.subr.mxu0 0.0
  %461 = vmatpush1.msra.mxu0 0.0
  %462 = vmatprep.subr.mxu0 0.0
  %463 = vmatpush1.msra.mxu0 0.0
  %464 = vmatprep.subr.mxu0 0.0
  %465 = vmatpush1.msra.mxu0 0.0
  %466 = vmatprep.subr.mxu0 0.0
  %467 = vmatpush1.msra.mxu0 0.0
  %468 = vmatprep.subr.mxu0 0.0
  %469 = vmatpush1.msra.mxu0 0.0
  %470 = vmatprep.subr.mxu0 0.0
  %471 = vmatpush1.msra.mxu0 0.0
  %472 = vmatprep.subr.mxu0 0.0
  %473 = vmatpush1.msra.mxu0 0.0
  %474 = vmatprep.subr.mxu0 0.0
  %475 = vmatpush1.msra.mxu0 0.0
  %476 = vmatprep.subr.mxu0 0.0
  %477 = vmatpush1.msra.mxu0 0.0
  %478 = vmatprep.subr.mxu0 0.0
  %479 = vmatpush1.msra.mxu0 0.0
  %480 = vmatprep.subr.mxu0 0.0
  %481 = vmatpush1.msra.mxu0 0.0
  %482 = vmatprep.subr.mxu0 0.0
  %483 = vmatpush1.msra.mxu0 0.0
  %484 = vmatprep.subr.mxu0 0.0
  %485 = vmatpush1.msra.mxu0 0.0
  %486 = vmatprep.subr.mxu0 0.0
  %487 = vmatpush1.msra.mxu0 0.0
  %488 = vmatprep.subr.mxu0 0.0
  %489 = vmatpush1.msra.mxu0 0.0
  %490 = vmatprep.subr.mxu0 0.0
  %491 = vmatpush1.msra.mxu0 0.0
  %492 = vmatprep.subr.mxu0 0.0
  %493 = vmatpush1.msra.mxu0 0.0
  %494 = vmatprep.subr.mxu0 0.0
  %495 = vmatpush1.msra.mxu0 0.0
  %496 = vmatprep.mubr.f32.mxu0 0.0
  %497 = vmatmul.mubr.f32.gmra.mrb[0].mxu0 %v133
  %v498 = vpop.f32.mrb[0].mxu0
  %v499 = vadd.f32 %v129, %v498
  %v500 = vpop.f32.mrb[0].mxu0
  %501 = vmatprep.mubr.f32.mxu0 0.0
  %502 = vmatmul.mubr.f32.gmra.mrb[0].mxu0 %v136
  %v503 = vpop.f32.mrb[0].mxu0
  %v504 = vadd.f32 %v129, %v503
  %v505 = vpop.f32.mrb[0].mxu0
  %506 = vmatprep.mubr.f32.mxu0 0.0
  %507 = vmatmul.mubr.f32.gmra.mrb[0].mxu0 %v139
  %v508 = vpop.f32.mrb[0].mxu0
  %v509 = vadd.f32 %v129, %v508
  %v510 = vpop.f32.mrb[0].mxu0
  %511 = vmatprep.mubr.f32.mxu0 0.0
  %512 = vmatmul.mubr.f32.gmra.mrb[0].mxu0 %v142
  %v513 = vpop.f32.mrb[0].mxu0
  %v514 = vadd.f32 %v129, %v513
  %v515 = vpop.f32.mrb[0].mxu0
  %516 = vmatprep.mubr.f32.mxu0 0.0
  %517 = vmatmul.mubr.f32.gmra.mrb[0].mxu0 %v145
  %v518 = vpop.f32.mrb[0].mxu0
  %v519 = vadd.f32 %v129, %v518
  %v520 = vpop.f32.mrb[0].mxu0
  %521 = vmatprep.mubr.f32.mxu0 0.0
  %522 = vmatmul.mubr.f32.gmra.mrb[0].mxu0 %v148
  %v523 = vpop.f32.mrb[0].mxu0
  %v524 = vadd.f32 %v129, %v523
  %v525 = vpop.f32.mrb[0].mxu0
  %526 = vmatprep.mubr.f32.mxu0 0.0
  %527 = vmatmul.mubr.f32.gmra.mrb[0].mxu0 %v151
  %v528 = vpop.f32.mrb[0].mxu0
  %v529 = vadd.f32 %v129, %v528
  %v530 = vpop.f32.mrb[0].mxu0
  %531 = vmatprep.mubr.f32.mxu0 0.0
  %532 = vmatmul.mubr.f32.gmra.mrb[0].mxu0 %v154
  %v533 = vpop.f32.mrb[0].mxu0
  %v534 = vadd.f32 %v129, %v533
  %v535 = vpop.f32.mrb[0].mxu0
  %536 = vmatprep.mubr.f32.mxu0 0.0
  %537 = vmatmul.mubr.f32.gmra.mrb[0].mxu0 %v157
  %v538 = vpop.f32.mrb[0].mxu0
  %v539 = vadd.f32 %v129, %v538
  %v540 = vpop.f32.mrb[0].mxu0
  %541 = vmatprep.mubr.f32.mxu0 0.0
  %542 = vmatmul.mubr.f32.gmra.mrb[0].mxu0 %v160
  %v543 = vpop.f32.mrb[0].mxu0
  %v544 = vadd.f32 %v129, %v543
  %v545 = vpop.f32.mrb[0].mxu0
  %546 = vmatprep.mubr.f32.mxu0 0.0
  %547 = vmatmul.mubr.f32.gmra.mrb[0].mxu0 %v163
  %v548 = vpop.f32.mrb[0].mxu0
  %v549 = vadd.f32 %v129, %v548
  %v550 = vpop.f32.mrb[0].mxu0
  %551 = vmatprep.mubr.f32.mxu0 0.0
  %552 = vmatmul.mubr.f32.gmra.mrb[0].mxu0 %v166
  %v553 = vpop.f32.mrb[0].mxu0
  %v554 = vadd.f32 %v129, %v553
  %v555 = vpop.f32.mrb[0].mxu0
  %556 = vmatprep.mubr.f32.mxu0 0.0
  %557 = vmatmul.mubr.f32.gmra.mrb[0].mxu0 %v169
  %v558 = vpop.f32.mrb[0].mxu0
  %v559 = vadd.f32 %v129, %v558
  %v560 = vpop.f32.mrb[0].mxu0
  %561 = vmatprep.mubr.f32.mxu0 0.0
  %562 = vmatmul.mubr.f32.gmra.mrb[0].mxu0 %v172
  %v563 = vpop.f32.mrb[0].mxu0
  %v564 = vadd.f32 %v129, %v563
  %v565 = vpop.f32.mrb[0].mxu0
  %566 = vmatprep.mubr.f32.mxu0 0.0
  %567 = vmatmul.mubr.f32.gmra.mrb[0].mxu0 %v175
  %v568 = vpop.f32.mrb[0].mxu0
  %v569 = vadd.f32 %v129, %v568
  %v570 = vpop.f32.mrb[0].mxu0
  %571 = vmatprep.mubr.f32.mxu0 0.0
  %572 = vmatmul.mubr.f32.gmra.mrb[0].mxu0 %v178
  %v573 = vpop.f32.mrb[0].mxu0
  %v574 = vadd.f32 %v129, %v573
  %v575 = vpop.f32.mrb[0].mxu0
  %576 = vmatprep.mubr.f32.mxu0 0.0
  %577 = vmatmul.mubr.f32.gmra.mrb[0].mxu0 %v181
  %v578 = vpop.f32.mrb[0].mxu0
  %v579 = vadd.f32 %v129, %v578
  %v580 = vpop.f32.mrb[0].mxu0
  %581 = vmatprep.mubr.f32.mxu0 0.0
  %582 = vmatmul.mubr.f32.gmra.mrb[0].mxu0 %v184
  %v583 = vpop.f32.mrb[0].mxu0
  %v584 = vadd.f32 %v129, %v583
  %v585 = vpop.f32.mrb[0].mxu0
  %586 = vmatprep.mubr.f32.mxu0 0.0
  %587 = vmatmul.mubr.f32.gmra.mrb[0].mxu0 %v187
  %v588 = vpop.f32.mrb[0].mxu0
  %v589 = vadd.f32 %v129, %v588
  %v590 = vpop.f32.mrb[0].mxu0
  %591 = vmatprep.mubr.f32.mxu0 0.0
  %592 = vmatmul.mubr.f32.gmra.mrb[0].mxu0 %v190
  %v593 = vpop.f32.mrb[0].mxu0
  %v594 = vadd.f32 %v129, %v593
  %v595 = vpop.f32.mrb[0].mxu0
  %596 = vmatprep.mubr.f32.mxu0 0.0
  %597 = vmatmul.mubr.f32.gmra.mrb[0].mxu0 %v193
  %v598 = vpop.f32.mrb[0].mxu0
  %v599 = vadd.f32 %v129, %v598
  %v600 = vpop.f32.mrb[0].mxu0
  %601 = vmatprep.mubr.f32.mxu0 0.0
  %602 = vmatmul.mubr.f32.gmra.mrb[0].mxu0 %v196
  %v603 = vpop.f32.mrb[0].mxu0
  %v604 = vadd.f32 %v129, %v603
  %v605 = vpop.f32.mrb[0].mxu0
  %606 = vmatprep.mubr.f32.mxu0 0.0
  %607 = vmatmul.mubr.f32.gmra.mrb[0].mxu0 %v199
  %v608 = vpop.f32.mrb[0].mxu0
  %v609 = vadd.f32 %v129, %v608
  %v610 = vpop.f32.mrb[0].mxu0
  %611 = vmatprep.mubr.f32.mxu0 0.0
  %612 = vmatmul.mubr.f32.gmra.mrb[0].mxu0 %v202
  %v613 = vpop.f32.mrb[0].mxu0
  %v614 = vadd.f32 %v129, %v613
  %v615 = vpop.f32.mrb[0].mxu0
  %616 = vmatprep.mubr.f32.mxu0 0.0
  %617 = vmatmul.mubr.f32.gmra.mrb[0].mxu0 %v205
  %v618 = vpop.f32.mrb[0].mxu0
  %v619 = vadd.f32 %v129, %v618
  %v620 = vpop.f32.mrb[0].mxu0
  %621 = vmatprep.mubr.f32.mxu0 0.0
  %622 = vmatmul.mubr.f32.gmra.mrb[0].mxu0 %v208
  %v623 = vpop.f32.mrb[0].mxu0
  %v624 = vadd.f32 %v129, %v623
  %v625 = vpop.f32.mrb[0].mxu0
  %626 = vmatprep.mubr.f32.mxu0 0.0
  %627 = vmatmul.mubr.f32.gmra.mrb[0].mxu0 %v211
  %v628 = vpop.f32.mrb[0].mxu0
  %v629 = vadd.f32 %v129, %v628
  %v630 = vpop.f32.mrb[0].mxu0
  %631 = vmatprep.mubr.f32.mxu0 0.0
  %632 = vmatmul.mubr.f32.gmra.mrb[0].mxu0 %v214
  %v633 = vpop.f32.mrb[0].mxu0
  %v634 = vadd.f32 %v129, %v633
  %v635 = vpop.f32.mrb[0].mxu0
  %636 = vmatprep.mubr.f32.mxu0 0.0
  %637 = vmatmul.mubr.f32.gmra.mrb[0].mxu0 %v217
  %v638 = vpop.f32.mrb[0].mxu0
  %v639 = vadd.f32 %v129, %v638
  %v640 = vpop.f32.mrb[0].mxu0
  %641 = vmatprep.mubr.f32.mxu0 0.0
  %642 = vmatmul.mubr.f32.gmra.mrb[0].mxu0 %v220
  %v643 = vpop.f32.mrb[0].mxu0
  %v644 = vadd.f32 %v129, %v643
  %v645 = vpop.f32.mrb[0].mxu0
  %646 = vmatprep.mubr.f32.mxu0 0.0
  %647 = vmatmul.mubr.f32.gmra.mrb[0].mxu0 %v223
  %v648 = vpop.f32.mrb[0].mxu0
  %v649 = vadd.f32 %v129, %v648
  %v650 = vpop.f32.mrb[0].mxu0
  %651 = vmatprep.mubr.f32.mxu0 0.0
  %652 = vmatmul.mubr.f32.gmra.mrb[0].mxu0 %v226
  %v653 = vpop.f32.mrb[0].mxu0
  %v654 = vadd.f32 %v129, %v653
  %v655 = vpop.f32.mrb[0].mxu0
  %656 = vmatprep.mubr.f32.mxu0 0.0
  %657 = vmatmul.mubr.f32.gmra.mrb[0].mxu0 %v229
  %v658 = vpop.f32.mrb[0].mxu0
  %v659 = vadd.f32 %v129, %v658
  %v660 = vpop.f32.mrb[0].mxu0
  %661 = vmatprep.mubr.f32.mxu0 0.0
  %662 = vmatmul.mubr.f32.gmra.mrb[0].mxu0 %v232
  %v663 = vpop.f32.mrb[0].mxu0
  %v664 = vadd.f32 %v129, %v663
  %v665 = vpop.f32.mrb[0].mxu0
  %666 = vmatprep.mubr.f32.mxu0 0.0
  %667 = vmatmul.mubr.f32.gmra.mrb[0].mxu0 %v235
  %v668 = vpop.f32.mrb[0].mxu0
  %v669 = vadd.f32 %v129, %v668
  %v670 = vpop.f32.mrb[0].mxu0
  %671 = vmatprep.mubr.f32.mxu0 0.0
  %672 = vmatmul.mubr.f32.gmra.mrb[0].mxu0 %v238
  %v673 = vpop.f32.mrb[0].mxu0
  %v674 = vadd.f32 %v129, %v673
  %v675 = vpop.f32.mrb[0].mxu0
  %676 = vmatprep.mubr.f32.mxu0 0.0
  %677 = vmatmul.mubr.f32.gmra.mrb[0].mxu0 %v241
  %v678 = vpop.f32.mrb[0].mxu0
  %v679 = vadd.f32 %v129, %v678
  %v680 = vpop.f32.mrb[0].mxu0
  %681 = vmatprep.mubr.f32.mxu0 0.0
  %682 = vmatmul.mubr.f32.gmra.mrb[0].mxu0 %v244
  %v683 = vpop.f32.mrb[0].mxu0
  %v684 = vadd.f32 %v129, %v683
  %v685 = vpop.f32.mrb[0].mxu0
  %686 = vmatprep.mubr.f32.mxu0 0.0
  %687 = vmatmul.mubr.f32.gmra.mrb[0].mxu0 %v247
  %v688 = vpop.f32.mrb[0].mxu0
  %v689 = vadd.f32 %v129, %v688
  %v690 = vpop.f32.mrb[0].mxu0
  %691 = vmatprep.mubr.f32.mxu0 0.0
  %692 = vmatmul.mubr.f32.gmra.mrb[0].mxu0 %v250
  %v693 = vpop.f32.mrb[0].mxu0
  %v694 = vadd.f32 %v129, %v693
  %v695 = vpop.f32.mrb[0].mxu0
  %696 = vmatprep.mubr.f32.mxu0 0.0
  %697 = vmatmul.mubr.f32.gmra.mrb[0].mxu0 %v253
  %v698 = vpop.f32.mrb[0].mxu0
  %v699 = vadd.f32 %v129, %v698
  %v700 = vpop.f32.mrb[0].mxu0
  %701 = vmatprep.mubr.f32.mxu0 0.0
  %702 = vmatmul.mubr.f32.gmra.mrb[0].mxu0 %v256
  %v703 = vpop.f32.mrb[0].mxu0
  %v704 = vadd.f32 %v129, %v703
  %v705 = vpop.f32.mrb[0].mxu0
  %706 = vmatprep.mubr.f32.mxu0 0.0
  %707 = vmatmul.mubr.f32.gmra.mrb[0].mxu0 %v259
  %v708 = vpop.f32.mrb[0].mxu0
  %v709 = vadd.f32 %v129, %v708
  %v710 = vpop.f32.mrb[0].mxu0
  %711 = vmatprep.mubr.f32.mxu0 0.0
  %712 = vmatmul.mubr.f32.gmra.mrb[0].mxu0 %v262
  %v713 = vpop.f32.mrb[0].mxu0
  %v714 = vadd.f32 %v129, %v713
  %v715 = vpop.f32.mrb[0].mxu0
  %716 = vmatprep.mubr.f32.mxu0 0.0
  %717 = vmatmul.mubr.f32.gmra.mrb[0].mxu0 %v265
  %v718 = vpop.f32.mrb[0].mxu0
  %v719 = vadd.f32 %v129, %v718
  %v720 = vpop.f32.mrb[0].mxu0
  %721 = vmatprep.mubr.f32.mxu0 0.0
  %722 = vmatmul.mubr.f32.gmra.mrb[0].mxu0 %v268
  %v723 = vpop.f32.mrb[0].mxu0
  %v724 = vadd.f32 %v129, %v723
  %v725 = vpop.f32.mrb[0].mxu0
  %726 = vmatprep.mubr.f32.mxu0 0.0
  %727 = vmatmul.mubr.f32.gmra.mrb[0].mxu0 %v271
  %v728 = vpop.f32.mrb[0].mxu0
  %v729 = vadd.f32 %v129, %v728
  %v730 = vpop.f32.mrb[0].mxu0
  %731 = vmatprep.mubr.f32.mxu0 0.0
  %732 = vmatmul.mubr.f32.gmra.mrb[0].mxu0 %v274
  %v733 = vpop.f32.mrb[0].mxu0
  %v734 = vadd.f32 %v129, %v733
  %v735 = vpop.f32.mrb[0].mxu0
  %736 = vmatprep.mubr.f32.mxu0 0.0
  %737 = vmatmul.mubr.f32.gmra.mrb[0].mxu0 %v277
  %v738 = vpop.f32.mrb[0].mxu0
  %v739 = vadd.f32 %v129, %v738
  %v740 = vpop.f32.mrb[0].mxu0
  %741 = vmatprep.mubr.f32.mxu0 0.0
  %742 = vmatmul.mubr.f32.gmra.mrb[0].mxu0 %v280
  %v743 = vpop.f32.mrb[0].mxu0
  %v744 = vadd.f32 %v129, %v743
  %v745 = vpop.f32.mrb[0].mxu0
  %746 = vmatprep.mubr.f32.mxu0 0.0
  %747 = vmatmul.mubr.f32.gmra.mrb[0].mxu0 %v283
  %v748 = vpop.f32.mrb[0].mxu0
  %v749 = vadd.f32 %v129, %v748
  %v750 = vpop.f32.mrb[0].mxu0
  %751 = vmatprep.mubr.f32.mxu0 0.0
  %752 = vmatmul.mubr.f32.gmra.mrb[0].mxu0 %v286
  %v753 = vpop.f32.mrb[0].mxu0
  %v754 = vadd.f32 %v129, %v753
  %v755 = vpop.f32.mrb[0].mxu0
  %756 = vmatprep.mubr.f32.mxu0 0.0
  %757 = vmatmul.mubr.f32.gmra.mrb[0].mxu0 %v289
  %v758 = vpop.f32.mrb[0].mxu0
  %v759 = vadd.f32 %v129, %v758
  %v760 = vpop.f32.mrb[0].mxu0
  %761 = vmatprep.mubr.f32.mxu0 0.0
  %762 = vmatmul.mubr.f32.gmra.mrb[0].mxu0 %v292
  %v763 = vpop.f32.mrb[0].mxu0
  %v764 = vadd.f32 %v129, %v763
  %v765 = vpop.f32.mrb[0].mxu0
  %766 = vmatprep.mubr.f32.mxu0 0.0
  %767 = vmatmul.mubr.f32.gmra.mrb[0].mxu0 %v295
  %v768 = vpop.f32.mrb[0].mxu0
  %v769 = vadd.f32 %v129, %v768
  %v770 = vpop.f32.mrb[0].mxu0
  %771 = vmatprep.mubr.f32.mxu0 0.0
  %772 = vmatmul.mubr.f32.gmra.mrb[0].mxu0 %v298
  %v773 = vpop.f32.mrb[0].mxu0
  %v774 = vadd.f32 %v129, %v773
  %v775 = vpop.f32.mrb[0].mxu0
  %776 = vmatprep.mubr.f32.mxu0 0.0
  %777 = vmatmul.mubr.f32.gmra.mrb[0].mxu0 %v301
  %v778 = vpop.f32.mrb[0].mxu0
  %v779 = vadd.f32 %v129, %v778
  %v780 = vpop.f32.mrb[0].mxu0
  %781 = vmatprep.mubr.f32.mxu0 0.0
  %782 = vmatmul.mubr.f32.gmra.mrb[0].mxu0 %v304
  %v783 = vpop.f32.mrb[0].mxu0
  %v784 = vadd.f32 %v129, %v783
  %v785 = vpop.f32.mrb[0].mxu0
  %786 = vmatprep.mubr.f32.mxu0 0.0
  %787 = vmatmul.mubr.f32.gmra.mrb[0].mxu0 %v307
  %v788 = vpop.f32.mrb[0].mxu0
  %v789 = vadd.f32 %v129, %v788
  %v790 = vpop.f32.mrb[0].mxu0
  %791 = vmatprep.mubr.f32.mxu0 0.0
  %792 = vmatmul.mubr.f32.gmra.mrb[0].mxu0 %v310
  %v793 = vpop.f32.mrb[0].mxu0
  %v794 = vadd.f32 %v129, %v793
  %v795 = vpop.f32.mrb[0].mxu0
  %796 = vmatprep.mubr.f32.mxu0 0.0
  %797 = vmatmul.mubr.f32.gmra.mrb[0].mxu0 %v313
  %v798 = vpop.f32.mrb[0].mxu0
  %v799 = vadd.f32 %v129, %v798
  %v800 = vpop.f32.mrb[0].mxu0
  %801 = vmatprep.mubr.f32.mxu0 0.0
  %802 = vmatmul.mubr.f32.gmra.mrb[0].mxu0 %v316
  %v803 = vpop.f32.mrb[0].mxu0
  %v804 = vadd.f32 %v129, %v803
  %v805 = vpop.f32.mrb[0].mxu0
  %806 = vmatprep.mubr.f32.mxu0 0.0
  %807 = vmatmul.mubr.f32.gmra.mrb[0].mxu0 %v319
  %v808 = vpop.f32.mrb[0].mxu0
  %v809 = vadd.f32 %v129, %v808
  %v810 = vpop.f32.mrb[0].mxu0
  %811 = vmatprep.mubr.f32.mxu0 0.0
  %812 = vmatmul.mubr.f32.gmra.mrb[0].mxu0 %v322
  %v813 = vpop.f32.mrb[0].mxu0
  %v814 = vadd.f32 %v129, %v813
  %v815 = vpop.f32.mrb[0].mxu0
  %816 = vmatprep.mubr.f32.mxu0 0.0
  %817 = vmatmul.mubr.f32.gmra.mrb[0].mxu0 %v325
  %v818 = vpop.f32.mrb[0].mxu0
  %v819 = vadd.f32 %v129, %v818
  %v820 = vpop.f32.mrb[0].mxu0
  %821 = vmatprep.mubr.f32.mxu0 0.0
  %822 = vmatmul.mubr.f32.gmra.mrb[0].mxu0 %v328
  %v823 = vpop.f32.mrb[0].mxu0
  %v824 = vadd.f32 %v129, %v823
  %v825 = vpop.f32.mrb[0].mxu0
  %826 = vmatprep.mubr.f32.mxu0 0.0
  %827 = vmatmul.mubr.f32.gmra.mrb[0].mxu0 %v331
  %v828 = vpop.f32.mrb[0].mxu0
  %v829 = vadd.f32 %v129, %v828
  %v830 = vpop.f32.mrb[0].mxu0
  %831 = vmatprep.mubr.f32.mxu0 0.0
  %832 = vmatmul.mubr.f32.gmra.mrb[0].mxu0 %v334
  %v833 = vpop.f32.mrb[0].mxu0
  %v834 = vadd.f32 %v129, %v833
  %v835 = vpop.f32.mrb[0].mxu0
  %836 = vmatprep.mubr.f32.mxu0 0.0
  %837 = vmatmul.mubr.f32.gmra.mrb[0].mxu0 %v337
  %v838 = vpop.f32.mrb[0].mxu0
  %v839 = vadd.f32 %v129, %v838
  %v840 = vpop.f32.mrb[0].mxu0
  %841 = vmatprep.mubr.f32.mxu0 0.0
  %842 = vmatmul.mubr.f32.gmra.mrb[0].mxu0 %v340
  %v843 = vpop.f32.mrb[0].mxu0
  %v844 = vadd.f32 %v129, %v843
  %v845 = vpop.f32.mrb[0].mxu0
  %846 = vmatprep.mubr.f32.mxu0 0.0
  %847 = vmatmul.mubr.f32.gmra.mrb[0].mxu0 %v343
  %v848 = vpop.f32.mrb[0].mxu0
  %v849 = vadd.f32 %v129, %v848
  %v850 = vpop.f32.mrb[0].mxu0
  %851 = vmatprep.mubr.f32.mxu0 0.0
  %852 = vmatmul.mubr.f32.gmra.mrb[0].mxu0 %v346
  %v853 = vpop.f32.mrb[0].mxu0
  %v854 = vadd.f32 %v129, %v853
  %v855 = vpop.f32.mrb[0].mxu0
  %856 = vmatprep.mubr.f32.mxu0 0.0
  %857 = vmatmul.mubr.f32.gmra.mrb[0].mxu0 %v349
  %v858 = vpop.f32.mrb[0].mxu0
  %v859 = vadd.f32 %v129, %v858
  %v860 = vpop.f32.mrb[0].mxu0
  %861 = vmatprep.mubr.f32.mxu0 0.0
  %862 = vmatmul.mubr.f32.gmra.mrb[0].mxu0 %v352
  %v863 = vpop.f32.mrb[0].mxu0
  %v864 = vadd.f32 %v129, %v863
  %v865 = vpop.f32.mrb[0].mxu0
  %866 = vmatprep.mubr.f32.mxu0 0.0
  %867 = vmatmul.mubr.f32.gmra.mrb[0].mxu0 %v355
  %v868 = vpop.f32.mrb[0].mxu0
  %v869 = vadd.f32 %v129, %v868
  %v870 = vpop.f32.mrb[0].mxu0
  %871 = vmatprep.mubr.f32.mxu0 0.0
  %872 = vmatmul.mubr.f32.gmra.mrb[0].mxu0 %v358
  %v873 = vpop.f32.mrb[0].mxu0
  %v874 = vadd.f32 %v129, %v873
  %v875 = vpop.f32.mrb[0].mxu0
  %876 = vmatprep.mubr.f32.mxu0 0.0
  %877 = vmatmul.mubr.f32.gmra.mrb[0].mxu0 %v361
  %v878 = vpop.f32.mrb[0].mxu0
  %v879 = vadd.f32 %v129, %v878
  %v880 = vpop.f32.mrb[0].mxu0
  %881 = vmatprep.mubr.f32.mxu0 0.0
  %882 = vmatmul.mubr.f32.gmra.mrb[0].mxu0 %v364
  %v883 = vpop.f32.mrb[0].mxu0
  %v884 = vadd.f32 %v129, %v883
  %v885 = vpop.f32.mrb[0].mxu0
  %886 = vmatprep.mubr.f32.mxu0 0.0
  %887 = vmatmul.mubr.f32.gmra.mrb[0].mxu0 %v367
  %v888 = vpop.f32.mrb[0].mxu0
  %v889 = vadd.f32 %v129, %v888
  %v890 = vpop.f32.mrb[0].mxu0
  %891 = vmatprep.mubr.f32.mxu0 0.0
  %892 = vmatmul.mubr.f32.gmra.mrb[0].mxu0 %v370
  %v893 = vpop.f32.mrb[0].mxu0
  %v894 = vadd.f32 %v129, %v893
  %v895 = vpop.f32.mrb[0].mxu0
  %896 = vmatprep.mubr.f32.mxu0 0.0
  %897 = vmatmul.mubr.f32.gmra.mrb[0].mxu0 %v373
  %v898 = vpop.f32.mrb[0].mxu0
  %v899 = vadd.f32 %v129, %v898
  %v900 = vpop.f32.mrb[0].mxu0
  %901 = vmatprep.mubr.f32.mxu0 0.0
  %902 = vmatmul.mubr.f32.gmra.mrb[0].mxu0 %v376
  %v903 = vpop.f32.mrb[0].mxu0
  %v904 = vadd.f32 %v129, %v903
  %v905 = vpop.f32.mrb[0].mxu0
  %906 = vmatprep.mubr.f32.mxu0 0.0
  %907 = vmatmul.mubr.f32.gmra.mrb[0].mxu0 %v379
  %v908 = vpop.f32.mrb[0].mxu0
  %v909 = vadd.f32 %v129, %v908
  %v910 = vpop.f32.mrb[0].mxu0
  %911 = vmatprep.mubr.f32.mxu0 0.0
  %912 = vmatmul.mubr.f32.gmra.mrb[0].mxu0 %v382
  %v913 = vpop.f32.mrb[0].mxu0
  %v914 = vadd.f32 %v129, %v913
  %v915 = vpop.f32.mrb[0].mxu0
  %916 = vmatprep.mubr.f32.mxu0 0.0
  %917 = vmatmul.mubr.f32.gmra.mrb[0].mxu0 %v385
  %v918 = vpop.f32.mrb[0].mxu0
  %v919 = vadd.f32 %v129, %v918
  %v920 = vpop.f32.mrb[0].mxu0
  %921 = vmatprep.mubr.f32.mxu0 0.0
  %922 = vmatmul.mubr.f32.gmra.mrb[0].mxu0 %v388
  %v923 = vpop.f32.mrb[0].mxu0
  %v924 = vadd.f32 %v129, %v923
  %v925 = vpop.f32.mrb[0].mxu0
  %926 = vmatprep.mubr.f32.mxu0 0.0
  %927 = vmatmul.mubr.f32.gmra.mrb[0].mxu0 %v391
  %v928 = vpop.f32.mrb[0].mxu0
  %v929 = vadd.f32 %v129, %v928
  %v930 = vpop.f32.mrb[0].mxu0
  %931 = vmatprep.mubr.f32.mxu0 0.0
  %932 = vmatmul.mubr.f32.gmra.mrb[0].mxu0 %v394
  %v933 = vpop.f32.mrb[0].mxu0
  %v934 = vadd.f32 %v129, %v933
  %v935 = vpop.f32.mrb[0].mxu0
  %936 = vmatprep.mubr.f32.mxu0 0.0
  %937 = vmatmul.mubr.f32.gmra.mrb[0].mxu0 %v397
  %v938 = vpop.f32.mrb[0].mxu0
  %v939 = vadd.f32 %v129, %v938
  %v940 = vpop.f32.mrb[0].mxu0
  %941 = vmatprep.mubr.f32.mxu0 0.0
  %942 = vmatmul.mubr.f32.gmra.mrb[0].mxu0 %v400
  %v943 = vpop.f32.mrb[0].mxu0
  %v944 = vadd.f32 %v129, %v943
  %v945 = vpop.f32.mrb[0].mxu0
  %946 = vmatprep.mubr.f32.mxu0 0.0
  %947 = vmatmul.mubr.f32.gmra.mrb[0].mxu0 %v403
  %v948 = vpop.f32.mrb[0].mxu0
  %v949 = vadd.f32 %v129, %v948
  %v950 = vpop.f32.mrb[0].mxu0
  %951 = vmatprep.mubr.f32.mxu0 0.0
  %952 = vmatmul.mubr.f32.gmra.mrb[0].mxu0 %v406
  %v953 = vpop.f32.mrb[0].mxu0
  %v954 = vadd.f32 %v129, %v953
  %v955 = vpop.f32.mrb[0].mxu0
  %956 = vmatprep.mubr.f32.mxu0 0.0
  %957 = vmatmul.mubr.f32.gmra.mrb[0].mxu0 %v409
  %v958 = vpop.f32.mrb[0].mxu0
  %v959 = vadd.f32 %v129, %v958
  %v960 = vpop.f32.mrb[0].mxu0
  %961 = vmatprep.mubr.f32.mxu0 0.0
  %962 = vmatmul.mubr.f32.gmra.mrb[0].mxu0 %v412
  %v963 = vpop.f32.mrb[0].mxu0
  %v964 = vadd.f32 %v129, %v963
  %v965 = vpop.f32.mrb[0].mxu0
  %966 = vmatprep.mubr.f32.mxu0 0.0
  %967 = vmatmul.mubr.f32.gmra.mrb[0].mxu0 %v415
  %v968 = vpop.f32.mrb[0].mxu0
  %v969 = vadd.f32 %v129, %v968
  %v970 = vpop.f32.mrb[0].mxu0
  %971 = vmatprep.mubr.f32.mxu0 0.0
  %972 = vmatmul.mubr.f32.gmra.mrb[0].mxu0 %v418
  %v973 = vpop.f32.mrb[0].mxu0
  %v974 = vadd.f32 %v129, %v973
  %v975 = vpop.f32.mrb[0].mxu0
  %976 = vmatprep.mubr.f32.mxu0 0.0
  %977 = vmatmul.mubr.f32.gmra.mrb[0].mxu0 %v421
  %v978 = vpop.f32.mrb[0].mxu0
  %v979 = vadd.f32 %v129, %v978
  %v980 = vpop.f32.mrb[0].mxu0
  %981 = vmatprep.mubr.f32.mxu0 0.0
  %982 = vmatmul.mubr.f32.gmra.mrb[0].mxu0 %v424
  %v983 = vpop.f32.mrb[0].mxu0
  %v984 = vadd.f32 %v129, %v983
  %v985 = vpop.f32.mrb[0].mxu0
  %986 = vmatprep.mubr.f32.mxu0 0.0
  %987 = vmatmul.mubr.f32.gmra.mrb[0].mxu0 %v427
  %v988 = vpop.f32.mrb[0].mxu0
  %v989 = vadd.f32 %v129, %v988
  %v990 = vpop.f32.mrb[0].mxu0
  %991 = vmatprep.mubr.f32.mxu0 0.0
  %992 = vmatmul.mubr.f32.gmra.mrb[0].mxu0 %v430
  %v993 = vpop.f32.mrb[0].mxu0
  %v994 = vadd.f32 %v129, %v993
  %v995 = vpop.f32.mrb[0].mxu0
  %996 = vdwg.mxu0
  %v997 = vmul.f32 %v499, 0.5
  %v998 = vmul.f32 %v504, 0.5
  %v999 = vmul.f32 %v509, 0.5
  %v1000 = vmul.f32 %v514, 0.5
  %v1001 = vmul.f32 %v519, 0.5
  %v1002 = vmul.f32 %v524, 0.5
  %v1003 = vmul.f32 %v529, 0.5
  %v1004 = vmul.f32 %v534, 0.5
  %v1005 = vmul.f32 %v539, 0.5
  %v1006 = vmul.f32 %v544, 0.5
  %v1007 = vmul.f32 %v549, 0.5
  %v1008 = vmul.f32 %v554, 0.5
  %v1009 = vmul.f32 %v559, 0.5
  %v1010 = vmul.f32 %v564, 0.5
  %v1011 = vmul.f32 %v569, 0.5
  %v1012 = vmul.f32 %v574, 0.5
  %v1013 = vmul.f32 %v579, 0.5
  %v1014 = vmul.f32 %v584, 0.5
  %v1015 = vmul.f32 %v589, 0.5
  %v1016 = vmul.f32 %v594, 0.5
  %v1017 = vmul.f32 %v599, 0.5
  %v1018 = vmul.f32 %v604, 0.5
  %v1019 = vmul.f32 %v609, 0.5
  %v1020 = vmul.f32 %v614, 0.5
  %v1021 = vmul.f32 %v619, 0.5
  %v1022 = vmul.f32 %v624, 0.5
  %v1023 = vmul.f32 %v629, 0.5
  %v1024 = vmul.f32 %v634, 0.5
  %v1025 = vmul.f32 %v639, 0.5
  %v1026 = vmul.f32 %v644, 0.5
  %v1027 = vmul.f32 %v649, 0.5
  %v1028 = vmul.f32 %v654, 0.5
  %v1029 = vmul.f32 %v659, 0.5
  %v1030 = vmul.f32 %v664, 0.5
  %v1031 = vmul.f32 %v669, 0.5
  %v1032 = vmul.f32 %v674, 0.5
  %v1033 = vmul.f32 %v679, 0.5
  %v1034 = vmul.f32 %v684, 0.5
  %v1035 = vmul.f32 %v689, 0.5
  %v1036 = vmul.f32 %v694, 0.5
  %v1037 = vmul.f32 %v699, 0.5
  %v1038 = vmul.f32 %v704, 0.5
  %v1039 = vmul.f32 %v709, 0.5
  %v1040 = vmul.f32 %v714, 0.5
  %v1041 = vmul.f32 %v719, 0.5
  %v1042 = vmul.f32 %v724, 0.5
  %v1043 = vmul.f32 %v729, 0.5
  %v1044 = vmul.f32 %v734, 0.5
  %v1045 = vmul.f32 %v739, 0.5
  %v1046 = vmul.f32 %v744, 0.5
  %v1047 = vmul.f32 %v749, 0.5
  %v1048 = vmul.f32 %v754, 0.5
  %v1049 = vmul.f32 %v759, 0.5
  %v1050 = vmul.f32 %v764, 0.5
  %v1051 = vmul.f32 %v769, 0.5
  %v1052 = vmul.f32 %v774, 0.5
  %v1053 = vmul.f32 %v779, 0.5
  %v1054 = vmul.f32 %v784, 0.5
  %v1055 = vmul.f32 %v789, 0.5
  %v1056 = vmul.f32 %v794, 0.5
  %v1057 = vmul.f32 %v799, 0.5
  %v1058 = vmul.f32 %v804, 0.5
  %v1059 = vmul.f32 %v809, 0.5
  %v1060 = vmul.f32 %v814, 0.5
  %v1061 = vmul.f32 %v819, 0.5
  %v1062 = vmul.f32 %v824, 0.5
  %v1063 = vmul.f32 %v829, 0.5
  %v1064 = vmul.f32 %v834, 0.5
  %v1065 = vmul.f32 %v839, 0.5
  %v1066 = vmul.f32 %v844, 0.5
  %v1067 = vmul.f32 %v849, 0.5
  %v1068 = vmul.f32 %v854, 0.5
  %v1069 = vmul.f32 %v859, 0.5
  %v1070 = vmul.f32 %v864, 0.5
  %v1071 = vmul.f32 %v869, 0.5
  %v1072 = vmul.f32 %v874, 0.5
  %v1073 = vmul.f32 %v879, 0.5
  %v1074 = vmul.f32 %v884, 0.5
  %v1075 = vmul.f32 %v889, 0.5
  %v1076 = vmul.f32 %v894, 0.5
  %v1077 = vmul.f32 %v899, 0.5
  %v1078 = vmul.f32 %v904, 0.5
  %v1079 = vmul.f32 %v909, 0.5
  %v1080 = vmul.f32 %v914, 0.5
  %v1081 = vmul.f32 %v919, 0.5
  %v1082 = vmul.f32 %v924, 0.5
  %v1083 = vmul.f32 %v929, 0.5
  %v1084 = vmul.f32 %v934, 0.5
  %v1085 = vmul.f32 %v939, 0.5
  %v1086 = vmul.f32 %v944, 0.5
  %v1087 = vmul.f32 %v949, 0.5
  %v1088 = vmul.f32 %v954, 0.5
  %v1089 = vmul.f32 %v959, 0.5
  %v1090 = vmul.f32 %v964, 0.5
  %v1091 = vmul.f32 %v969, 0.5
  %v1092 = vmul.f32 %v974, 0.5
  %v1093 = vmul.f32 %v979, 0.5
  %v1094 = vmul.f32 %v984, 0.5
  %v1095 = vmul.f32 %v989, 0.5
  %v1096 = vmul.f32 %v994, 0.5
  %v1097 = vrcp.pop 1.4142135
  %v1098 = vmul.f32 %v499, %v1097
  %v1099 = vmul.f32 %v504, %v1097
  %v1100 = vmul.f32 %v509, %v1097
  %v1101 = vmul.f32 %v514, %v1097
  %v1102 = vmul.f32 %v519, %v1097
  %v1103 = vmul.f32 %v524, %v1097
  %v1104 = vmul.f32 %v529, %v1097
  %v1105 = vmul.f32 %v534, %v1097
  %v1106 = vmul.f32 %v539, %v1097
  %v1107 = vmul.f32 %v544, %v1097
  %v1108 = vmul.f32 %v549, %v1097
  %v1109 = vmul.f32 %v554, %v1097
  %v1110 = vmul.f32 %v559, %v1097
  %v1111 = vmul.f32 %v564, %v1097
  %v1112 = vmul.f32 %v569, %v1097
  %v1113 = vmul.f32 %v574, %v1097
  %v1114 = vmul.f32 %v579, %v1097
  %v1115 = vmul.f32 %v584, %v1097
  %v1116 = vmul.f32 %v589, %v1097
  %v1117 = vmul.f32 %v594, %v1097
  %v1118 = vmul.f32 %v599, %v1097
  %v1119 = vmul.f32 %v604, %v1097
  %v1120 = vmul.f32 %v609, %v1097
  %v1121 = vmul.f32 %v614, %v1097
  %v1122 = vmul.f32 %v619, %v1097
  %v1123 = vmul.f32 %v624, %v1097
  %v1124 = vmul.f32 %v629, %v1097
  %v1125 = vmul.f32 %v634, %v1097
  %v1126 = vmul.f32 %v639, %v1097
  %v1127 = vmul.f32 %v644, %v1097
  %v1128 = vmul.f32 %v649, %v1097
  %v1129 = vmul.f32 %v654, %v1097
  %v1130 = vmul.f32 %v659, %v1097
  %v1131 = vmul.f32 %v664, %v1097
  %v1132 = vmul.f32 %v669, %v1097
  %v1133 = vmul.f32 %v674, %v1097
  %v1134 = vmul.f32 %v679, %v1097
  %v1135 = vmul.f32 %v684, %v1097
  %v1136 = vmul.f32 %v689, %v1097
  %v1137 = vmul.f32 %v694, %v1097
  %v1138 = vmul.f32 %v699, %v1097
  %v1139 = vmul.f32 %v704, %v1097
  %v1140 = vmul.f32 %v709, %v1097
  %v1141 = vmul.f32 %v714, %v1097
  %v1142 = vmul.f32 %v719, %v1097
  %v1143 = vmul.f32 %v724, %v1097
  %v1144 = vmul.f32 %v729, %v1097
  %v1145 = vmul.f32 %v734, %v1097
  %v1146 = vmul.f32 %v739, %v1097
  %v1147 = vmul.f32 %v744, %v1097
  %v1148 = vmul.f32 %v749, %v1097
  %v1149 = vmul.f32 %v754, %v1097
  %v1150 = vmul.f32 %v759, %v1097
  %v1151 = vmul.f32 %v764, %v1097
  %v1152 = vmul.f32 %v769, %v1097
  %v1153 = vmul.f32 %v774, %v1097
  %v1154 = vmul.f32 %v779, %v1097
  %v1155 = vmul.f32 %v784, %v1097
  %v1156 = vmul.f32 %v789, %v1097
  %v1157 = vmul.f32 %v794, %v1097
  %v1158 = vmul.f32 %v799, %v1097
  %v1159 = vmul.f32 %v804, %v1097
  %v1160 = vmul.f32 %v809, %v1097
  %v1161 = vmul.f32 %v814, %v1097
  %v1162 = vmul.f32 %v819, %v1097
  %v1163 = vmul.f32 %v824, %v1097
  %v1164 = vmul.f32 %v829, %v1097
  %v1165 = vmul.f32 %v834, %v1097
  %v1166 = vmul.f32 %v839, %v1097
  %v1167 = vmul.f32 %v844, %v1097
  %v1168 = vmul.f32 %v849, %v1097
  %v1169 = vmul.f32 %v854, %v1097
  %v1170 = vmul.f32 %v859, %v1097
  %v1171 = vmul.f32 %v864, %v1097
  %v1172 = vmul.f32 %v869, %v1097
  %v1173 = vmul.f32 %v874, %v1097
  %v1174 = vmul.f32 %v879, %v1097
  %v1175 = vmul.f32 %v884, %v1097
  %v1176 = vmul.f32 %v889, %v1097
  %v1177 = vmul.f32 %v894, %v1097
  %v1178 = vmul.f32 %v899, %v1097
  %v1179 = vmul.f32 %v904, %v1097
  %v1180 = vmul.f32 %v909, %v1097
  %v1181 = vmul.f32 %v914, %v1097
  %v1182 = vmul.f32 %v919, %v1097
  %v1183 = vmul.f32 %v924, %v1097
  %v1184 = vmul.f32 %v929, %v1097
  %v1185 = vmul.f32 %v934, %v1097
  %v1186 = vmul.f32 %v939, %v1097
  %v1187 = vmul.f32 %v944, %v1097
  %v1188 = vmul.f32 %v949, %v1097
  %v1189 = vmul.f32 %v954, %v1097
  %v1190 = vmul.f32 %v959, %v1097
  %v1191 = vmul.f32 %v964, %v1097
  %v1192 = vmul.f32 %v969, %v1097
  %v1193 = vmul.f32 %v974, %v1097
  %v1194 = vmul.f32 %v979, %v1097
  %v1195 = vmul.f32 %v984, %v1097
  %v1196 = vmul.f32 %v989, %v1097
  %v1197 = vmul.f32 %v994, %v1097
  %vm1198 = vcmp.ge.f32.partialorder %v1098, 0.0
  %vm1199 = vcmp.ge.f32.partialorder %v1099, 0.0
  %vm1200 = vcmp.ge.f32.partialorder %v1100, 0.0
  %vm1201 = vcmp.ge.f32.partialorder %v1101, 0.0
  %vm1202 = vcmp.ge.f32.partialorder %v1102, 0.0
  %vm1203 = vcmp.ge.f32.partialorder %v1103, 0.0
  %vm1204 = vcmp.ge.f32.partialorder %v1104, 0.0
  %vm1205 = vcmp.ge.f32.partialorder %v1105, 0.0
  %vm1206 = vcmp.ge.f32.partialorder %v1106, 0.0
  %vm1207 = vcmp.ge.f32.partialorder %v1107, 0.0
  %vm1208 = vcmp.ge.f32.partialorder %v1108, 0.0
  %vm1209 = vcmp.ge.f32.partialorder %v1109, 0.0
  %vm1210 = vcmp.ge.f32.partialorder %v1110, 0.0
  %vm1211 = vcmp.ge.f32.partialorder %v1111, 0.0
  %vm1212 = vcmp.ge.f32.partialorder %v1112, 0.0
  %vm1213 = vcmp.ge.f32.partialorder %v1113, 0.0
  %vm1214 = vcmp.ge.f32.partialorder %v1114, 0.0
  %vm1215 = vcmp.ge.f32.partialorder %v1115, 0.0
  %vm1216 = vcmp.ge.f32.partialorder %v1116, 0.0
  %vm1217 = vcmp.ge.f32.partialorder %v1117, 0.0
  %vm1218 = vcmp.ge.f32.partialorder %v1118, 0.0
  %vm1219 = vcmp.ge.f32.partialorder %v1119, 0.0
  %vm1220 = vcmp.ge.f32.partialorder %v1120, 0.0
  %vm1221 = vcmp.ge.f32.partialorder %v1121, 0.0
  %vm1222 = vcmp.ge.f32.partialorder %v1122, 0.0
  %vm1223 = vcmp.ge.f32.partialorder %v1123, 0.0
  %vm1224 = vcmp.ge.f32.partialorder %v1124, 0.0
  %vm1225 = vcmp.ge.f32.partialorder %v1125, 0.0
  %vm1226 = vcmp.ge.f32.partialorder %v1126, 0.0
  %vm1227 = vcmp.ge.f32.partialorder %v1127, 0.0
  %vm1228 = vcmp.ge.f32.partialorder %v1128, 0.0
  %vm1229 = vcmp.ge.f32.partialorder %v1129, 0.0
  %vm1230 = vcmp.ge.f32.partialorder %v1130, 0.0
  %vm1231 = vcmp.ge.f32.partialorder %v1131, 0.0
  %vm1232 = vcmp.ge.f32.partialorder %v1132, 0.0
  %vm1233 = vcmp.ge.f32.partialorder %v1133, 0.0
  %vm1234 = vcmp.ge.f32.partialorder %v1134, 0.0
  %vm1235 = vcmp.ge.f32.partialorder %v1135, 0.0
  %vm1236 = vcmp.ge.f32.partialorder %v1136, 0.0
  %vm1237 = vcmp.ge.f32.partialorder %v1137, 0.0
  %vm1238 = vcmp.ge.f32.partialorder %v1138, 0.0
  %vm1239 = vcmp.ge.f32.partialorder %v1139, 0.0
  %vm1240 = vcmp.ge.f32.partialorder %v1140, 0.0
  %vm1241 = vcmp.ge.f32.partialorder %v1141, 0.0
  %vm1242 = vcmp.ge.f32.partialorder %v1142, 0.0
  %vm1243 = vcmp.ge.f32.partialorder %v1143, 0.0
  %vm1244 = vcmp.ge.f32.partialorder %v1144, 0.0
  %vm1245 = vcmp.ge.f32.partialorder %v1145, 0.0
  %vm1246 = vcmp.ge.f32.partialorder %v1146, 0.0
  %vm1247 = vcmp.ge.f32.partialorder %v1147, 0.0
  %vm1248 = vcmp.ge.f32.partialorder %v1148, 0.0
  %vm1249 = vcmp.ge.f32.partialorder %v1149, 0.0
  %vm1250 = vcmp.ge.f32.partialorder %v1150, 0.0
  %vm1251 = vcmp.ge.f32.partialorder %v1151, 0.0
  %vm1252 = vcmp.ge.f32.partialorder %v1152, 0.0
  %vm1253 = vcmp.ge.f32.partialorder %v1153, 0.0
  %vm1254 = vcmp.ge.f32.partialorder %v1154, 0.0
  %vm1255 = vcmp.ge.f32.partialorder %v1155, 0.0
  %vm1256 = vcmp.ge.f32.partialorder %v1156, 0.0
  %vm1257 = vcmp.ge.f32.partialorder %v1157, 0.0
  %vm1258 = vcmp.ge.f32.partialorder %v1158, 0.0
  %vm1259 = vcmp.ge.f32.partialorder %v1159, 0.0
  %vm1260 = vcmp.ge.f32.partialorder %v1160, 0.0
  %vm1261 = vcmp.ge.f32.partialorder %v1161, 0.0
  %vm1262 = vcmp.ge.f32.partialorder %v1162, 0.0
  %vm1263 = vcmp.ge.f32.partialorder %v1163, 0.0
  %vm1264 = vcmp.ge.f32.partialorder %v1164, 0.0
  %vm1265 = vcmp.ge.f32.partialorder %v1165, 0.0
  %vm1266 = vcmp.ge.f32.partialorder %v1166, 0.0
  %vm1267 = vcmp.ge.f32.partialorder %v1167, 0.0
  %vm1268 = vcmp.ge.f32.partialorder %v1168, 0.0
  %vm1269 = vcmp.ge.f32.partialorder %v1169, 0.0
  %vm1270 = vcmp.ge.f32.partialorder %v1170, 0.0
  %vm1271 = vcmp.ge.f32.partialorder %v1171, 0.0
  %vm1272 = vcmp.ge.f32.partialorder %v1172, 0.0
  %vm1273 = vcmp.ge.f32.partialorder %v1173, 0.0
  %vm1274 = vcmp.ge.f32.partialorder %v1174, 0.0
  %vm1275 = vcmp.ge.f32.partialorder %v1175, 0.0
  %vm1276 = vcmp.ge.f32.partialorder %v1176, 0.0
  %vm1277 = vcmp.ge.f32.partialorder %v1177, 0.0
  %vm1278 = vcmp.ge.f32.partialorder %v1178, 0.0
  %vm1279 = vcmp.ge.f32.partialorder %v1179, 0.0
  %vm1280 = vcmp.ge.f32.partialorder %v1180, 0.0
  %vm1281 = vcmp.ge.f32.partialorder %v1181, 0.0
  %vm1282 = vcmp.ge.f32.partialorder %v1182, 0.0
  %vm1283 = vcmp.ge.f32.partialorder %v1183, 0.0
  %vm1284 = vcmp.ge.f32.partialorder %v1184, 0.0
  %vm1285 = vcmp.ge.f32.partialorder %v1185, 0.0
  %vm1286 = vcmp.ge.f32.partialorder %v1186, 0.0
  %vm1287 = vcmp.ge.f32.partialorder %v1187, 0.0
  %vm1288 = vcmp.ge.f32.partialorder %v1188, 0.0
  %vm1289 = vcmp.ge.f32.partialorder %v1189, 0.0
  %vm1290 = vcmp.ge.f32.partialorder %v1190, 0.0
  %vm1291 = vcmp.ge.f32.partialorder %v1191, 0.0
  %vm1292 = vcmp.ge.f32.partialorder %v1192, 0.0
  %vm1293 = vcmp.ge.f32.partialorder %v1193, 0.0
  %vm1294 = vcmp.ge.f32.partialorder %v1194, 0.0
  %vm1295 = vcmp.ge.f32.partialorder %v1195, 0.0
  %vm1296 = vcmp.ge.f32.partialorder %v1196, 0.0
  %vm1297 = vcmp.ge.f32.partialorder %v1197, 0.0
  %v1298 = vsel %vm1198, 1.0, -1.0
  %v1299 = vsel %vm1199, 1.0, -1.0
  %v1300 = vsel %vm1200, 1.0, -1.0
  %v1301 = vsel %vm1201, 1.0, -1.0
  %v1302 = vsel %vm1202, 1.0, -1.0
  %v1303 = vsel %vm1203, 1.0, -1.0
  %v1304 = vsel %vm1204, 1.0, -1.0
  %v1305 = vsel %vm1205, 1.0, -1.0
  %v1306 = vsel %vm1206, 1.0, -1.0
  %v1307 = vsel %vm1207, 1.0, -1.0
  %v1308 = vsel %vm1208, 1.0, -1.0
  %v1309 = vsel %vm1209, 1.0, -1.0
  %v1310 = vsel %vm1210, 1.0, -1.0
  %v1311 = vsel %vm1211, 1.0, -1.0
  %v1312 = vsel %vm1212, 1.0, -1.0
  %v1313 = vsel %vm1213, 1.0, -1.0
  %v1314 = vsel %vm1214, 1.0, -1.0
  %v1315 = vsel %vm1215, 1.0, -1.0
  %v1316 = vsel %vm1216, 1.0, -1.0
  %v1317 = vsel %vm1217, 1.0, -1.0
  %v1318 = vsel %vm1218, 1.0, -1.0
  %v1319 = vsel %vm1219, 1.0, -1.0
  %v1320 = vsel %vm1220, 1.0, -1.0
  %v1321 = vsel %vm1221, 1.0, -1.0
  %v1322 = vsel %vm1222, 1.0, -1.0
  %v1323 = vsel %vm1223, 1.0, -1.0
  %v1324 = vsel %vm1224, 1.0, -1.0
  %v1325 = vsel %vm1225, 1.0, -1.0
  %v1326 = vsel %vm1226, 1.0, -1.0
  %v1327 = vsel %vm1227, 1.0, -1.0
  %v1328 = vsel %vm1228, 1.0, -1.0
  %v1329 = vsel %vm1229, 1.0, -1.0
  %v1330 = vsel %vm1230, 1.0, -1.0
  %v1331 = vsel %vm1231, 1.0, -1.0
  %v1332 = vsel %vm1232, 1.0, -1.0
  %v1333 = vsel %vm1233, 1.0, -1.0
  %v1334 = vsel %vm1234, 1.0, -1.0
  %v1335 = vsel %vm1235, 1.0, -1.0
  %v1336 = vsel %vm1236, 1.0, -1.0
  %v1337 = vsel %vm1237, 1.0, -1.0
  %v1338 = vsel %vm1238, 1.0, -1.0
  %v1339 = vsel %vm1239, 1.0, -1.0
  %v1340 = vsel %vm1240, 1.0, -1.0
  %v1341 = vsel %vm1241, 1.0, -1.0
  %v1342 = vsel %vm1242, 1.0, -1.0
  %v1343 = vsel %vm1243, 1.0, -1.0
  %v1344 = vsel %vm1244, 1.0, -1.0
  %v1345 = vsel %vm1245, 1.0, -1.0
  %v1346 = vsel %vm1246, 1.0, -1.0
  %v1347 = vsel %vm1247, 1.0, -1.0
  %v1348 = vsel %vm1248, 1.0, -1.0
  %v1349 = vsel %vm1249, 1.0, -1.0
  %v1350 = vsel %vm1250, 1.0, -1.0
  %v1351 = vsel %vm1251, 1.0, -1.0
  %v1352 = vsel %vm1252, 1.0, -1.0
  %v1353 = vsel %vm1253, 1.0, -1.0
  %v1354 = vsel %vm1254, 1.0, -1.0
  %v1355 = vsel %vm1255, 1.0, -1.0
  %v1356 = vsel %vm1256, 1.0, -1.0
  %v1357 = vsel %vm1257, 1.0, -1.0
  %v1358 = vsel %vm1258, 1.0, -1.0
  %v1359 = vsel %vm1259, 1.0, -1.0
  %v1360 = vsel %vm1260, 1.0, -1.0
  %v1361 = vsel %vm1261, 1.0, -1.0
  %v1362 = vsel %vm1262, 1.0, -1.0
  %v1363 = vsel %vm1263, 1.0, -1.0
  %v1364 = vsel %vm1264, 1.0, -1.0
  %v1365 = vsel %vm1265, 1.0, -1.0
  %v1366 = vsel %vm1266, 1.0, -1.0
  %v1367 = vsel %vm1267, 1.0, -1.0
  %v1368 = vsel %vm1268, 1.0, -1.0
  %v1369 = vsel %vm1269, 1.0, -1.0
  %v1370 = vsel %vm1270, 1.0, -1.0
  %v1371 = vsel %vm1271, 1.0, -1.0
  %v1372 = vsel %vm1272, 1.0, -1.0
  %v1373 = vsel %vm1273, 1.0, -1.0
  %v1374 = vsel %vm1274, 1.0, -1.0
  %v1375 = vsel %vm1275, 1.0, -1.0
  %v1376 = vsel %vm1276, 1.0, -1.0
  %v1377 = vsel %vm1277, 1.0, -1.0
  %v1378 = vsel %vm1278, 1.0, -1.0
  %v1379 = vsel %vm1279, 1.0, -1.0
  %v1380 = vsel %vm1280, 1.0, -1.0
  %v1381 = vsel %vm1281, 1.0, -1.0
  %v1382 = vsel %vm1282, 1.0, -1.0
  %v1383 = vsel %vm1283, 1.0, -1.0
  %v1384 = vsel %vm1284, 1.0, -1.0
  %v1385 = vsel %vm1285, 1.0, -1.0
  %v1386 = vsel %vm1286, 1.0, -1.0
  %v1387 = vsel %vm1287, 1.0, -1.0
  %v1388 = vsel %vm1288, 1.0, -1.0
  %v1389 = vsel %vm1289, 1.0, -1.0
  %v1390 = vsel %vm1290, 1.0, -1.0
  %v1391 = vsel %vm1291, 1.0, -1.0
  %v1392 = vsel %vm1292, 1.0, -1.0
  %v1393 = vsel %vm1293, 1.0, -1.0
  %v1394 = vsel %vm1294, 1.0, -1.0
  %v1395 = vsel %vm1295, 1.0, -1.0
  %v1396 = vsel %vm1296, 1.0, -1.0
  %v1397 = vsel %vm1297, 1.0, -1.0
  %v1398 = vand.u32 2147483647, %v1098
  %v1399 = vand.u32 2147483647, %v1099
  %v1400 = vand.u32 2147483647, %v1100
  %v1401 = vand.u32 2147483647, %v1101
  %v1402 = vand.u32 2147483647, %v1102
  %v1403 = vand.u32 2147483647, %v1103
  %v1404 = vand.u32 2147483647, %v1104
  %v1405 = vand.u32 2147483647, %v1105
  %v1406 = vand.u32 2147483647, %v1106
  %v1407 = vand.u32 2147483647, %v1107
  %v1408 = vand.u32 2147483647, %v1108
  %v1409 = vand.u32 2147483647, %v1109
  %v1410 = vand.u32 2147483647, %v1110
  %v1411 = vand.u32 2147483647, %v1111
  %v1412 = vand.u32 2147483647, %v1112
  %v1413 = vand.u32 2147483647, %v1113
  %v1414 = vand.u32 2147483647, %v1114
  %v1415 = vand.u32 2147483647, %v1115
  %v1416 = vand.u32 2147483647, %v1116
  %v1417 = vand.u32 2147483647, %v1117
  %v1418 = vand.u32 2147483647, %v1118
  %v1419 = vand.u32 2147483647, %v1119
  %v1420 = vand.u32 2147483647, %v1120
  %v1421 = vand.u32 2147483647, %v1121
  %v1422 = vand.u32 2147483647, %v1122
  %v1423 = vand.u32 2147483647, %v1123
  %v1424 = vand.u32 2147483647, %v1124
  %v1425 = vand.u32 2147483647, %v1125
  %v1426 = vand.u32 2147483647, %v1126
  %v1427 = vand.u32 2147483647, %v1127
  %v1428 = vand.u32 2147483647, %v1128
  %v1429 = vand.u32 2147483647, %v1129
  %v1430 = vand.u32 2147483647, %v1130
  %v1431 = vand.u32 2147483647, %v1131
  %v1432 = vand.u32 2147483647, %v1132
  %v1433 = vand.u32 2147483647, %v1133
  %v1434 = vand.u32 2147483647, %v1134
  %v1435 = vand.u32 2147483647, %v1135
  %v1436 = vand.u32 2147483647, %v1136
  %v1437 = vand.u32 2147483647, %v1137
  %v1438 = vand.u32 2147483647, %v1138
  %v1439 = vand.u32 2147483647, %v1139
  %v1440 = vand.u32 2147483647, %v1140
  %v1441 = vand.u32 2147483647, %v1141
  %v1442 = vand.u32 2147483647, %v1142
  %v1443 = vand.u32 2147483647, %v1143
  %v1444 = vand.u32 2147483647, %v1144
  %v1445 = vand.u32 2147483647, %v1145
  %v1446 = vand.u32 2147483647, %v1146
  %v1447 = vand.u32 2147483647, %v1147
  %v1448 = vand.u32 2147483647, %v1148
  %v1449 = vand.u32 2147483647, %v1149
  %v1450 = vand.u32 2147483647, %v1150
  %v1451 = vand.u32 2147483647, %v1151
  %v1452 = vand.u32 2147483647, %v1152
  %v1453 = vand.u32 2147483647, %v1153
  %v1454 = vand.u32 2147483647, %v1154
  %v1455 = vand.u32 2147483647, %v1155
  %v1456 = vand.u32 2147483647, %v1156
  %v1457 = vand.u32 2147483647, %v1157
  %v1458 = vand.u32 2147483647, %v1158
  %v1459 = vand.u32 2147483647, %v1159
  %v1460 = vand.u32 2147483647, %v1160
  %v1461 = vand.u32 2147483647, %v1161
  %v1462 = vand.u32 2147483647, %v1162
  %v1463 = vand.u32 2147483647, %v1163
  %v1464 = vand.u32 2147483647, %v1164
  %v1465 = vand.u32 2147483647, %v1165
  %v1466 = vand.u32 2147483647, %v1166
  %v1467 = vand.u32 2147483647, %v1167
  %v1468 = vand.u32 2147483647, %v1168
  %v1469 = vand.u32 2147483647, %v1169
  %v1470 = vand.u32 2147483647, %v1170
  %v1471 = vand.u32 2147483647, %v1171
  %v1472 = vand.u32 2147483647, %v1172
  %v1473 = vand.u32 2147483647, %v1173
  %v1474 = vand.u32 2147483647, %v1174
  %v1475 = vand.u32 2147483647, %v1175
  %v1476 = vand.u32 2147483647, %v1176
  %v1477 = vand.u32 2147483647, %v1177
  %v1478 = vand.u32 2147483647, %v1178
  %v1479 = vand.u32 2147483647, %v1179
  %v1480 = vand.u32 2147483647, %v1180
  %v1481 = vand.u32 2147483647, %v1181
  %v1482 = vand.u32 2147483647, %v1182
  %v1483 = vand.u32 2147483647, %v1183
  %v1484 = vand.u32 2147483647, %v1184
  %v1485 = vand.u32 2147483647, %v1185
  %v1486 = vand.u32 2147483647, %v1186
  %v1487 = vand.u32 2147483647, %v1187
  %v1488 = vand.u32 2147483647, %v1188
  %v1489 = vand.u32 2147483647, %v1189
  %v1490 = vand.u32 2147483647, %v1190
  %v1491 = vand.u32 2147483647, %v1191
  %v1492 = vand.u32 2147483647, %v1192
  %v1493 = vand.u32 2147483647, %v1193
  %v1494 = vand.u32 2147483647, %v1194
  %v1495 = vand.u32 2147483647, %v1195
  %v1496 = vand.u32 2147483647, %v1196
  %v1497 = vand.u32 2147483647, %v1197
  %v1498 = vmul.f32 %v1398, 0.3275911
  %v1499 = vmul.f32 %v1399, 0.3275911
  %v1500 = vmul.f32 %v1400, 0.3275911
  %v1501 = vmul.f32 %v1401, 0.3275911
  %v1502 = vmul.f32 %v1402, 0.3275911
  %v1503 = vmul.f32 %v1403, 0.3275911
  %v1504 = vmul.f32 %v1404, 0.3275911
  %v1505 = vmul.f32 %v1405, 0.3275911
  %v1506 = vmul.f32 %v1406, 0.3275911
  %v1507 = vmul.f32 %v1407, 0.3275911
  %v1508 = vmul.f32 %v1408, 0.3275911
  %v1509 = vmul.f32 %v1409, 0.3275911
  %v1510 = vmul.f32 %v1410, 0.3275911
  %v1511 = vmul.f32 %v1411, 0.3275911
  %v1512 = vmul.f32 %v1412, 0.3275911
  %v1513 = vmul.f32 %v1413, 0.3275911
  %v1514 = vmul.f32 %v1414, 0.3275911
  %v1515 = vmul.f32 %v1415, 0.3275911
  %v1516 = vmul.f32 %v1416, 0.3275911
  %v1517 = vmul.f32 %v1417, 0.3275911
  %v1518 = vmul.f32 %v1418, 0.3275911
  %v1519 = vmul.f32 %v1419, 0.3275911
  %v1520 = vmul.f32 %v1420, 0.3275911
  %v1521 = vmul.f32 %v1421, 0.3275911
  %v1522 = vmul.f32 %v1422, 0.3275911
  %v1523 = vmul.f32 %v1423, 0.3275911
  %v1524 = vmul.f32 %v1424, 0.3275911
  %v1525 = vmul.f32 %v1425, 0.3275911
  %v1526 = vmul.f32 %v1426, 0.3275911
  %v1527 = vmul.f32 %v1427, 0.3275911
  %v1528 = vmul.f32 %v1428, 0.3275911
  %v1529 = vmul.f32 %v1429, 0.3275911
  %v1530 = vmul.f32 %v1430, 0.3275911
  %v1531 = vmul.f32 %v1431, 0.3275911
  %v1532 = vmul.f32 %v1432, 0.3275911
  %v1533 = vmul.f32 %v1433, 0.3275911
  %v1534 = vmul.f32 %v1434, 0.3275911
  %v1535 = vmul.f32 %v1435, 0.3275911
  %v1536 = vmul.f32 %v1436, 0.3275911
  %v1537 = vmul.f32 %v1437, 0.3275911
  %v1538 = vmul.f32 %v1438, 0.3275911
  %v1539 = vmul.f32 %v1439, 0.3275911
  %v1540 = vmul.f32 %v1440, 0.3275911
  %v1541 = vmul.f32 %v1441, 0.3275911
  %v1542 = vmul.f32 %v1442, 0.3275911
  %v1543 = vmul.f32 %v1443, 0.3275911
  %v1544 = vmul.f32 %v1444, 0.3275911
  %v1545 = vmul.f32 %v1445, 0.3275911
  %v1546 = vmul.f32 %v1446, 0.3275911
  %v1547 = vmul.f32 %v1447, 0.3275911
  %v1548 = vmul.f32 %v1448, 0.3275911
  %v1549 = vmul.f32 %v1449, 0.3275911
  %v1550 = vmul.f32 %v1450, 0.3275911
  %v1551 = vmul.f32 %v1451, 0.3275911
  %v1552 = vmul.f32 %v1452, 0.3275911
  %v1553 = vmul.f32 %v1453, 0.3275911
  %v1554 = vmul.f32 %v1454, 0.3275911
  %v1555 = vmul.f32 %v1455, 0.3275911
  %v1556 = vmul.f32 %v1456, 0.3275911
  %v1557 = vmul.f32 %v1457, 0.3275911
  %v1558 = vmul.f32 %v1458, 0.3275911
  %v1559 = vmul.f32 %v1459, 0.3275911
  %v1560 = vmul.f32 %v1460, 0.3275911
  %v1561 = vmul.f32 %v1461, 0.3275911
  %v1562 = vmul.f32 %v1462, 0.3275911
  %v1563 = vmul.f32 %v1463, 0.3275911
  %v1564 = vmul.f32 %v1464, 0.3275911
  %v1565 = vmul.f32 %v1465, 0.3275911
  %v1566 = vmul.f32 %v1466, 0.3275911
  %v1567 = vmul.f32 %v1467, 0.3275911
  %v1568 = vmul.f32 %v1468, 0.3275911
  %v1569 = vmul.f32 %v1469, 0.3275911
  %v1570 = vmul.f32 %v1470, 0.3275911
  %v1571 = vmul.f32 %v1471, 0.3275911
  %v1572 = vmul.f32 %v1472, 0.3275911
  %v1573 = vmul.f32 %v1473, 0.3275911
  %v1574 = vmul.f32 %v1474, 0.3275911
  %v1575 = vmul.f32 %v1475, 0.3275911
  %v1576 = vmul.f32 %v1476, 0.3275911
  %v1577 = vmul.f32 %v1477, 0.3275911
  %v1578 = vmul.f32 %v1478, 0.3275911
  %v1579 = vmul.f32 %v1479, 0.3275911
  %v1580 = vmul.f32 %v1480, 0.3275911
  %v1581 = vmul.f32 %v1481, 0.3275911
  %v1582 = vmul.f32 %v1482, 0.3275911
  %v1583 = vmul.f32 %v1483, 0.3275911
  %v1584 = vmul.f32 %v1484, 0.3275911
  %v1585 = vmul.f32 %v1485, 0.3275911
  %v1586 = vmul.f32 %v1486, 0.3275911
  %v1587 = vmul.f32 %v1487, 0.3275911
  %v1588 = vmul.f32 %v1488, 0.3275911
  %v1589 = vmul.f32 %v1489, 0.3275911
  %v1590 = vmul.f32 %v1490, 0.3275911
  %v1591 = vmul.f32 %v1491, 0.3275911
  %v1592 = vmul.f32 %v1492, 0.3275911
  %v1593 = vmul.f32 %v1493, 0.3275911
  %v1594 = vmul.f32 %v1494, 0.3275911
  %v1595 = vmul.f32 %v1495, 0.3275911
  %v1596 = vmul.f32 %v1496, 0.3275911
  %v1597 = vmul.f32 %v1497, 0.3275911
  %v1598 = vadd.f32 %v1498, 1.0
  %v1599 = vadd.f32 %v1499, 1.0
  %v1600 = vadd.f32 %v1500, 1.0
  %v1601 = vadd.f32 %v1501, 1.0
  %v1602 = vadd.f32 %v1502, 1.0
  %v1603 = vadd.f32 %v1503, 1.0
  %v1604 = vadd.f32 %v1504, 1.0
  %v1605 = vadd.f32 %v1505, 1.0
  %v1606 = vadd.f32 %v1506, 1.0
  %v1607 = vadd.f32 %v1507, 1.0
  %v1608 = vadd.f32 %v1508, 1.0
  %v1609 = vadd.f32 %v1509, 1.0
  %v1610 = vadd.f32 %v1510, 1.0
  %v1611 = vadd.f32 %v1511, 1.0
  %v1612 = vadd.f32 %v1512, 1.0
  %v1613 = vadd.f32 %v1513, 1.0
  %v1614 = vadd.f32 %v1514, 1.0
  %v1615 = vadd.f32 %v1515, 1.0
  %v1616 = vadd.f32 %v1516, 1.0
  %v1617 = vadd.f32 %v1517, 1.0
  %v1618 = vadd.f32 %v1518, 1.0
  %v1619 = vadd.f32 %v1519, 1.0
  %v1620 = vadd.f32 %v1520, 1.0
  %v1621 = vadd.f32 %v1521, 1.0
  %v1622 = vadd.f32 %v1522, 1.0
  %v1623 = vadd.f32 %v1523, 1.0
  %v1624 = vadd.f32 %v1524, 1.0
  %v1625 = vadd.f32 %v1525, 1.0
  %v1626 = vadd.f32 %v1526, 1.0
  %v1627 = vadd.f32 %v1527, 1.0
  %v1628 = vadd.f32 %v1528, 1.0
  %v1629 = vadd.f32 %v1529, 1.0
  %v1630 = vadd.f32 %v1530, 1.0
  %v1631 = vadd.f32 %v1531, 1.0
  %v1632 = vadd.f32 %v1532, 1.0
  %v1633 = vadd.f32 %v1533, 1.0
  %v1634 = vadd.f32 %v1534, 1.0
  %v1635 = vadd.f32 %v1535, 1.0
  %v1636 = vadd.f32 %v1536, 1.0
  %v1637 = vadd.f32 %v1537, 1.0
  %v1638 = vadd.f32 %v1538, 1.0
  %v1639 = vadd.f32 %v1539, 1.0
  %v1640 = vadd.f32 %v1540, 1.0
  %v1641 = vadd.f32 %v1541, 1.0
  %v1642 = vadd.f32 %v1542, 1.0
  %v1643 = vadd.f32 %v1543, 1.0
  %v1644 = vadd.f32 %v1544, 1.0
  %v1645 = vadd.f32 %v1545, 1.0
  %v1646 = vadd.f32 %v1546, 1.0
  %v1647 = vadd.f32 %v1547, 1.0
  %v1648 = vadd.f32 %v1548, 1.0
  %v1649 = vadd.f32 %v1549, 1.0
  %v1650 = vadd.f32 %v1550, 1.0
  %v1651 = vadd.f32 %v1551, 1.0
  %v1652 = vadd.f32 %v1552, 1.0
  %v1653 = vadd.f32 %v1553, 1.0
  %v1654 = vadd.f32 %v1554, 1.0
  %v1655 = vadd.f32 %v1555, 1.0
  %v1656 = vadd.f32 %v1556, 1.0
  %v1657 = vadd.f32 %v1557, 1.0
  %v1658 = vadd.f32 %v1558, 1.0
  %v1659 = vadd.f32 %v1559, 1.0
  %v1660 = vadd.f32 %v1560, 1.0
  %v1661 = vadd.f32 %v1561, 1.0
  %v1662 = vadd.f32 %v1562, 1.0
  %v1663 = vadd.f32 %v1563, 1.0
  %v1664 = vadd.f32 %v1564, 1.0
  %v1665 = vadd.f32 %v1565, 1.0
  %v1666 = vadd.f32 %v1566, 1.0
  %v1667 = vadd.f32 %v1567, 1.0
  %v1668 = vadd.f32 %v1568, 1.0
  %v1669 = vadd.f32 %v1569, 1.0
  %v1670 = vadd.f32 %v1570, 1.0
  %v1671 = vadd.f32 %v1571, 1.0
  %v1672 = vadd.f32 %v1572, 1.0
  %v1673 = vadd.f32 %v1573, 1.0
  %v1674 = vadd.f32 %v1574, 1.0
  %v1675 = vadd.f32 %v1575, 1.0
  %v1676 = vadd.f32 %v1576, 1.0
  %v1677 = vadd.f32 %v1577, 1.0
  %v1678 = vadd.f32 %v1578, 1.0
  %v1679 = vadd.f32 %v1579, 1.0
  %v1680 = vadd.f32 %v1580, 1.0
  %v1681 = vadd.f32 %v1581, 1.0
  %v1682 = vadd.f32 %v1582, 1.0
  %v1683 = vadd.f32 %v1583, 1.0
  %v1684 = vadd.f32 %v1584, 1.0
  %v1685 = vadd.f32 %v1585, 1.0
  %v1686 = vadd.f32 %v1586, 1.0
  %v1687 = vadd.f32 %v1587, 1.0
  %v1688 = vadd.f32 %v1588, 1.0
  %v1689 = vadd.f32 %v1589, 1.0
  %v1690 = vadd.f32 %v1590, 1.0
  %v1691 = vadd.f32 %v1591, 1.0
  %v1692 = vadd.f32 %v1592, 1.0
  %v1693 = vadd.f32 %v1593, 1.0
  %v1694 = vadd.f32 %v1594, 1.0
  %v1695 = vadd.f32 %v1595, 1.0
  %v1696 = vadd.f32 %v1596, 1.0
  %v1697 = vadd.f32 %v1597, 1.0
  %v1698 = vrcp.pop %v1598
  %v1699 = vmul.f32 1.0, %v1698
  %v1700 = vrcp.pop %v1599
  %v1701 = vmul.f32 1.0, %v1700
  %v1702 = vrcp.pop %v1600
  %v1703 = vmul.f32 1.0, %v1702
  %v1704 = vrcp.pop %v1601
  %v1705 = vmul.f32 1.0, %v1704
  %v1706 = vrcp.pop %v1602
  %v1707 = vmul.f32 1.0, %v1706
  %v1708 = vrcp.pop %v1603
  %v1709 = vmul.f32 1.0, %v1708
  %v1710 = vrcp.pop %v1604
  %v1711 = vmul.f32 1.0, %v1710
  %v1712 = vrcp.pop %v1605
  %v1713 = vmul.f32 1.0, %v1712
  %v1714 = vrcp.pop %v1606
  %v1715 = vmul.f32 1.0, %v1714
  %v1716 = vrcp.pop %v1607
  %v1717 = vmul.f32 1.0, %v1716
  %v1718 = vrcp.pop %v1608
  %v1719 = vmul.f32 1.0, %v1718
  %v1720 = vrcp.pop %v1609
  %v1721 = vmul.f32 1.0, %v1720
  %v1722 = vrcp.pop %v1610
  %v1723 = vmul.f32 1.0, %v1722
  %v1724 = vrcp.pop %v1611
  %v1725 = vmul.f32 1.0, %v1724
  %v1726 = vrcp.pop %v1612
  %v1727 = vmul.f32 1.0, %v1726
  %v1728 = vrcp.pop %v1613
  %v1729 = vmul.f32 1.0, %v1728
  %v1730 = vrcp.pop %v1614
  %v1731 = vmul.f32 1.0, %v1730
  %v1732 = vrcp.pop %v1615
  %v1733 = vmul.f32 1.0, %v1732
  %v1734 = vrcp.pop %v1616
  %v1735 = vmul.f32 1.0, %v1734
  %v1736 = vrcp.pop %v1617
  %v1737 = vmul.f32 1.0, %v1736
  %v1738 = vrcp.pop %v1618
  %v1739 = vmul.f32 1.0, %v1738
  %v1740 = vrcp.pop %v1619
  %v1741 = vmul.f32 1.0, %v1740
  %v1742 = vrcp.pop %v1620
  %v1743 = vmul.f32 1.0, %v1742
  %v1744 = vrcp.pop %v1621
  %v1745 = vmul.f32 1.0, %v1744
  %v1746 = vrcp.pop %v1622
  %v1747 = vmul.f32 1.0, %v1746
  %v1748 = vrcp.pop %v1623
  %v1749 = vmul.f32 1.0, %v1748
  %v1750 = vrcp.pop %v1624
  %v1751 = vmul.f32 1.0, %v1750
  %v1752 = vrcp.pop %v1625
  %v1753 = vmul.f32 1.0, %v1752
  %v1754 = vrcp.pop %v1626
  %v1755 = vmul.f32 1.0, %v1754
  %v1756 = vrcp.pop %v1627
  %v1757 = vmul.f32 1.0, %v1756
  %v1758 = vrcp.pop %v1628
  %v1759 = vmul.f32 1.0, %v1758
  %v1760 = vrcp.pop %v1629
  %v1761 = vmul.f32 1.0, %v1760
  %v1762 = vrcp.pop %v1630
  %v1763 = vmul.f32 1.0, %v1762
  %v1764 = vrcp.pop %v1631
  %v1765 = vmul.f32 1.0, %v1764
  %v1766 = vrcp.pop %v1632
  %v1767 = vmul.f32 1.0, %v1766
  %v1768 = vrcp.pop %v1633
  %v1769 = vmul.f32 1.0, %v1768
  %v1770 = vrcp.pop %v1634
  %v1771 = vmul.f32 1.0, %v1770
  %v1772 = vrcp.pop %v1635
  %v1773 = vmul.f32 1.0, %v1772
  %v1774 = vrcp.pop %v1636
  %v1775 = vmul.f32 1.0, %v1774
  %v1776 = vrcp.pop %v1637
  %v1777 = vmul.f32 1.0, %v1776
  %v1778 = vrcp.pop %v1638
  %v1779 = vmul.f32 1.0, %v1778
  %v1780 = vrcp.pop %v1639
  %v1781 = vmul.f32 1.0, %v1780
  %v1782 = vrcp.pop %v1640
  %v1783 = vmul.f32 1.0, %v1782
  %v1784 = vrcp.pop %v1641
  %v1785 = vmul.f32 1.0, %v1784
  %v1786 = vrcp.pop %v1642
  %v1787 = vmul.f32 1.0, %v1786
  %v1788 = vrcp.pop %v1643
  %v1789 = vmul.f32 1.0, %v1788
  %v1790 = vrcp.pop %v1644
  %v1791 = vmul.f32 1.0, %v1790
  %v1792 = vrcp.pop %v1645
  %v1793 = vmul.f32 1.0, %v1792
  %v1794 = vrcp.pop %v1646
  %v1795 = vmul.f32 1.0, %v1794
  %v1796 = vrcp.pop %v1647
  %v1797 = vmul.f32 1.0, %v1796
  %v1798 = vrcp.pop %v1648
  %v1799 = vmul.f32 1.0, %v1798
  %v1800 = vrcp.pop %v1649
  %v1801 = vmul.f32 1.0, %v1800
  %v1802 = vrcp.pop %v1650
  %v1803 = vmul.f32 1.0, %v1802
  %v1804 = vrcp.pop %v1651
  %v1805 = vmul.f32 1.0, %v1804
  %v1806 = vrcp.pop %v1652
  %v1807 = vmul.f32 1.0, %v1806
  %v1808 = vrcp.pop %v1653
  %v1809 = vmul.f32 1.0, %v1808
  %v1810 = vrcp.pop %v1654
  %v1811 = vmul.f32 1.0, %v1810
  %v1812 = vrcp.pop %v1655
  %v1813 = vmul.f32 1.0, %v1812
  %v1814 = vrcp.pop %v1656
  %v1815 = vmul.f32 1.0, %v1814
  %v1816 = vrcp.pop %v1657
  %v1817 = vmul.f32 1.0, %v1816
  %v1818 = vrcp.pop %v1658
  %v1819 = vmul.f32 1.0, %v1818
  %v1820 = vrcp.pop %v1659
  %v1821 = vmul.f32 1.0, %v1820
  %v1822 = vrcp.pop %v1660
  %v1823 = vmul.f32 1.0, %v1822
  %v1824 = vrcp.pop %v1661
  %v1825 = vmul.f32 1.0, %v1824
  %v1826 = vrcp.pop %v1662
  %v1827 = vmul.f32 1.0, %v1826
  %v1828 = vrcp.pop %v1663
  %v1829 = vmul.f32 1.0, %v1828
  %v1830 = vrcp.pop %v1664
  %v1831 = vmul.f32 1.0, %v1830
  %v1832 = vrcp.pop %v1665
  %v1833 = vmul.f32 1.0, %v1832
  %v1834 = vrcp.pop %v1666
  %v1835 = vmul.f32 1.0, %v1834
  %v1836 = vrcp.pop %v1667
  %v1837 = vmul.f32 1.0, %v1836
  %v1838 = vrcp.pop %v1668
  %v1839 = vmul.f32 1.0, %v1838
  %v1840 = vrcp.pop %v1669
  %v1841 = vmul.f32 1.0, %v1840
  %v1842 = vrcp.pop %v1670
  %v1843 = vmul.f32 1.0, %v1842
  %v1844 = vrcp.pop %v1671
  %v1845 = vmul.f32 1.0, %v1844
  %v1846 = vrcp.pop %v1672
  %v1847 = vmul.f32 1.0, %v1846
  %v1848 = vrcp.pop %v1673
  %v1849 = vmul.f32 1.0, %v1848
  %v1850 = vrcp.pop %v1674
  %v1851 = vmul.f32 1.0, %v1850
  %v1852 = vrcp.pop %v1675
  %v1853 = vmul.f32 1.0, %v1852
  %v1854 = vrcp.pop %v1676
  %v1855 = vmul.f32 1.0, %v1854
  %v1856 = vrcp.pop %v1677
  %v1857 = vmul.f32 1.0, %v1856
  %v1858 = vrcp.pop %v1678
  %v1859 = vmul.f32 1.0, %v1858
  %v1860 = vrcp.pop %v1679
  %v1861 = vmul.f32 1.0, %v1860
  %v1862 = vrcp.pop %v1680
  %v1863 = vmul.f32 1.0, %v1862
  %v1864 = vrcp.pop %v1681
  %v1865 = vmul.f32 1.0, %v1864
  %v1866 = vrcp.pop %v1682
  %v1867 = vmul.f32 1.0, %v1866
  %v1868 = vrcp.pop %v1683
  %v1869 = vmul.f32 1.0, %v1868
  %v1870 = vrcp.pop %v1684
  %v1871 = vmul.f32 1.0, %v1870
  %v1872 = vrcp.pop %v1685
  %v1873 = vmul.f32 1.0, %v1872
  %v1874 = vrcp.pop %v1686
  %v1875 = vmul.f32 1.0, %v1874
  %v1876 = vrcp.pop %v1687
  %v1877 = vmul.f32 1.0, %v1876
  %v1878 = vrcp.pop %v1688
  %v1879 = vmul.f32 1.0, %v1878
  %v1880 = vrcp.pop %v1689
  %v1881 = vmul.f32 1.0, %v1880
  %v1882 = vrcp.pop %v1690
  %v1883 = vmul.f32 1.0, %v1882
  %v1884 = vrcp.pop %v1691
  %v1885 = vmul.f32 1.0, %v1884
  %v1886 = vrcp.pop %v1692
  %v1887 = vmul.f32 1.0, %v1886
  %v1888 = vrcp.pop %v1693
  %v1889 = vmul.f32 1.0, %v1888
  %v1890 = vrcp.pop %v1694
  %v1891 = vmul.f32 1.0, %v1890
  %v1892 = vrcp.pop %v1695
  %v1893 = vmul.f32 1.0, %v1892
  %v1894 = vrcp.pop %v1696
  %v1895 = vmul.f32 1.0, %v1894
  %v1896 = vrcp.pop %v1697
  %v1897 = vmul.f32 1.0, %v1896
  %v1898 = vmul.f32 %v1699, 1.0614054
  %v1899 = vmul.f32 %v1701, 1.0614054
  %v1900 = vmul.f32 %v1703, 1.0614054
  %v1901 = vmul.f32 %v1705, 1.0614054
  %v1902 = vmul.f32 %v1707, 1.0614054
  %v1903 = vmul.f32 %v1709, 1.0614054
  %v1904 = vmul.f32 %v1711, 1.0614054
  %v1905 = vmul.f32 %v1713, 1.0614054
  %v1906 = vmul.f32 %v1715, 1.0614054
  %v1907 = vmul.f32 %v1717, 1.0614054
  %v1908 = vmul.f32 %v1719, 1.0614054
  %v1909 = vmul.f32 %v1721, 1.0614054
  %v1910 = vmul.f32 %v1723, 1.0614054
  %v1911 = vmul.f32 %v1725, 1.0614054
  %v1912 = vmul.f32 %v1727, 1.0614054
  %v1913 = vmul.f32 %v1729, 1.0614054
  %v1914 = vmul.f32 %v1731, 1.0614054
  %v1915 = vmul.f32 %v1733, 1.0614054
  %v1916 = vmul.f32 %v1735, 1.0614054
  %v1917 = vmul.f32 %v1737, 1.0614054
  %v1918 = vmul.f32 %v1739, 1.0614054
  %v1919 = vmul.f32 %v1741, 1.0614054
  %v1920 = vmul.f32 %v1743, 1.0614054
  %v1921 = vmul.f32 %v1745, 1.0614054
  %v1922 = vmul.f32 %v1747, 1.0614054
  %v1923 = vmul.f32 %v1749, 1.0614054
  %v1924 = vmul.f32 %v1751, 1.0614054
  %v1925 = vmul.f32 %v1753, 1.0614054
  %v1926 = vmul.f32 %v1755, 1.0614054
  %v1927 = vmul.f32 %v1757, 1.0614054
  %v1928 = vmul.f32 %v1759, 1.0614054
  %v1929 = vmul.f32 %v1761, 1.0614054
  %v1930 = vmul.f32 %v1763, 1.0614054
  %v1931 = vmul.f32 %v1765, 1.0614054
  %v1932 = vmul.f32 %v1767, 1.0614054
  %v1933 = vmul.f32 %v1769, 1.0614054
  %v1934 = vmul.f32 %v1771, 1.0614054
  %v1935 = vmul.f32 %v1773, 1.0614054
  %v1936 = vmul.f32 %v1775, 1.0614054
  %v1937 = vmul.f32 %v1777, 1.0614054
  %v1938 = vmul.f32 %v1779, 1.0614054
  %v1939 = vmul.f32 %v1781, 1.0614054
  %v1940 = vmul.f32 %v1783, 1.0614054
  %v1941 = vmul.f32 %v1785, 1.0614054
  %v1942 = vmul.f32 %v1787, 1.0614054
  %v1943 = vmul.f32 %v1789, 1.0614054
  %v1944 = vmul.f32 %v1791, 1.0614054
  %v1945 = vmul.f32 %v1793, 1.0614054
  %v1946 = vmul.f32 %v1795, 1.0614054
  %v1947 = vmul.f32 %v1797, 1.0614054
  %v1948 = vmul.f32 %v1799, 1.0614054
  %v1949 = vmul.f32 %v1801, 1.0614054
  %v1950 = vmul.f32 %v1803, 1.0614054
  %v1951 = vmul.f32 %v1805, 1.0614054
  %v1952 = vmul.f32 %v1807, 1.0614054
  %v1953 = vmul.f32 %v1809, 1.0614054
  %v1954 = vmul.f32 %v1811, 1.0614054
  %v1955 = vmul.f32 %v1813, 1.0614054
  %v1956 = vmul.f32 %v1815, 1.0614054
  %v1957 = vmul.f32 %v1817, 1.0614054
  %v1958 = vmul.f32 %v1819, 1.0614054
  %v1959 = vmul.f32 %v1821, 1.0614054
  %v1960 = vmul.f32 %v1823, 1.0614054
  %v1961 = vmul.f32 %v1825, 1.0614054
  %v1962 = vmul.f32 %v1827, 1.0614054
  %v1963 = vmul.f32 %v1829, 1.0614054
  %v1964 = vmul.f32 %v1831, 1.0614054
  %v1965 = vmul.f32 %v1833, 1.0614054
  %v1966 = vmul.f32 %v1835, 1.0614054
  %v1967 = vmul.f32 %v1837, 1.0614054
  %v1968 = vmul.f32 %v1839, 1.0614054
  %v1969 = vmul.f32 %v1841, 1.0614054
  %v1970 = vmul.f32 %v1843, 1.0614054
  %v1971 = vmul.f32 %v1845, 1.0614054
  %v1972 = vmul.f32 %v1847, 1.0614054
  %v1973 = vmul.f32 %v1849, 1.0614054
  %v1974 = vmul.f32 %v1851, 1.0614054
  %v1975 = vmul.f32 %v1853, 1.0614054
  %v1976 = vmul.f32 %v1855, 1.0614054
  %v1977 = vmul.f32 %v1857, 1.0614054
  %v1978 = vmul.f32 %v1859, 1.0614054
  %v1979 = vmul.f32 %v1861, 1.0614054
  %v1980 = vmul.f32 %v1863, 1.0614054
  %v1981 = vmul.f32 %v1865, 1.0614054
  %v1982 = vmul.f32 %v1867, 1.0614054
  %v1983 = vmul.f32 %v1869, 1.0614054
  %v1984 = vmul.f32 %v1871, 1.0614054
  %v1985 = vmul.f32 %v1873, 1.0614054
  %v1986 = vmul.f32 %v1875, 1.0614054
  %v1987 = vmul.f32 %v1877, 1.0614054
  %v1988 = vmul.f32 %v1879, 1.0614054
  %v1989 = vmul.f32 %v1881, 1.0614054
  %v1990 = vmul.f32 %v1883, 1.0614054
  %v1991 = vmul.f32 %v1885, 1.0614054
  %v1992 = vmul.f32 %v1887, 1.0614054
  %v1993 = vmul.f32 %v1889, 1.0614054
  %v1994 = vmul.f32 %v1891, 1.0614054
  %v1995 = vmul.f32 %v1893, 1.0614054
  %v1996 = vmul.f32 %v1895, 1.0614054
  %v1997 = vmul.f32 %v1897, 1.0614054
  %v1998 = vadd.f32 %v1898, -1.4531521
  %v1999 = vadd.f32 %v1899, -1.4531521
  %v2000 = vadd.f32 %v1900, -1.4531521
  %v2001 = vadd.f32 %v1901, -1.4531521
  %v2002 = vadd.f32 %v1902, -1.4531521
  %v2003 = vadd.f32 %v1903, -1.4531521
  %v2004 = vadd.f32 %v1904, -1.4531521
  %v2005 = vadd.f32 %v1905, -1.4531521
  %v2006 = vadd.f32 %v1906, -1.4531521
  %v2007 = vadd.f32 %v1907, -1.4531521
  %v2008 = vadd.f32 %v1908, -1.4531521
  %v2009 = vadd.f32 %v1909, -1.4531521
  %v2010 = vadd.f32 %v1910, -1.4531521
  %v2011 = vadd.f32 %v1911, -1.4531521
  %v2012 = vadd.f32 %v1912, -1.4531521
  %v2013 = vadd.f32 %v1913, -1.4531521
  %v2014 = vadd.f32 %v1914, -1.4531521
  %v2015 = vadd.f32 %v1915, -1.4531521
  %v2016 = vadd.f32 %v1916, -1.4531521
  %v2017 = vadd.f32 %v1917, -1.4531521
  %v2018 = vadd.f32 %v1918, -1.4531521
  %v2019 = vadd.f32 %v1919, -1.4531521
  %v2020 = vadd.f32 %v1920, -1.4531521
  %v2021 = vadd.f32 %v1921, -1.4531521
  %v2022 = vadd.f32 %v1922, -1.4531521
  %v2023 = vadd.f32 %v1923, -1.4531521
  %v2024 = vadd.f32 %v1924, -1.4531521
  %v2025 = vadd.f32 %v1925, -1.4531521
  %v2026 = vadd.f32 %v1926, -1.4531521
  %v2027 = vadd.f32 %v1927, -1.4531521
  %v2028 = vadd.f32 %v1928, -1.4531521
  %v2029 = vadd.f32 %v1929, -1.4531521
  %v2030 = vadd.f32 %v1930, -1.4531521
  %v2031 = vadd.f32 %v1931, -1.4531521
  %v2032 = vadd.f32 %v1932, -1.4531521
  %v2033 = vadd.f32 %v1933, -1.4531521
  %v2034 = vadd.f32 %v1934, -1.4531521
  %v2035 = vadd.f32 %v1935, -1.4531521
  %v2036 = vadd.f32 %v1936, -1.4531521
  %v2037 = vadd.f32 %v1937, -1.4531521
  %v2038 = vadd.f32 %v1938, -1.4531521
  %v2039 = vadd.f32 %v1939, -1.4531521
  %v2040 = vadd.f32 %v1940, -1.4531521
  %v2041 = vadd.f32 %v1941, -1.4531521
  %v2042 = vadd.f32 %v1942, -1.4531521
  %v2043 = vadd.f32 %v1943, -1.4531521
  %v2044 = vadd.f32 %v1944, -1.4531521
  %v2045 = vadd.f32 %v1945, -1.4531521
  %v2046 = vadd.f32 %v1946, -1.4531521
  %v2047 = vadd.f32 %v1947, -1.4531521
  %v2048 = vadd.f32 %v1948, -1.4531521
  %v2049 = vadd.f32 %v1949, -1.4531521
  %v2050 = vadd.f32 %v1950, -1.4531521
  %v2051 = vadd.f32 %v1951, -1.4531521
  %v2052 = vadd.f32 %v1952, -1.4531521
  %v2053 = vadd.f32 %v1953, -1.4531521
  %v2054 = vadd.f32 %v1954, -1.4531521
  %v2055 = vadd.f32 %v1955, -1.4531521
  %v2056 = vadd.f32 %v1956, -1.4531521
  %v2057 = vadd.f32 %v1957, -1.4531521
  %v2058 = vadd.f32 %v1958, -1.4531521
  %v2059 = vadd.f32 %v1959, -1.4531521
  %v2060 = vadd.f32 %v1960, -1.4531521
  %v2061 = vadd.f32 %v1961, -1.4531521
  %v2062 = vadd.f32 %v1962, -1.4531521
  %v2063 = vadd.f32 %v1963, -1.4531521
  %v2064 = vadd.f32 %v1964, -1.4531521
  %v2065 = vadd.f32 %v1965, -1.4531521
  %v2066 = vadd.f32 %v1966, -1.4531521
  %v2067 = vadd.f32 %v1967, -1.4531521
  %v2068 = vadd.f32 %v1968, -1.4531521
  %v2069 = vadd.f32 %v1969, -1.4531521
  %v2070 = vadd.f32 %v1970, -1.4531521
  %v2071 = vadd.f32 %v1971, -1.4531521
  %v2072 = vadd.f32 %v1972, -1.4531521
  %v2073 = vadd.f32 %v1973, -1.4531521
  %v2074 = vadd.f32 %v1974, -1.4531521
  %v2075 = vadd.f32 %v1975, -1.4531521
  %v2076 = vadd.f32 %v1976, -1.4531521
  %v2077 = vadd.f32 %v1977, -1.4531521
  %v2078 = vadd.f32 %v1978, -1.4531521
  %v2079 = vadd.f32 %v1979, -1.4531521
  %v2080 = vadd.f32 %v1980, -1.4531521
  %v2081 = vadd.f32 %v1981, -1.4531521
  %v2082 = vadd.f32 %v1982, -1.4531521
  %v2083 = vadd.f32 %v1983, -1.4531521
  %v2084 = vadd.f32 %v1984, -1.4531521
  %v2085 = vadd.f32 %v1985, -1.4531521
  %v2086 = vadd.f32 %v1986, -1.4531521
  %v2087 = vadd.f32 %v1987, -1.4531521
  %v2088 = vadd.f32 %v1988, -1.4531521
  %v2089 = vadd.f32 %v1989, -1.4531521
  %v2090 = vadd.f32 %v1990, -1.4531521
  %v2091 = vadd.f32 %v1991, -1.4531521
  %v2092 = vadd.f32 %v1992, -1.4531521
  %v2093 = vadd.f32 %v1993, -1.4531521
  %v2094 = vadd.f32 %v1994, -1.4531521
  %v2095 = vadd.f32 %v1995, -1.4531521
  %v2096 = vadd.f32 %v1996, -1.4531521
  %v2097 = vadd.f32 %v1997, -1.4531521
  %v2098 = vmul.f32 %v1998, %v1699
  %v2099 = vmul.f32 %v1999, %v1701
  %v2100 = vmul.f32 %v2000, %v1703
  %v2101 = vmul.f32 %v2001, %v1705
  %v2102 = vmul.f32 %v2002, %v1707
  %v2103 = vmul.f32 %v2003, %v1709
  %v2104 = vmul.f32 %v2004, %v1711
  %v2105 = vmul.f32 %v2005, %v1713
  %v2106 = vmul.f32 %v2006, %v1715
  %v2107 = vmul.f32 %v2007, %v1717
  %v2108 = vmul.f32 %v2008, %v1719
  %v2109 = vmul.f32 %v2009, %v1721
  %v2110 = vmul.f32 %v2010, %v1723
  %v2111 = vmul.f32 %v2011, %v1725
  %v2112 = vmul.f32 %v2012, %v1727
  %v2113 = vmul.f32 %v2013, %v1729
  %v2114 = vmul.f32 %v2014, %v1731
  %v2115 = vmul.f32 %v2015, %v1733
  %v2116 = vmul.f32 %v2016, %v1735
  %v2117 = vmul.f32 %v2017, %v1737
  %v2118 = vmul.f32 %v2018, %v1739
  %v2119 = vmul.f32 %v2019, %v1741
  %v2120 = vmul.f32 %v2020, %v1743
  %v2121 = vmul.f32 %v2021, %v1745
  %v2122 = vmul.f32 %v2022, %v1747
  %v2123 = vmul.f32 %v2023, %v1749
  %v2124 = vmul.f32 %v2024, %v1751
  %v2125 = vmul.f32 %v2025, %v1753
  %v2126 = vmul.f32 %v2026, %v1755
  %v2127 = vmul.f32 %v2027, %v1757
  %v2128 = vmul.f32 %v2028, %v1759
  %v2129 = vmul.f32 %v2029, %v1761
  %v2130 = vmul.f32 %v2030, %v1763
  %v2131 = vmul.f32 %v2031, %v1765
  %v2132 = vmul.f32 %v2032, %v1767
  %v2133 = vmul.f32 %v2033, %v1769
  %v2134 = vmul.f32 %v2034, %v1771
  %v2135 = vmul.f32 %v2035, %v1773
  %v2136 = vmul.f32 %v2036, %v1775
  %v2137 = vmul.f32 %v2037, %v1777
  %v2138 = vmul.f32 %v2038, %v1779
  %v2139 = vmul.f32 %v2039, %v1781
  %v2140 = vmul.f32 %v2040, %v1783
  %v2141 = vmul.f32 %v2041, %v1785
  %v2142 = vmul.f32 %v2042, %v1787
  %v2143 = vmul.f32 %v2043, %v1789
  %v2144 = vmul.f32 %v2044, %v1791
  %v2145 = vmul.f32 %v2045, %v1793
  %v2146 = vmul.f32 %v2046, %v1795
  %v2147 = vmul.f32 %v2047, %v1797
  %v2148 = vmul.f32 %v2048, %v1799
  %v2149 = vmul.f32 %v2049, %v1801
  %v2150 = vmul.f32 %v2050, %v1803
  %v2151 = vmul.f32 %v2051, %v1805
  %v2152 = vmul.f32 %v2052, %v1807
  %v2153 = vmul.f32 %v2053, %v1809
  %v2154 = vmul.f32 %v2054, %v1811
  %v2155 = vmul.f32 %v2055, %v1813
  %v2156 = vmul.f32 %v2056, %v1815
  %v2157 = vmul.f32 %v2057, %v1817
  %v2158 = vmul.f32 %v2058, %v1819
  %v2159 = vmul.f32 %v2059, %v1821
  %v2160 = vmul.f32 %v2060, %v1823
  %v2161 = vmul.f32 %v2061, %v1825
  %v2162 = vmul.f32 %v2062, %v1827
  %v2163 = vmul.f32 %v2063, %v1829
  %v2164 = vmul.f32 %v2064, %v1831
  %v2165 = vmul.f32 %v2065, %v1833
  %v2166 = vmul.f32 %v2066, %v1835
  %v2167 = vmul.f32 %v2067, %v1837
  %v2168 = vmul.f32 %v2068, %v1839
  %v2169 = vmul.f32 %v2069, %v1841
  %v2170 = vmul.f32 %v2070, %v1843
  %v2171 = vmul.f32 %v2071, %v1845
  %v2172 = vmul.f32 %v2072, %v1847
  %v2173 = vmul.f32 %v2073, %v1849
  %v2174 = vmul.f32 %v2074, %v1851
  %v2175 = vmul.f32 %v2075, %v1853
  %v2176 = vmul.f32 %v2076, %v1855
  %v2177 = vmul.f32 %v2077, %v1857
  %v2178 = vmul.f32 %v2078, %v1859
  %v2179 = vmul.f32 %v2079, %v1861
  %v2180 = vmul.f32 %v2080, %v1863
  %v2181 = vmul.f32 %v2081, %v1865
  %v2182 = vmul.f32 %v2082, %v1867
  %v2183 = vmul.f32 %v2083, %v1869
  %v2184 = vmul.f32 %v2084, %v1871
  %v2185 = vmul.f32 %v2085, %v1873
  %v2186 = vmul.f32 %v2086, %v1875
  %v2187 = vmul.f32 %v2087, %v1877
  %v2188 = vmul.f32 %v2088, %v1879
  %v2189 = vmul.f32 %v2089, %v1881
  %v2190 = vmul.f32 %v2090, %v1883
  %v2191 = vmul.f32 %v2091, %v1885
  %v2192 = vmul.f32 %v2092, %v1887
  %v2193 = vmul.f32 %v2093, %v1889
  %v2194 = vmul.f32 %v2094, %v1891
  %v2195 = vmul.f32 %v2095, %v1893
  %v2196 = vmul.f32 %v2096, %v1895
  %v2197 = vmul.f32 %v2097, %v1897
  %v2198 = vadd.f32 %v2098, 1.4214138
  %v2199 = vadd.f32 %v2099, 1.4214138
  %v2200 = vadd.f32 %v2100, 1.4214138
  %v2201 = vadd.f32 %v2101, 1.4214138
  %v2202 = vadd.f32 %v2102, 1.4214138
  %v2203 = vadd.f32 %v2103, 1.4214138
  %v2204 = vadd.f32 %v2104, 1.4214138
  %v2205 = vadd.f32 %v2105, 1.4214138
  %v2206 = vadd.f32 %v2106, 1.4214138
  %v2207 = vadd.f32 %v2107, 1.4214138
  %v2208 = vadd.f32 %v2108, 1.4214138
  %v2209 = vadd.f32 %v2109, 1.4214138
  %v2210 = vadd.f32 %v2110, 1.4214138
  %v2211 = vadd.f32 %v2111, 1.4214138
  %v2212 = vadd.f32 %v2112, 1.4214138
  %v2213 = vadd.f32 %v2113, 1.4214138
  %v2214 = vadd.f32 %v2114, 1.4214138
  %v2215 = vadd.f32 %v2115, 1.4214138
  %v2216 = vadd.f32 %v2116, 1.4214138
  %v2217 = vadd.f32 %v2117, 1.4214138
  %v2218 = vadd.f32 %v2118, 1.4214138
  %v2219 = vadd.f32 %v2119, 1.4214138
  %v2220 = vadd.f32 %v2120, 1.4214138
  %v2221 = vadd.f32 %v2121, 1.4214138
  %v2222 = vadd.f32 %v2122, 1.4214138
  %v2223 = vadd.f32 %v2123, 1.4214138
  %v2224 = vadd.f32 %v2124, 1.4214138
  %v2225 = vadd.f32 %v2125, 1.4214138
  %v2226 = vadd.f32 %v2126, 1.4214138
  %v2227 = vadd.f32 %v2127, 1.4214138
  %v2228 = vadd.f32 %v2128, 1.4214138
  %v2229 = vadd.f32 %v2129, 1.4214138
  %v2230 = vadd.f32 %v2130, 1.4214138
  %v2231 = vadd.f32 %v2131, 1.4214138
  %v2232 = vadd.f32 %v2132, 1.4214138
  %v2233 = vadd.f32 %v2133, 1.4214138
  %v2234 = vadd.f32 %v2134, 1.4214138
  %v2235 = vadd.f32 %v2135, 1.4214138
  %v2236 = vadd.f32 %v2136, 1.4214138
  %v2237 = vadd.f32 %v2137, 1.4214138
  %v2238 = vadd.f32 %v2138, 1.4214138
  %v2239 = vadd.f32 %v2139, 1.4214138
  %v2240 = vadd.f32 %v2140, 1.4214138
  %v2241 = vadd.f32 %v2141, 1.4214138
  %v2242 = vadd.f32 %v2142, 1.4214138
  %v2243 = vadd.f32 %v2143, 1.4214138
  %v2244 = vadd.f32 %v2144, 1.4214138
  %v2245 = vadd.f32 %v2145, 1.4214138
  %v2246 = vadd.f32 %v2146, 1.4214138
  %v2247 = vadd.f32 %v2147, 1.4214138
  %v2248 = vadd.f32 %v2148, 1.4214138
  %v2249 = vadd.f32 %v2149, 1.4214138
  %v2250 = vadd.f32 %v2150, 1.4214138
  %v2251 = vadd.f32 %v2151, 1.4214138
  %v2252 = vadd.f32 %v2152, 1.4214138
  %v2253 = vadd.f32 %v2153, 1.4214138
  %v2254 = vadd.f32 %v2154, 1.4214138
  %v2255 = vadd.f32 %v2155, 1.4214138
  %v2256 = vadd.f32 %v2156, 1.4214138
  %v2257 = vadd.f32 %v2157, 1.4214138
  %v2258 = vadd.f32 %v2158, 1.4214138
  %v2259 = vadd.f32 %v2159, 1.4214138
  %v2260 = vadd.f32 %v2160, 1.4214138
  %v2261 = vadd.f32 %v2161, 1.4214138
  %v2262 = vadd.f32 %v2162, 1.4214138
  %v2263 = vadd.f32 %v2163, 1.4214138
  %v2264 = vadd.f32 %v2164, 1.4214138
  %v2265 = vadd.f32 %v2165, 1.4214138
  %v2266 = vadd.f32 %v2166, 1.4214138
  %v2267 = vadd.f32 %v2167, 1.4214138
  %v2268 = vadd.f32 %v2168, 1.4214138
  %v2269 = vadd.f32 %v2169, 1.4214138
  %v2270 = vadd.f32 %v2170, 1.4214138
  %v2271 = vadd.f32 %v2171, 1.4214138
  %v2272 = vadd.f32 %v2172, 1.4214138
  %v2273 = vadd.f32 %v2173, 1.4214138
  %v2274 = vadd.f32 %v2174, 1.4214138
  %v2275 = vadd.f32 %v2175, 1.4214138
  %v2276 = vadd.f32 %v2176, 1.4214138
  %v2277 = vadd.f32 %v2177, 1.4214138
  %v2278 = vadd.f32 %v2178, 1.4214138
  %v2279 = vadd.f32 %v2179, 1.4214138
  %v2280 = vadd.f32 %v2180, 1.4214138
  %v2281 = vadd.f32 %v2181, 1.4214138
  %v2282 = vadd.f32 %v2182, 1.4214138
  %v2283 = vadd.f32 %v2183, 1.4214138
  %v2284 = vadd.f32 %v2184, 1.4214138
  %v2285 = vadd.f32 %v2185, 1.4214138
  %v2286 = vadd.f32 %v2186, 1.4214138
  %v2287 = vadd.f32 %v2187, 1.4214138
  %v2288 = vadd.f32 %v2188, 1.4214138
  %v2289 = vadd.f32 %v2189, 1.4214138
  %v2290 = vadd.f32 %v2190, 1.4214138
  %v2291 = vadd.f32 %v2191, 1.4214138
  %v2292 = vadd.f32 %v2192, 1.4214138
  %v2293 = vadd.f32 %v2193, 1.4214138
  %v2294 = vadd.f32 %v2194, 1.4214138
  %v2295 = vadd.f32 %v2195, 1.4214138
  %v2296 = vadd.f32 %v2196, 1.4214138
  %v2297 = vadd.f32 %v2197, 1.4214138
  %v2298 = vmul.f32 %v2198, %v1699
  %v2299 = vmul.f32 %v2199, %v1701
  %v2300 = vmul.f32 %v2200, %v1703
  %v2301 = vmul.f32 %v2201, %v1705
  %v2302 = vmul.f32 %v2202, %v1707
  %v2303 = vmul.f32 %v2203, %v1709
  %v2304 = vmul.f32 %v2204, %v1711
  %v2305 = vmul.f32 %v2205, %v1713
  %v2306 = vmul.f32 %v2206, %v1715
  %v2307 = vmul.f32 %v2207, %v1717
  %v2308 = vmul.f32 %v2208, %v1719
  %v2309 = vmul.f32 %v2209, %v1721
  %v2310 = vmul.f32 %v2210, %v1723
  %v2311 = vmul.f32 %v2211, %v1725
  %v2312 = vmul.f32 %v2212, %v1727
  %v2313 = vmul.f32 %v2213, %v1729
  %v2314 = vmul.f32 %v2214, %v1731
  %v2315 = vmul.f32 %v2215, %v1733
  %v2316 = vmul.f32 %v2216, %v1735
  %v2317 = vmul.f32 %v2217, %v1737
  %v2318 = vmul.f32 %v2218, %v1739
  %v2319 = vmul.f32 %v2219, %v1741
  %v2320 = vmul.f32 %v2220, %v1743
  %v2321 = vmul.f32 %v2221, %v1745
  %v2322 = vmul.f32 %v2222, %v1747
  %v2323 = vmul.f32 %v2223, %v1749
  %v2324 = vmul.f32 %v2224, %v1751
  %v2325 = vmul.f32 %v2225, %v1753
  %v2326 = vmul.f32 %v2226, %v1755
  %v2327 = vmul.f32 %v2227, %v1757
  %v2328 = vmul.f32 %v2228, %v1759
  %v2329 = vmul.f32 %v2229, %v1761
  %v2330 = vmul.f32 %v2230, %v1763
  %v2331 = vmul.f32 %v2231, %v1765
  %v2332 = vmul.f32 %v2232, %v1767
  %v2333 = vmul.f32 %v2233, %v1769
  %v2334 = vmul.f32 %v2234, %v1771
  %v2335 = vmul.f32 %v2235, %v1773
  %v2336 = vmul.f32 %v2236, %v1775
  %v2337 = vmul.f32 %v2237, %v1777
  %v2338 = vmul.f32 %v2238, %v1779
  %v2339 = vmul.f32 %v2239, %v1781
  %v2340 = vmul.f32 %v2240, %v1783
  %v2341 = vmul.f32 %v2241, %v1785
  %v2342 = vmul.f32 %v2242, %v1787
  %v2343 = vmul.f32 %v2243, %v1789
  %v2344 = vmul.f32 %v2244, %v1791
  %v2345 = vmul.f32 %v2245, %v1793
  %v2346 = vmul.f32 %v2246, %v1795
  %v2347 = vmul.f32 %v2247, %v1797
  %v2348 = vmul.f32 %v2248, %v1799
  %v2349 = vmul.f32 %v2249, %v1801
  %v2350 = vmul.f32 %v2250, %v1803
  %v2351 = vmul.f32 %v2251, %v1805
  %v2352 = vmul.f32 %v2252, %v1807
  %v2353 = vmul.f32 %v2253, %v1809
  %v2354 = vmul.f32 %v2254, %v1811
  %v2355 = vmul.f32 %v2255, %v1813
  %v2356 = vmul.f32 %v2256, %v1815
  %v2357 = vmul.f32 %v2257, %v1817
  %v2358 = vmul.f32 %v2258, %v1819
  %v2359 = vmul.f32 %v2259, %v1821
  %v2360 = vmul.f32 %v2260, %v1823
  %v2361 = vmul.f32 %v2261, %v1825
  %v2362 = vmul.f32 %v2262, %v1827
  %v2363 = vmul.f32 %v2263, %v1829
  %v2364 = vmul.f32 %v2264, %v1831
  %v2365 = vmul.f32 %v2265, %v1833
  %v2366 = vmul.f32 %v2266, %v1835
  %v2367 = vmul.f32 %v2267, %v1837
  %v2368 = vmul.f32 %v2268, %v1839
  %v2369 = vmul.f32 %v2269, %v1841
  %v2370 = vmul.f32 %v2270, %v1843
  %v2371 = vmul.f32 %v2271, %v1845
  %v2372 = vmul.f32 %v2272, %v1847
  %v2373 = vmul.f32 %v2273, %v1849
  %v2374 = vmul.f32 %v2274, %v1851
  %v2375 = vmul.f32 %v2275, %v1853
  %v2376 = vmul.f32 %v2276, %v1855
  %v2377 = vmul.f32 %v2277, %v1857
  %v2378 = vmul.f32 %v2278, %v1859
  %v2379 = vmul.f32 %v2279, %v1861
  %v2380 = vmul.f32 %v2280, %v1863
  %v2381 = vmul.f32 %v2281, %v1865
  %v2382 = vmul.f32 %v2282, %v1867
  %v2383 = vmul.f32 %v2283, %v1869
  %v2384 = vmul.f32 %v2284, %v1871
  %v2385 = vmul.f32 %v2285, %v1873
  %v2386 = vmul.f32 %v2286, %v1875
  %v2387 = vmul.f32 %v2287, %v1877
  %v2388 = vmul.f32 %v2288, %v1879
  %v2389 = vmul.f32 %v2289, %v1881
  %v2390 = vmul.f32 %v2290, %v1883
  %v2391 = vmul.f32 %v2291, %v1885
  %v2392 = vmul.f32 %v2292, %v1887
  %v2393 = vmul.f32 %v2293, %v1889
  %v2394 = vmul.f32 %v2294, %v1891
  %v2395 = vmul.f32 %v2295, %v1893
  %v2396 = vmul.f32 %v2296, %v1895
  %v2397 = vmul.f32 %v2297, %v1897
  %v2398 = vadd.f32 %v2298, -0.28449672
  %v2399 = vadd.f32 %v2299, -0.28449672
  %v2400 = vadd.f32 %v2300, -0.28449672
  %v2401 = vadd.f32 %v2301, -0.28449672
  %v2402 = vadd.f32 %v2302, -0.28449672
  %v2403 = vadd.f32 %v2303, -0.28449672
  %v2404 = vadd.f32 %v2304, -0.28449672
  %v2405 = vadd.f32 %v2305, -0.28449672
  %v2406 = vadd.f32 %v2306, -0.28449672
  %v2407 = vadd.f32 %v2307, -0.28449672
  %v2408 = vadd.f32 %v2308, -0.28449672
  %v2409 = vadd.f32 %v2309, -0.28449672
  %v2410 = vadd.f32 %v2310, -0.28449672
  %v2411 = vadd.f32 %v2311, -0.28449672
  %v2412 = vadd.f32 %v2312, -0.28449672
  %v2413 = vadd.f32 %v2313, -0.28449672
  %v2414 = vadd.f32 %v2314, -0.28449672
  %v2415 = vadd.f32 %v2315, -0.28449672
  %v2416 = vadd.f32 %v2316, -0.28449672
  %v2417 = vadd.f32 %v2317, -0.28449672
  %v2418 = vadd.f32 %v2318, -0.28449672
  %v2419 = vadd.f32 %v2319, -0.28449672
  %v2420 = vadd.f32 %v2320, -0.28449672
  %v2421 = vadd.f32 %v2321, -0.28449672
  %v2422 = vadd.f32 %v2322, -0.28449672
  %v2423 = vadd.f32 %v2323, -0.28449672
  %v2424 = vadd.f32 %v2324, -0.28449672
  %v2425 = vadd.f32 %v2325, -0.28449672
  %v2426 = vadd.f32 %v2326, -0.28449672
  %v2427 = vadd.f32 %v2327, -0.28449672
  %v2428 = vadd.f32 %v2328, -0.28449672
  %v2429 = vadd.f32 %v2329, -0.28449672
  %v2430 = vadd.f32 %v2330, -0.28449672
  %v2431 = vadd.f32 %v2331, -0.28449672
  %v2432 = vadd.f32 %v2332, -0.28449672
  %v2433 = vadd.f32 %v2333, -0.28449672
  %v2434 = vadd.f32 %v2334, -0.28449672
  %v2435 = vadd.f32 %v2335, -0.28449672
  %v2436 = vadd.f32 %v2336, -0.28449672
  %v2437 = vadd.f32 %v2337, -0.28449672
  %v2438 = vadd.f32 %v2338, -0.28449672
  %v2439 = vadd.f32 %v2339, -0.28449672
  %v2440 = vadd.f32 %v2340, -0.28449672
  %v2441 = vadd.f32 %v2341, -0.28449672
  %v2442 = vadd.f32 %v2342, -0.28449672
  %v2443 = vadd.f32 %v2343, -0.28449672
  %v2444 = vadd.f32 %v2344, -0.28449672
  %v2445 = vadd.f32 %v2345, -0.28449672
  %v2446 = vadd.f32 %v2346, -0.28449672
  %v2447 = vadd.f32 %v2347, -0.28449672
  %v2448 = vadd.f32 %v2348, -0.28449672
  %v2449 = vadd.f32 %v2349, -0.28449672
  %v2450 = vadd.f32 %v2350, -0.28449672
  %v2451 = vadd.f32 %v2351, -0.28449672
  %v2452 = vadd.f32 %v2352, -0.28449672
  %v2453 = vadd.f32 %v2353, -0.28449672
  %v2454 = vadd.f32 %v2354, -0.28449672
  %v2455 = vadd.f32 %v2355, -0.28449672
  %v2456 = vadd.f32 %v2356, -0.28449672
  %v2457 = vadd.f32 %v2357, -0.28449672
  %v2458 = vadd.f32 %v2358, -0.28449672
  %v2459 = vadd.f32 %v2359, -0.28449672
  %v2460 = vadd.f32 %v2360, -0.28449672
  %v2461 = vadd.f32 %v2361, -0.28449672
  %v2462 = vadd.f32 %v2362, -0.28449672
  %v2463 = vadd.f32 %v2363, -0.28449672
  %v2464 = vadd.f32 %v2364, -0.28449672
  %v2465 = vadd.f32 %v2365, -0.28449672
  %v2466 = vadd.f32 %v2366, -0.28449672
  %v2467 = vadd.f32 %v2367, -0.28449672
  %v2468 = vadd.f32 %v2368, -0.28449672
  %v2469 = vadd.f32 %v2369, -0.28449672
  %v2470 = vadd.f32 %v2370, -0.28449672
  %v2471 = vadd.f32 %v2371, -0.28449672
  %v2472 = vadd.f32 %v2372, -0.28449672
  %v2473 = vadd.f32 %v2373, -0.28449672
  %v2474 = vadd.f32 %v2374, -0.28449672
  %v2475 = vadd.f32 %v2375, -0.28449672
  %v2476 = vadd.f32 %v2376, -0.28449672
  %v2477 = vadd.f32 %v2377, -0.28449672
  %v2478 = vadd.f32 %v2378, -0.28449672
  %v2479 = vadd.f32 %v2379, -0.28449672
  %v2480 = vadd.f32 %v2380, -0.28449672
  %v2481 = vadd.f32 %v2381, -0.28449672
  %v2482 = vadd.f32 %v2382, -0.28449672
  %v2483 = vadd.f32 %v2383, -0.28449672
  %v2484 = vadd.f32 %v2384, -0.28449672
  %v2485 = vadd.f32 %v2385, -0.28449672
  %v2486 = vadd.f32 %v2386, -0.28449672
  %v2487 = vadd.f32 %v2387, -0.28449672
  %v2488 = vadd.f32 %v2388, -0.28449672
  %v2489 = vadd.f32 %v2389, -0.28449672
  %v2490 = vadd.f32 %v2390, -0.28449672
  %v2491 = vadd.f32 %v2391, -0.28449672
  %v2492 = vadd.f32 %v2392, -0.28449672
  %v2493 = vadd.f32 %v2393, -0.28449672
  %v2494 = vadd.f32 %v2394, -0.28449672
  %v2495 = vadd.f32 %v2395, -0.28449672
  %v2496 = vadd.f32 %v2396, -0.28449672
  %v2497 = vadd.f32 %v2397, -0.28449672
  %v2498 = vmul.f32 %v2398, %v1699
  %v2499 = vmul.f32 %v2399, %v1701
  %v2500 = vmul.f32 %v2400, %v1703
  %v2501 = vmul.f32 %v2401, %v1705
  %v2502 = vmul.f32 %v2402, %v1707
  %v2503 = vmul.f32 %v2403, %v1709
  %v2504 = vmul.f32 %v2404, %v1711
  %v2505 = vmul.f32 %v2405, %v1713
  %v2506 = vmul.f32 %v2406, %v1715
  %v2507 = vmul.f32 %v2407, %v1717
  %v2508 = vmul.f32 %v2408, %v1719
  %v2509 = vmul.f32 %v2409, %v1721
  %v2510 = vmul.f32 %v2410, %v1723
  %v2511 = vmul.f32 %v2411, %v1725
  %v2512 = vmul.f32 %v2412, %v1727
  %v2513 = vmul.f32 %v2413, %v1729
  %v2514 = vmul.f32 %v2414, %v1731
  %v2515 = vmul.f32 %v2415, %v1733
  %v2516 = vmul.f32 %v2416, %v1735
  %v2517 = vmul.f32 %v2417, %v1737
  %v2518 = vmul.f32 %v2418, %v1739
  %v2519 = vmul.f32 %v2419, %v1741
  %v2520 = vmul.f32 %v2420, %v1743
  %v2521 = vmul.f32 %v2421, %v1745
  %v2522 = vmul.f32 %v2422, %v1747
  %v2523 = vmul.f32 %v2423, %v1749
  %v2524 = vmul.f32 %v2424, %v1751
  %v2525 = vmul.f32 %v2425, %v1753
  %v2526 = vmul.f32 %v2426, %v1755
  %v2527 = vmul.f32 %v2427, %v1757
  %v2528 = vmul.f32 %v2428, %v1759
  %v2529 = vmul.f32 %v2429, %v1761
  %v2530 = vmul.f32 %v2430, %v1763
  %v2531 = vmul.f32 %v2431, %v1765
  %v2532 = vmul.f32 %v2432, %v1767
  %v2533 = vmul.f32 %v2433, %v1769
  %v2534 = vmul.f32 %v2434, %v1771
  %v2535 = vmul.f32 %v2435, %v1773
  %v2536 = vmul.f32 %v2436, %v1775
  %v2537 = vmul.f32 %v2437, %v1777
  %v2538 = vmul.f32 %v2438, %v1779
  %v2539 = vmul.f32 %v2439, %v1781
  %v2540 = vmul.f32 %v2440, %v1783
  %v2541 = vmul.f32 %v2441, %v1785
  %v2542 = vmul.f32 %v2442, %v1787
  %v2543 = vmul.f32 %v2443, %v1789
  %v2544 = vmul.f32 %v2444, %v1791
  %v2545 = vmul.f32 %v2445, %v1793
  %v2546 = vmul.f32 %v2446, %v1795
  %v2547 = vmul.f32 %v2447, %v1797
  %v2548 = vmul.f32 %v2448, %v1799
  %v2549 = vmul.f32 %v2449, %v1801
  %v2550 = vmul.f32 %v2450, %v1803
  %v2551 = vmul.f32 %v2451, %v1805
  %v2552 = vmul.f32 %v2452, %v1807
  %v2553 = vmul.f32 %v2453, %v1809
  %v2554 = vmul.f32 %v2454, %v1811
  %v2555 = vmul.f32 %v2455, %v1813
  %v2556 = vmul.f32 %v2456, %v1815
  %v2557 = vmul.f32 %v2457, %v1817
  %v2558 = vmul.f32 %v2458, %v1819
  %v2559 = vmul.f32 %v2459, %v1821
  %v2560 = vmul.f32 %v2460, %v1823
  %v2561 = vmul.f32 %v2461, %v1825
  %v2562 = vmul.f32 %v2462, %v1827
  %v2563 = vmul.f32 %v2463, %v1829
  %v2564 = vmul.f32 %v2464, %v1831
  %v2565 = vmul.f32 %v2465, %v1833
  %v2566 = vmul.f32 %v2466, %v1835
  %v2567 = vmul.f32 %v2467, %v1837
  %v2568 = vmul.f32 %v2468, %v1839
  %v2569 = vmul.f32 %v2469, %v1841
  %v2570 = vmul.f32 %v2470, %v1843
  %v2571 = vmul.f32 %v2471, %v1845
  %v2572 = vmul.f32 %v2472, %v1847
  %v2573 = vmul.f32 %v2473, %v1849
  %v2574 = vmul.f32 %v2474, %v1851
  %v2575 = vmul.f32 %v2475, %v1853
  %v2576 = vmul.f32 %v2476, %v1855
  %v2577 = vmul.f32 %v2477, %v1857
  %v2578 = vmul.f32 %v2478, %v1859
  %v2579 = vmul.f32 %v2479, %v1861
  %v2580 = vmul.f32 %v2480, %v1863
  %v2581 = vmul.f32 %v2481, %v1865
  %v2582 = vmul.f32 %v2482, %v1867
  %v2583 = vmul.f32 %v2483, %v1869
  %v2584 = vmul.f32 %v2484, %v1871
  %v2585 = vmul.f32 %v2485, %v1873
  %v2586 = vmul.f32 %v2486, %v1875
  %v2587 = vmul.f32 %v2487, %v1877
  %v2588 = vmul.f32 %v2488, %v1879
  %v2589 = vmul.f32 %v2489, %v1881
  %v2590 = vmul.f32 %v2490, %v1883
  %v2591 = vmul.f32 %v2491, %v1885
  %v2592 = vmul.f32 %v2492, %v1887
  %v2593 = vmul.f32 %v2493, %v1889
  %v2594 = vmul.f32 %v2494, %v1891
  %v2595 = vmul.f32 %v2495, %v1893
  %v2596 = vmul.f32 %v2496, %v1895
  %v2597 = vmul.f32 %v2497, %v1897
  %v2598 = vadd.f32 %v2498, 0.2548296
  %v2599 = vadd.f32 %v2499, 0.2548296
  %v2600 = vadd.f32 %v2500, 0.2548296
  %v2601 = vadd.f32 %v2501, 0.2548296
  %v2602 = vadd.f32 %v2502, 0.2548296
  %v2603 = vadd.f32 %v2503, 0.2548296
  %v2604 = vadd.f32 %v2504, 0.2548296
  %v2605 = vadd.f32 %v2505, 0.2548296
  %v2606 = vadd.f32 %v2506, 0.2548296
  %v2607 = vadd.f32 %v2507, 0.2548296
  %v2608 = vadd.f32 %v2508, 0.2548296
  %v2609 = vadd.f32 %v2509, 0.2548296
  %v2610 = vadd.f32 %v2510, 0.2548296
  %v2611 = vadd.f32 %v2511, 0.2548296
  %v2612 = vadd.f32 %v2512, 0.2548296
  %v2613 = vadd.f32 %v2513, 0.2548296
  %v2614 = vadd.f32 %v2514, 0.2548296
  %v2615 = vadd.f32 %v2515, 0.2548296
  %v2616 = vadd.f32 %v2516, 0.2548296
  %v2617 = vadd.f32 %v2517, 0.2548296
  %v2618 = vadd.f32 %v2518, 0.2548296
  %v2619 = vadd.f32 %v2519, 0.2548296
  %v2620 = vadd.f32 %v2520, 0.2548296
  %v2621 = vadd.f32 %v2521, 0.2548296
  %v2622 = vadd.f32 %v2522, 0.2548296
  %v2623 = vadd.f32 %v2523, 0.2548296
  %v2624 = vadd.f32 %v2524, 0.2548296
  %v2625 = vadd.f32 %v2525, 0.2548296
  %v2626 = vadd.f32 %v2526, 0.2548296
  %v2627 = vadd.f32 %v2527, 0.2548296
  %v2628 = vadd.f32 %v2528, 0.2548296
  %v2629 = vadd.f32 %v2529, 0.2548296
  %v2630 = vadd.f32 %v2530, 0.2548296
  %v2631 = vadd.f32 %v2531, 0.2548296
  %v2632 = vadd.f32 %v2532, 0.2548296
  %v2633 = vadd.f32 %v2533, 0.2548296
  %v2634 = vadd.f32 %v2534, 0.2548296
  %v2635 = vadd.f32 %v2535, 0.2548296
  %v2636 = vadd.f32 %v2536, 0.2548296
  %v2637 = vadd.f32 %v2537, 0.2548296
  %v2638 = vadd.f32 %v2538, 0.2548296
  %v2639 = vadd.f32 %v2539, 0.2548296
  %v2640 = vadd.f32 %v2540, 0.2548296
  %v2641 = vadd.f32 %v2541, 0.2548296
  %v2642 = vadd.f32 %v2542, 0.2548296
  %v2643 = vadd.f32 %v2543, 0.2548296
  %v2644 = vadd.f32 %v2544, 0.2548296
  %v2645 = vadd.f32 %v2545, 0.2548296
  %v2646 = vadd.f32 %v2546, 0.2548296
  %v2647 = vadd.f32 %v2547, 0.2548296
  %v2648 = vadd.f32 %v2548, 0.2548296
  %v2649 = vadd.f32 %v2549, 0.2548296
  %v2650 = vadd.f32 %v2550, 0.2548296
  %v2651 = vadd.f32 %v2551, 0.2548296
  %v2652 = vadd.f32 %v2552, 0.2548296
  %v2653 = vadd.f32 %v2553, 0.2548296
  %v2654 = vadd.f32 %v2554, 0.2548296
  %v2655 = vadd.f32 %v2555, 0.2548296
  %v2656 = vadd.f32 %v2556, 0.2548296
  %v2657 = vadd.f32 %v2557, 0.2548296
  %v2658 = vadd.f32 %v2558, 0.2548296
  %v2659 = vadd.f32 %v2559, 0.2548296
  %v2660 = vadd.f32 %v2560, 0.2548296
  %v2661 = vadd.f32 %v2561, 0.2548296
  %v2662 = vadd.f32 %v2562, 0.2548296
  %v2663 = vadd.f32 %v2563, 0.2548296
  %v2664 = vadd.f32 %v2564, 0.2548296
  %v2665 = vadd.f32 %v2565, 0.2548296
  %v2666 = vadd.f32 %v2566, 0.2548296
  %v2667 = vadd.f32 %v2567, 0.2548296
  %v2668 = vadd.f32 %v2568, 0.2548296
  %v2669 = vadd.f32 %v2569, 0.2548296
  %v2670 = vadd.f32 %v2570, 0.2548296
  %v2671 = vadd.f32 %v2571, 0.2548296
  %v2672 = vadd.f32 %v2572, 0.2548296
  %v2673 = vadd.f32 %v2573, 0.2548296
  %v2674 = vadd.f32 %v2574, 0.2548296
  %v2675 = vadd.f32 %v2575, 0.2548296
  %v2676 = vadd.f32 %v2576, 0.2548296
  %v2677 = vadd.f32 %v2577, 0.2548296
  %v2678 = vadd.f32 %v2578, 0.2548296
  %v2679 = vadd.f32 %v2579, 0.2548296
  %v2680 = vadd.f32 %v2580, 0.2548296
  %v2681 = vadd.f32 %v2581, 0.2548296
  %v2682 = vadd.f32 %v2582, 0.2548296
  %v2683 = vadd.f32 %v2583, 0.2548296
  %v2684 = vadd.f32 %v2584, 0.2548296
  %v2685 = vadd.f32 %v2585, 0.2548296
  %v2686 = vadd.f32 %v2586, 0.2548296
  %v2687 = vadd.f32 %v2587, 0.2548296
  %v2688 = vadd.f32 %v2588, 0.2548296
  %v2689 = vadd.f32 %v2589, 0.2548296
  %v2690 = vadd.f32 %v2590, 0.2548296
  %v2691 = vadd.f32 %v2591, 0.2548296
  %v2692 = vadd.f32 %v2592, 0.2548296
  %v2693 = vadd.f32 %v2593, 0.2548296
  %v2694 = vadd.f32 %v2594, 0.2548296
  %v2695 = vadd.f32 %v2595, 0.2548296
  %v2696 = vadd.f32 %v2596, 0.2548296
  %v2697 = vadd.f32 %v2597, 0.2548296
  %v2698 = vmul.f32 %v2598, %v1699
  %v2699 = vmul.f32 %v2599, %v1701
  %v2700 = vmul.f32 %v2600, %v1703
  %v2701 = vmul.f32 %v2601, %v1705
  %v2702 = vmul.f32 %v2602, %v1707
  %v2703 = vmul.f32 %v2603, %v1709
  %v2704 = vmul.f32 %v2604, %v1711
  %v2705 = vmul.f32 %v2605, %v1713
  %v2706 = vmul.f32 %v2606, %v1715
  %v2707 = vmul.f32 %v2607, %v1717
  %v2708 = vmul.f32 %v2608, %v1719
  %v2709 = vmul.f32 %v2609, %v1721
  %v2710 = vmul.f32 %v2610, %v1723
  %v2711 = vmul.f32 %v2611, %v1725
  %v2712 = vmul.f32 %v2612, %v1727
  %v2713 = vmul.f32 %v2613, %v1729
  %v2714 = vmul.f32 %v2614, %v1731
  %v2715 = vmul.f32 %v2615, %v1733
  %v2716 = vmul.f32 %v2616, %v1735
  %v2717 = vmul.f32 %v2617, %v1737
  %v2718 = vmul.f32 %v2618, %v1739
  %v2719 = vmul.f32 %v2619, %v1741
  %v2720 = vmul.f32 %v2620, %v1743
  %v2721 = vmul.f32 %v2621, %v1745
  %v2722 = vmul.f32 %v2622, %v1747
  %v2723 = vmul.f32 %v2623, %v1749
  %v2724 = vmul.f32 %v2624, %v1751
  %v2725 = vmul.f32 %v2625, %v1753
  %v2726 = vmul.f32 %v2626, %v1755
  %v2727 = vmul.f32 %v2627, %v1757
  %v2728 = vmul.f32 %v2628, %v1759
  %v2729 = vmul.f32 %v2629, %v1761
  %v2730 = vmul.f32 %v2630, %v1763
  %v2731 = vmul.f32 %v2631, %v1765
  %v2732 = vmul.f32 %v2632, %v1767
  %v2733 = vmul.f32 %v2633, %v1769
  %v2734 = vmul.f32 %v2634, %v1771
  %v2735 = vmul.f32 %v2635, %v1773
  %v2736 = vmul.f32 %v2636, %v1775
  %v2737 = vmul.f32 %v2637, %v1777
  %v2738 = vmul.f32 %v2638, %v1779
  %v2739 = vmul.f32 %v2639, %v1781
  %v2740 = vmul.f32 %v2640, %v1783
  %v2741 = vmul.f32 %v2641, %v1785
  %v2742 = vmul.f32 %v2642, %v1787
  %v2743 = vmul.f32 %v2643, %v1789
  %v2744 = vmul.f32 %v2644, %v1791
  %v2745 = vmul.f32 %v2645, %v1793
  %v2746 = vmul.f32 %v2646, %v1795
  %v2747 = vmul.f32 %v2647, %v1797
  %v2748 = vmul.f32 %v2648, %v1799
  %v2749 = vmul.f32 %v2649, %v1801
  %v2750 = vmul.f32 %v2650, %v1803
  %v2751 = vmul.f32 %v2651, %v1805
  %v2752 = vmul.f32 %v2652, %v1807
  %v2753 = vmul.f32 %v2653, %v1809
  %v2754 = vmul.f32 %v2654, %v1811
  %v2755 = vmul.f32 %v2655, %v1813
  %v2756 = vmul.f32 %v2656, %v1815
  %v2757 = vmul.f32 %v2657, %v1817
  %v2758 = vmul.f32 %v2658, %v1819
  %v2759 = vmul.f32 %v2659, %v1821
  %v2760 = vmul.f32 %v2660, %v1823
  %v2761 = vmul.f32 %v2661, %v1825
  %v2762 = vmul.f32 %v2662, %v1827
  %v2763 = vmul.f32 %v2663, %v1829
  %v2764 = vmul.f32 %v2664, %v1831
  %v2765 = vmul.f32 %v2665, %v1833
  %v2766 = vmul.f32 %v2666, %v1835
  %v2767 = vmul.f32 %v2667, %v1837
  %v2768 = vmul.f32 %v2668, %v1839
  %v2769 = vmul.f32 %v2669, %v1841
  %v2770 = vmul.f32 %v2670, %v1843
  %v2771 = vmul.f32 %v2671, %v1845
  %v2772 = vmul.f32 %v2672, %v1847
  %v2773 = vmul.f32 %v2673, %v1849
  %v2774 = vmul.f32 %v2674, %v1851
  %v2775 = vmul.f32 %v2675, %v1853
  %v2776 = vmul.f32 %v2676, %v1855
  %v2777 = vmul.f32 %v2677, %v1857
  %v2778 = vmul.f32 %v2678, %v1859
  %v2779 = vmul.f32 %v2679, %v1861
  %v2780 = vmul.f32 %v2680, %v1863
  %v2781 = vmul.f32 %v2681, %v1865
  %v2782 = vmul.f32 %v2682, %v1867
  %v2783 = vmul.f32 %v2683, %v1869
  %v2784 = vmul.f32 %v2684, %v1871
  %v2785 = vmul.f32 %v2685, %v1873
  %v2786 = vmul.f32 %v2686, %v1875
  %v2787 = vmul.f32 %v2687, %v1877
  %v2788 = vmul.f32 %v2688, %v1879
  %v2789 = vmul.f32 %v2689, %v1881
  %v2790 = vmul.f32 %v2690, %v1883
  %v2791 = vmul.f32 %v2691, %v1885
  %v2792 = vmul.f32 %v2692, %v1887
  %v2793 = vmul.f32 %v2693, %v1889
  %v2794 = vmul.f32 %v2694, %v1891
  %v2795 = vmul.f32 %v2695, %v1893
  %v2796 = vmul.f32 %v2696, %v1895
  %v2797 = vmul.f32 %v2697, %v1897
  %v2798 = vsub.f32 0.0, %v1398
  %v2799 = vsub.f32 0.0, %v1399
  %v2800 = vsub.f32 0.0, %v1400
  %v2801 = vsub.f32 0.0, %v1401
  %v2802 = vsub.f32 0.0, %v1402
  %v2803 = vsub.f32 0.0, %v1403
  %v2804 = vsub.f32 0.0, %v1404
  %v2805 = vsub.f32 0.0, %v1405
  %v2806 = vsub.f32 0.0, %v1406
  %v2807 = vsub.f32 0.0, %v1407
  %v2808 = vsub.f32 0.0, %v1408
  %v2809 = vsub.f32 0.0, %v1409
  %v2810 = vsub.f32 0.0, %v1410
  %v2811 = vsub.f32 0.0, %v1411
  %v2812 = vsub.f32 0.0, %v1412
  %v2813 = vsub.f32 0.0, %v1413
  %v2814 = vsub.f32 0.0, %v1414
  %v2815 = vsub.f32 0.0, %v1415
  %v2816 = vsub.f32 0.0, %v1416
  %v2817 = vsub.f32 0.0, %v1417
  %v2818 = vsub.f32 0.0, %v1418
  %v2819 = vsub.f32 0.0, %v1419
  %v2820 = vsub.f32 0.0, %v1420
  %v2821 = vsub.f32 0.0, %v1421
  %v2822 = vsub.f32 0.0, %v1422
  %v2823 = vsub.f32 0.0, %v1423
  %v2824 = vsub.f32 0.0, %v1424
  %v2825 = vsub.f32 0.0, %v1425
  %v2826 = vsub.f32 0.0, %v1426
  %v2827 = vsub.f32 0.0, %v1427
  %v2828 = vsub.f32 0.0, %v1428
  %v2829 = vsub.f32 0.0, %v1429
  %v2830 = vsub.f32 0.0, %v1430
  %v2831 = vsub.f32 0.0, %v1431
  %v2832 = vsub.f32 0.0, %v1432
  %v2833 = vsub.f32 0.0, %v1433
  %v2834 = vsub.f32 0.0, %v1434
  %v2835 = vsub.f32 0.0, %v1435
  %v2836 = vsub.f32 0.0, %v1436
  %v2837 = vsub.f32 0.0, %v1437
  %v2838 = vsub.f32 0.0, %v1438
  %v2839 = vsub.f32 0.0, %v1439
  %v2840 = vsub.f32 0.0, %v1440
  %v2841 = vsub.f32 0.0, %v1441
  %v2842 = vsub.f32 0.0, %v1442
  %v2843 = vsub.f32 0.0, %v1443
  %v2844 = vsub.f32 0.0, %v1444
  %v2845 = vsub.f32 0.0, %v1445
  %v2846 = vsub.f32 0.0, %v1446
  %v2847 = vsub.f32 0.0, %v1447
  %v2848 = vsub.f32 0.0, %v1448
  %v2849 = vsub.f32 0.0, %v1449
  %v2850 = vsub.f32 0.0, %v1450
  %v2851 = vsub.f32 0.0, %v1451
  %v2852 = vsub.f32 0.0, %v1452
  %v2853 = vsub.f32 0.0, %v1453
  %v2854 = vsub.f32 0.0, %v1454
  %v2855 = vsub.f32 0.0, %v1455
  %v2856 = vsub.f32 0.0, %v1456
  %v2857 = vsub.f32 0.0, %v1457
  %v2858 = vsub.f32 0.0, %v1458
  %v2859 = vsub.f32 0.0, %v1459
  %v2860 = vsub.f32 0.0, %v1460
  %v2861 = vsub.f32 0.0, %v1461
  %v2862 = vsub.f32 0.0, %v1462
  %v2863 = vsub.f32 0.0, %v1463
  %v2864 = vsub.f32 0.0, %v1464
  %v2865 = vsub.f32 0.0, %v1465
  %v2866 = vsub.f32 0.0, %v1466
  %v2867 = vsub.f32 0.0, %v1467
  %v2868 = vsub.f32 0.0, %v1468
  %v2869 = vsub.f32 0.0, %v1469
  %v2870 = vsub.f32 0.0, %v1470
  %v2871 = vsub.f32 0.0, %v1471
  %v2872 = vsub.f32 0.0, %v1472
  %v2873 = vsub.f32 0.0, %v1473
  %v2874 = vsub.f32 0.0, %v1474
  %v2875 = vsub.f32 0.0, %v1475
  %v2876 = vsub.f32 0.0, %v1476
  %v2877 = vsub.f32 0.0, %v1477
  %v2878 = vsub.f32 0.0, %v1478
  %v2879 = vsub.f32 0.0, %v1479
  %v2880 = vsub.f32 0.0, %v1480
  %v2881 = vsub.f32 0.0, %v1481
  %v2882 = vsub.f32 0.0, %v1482
  %v2883 = vsub.f32 0.0, %v1483
  %v2884 = vsub.f32 0.0, %v1484
  %v2885 = vsub.f32 0.0, %v1485
  %v2886 = vsub.f32 0.0, %v1486
  %v2887 = vsub.f32 0.0, %v1487
  %v2888 = vsub.f32 0.0, %v1488
  %v2889 = vsub.f32 0.0, %v1489
  %v2890 = vsub.f32 0.0, %v1490
  %v2891 = vsub.f32 0.0, %v1491
  %v2892 = vsub.f32 0.0, %v1492
  %v2893 = vsub.f32 0.0, %v1493
  %v2894 = vsub.f32 0.0, %v1494
  %v2895 = vsub.f32 0.0, %v1495
  %v2896 = vsub.f32 0.0, %v1496
  %v2897 = vsub.f32 0.0, %v1497
  %v2898 = vmul.f32 %v2798, %v1398
  %v2899 = vmul.f32 %v2799, %v1399
  %v2900 = vmul.f32 %v2800, %v1400
  %v2901 = vmul.f32 %v2801, %v1401
  %v2902 = vmul.f32 %v2802, %v1402
  %v2903 = vmul.f32 %v2803, %v1403
  %v2904 = vmul.f32 %v2804, %v1404
  %v2905 = vmul.f32 %v2805, %v1405
  %v2906 = vmul.f32 %v2806, %v1406
  %v2907 = vmul.f32 %v2807, %v1407
  %v2908 = vmul.f32 %v2808, %v1408
  %v2909 = vmul.f32 %v2809, %v1409
  %v2910 = vmul.f32 %v2810, %v1410
  %v2911 = vmul.f32 %v2811, %v1411
  %v2912 = vmul.f32 %v2812, %v1412
  %v2913 = vmul.f32 %v2813, %v1413
  %v2914 = vmul.f32 %v2814, %v1414
  %v2915 = vmul.f32 %v2815, %v1415
  %v2916 = vmul.f32 %v2816, %v1416
  %v2917 = vmul.f32 %v2817, %v1417
  %v2918 = vmul.f32 %v2818, %v1418
  %v2919 = vmul.f32 %v2819, %v1419
  %v2920 = vmul.f32 %v2820, %v1420
  %v2921 = vmul.f32 %v2821, %v1421
  %v2922 = vmul.f32 %v2822, %v1422
  %v2923 = vmul.f32 %v2823, %v1423
  %v2924 = vmul.f32 %v2824, %v1424
  %v2925 = vmul.f32 %v2825, %v1425
  %v2926 = vmul.f32 %v2826, %v1426
  %v2927 = vmul.f32 %v2827, %v1427
  %v2928 = vmul.f32 %v2828, %v1428
  %v2929 = vmul.f32 %v2829, %v1429
  %v2930 = vmul.f32 %v2830, %v1430
  %v2931 = vmul.f32 %v2831, %v1431
  %v2932 = vmul.f32 %v2832, %v1432
  %v2933 = vmul.f32 %v2833, %v1433
  %v2934 = vmul.f32 %v2834, %v1434
  %v2935 = vmul.f32 %v2835, %v1435
  %v2936 = vmul.f32 %v2836, %v1436
  %v2937 = vmul.f32 %v2837, %v1437
  %v2938 = vmul.f32 %v2838, %v1438
  %v2939 = vmul.f32 %v2839, %v1439
  %v2940 = vmul.f32 %v2840, %v1440
  %v2941 = vmul.f32 %v2841, %v1441
  %v2942 = vmul.f32 %v2842, %v1442
  %v2943 = vmul.f32 %v2843, %v1443
  %v2944 = vmul.f32 %v2844, %v1444
  %v2945 = vmul.f32 %v2845, %v1445
  %v2946 = vmul.f32 %v2846, %v1446
  %v2947 = vmul.f32 %v2847, %v1447
  %v2948 = vmul.f32 %v2848, %v1448
  %v2949 = vmul.f32 %v2849, %v1449
  %v2950 = vmul.f32 %v2850, %v1450
  %v2951 = vmul.f32 %v2851, %v1451
  %v2952 = vmul.f32 %v2852, %v1452
  %v2953 = vmul.f32 %v2853, %v1453
  %v2954 = vmul.f32 %v2854, %v1454
  %v2955 = vmul.f32 %v2855, %v1455
  %v2956 = vmul.f32 %v2856, %v1456
  %v2957 = vmul.f32 %v2857, %v1457
  %v2958 = vmul.f32 %v2858, %v1458
  %v2959 = vmul.f32 %v2859, %v1459
  %v2960 = vmul.f32 %v2860, %v1460
  %v2961 = vmul.f32 %v2861, %v1461
  %v2962 = vmul.f32 %v2862, %v1462
  %v2963 = vmul.f32 %v2863, %v1463
  %v2964 = vmul.f32 %v2864, %v1464
  %v2965 = vmul.f32 %v2865, %v1465
  %v2966 = vmul.f32 %v2866, %v1466
  %v2967 = vmul.f32 %v2867, %v1467
  %v2968 = vmul.f32 %v2868, %v1468
  %v2969 = vmul.f32 %v2869, %v1469
  %v2970 = vmul.f32 %v2870, %v1470
  %v2971 = vmul.f32 %v2871, %v1471
  %v2972 = vmul.f32 %v2872, %v1472
  %v2973 = vmul.f32 %v2873, %v1473
  %v2974 = vmul.f32 %v2874, %v1474
  %v2975 = vmul.f32 %v2875, %v1475
  %v2976 = vmul.f32 %v2876, %v1476
  %v2977 = vmul.f32 %v2877, %v1477
  %v2978 = vmul.f32 %v2878, %v1478
  %v2979 = vmul.f32 %v2879, %v1479
  %v2980 = vmul.f32 %v2880, %v1480
  %v2981 = vmul.f32 %v2881, %v1481
  %v2982 = vmul.f32 %v2882, %v1482
  %v2983 = vmul.f32 %v2883, %v1483
  %v2984 = vmul.f32 %v2884, %v1484
  %v2985 = vmul.f32 %v2885, %v1485
  %v2986 = vmul.f32 %v2886, %v1486
  %v2987 = vmul.f32 %v2887, %v1487
  %v2988 = vmul.f32 %v2888, %v1488
  %v2989 = vmul.f32 %v2889, %v1489
  %v2990 = vmul.f32 %v2890, %v1490
  %v2991 = vmul.f32 %v2891, %v1491
  %v2992 = vmul.f32 %v2892, %v1492
  %v2993 = vmul.f32 %v2893, %v1493
  %v2994 = vmul.f32 %v2894, %v1494
  %v2995 = vmul.f32 %v2895, %v1495
  %v2996 = vmul.f32 %v2896, %v1496
  %v2997 = vmul.f32 %v2897, %v1497
  %v2998 = vmul.f32 %v2898, 1.442695
  %v2999 = vpow.pop %v2998
  %v3000 = vmul.f32 %v2899, 1.442695
  %v3001 = vpow.pop %v3000
  %v3002 = vmul.f32 %v2900, 1.442695
  %v3003 = vpow.pop %v3002
  %v3004 = vmul.f32 %v2901, 1.442695
  %v3005 = vpow.pop %v3004
  %v3006 = vmul.f32 %v2902, 1.442695
  %v3007 = vpow.pop %v3006
  %v3008 = vmul.f32 %v2903, 1.442695
  %v3009 = vpow.pop %v3008
  %v3010 = vmul.f32 %v2904, 1.442695
  %v3011 = vpow.pop %v3010
  %v3012 = vmul.f32 %v2905, 1.442695
  %v3013 = vpow.pop %v3012
  %v3014 = vmul.f32 %v2906, 1.442695
  %v3015 = vpow.pop %v3014
  %v3016 = vmul.f32 %v2907, 1.442695
  %v3017 = vpow.pop %v3016
  %v3018 = vmul.f32 %v2908, 1.442695
  %v3019 = vpow.pop %v3018
  %v3020 = vmul.f32 %v2909, 1.442695
  %v3021 = vpow.pop %v3020
  %v3022 = vmul.f32 %v2910, 1.442695
  %v3023 = vpow.pop %v3022
  %v3024 = vmul.f32 %v2911, 1.442695
  %v3025 = vpow.pop %v3024
  %v3026 = vmul.f32 %v2912, 1.442695
  %v3027 = vpow.pop %v3026
  %v3028 = vmul.f32 %v2913, 1.442695
  %v3029 = vpow.pop %v3028
  %v3030 = vmul.f32 %v2914, 1.442695
  %v3031 = vpow.pop %v3030
  %v3032 = vmul.f32 %v2915, 1.442695
  %v3033 = vpow.pop %v3032
  %v3034 = vmul.f32 %v2916, 1.442695
  %v3035 = vpow.pop %v3034
  %v3036 = vmul.f32 %v2917, 1.442695
  %v3037 = vpow.pop %v3036
  %v3038 = vmul.f32 %v2918, 1.442695
  %v3039 = vpow.pop %v3038
  %v3040 = vmul.f32 %v2919, 1.442695
  %v3041 = vpow.pop %v3040
  %v3042 = vmul.f32 %v2920, 1.442695
  %v3043 = vpow.pop %v3042
  %v3044 = vmul.f32 %v2921, 1.442695
  %v3045 = vpow.pop %v3044
  %v3046 = vmul.f32 %v2922, 1.442695
  %v3047 = vpow.pop %v3046
  %v3048 = vmul.f32 %v2923, 1.442695
  %v3049 = vpow.pop %v3048
  %v3050 = vmul.f32 %v2924, 1.442695
  %v3051 = vpow.pop %v3050
  %v3052 = vmul.f32 %v2925, 1.442695
  %v3053 = vpow.pop %v3052
  %v3054 = vmul.f32 %v2926, 1.442695
  %v3055 = vpow.pop %v3054
  %v3056 = vmul.f32 %v2927, 1.442695
  %v3057 = vpow.pop %v3056
  %v3058 = vmul.f32 %v2928, 1.442695
  %v3059 = vpow.pop %v3058
  %v3060 = vmul.f32 %v2929, 1.442695
  %v3061 = vpow.pop %v3060
  %v3062 = vmul.f32 %v2930, 1.442695
  %v3063 = vpow.pop %v3062
  %v3064 = vmul.f32 %v2931, 1.442695
  %v3065 = vpow.pop %v3064
  %v3066 = vmul.f32 %v2932, 1.442695
  %v3067 = vpow.pop %v3066
  %v3068 = vmul.f32 %v2933, 1.442695
  %v3069 = vpow.pop %v3068
  %v3070 = vmul.f32 %v2934, 1.442695
  %v3071 = vpow.pop %v3070
  %v3072 = vmul.f32 %v2935, 1.442695
  %v3073 = vpow.pop %v3072
  %v3074 = vmul.f32 %v2936, 1.442695
  %v3075 = vpow.pop %v3074
  %v3076 = vmul.f32 %v2937, 1.442695
  %v3077 = vpow.pop %v3076
  %v3078 = vmul.f32 %v2938, 1.442695
  %v3079 = vpow.pop %v3078
  %v3080 = vmul.f32 %v2939, 1.442695
  %v3081 = vpow.pop %v3080
  %v3082 = vmul.f32 %v2940, 1.442695
  %v3083 = vpow.pop %v3082
  %v3084 = vmul.f32 %v2941, 1.442695
  %v3085 = vpow.pop %v3084
  %v3086 = vmul.f32 %v2942, 1.442695
  %v3087 = vpow.pop %v3086
  %v3088 = vmul.f32 %v2943, 1.442695
  %v3089 = vpow.pop %v3088
  %v3090 = vmul.f32 %v2944, 1.442695
  %v3091 = vpow.pop %v3090
  %v3092 = vmul.f32 %v2945, 1.442695
  %v3093 = vpow.pop %v3092
  %v3094 = vmul.f32 %v2946, 1.442695
  %v3095 = vpow.pop %v3094
  %v3096 = vmul.f32 %v2947, 1.442695
  %v3097 = vpow.pop %v3096
  %v3098 = vmul.f32 %v2948, 1.442695
  %v3099 = vpow.pop %v3098
  %v3100 = vmul.f32 %v2949, 1.442695
  %v3101 = vpow.pop %v3100
  %v3102 = vmul.f32 %v2950, 1.442695
  %v3103 = vpow.pop %v3102
  %v3104 = vmul.f32 %v2951, 1.442695
  %v3105 = vpow.pop %v3104
  %v3106 = vmul.f32 %v2952, 1.442695
  %v3107 = vpow.pop %v3106
  %v3108 = vmul.f32 %v2953, 1.442695
  %v3109 = vpow.pop %v3108
  %v3110 = vmul.f32 %v2954, 1.442695
  %v3111 = vpow.pop %v3110
  %v3112 = vmul.f32 %v2955, 1.442695
  %v3113 = vpow.pop %v3112
  %v3114 = vmul.f32 %v2956, 1.442695
  %v3115 = vpow.pop %v3114
  %v3116 = vmul.f32 %v2957, 1.442695
  %v3117 = vpow.pop %v3116
  %v3118 = vmul.f32 %v2958, 1.442695
  %v3119 = vpow.pop %v3118
  %v3120 = vmul.f32 %v2959, 1.442695
  %v3121 = vpow.pop %v3120
  %v3122 = vmul.f32 %v2960, 1.442695
  %v3123 = vpow.pop %v3122
  %v3124 = vmul.f32 %v2961, 1.442695
  %v3125 = vpow.pop %v3124
  %v3126 = vmul.f32 %v2962, 1.442695
  %v3127 = vpow.pop %v3126
  %v3128 = vmul.f32 %v2963, 1.442695
  %v3129 = vpow.pop %v3128
  %v3130 = vmul.f32 %v2964, 1.442695
  %v3131 = vpow.pop %v3130
  %v3132 = vmul.f32 %v2965, 1.442695
  %v3133 = vpow.pop %v3132
  %v3134 = vmul.f32 %v2966, 1.442695
  %v3135 = vpow.pop %v3134
  %v3136 = vmul.f32 %v2967, 1.442695
  %v3137 = vpow.pop %v3136
  %v3138 = vmul.f32 %v2968, 1.442695
  %v3139 = vpow.pop %v3138
  %v3140 = vmul.f32 %v2969, 1.442695
  %v3141 = vpow.pop %v3140
  %v3142 = vmul.f32 %v2970, 1.442695
  %v3143 = vpow.pop %v3142
  %v3144 = vmul.f32 %v2971, 1.442695
  %v3145 = vpow.pop %v3144
  %v3146 = vmul.f32 %v2972, 1.442695
  %v3147 = vpow.pop %v3146
  %v3148 = vmul.f32 %v2973, 1.442695
  %v3149 = vpow.pop %v3148
  %v3150 = vmul.f32 %v2974, 1.442695
  %v3151 = vpow.pop %v3150
  %v3152 = vmul.f32 %v2975, 1.442695
  %v3153 = vpow.pop %v3152
  %v3154 = vmul.f32 %v2976, 1.442695
  %v3155 = vpow.pop %v3154
  %v3156 = vmul.f32 %v2977, 1.442695
  %v3157 = vpow.pop %v3156
  %v3158 = vmul.f32 %v2978, 1.442695
  %v3159 = vpow.pop %v3158
  %v3160 = vmul.f32 %v2979, 1.442695
  %v3161 = vpow.pop %v3160
  %v3162 = vmul.f32 %v2980, 1.442695
  %v3163 = vpow.pop %v3162
  %v3164 = vmul.f32 %v2981, 1.442695
  %v3165 = vpow.pop %v3164
  %v3166 = vmul.f32 %v2982, 1.442695
  %v3167 = vpow.pop %v3166
  %v3168 = vmul.f32 %v2983, 1.442695
  %v3169 = vpow.pop %v3168
  %v3170 = vmul.f32 %v2984, 1.442695
  %v3171 = vpow.pop %v3170
  %v3172 = vmul.f32 %v2985, 1.442695
  %v3173 = vpow.pop %v3172
  %v3174 = vmul.f32 %v2986, 1.442695
  %v3175 = vpow.pop %v3174
  %v3176 = vmul.f32 %v2987, 1.442695
  %v3177 = vpow.pop %v3176
  %v3178 = vmul.f32 %v2988, 1.442695
  %v3179 = vpow.pop %v3178
  %v3180 = vmul.f32 %v2989, 1.442695
  %v3181 = vpow.pop %v3180
  %v3182 = vmul.f32 %v2990, 1.442695
  %v3183 = vpow.pop %v3182
  %v3184 = vmul.f32 %v2991, 1.442695
  %v3185 = vpow.pop %v3184
  %v3186 = vmul.f32 %v2992, 1.442695
  %v3187 = vpow.pop %v3186
  %v3188 = vmul.f32 %v2993, 1.442695
  %v3189 = vpow.pop %v3188
  %v3190 = vmul.f32 %v2994, 1.442695
  %v3191 = vpow.pop %v3190
  %v3192 = vmul.f32 %v2995, 1.442695
  %v3193 = vpow.pop %v3192
  %v3194 = vmul.f32 %v2996, 1.442695
  %v3195 = vpow.pop %v3194
  %v3196 = vmul.f32 %v2997, 1.442695
  %v3197 = vpow.pop %v3196
  %v3198 = vmul.f32 %v2698, %v2999
  %v3199 = vmul.f32 %v2699, %v3001
  %v3200 = vmul.f32 %v2700, %v3003
  %v3201 = vmul.f32 %v2701, %v3005
  %v3202 = vmul.f32 %v2702, %v3007
  %v3203 = vmul.f32 %v2703, %v3009
  %v3204 = vmul.f32 %v2704, %v3011
  %v3205 = vmul.f32 %v2705, %v3013
  %v3206 = vmul.f32 %v2706, %v3015
  %v3207 = vmul.f32 %v2707, %v3017
  %v3208 = vmul.f32 %v2708, %v3019
  %v3209 = vmul.f32 %v2709, %v3021
  %v3210 = vmul.f32 %v2710, %v3023
  %v3211 = vmul.f32 %v2711, %v3025
  %v3212 = vmul.f32 %v2712, %v3027
  %v3213 = vmul.f32 %v2713, %v3029
  %v3214 = vmul.f32 %v2714, %v3031
  %v3215 = vmul.f32 %v2715, %v3033
  %v3216 = vmul.f32 %v2716, %v3035
  %v3217 = vmul.f32 %v2717, %v3037
  %v3218 = vmul.f32 %v2718, %v3039
  %v3219 = vmul.f32 %v2719, %v3041
  %v3220 = vmul.f32 %v2720, %v3043
  %v3221 = vmul.f32 %v2721, %v3045
  %v3222 = vmul.f32 %v2722, %v3047
  %v3223 = vmul.f32 %v2723, %v3049
  %v3224 = vmul.f32 %v2724, %v3051
  %v3225 = vmul.f32 %v2725, %v3053
  %v3226 = vmul.f32 %v2726, %v3055
  %v3227 = vmul.f32 %v2727, %v3057
  %v3228 = vmul.f32 %v2728, %v3059
  %v3229 = vmul.f32 %v2729, %v3061
  %v3230 = vmul.f32 %v2730, %v3063
  %v3231 = vmul.f32 %v2731, %v3065
  %v3232 = vmul.f32 %v2732, %v3067
  %v3233 = vmul.f32 %v2733, %v3069
  %v3234 = vmul.f32 %v2734, %v3071
  %v3235 = vmul.f32 %v2735, %v3073
  %v3236 = vmul.f32 %v2736, %v3075
  %v3237 = vmul.f32 %v2737, %v3077
  %v3238 = vmul.f32 %v2738, %v3079
  %v3239 = vmul.f32 %v2739, %v3081
  %v3240 = vmul.f32 %v2740, %v3083
  %v3241 = vmul.f32 %v2741, %v3085
  %v3242 = vmul.f32 %v2742, %v3087
  %v3243 = vmul.f32 %v2743, %v3089
  %v3244 = vmul.f32 %v2744, %v3091
  %v3245 = vmul.f32 %v2745, %v3093
  %v3246 = vmul.f32 %v2746, %v3095
  %v3247 = vmul.f32 %v2747, %v3097
  %v3248 = vmul.f32 %v2748, %v3099
  %v3249 = vmul.f32 %v2749, %v3101
  %v3250 = vmul.f32 %v2750, %v3103
  %v3251 = vmul.f32 %v2751, %v3105
  %v3252 = vmul.f32 %v2752, %v3107
  %v3253 = vmul.f32 %v2753, %v3109
  %v3254 = vmul.f32 %v2754, %v3111
  %v3255 = vmul.f32 %v2755, %v3113
  %v3256 = vmul.f32 %v2756, %v3115
  %v3257 = vmul.f32 %v2757, %v3117
  %v3258 = vmul.f32 %v2758, %v3119
  %v3259 = vmul.f32 %v2759, %v3121
  %v3260 = vmul.f32 %v2760, %v3123
  %v3261 = vmul.f32 %v2761, %v3125
  %v3262 = vmul.f32 %v2762, %v3127
  %v3263 = vmul.f32 %v2763, %v3129
  %v3264 = vmul.f32 %v2764, %v3131
  %v3265 = vmul.f32 %v2765, %v3133
  %v3266 = vmul.f32 %v2766, %v3135
  %v3267 = vmul.f32 %v2767, %v3137
  %v3268 = vmul.f32 %v2768, %v3139
  %v3269 = vmul.f32 %v2769, %v3141
  %v3270 = vmul.f32 %v2770, %v3143
  %v3271 = vmul.f32 %v2771, %v3145
  %v3272 = vmul.f32 %v2772, %v3147
  %v3273 = vmul.f32 %v2773, %v3149
  %v3274 = vmul.f32 %v2774, %v3151
  %v3275 = vmul.f32 %v2775, %v3153
  %v3276 = vmul.f32 %v2776, %v3155
  %v3277 = vmul.f32 %v2777, %v3157
  %v3278 = vmul.f32 %v2778, %v3159
  %v3279 = vmul.f32 %v2779, %v3161
  %v3280 = vmul.f32 %v2780, %v3163
  %v3281 = vmul.f32 %v2781, %v3165
  %v3282 = vmul.f32 %v2782, %v3167
  %v3283 = vmul.f32 %v2783, %v3169
  %v3284 = vmul.f32 %v2784, %v3171
  %v3285 = vmul.f32 %v2785, %v3173
  %v3286 = vmul.f32 %v2786, %v3175
  %v3287 = vmul.f32 %v2787, %v3177
  %v3288 = vmul.f32 %v2788, %v3179
  %v3289 = vmul.f32 %v2789, %v3181
  %v3290 = vmul.f32 %v2790, %v3183
  %v3291 = vmul.f32 %v2791, %v3185
  %v3292 = vmul.f32 %v2792, %v3187
  %v3293 = vmul.f32 %v2793, %v3189
  %v3294 = vmul.f32 %v2794, %v3191
  %v3295 = vmul.f32 %v2795, %v3193
  %v3296 = vmul.f32 %v2796, %v3195
  %v3297 = vmul.f32 %v2797, %v3197
  %v3298 = vsub.f32 1.0, %v3198
  %v3299 = vsub.f32 1.0, %v3199
  %v3300 = vsub.f32 1.0, %v3200
  %v3301 = vsub.f32 1.0, %v3201
  %v3302 = vsub.f32 1.0, %v3202
  %v3303 = vsub.f32 1.0, %v3203
  %v3304 = vsub.f32 1.0, %v3204
  %v3305 = vsub.f32 1.0, %v3205
  %v3306 = vsub.f32 1.0, %v3206
  %v3307 = vsub.f32 1.0, %v3207
  %v3308 = vsub.f32 1.0, %v3208
  %v3309 = vsub.f32 1.0, %v3209
  %v3310 = vsub.f32 1.0, %v3210
  %v3311 = vsub.f32 1.0, %v3211
  %v3312 = vsub.f32 1.0, %v3212
  %v3313 = vsub.f32 1.0, %v3213
  %v3314 = vsub.f32 1.0, %v3214
  %v3315 = vsub.f32 1.0, %v3215
  %v3316 = vsub.f32 1.0, %v3216
  %v3317 = vsub.f32 1.0, %v3217
  %v3318 = vsub.f32 1.0, %v3218
  %v3319 = vsub.f32 1.0, %v3219
  %v3320 = vsub.f32 1.0, %v3220
  %v3321 = vsub.f32 1.0, %v3221
  %v3322 = vsub.f32 1.0, %v3222
  %v3323 = vsub.f32 1.0, %v3223
  %v3324 = vsub.f32 1.0, %v3224
  %v3325 = vsub.f32 1.0, %v3225
  %v3326 = vsub.f32 1.0, %v3226
  %v3327 = vsub.f32 1.0, %v3227
  %v3328 = vsub.f32 1.0, %v3228
  %v3329 = vsub.f32 1.0, %v3229
  %v3330 = vsub.f32 1.0, %v3230
  %v3331 = vsub.f32 1.0, %v3231
  %v3332 = vsub.f32 1.0, %v3232
  %v3333 = vsub.f32 1.0, %v3233
  %v3334 = vsub.f32 1.0, %v3234
  %v3335 = vsub.f32 1.0, %v3235
  %v3336 = vsub.f32 1.0, %v3236
  %v3337 = vsub.f32 1.0, %v3237
  %v3338 = vsub.f32 1.0, %v3238
  %v3339 = vsub.f32 1.0, %v3239
  %v3340 = vsub.f32 1.0, %v3240
  %v3341 = vsub.f32 1.0, %v3241
  %v3342 = vsub.f32 1.0, %v3242
  %v3343 = vsub.f32 1.0, %v3243
  %v3344 = vsub.f32 1.0, %v3244
  %v3345 = vsub.f32 1.0, %v3245
  %v3346 = vsub.f32 1.0, %v3246
  %v3347 = vsub.f32 1.0, %v3247
  %v3348 = vsub.f32 1.0, %v3248
  %v3349 = vsub.f32 1.0, %v3249
  %v3350 = vsub.f32 1.0, %v3250
  %v3351 = vsub.f32 1.0, %v3251
  %v3352 = vsub.f32 1.0, %v3252
  %v3353 = vsub.f32 1.0, %v3253
  %v3354 = vsub.f32 1.0, %v3254
  %v3355 = vsub.f32 1.0, %v3255
  %v3356 = vsub.f32 1.0, %v3256
  %v3357 = vsub.f32 1.0, %v3257
  %v3358 = vsub.f32 1.0, %v3258
  %v3359 = vsub.f32 1.0, %v3259
  %v3360 = vsub.f32 1.0, %v3260
  %v3361 = vsub.f32 1.0, %v3261
  %v3362 = vsub.f32 1.0, %v3262
  %v3363 = vsub.f32 1.0, %v3263
  %v3364 = vsub.f32 1.0, %v3264
  %v3365 = vsub.f32 1.0, %v3265
  %v3366 = vsub.f32 1.0, %v3266
  %v3367 = vsub.f32 1.0, %v3267
  %v3368 = vsub.f32 1.0, %v3268
  %v3369 = vsub.f32 1.0, %v3269
  %v3370 = vsub.f32 1.0, %v3270
  %v3371 = vsub.f32 1.0, %v3271
  %v3372 = vsub.f32 1.0, %v3272
  %v3373 = vsub.f32 1.0, %v3273
  %v3374 = vsub.f32 1.0, %v3274
  %v3375 = vsub.f32 1.0, %v3275
  %v3376 = vsub.f32 1.0, %v3276
  %v3377 = vsub.f32 1.0, %v3277
  %v3378 = vsub.f32 1.0, %v3278
  %v3379 = vsub.f32 1.0, %v3279
  %v3380 = vsub.f32 1.0, %v3280
  %v3381 = vsub.f32 1.0, %v3281
  %v3382 = vsub.f32 1.0, %v3282
  %v3383 = vsub.f32 1.0, %v3283
  %v3384 = vsub.f32 1.0, %v3284
  %v3385 = vsub.f32 1.0, %v3285
  %v3386 = vsub.f32 1.0, %v3286
  %v3387 = vsub.f32 1.0, %v3287
  %v3388 = vsub.f32 1.0, %v3288
  %v3389 = vsub.f32 1.0, %v3289
  %v3390 = vsub.f32 1.0, %v3290
  %v3391 = vsub.f32 1.0, %v3291
  %v3392 = vsub.f32 1.0, %v3292
  %v3393 = vsub.f32 1.0, %v3293
  %v3394 = vsub.f32 1.0, %v3294
  %v3395 = vsub.f32 1.0, %v3295
  %v3396 = vsub.f32 1.0, %v3296
  %v3397 = vsub.f32 1.0, %v3297
  %v3398 = vmul.f32 %v1298, %v3298
  %v3399 = vmul.f32 %v1299, %v3299
  %v3400 = vmul.f32 %v1300, %v3300
  %v3401 = vmul.f32 %v1301, %v3301
  %v3402 = vmul.f32 %v1302, %v3302
  %v3403 = vmul.f32 %v1303, %v3303
  %v3404 = vmul.f32 %v1304, %v3304
  %v3405 = vmul.f32 %v1305, %v3305
  %v3406 = vmul.f32 %v1306, %v3306
  %v3407 = vmul.f32 %v1307, %v3307
  %v3408 = vmul.f32 %v1308, %v3308
  %v3409 = vmul.f32 %v1309, %v3309
  %v3410 = vmul.f32 %v1310, %v3310
  %v3411 = vmul.f32 %v1311, %v3311
  %v3412 = vmul.f32 %v1312, %v3312
  %v3413 = vmul.f32 %v1313, %v3313
  %v3414 = vmul.f32 %v1314, %v3314
  %v3415 = vmul.f32 %v1315, %v3315
  %v3416 = vmul.f32 %v1316, %v3316
  %v3417 = vmul.f32 %v1317, %v3317
  %v3418 = vmul.f32 %v1318, %v3318
  %v3419 = vmul.f32 %v1319, %v3319
  %v3420 = vmul.f32 %v1320, %v3320
  %v3421 = vmul.f32 %v1321, %v3321
  %v3422 = vmul.f32 %v1322, %v3322
  %v3423 = vmul.f32 %v1323, %v3323
  %v3424 = vmul.f32 %v1324, %v3324
  %v3425 = vmul.f32 %v1325, %v3325
  %v3426 = vmul.f32 %v1326, %v3326
  %v3427 = vmul.f32 %v1327, %v3327
  %v3428 = vmul.f32 %v1328, %v3328
  %v3429 = vmul.f32 %v1329, %v3329
  %v3430 = vmul.f32 %v1330, %v3330
  %v3431 = vmul.f32 %v1331, %v3331
  %v3432 = vmul.f32 %v1332, %v3332
  %v3433 = vmul.f32 %v1333, %v3333
  %v3434 = vmul.f32 %v1334, %v3334
  %v3435 = vmul.f32 %v1335, %v3335
  %v3436 = vmul.f32 %v1336, %v3336
  %v3437 = vmul.f32 %v1337, %v3337
  %v3438 = vmul.f32 %v1338, %v3338
  %v3439 = vmul.f32 %v1339, %v3339
  %v3440 = vmul.f32 %v1340, %v3340
  %v3441 = vmul.f32 %v1341, %v3341
  %v3442 = vmul.f32 %v1342, %v3342
  %v3443 = vmul.f32 %v1343, %v3343
  %v3444 = vmul.f32 %v1344, %v3344
  %v3445 = vmul.f32 %v1345, %v3345
  %v3446 = vmul.f32 %v1346, %v3346
  %v3447 = vmul.f32 %v1347, %v3347
  %v3448 = vmul.f32 %v1348, %v3348
  %v3449 = vmul.f32 %v1349, %v3349
  %v3450 = vmul.f32 %v1350, %v3350
  %v3451 = vmul.f32 %v1351, %v3351
  %v3452 = vmul.f32 %v1352, %v3352
  %v3453 = vmul.f32 %v1353, %v3353
  %v3454 = vmul.f32 %v1354, %v3354
  %v3455 = vmul.f32 %v1355, %v3355
  %v3456 = vmul.f32 %v1356, %v3356
  %v3457 = vmul.f32 %v1357, %v3357
  %v3458 = vmul.f32 %v1358, %v3358
  %v3459 = vmul.f32 %v1359, %v3359
  %v3460 = vmul.f32 %v1360, %v3360
  %v3461 = vmul.f32 %v1361, %v3361
  %v3462 = vmul.f32 %v1362, %v3362
  %v3463 = vmul.f32 %v1363, %v3363
  %v3464 = vmul.f32 %v1364, %v3364
  %v3465 = vmul.f32 %v1365, %v3365
  %v3466 = vmul.f32 %v1366, %v3366
  %v3467 = vmul.f32 %v1367, %v3367
  %v3468 = vmul.f32 %v1368, %v3368
  %v3469 = vmul.f32 %v1369, %v3369
  %v3470 = vmul.f32 %v1370, %v3370
  %v3471 = vmul.f32 %v1371, %v3371
  %v3472 = vmul.f32 %v1372, %v3372
  %v3473 = vmul.f32 %v1373, %v3373
  %v3474 = vmul.f32 %v1374, %v3374
  %v3475 = vmul.f32 %v1375, %v3375
  %v3476 = vmul.f32 %v1376, %v3376
  %v3477 = vmul.f32 %v1377, %v3377
  %v3478 = vmul.f32 %v1378, %v3378
  %v3479 = vmul.f32 %v1379, %v3379
  %v3480 = vmul.f32 %v1380, %v3380
  %v3481 = vmul.f32 %v1381, %v3381
  %v3482 = vmul.f32 %v1382, %v3382
  %v3483 = vmul.f32 %v1383, %v3383
  %v3484 = vmul.f32 %v1384, %v3384
  %v3485 = vmul.f32 %v1385, %v3385
  %v3486 = vmul.f32 %v1386, %v3386
  %v3487 = vmul.f32 %v1387, %v3387
  %v3488 = vmul.f32 %v1388, %v3388
  %v3489 = vmul.f32 %v1389, %v3389
  %v3490 = vmul.f32 %v1390, %v3390
  %v3491 = vmul.f32 %v1391, %v3391
  %v3492 = vmul.f32 %v1392, %v3392
  %v3493 = vmul.f32 %v1393, %v3393
  %v3494 = vmul.f32 %v1394, %v3394
  %v3495 = vmul.f32 %v1395, %v3395
  %v3496 = vmul.f32 %v1396, %v3396
  %v3497 = vmul.f32 %v1397, %v3397
  %v3498 = vadd.f32 %v3398, 1.0
  %v3499 = vadd.f32 %v3399, 1.0
  %v3500 = vadd.f32 %v3400, 1.0
  %v3501 = vadd.f32 %v3401, 1.0
  %v3502 = vadd.f32 %v3402, 1.0
  %v3503 = vadd.f32 %v3403, 1.0
  %v3504 = vadd.f32 %v3404, 1.0
  %v3505 = vadd.f32 %v3405, 1.0
  %v3506 = vadd.f32 %v3406, 1.0
  %v3507 = vadd.f32 %v3407, 1.0
  %v3508 = vadd.f32 %v3408, 1.0
  %v3509 = vadd.f32 %v3409, 1.0
  %v3510 = vadd.f32 %v3410, 1.0
  %v3511 = vadd.f32 %v3411, 1.0
  %v3512 = vadd.f32 %v3412, 1.0
  %v3513 = vadd.f32 %v3413, 1.0
  %v3514 = vadd.f32 %v3414, 1.0
  %v3515 = vadd.f32 %v3415, 1.0
  %v3516 = vadd.f32 %v3416, 1.0
  %v3517 = vadd.f32 %v3417, 1.0
  %v3518 = vadd.f32 %v3418, 1.0
  %v3519 = vadd.f32 %v3419, 1.0
  %v3520 = vadd.f32 %v3420, 1.0
  %v3521 = vadd.f32 %v3421, 1.0
  %v3522 = vadd.f32 %v3422, 1.0
  %v3523 = vadd.f32 %v3423, 1.0
  %v3524 = vadd.f32 %v3424, 1.0
  %v3525 = vadd.f32 %v3425, 1.0
  %v3526 = vadd.f32 %v3426, 1.0
  %v3527 = vadd.f32 %v3427, 1.0
  %v3528 = vadd.f32 %v3428, 1.0
  %v3529 = vadd.f32 %v3429, 1.0
  %v3530 = vadd.f32 %v3430, 1.0
  %v3531 = vadd.f32 %v3431, 1.0
  %v3532 = vadd.f32 %v3432, 1.0
  %v3533 = vadd.f32 %v3433, 1.0
  %v3534 = vadd.f32 %v3434, 1.0
  %v3535 = vadd.f32 %v3435, 1.0
  %v3536 = vadd.f32 %v3436, 1.0
  %v3537 = vadd.f32 %v3437, 1.0
  %v3538 = vadd.f32 %v3438, 1.0
  %v3539 = vadd.f32 %v3439, 1.0
  %v3540 = vadd.f32 %v3440, 1.0
  %v3541 = vadd.f32 %v3441, 1.0
  %v3542 = vadd.f32 %v3442, 1.0
  %v3543 = vadd.f32 %v3443, 1.0
  %v3544 = vadd.f32 %v3444, 1.0
  %v3545 = vadd.f32 %v3445, 1.0
  %v3546 = vadd.f32 %v3446, 1.0
  %v3547 = vadd.f32 %v3447, 1.0
  %v3548 = vadd.f32 %v3448, 1.0
  %v3549 = vadd.f32 %v3449, 1.0
  %v3550 = vadd.f32 %v3450, 1.0
  %v3551 = vadd.f32 %v3451, 1.0
  %v3552 = vadd.f32 %v3452, 1.0
  %v3553 = vadd.f32 %v3453, 1.0
  %v3554 = vadd.f32 %v3454, 1.0
  %v3555 = vadd.f32 %v3455, 1.0
  %v3556 = vadd.f32 %v3456, 1.0
  %v3557 = vadd.f32 %v3457, 1.0
  %v3558 = vadd.f32 %v3458, 1.0
  %v3559 = vadd.f32 %v3459, 1.0
  %v3560 = vadd.f32 %v3460, 1.0
  %v3561 = vadd.f32 %v3461, 1.0
  %v3562 = vadd.f32 %v3462, 1.0
  %v3563 = vadd.f32 %v3463, 1.0
  %v3564 = vadd.f32 %v3464, 1.0
  %v3565 = vadd.f32 %v3465, 1.0
  %v3566 = vadd.f32 %v3466, 1.0
  %v3567 = vadd.f32 %v3467, 1.0
  %v3568 = vadd.f32 %v3468, 1.0
  %v3569 = vadd.f32 %v3469, 1.0
  %v3570 = vadd.f32 %v3470, 1.0
  %v3571 = vadd.f32 %v3471, 1.0
  %v3572 = vadd.f32 %v3472, 1.0
  %v3573 = vadd.f32 %v3473, 1.0
  %v3574 = vadd.f32 %v3474, 1.0
  %v3575 = vadd.f32 %v3475, 1.0
  %v3576 = vadd.f32 %v3476, 1.0
  %v3577 = vadd.f32 %v3477, 1.0
  %v3578 = vadd.f32 %v3478, 1.0
  %v3579 = vadd.f32 %v3479, 1.0
  %v3580 = vadd.f32 %v3480, 1.0
  %v3581 = vadd.f32 %v3481, 1.0
  %v3582 = vadd.f32 %v3482, 1.0
  %v3583 = vadd.f32 %v3483, 1.0
  %v3584 = vadd.f32 %v3484, 1.0
  %v3585 = vadd.f32 %v3485, 1.0
  %v3586 = vadd.f32 %v3486, 1.0
  %v3587 = vadd.f32 %v3487, 1.0
  %v3588 = vadd.f32 %v3488, 1.0
  %v3589 = vadd.f32 %v3489, 1.0
  %v3590 = vadd.f32 %v3490, 1.0
  %v3591 = vadd.f32 %v3491, 1.0
  %v3592 = vadd.f32 %v3492, 1.0
  %v3593 = vadd.f32 %v3493, 1.0
  %v3594 = vadd.f32 %v3494, 1.0
  %v3595 = vadd.f32 %v3495, 1.0
  %v3596 = vadd.f32 %v3496, 1.0
  %v3597 = vadd.f32 %v3497, 1.0
  %v3598 = vmul.f32 %v997, %v3498
  %v3599 = vmul.f32 %v998, %v3499
  %v3600 = vmul.f32 %v999, %v3500
  %v3601 = vmul.f32 %v1000, %v3501
  %v3602 = vmul.f32 %v1001, %v3502
  %v3603 = vmul.f32 %v1002, %v3503
  %v3604 = vmul.f32 %v1003, %v3504
  %v3605 = vmul.f32 %v1004, %v3505
  %v3606 = vmul.f32 %v1005, %v3506
  %v3607 = vmul.f32 %v1006, %v3507
  %v3608 = vmul.f32 %v1007, %v3508
  %v3609 = vmul.f32 %v1008, %v3509
  %v3610 = vmul.f32 %v1009, %v3510
  %v3611 = vmul.f32 %v1010, %v3511
  %v3612 = vmul.f32 %v1011, %v3512
  %v3613 = vmul.f32 %v1012, %v3513
  %v3614 = vmul.f32 %v1013, %v3514
  %v3615 = vmul.f32 %v1014, %v3515
  %v3616 = vmul.f32 %v1015, %v3516
  %v3617 = vmul.f32 %v1016, %v3517
  %v3618 = vmul.f32 %v1017, %v3518
  %v3619 = vmul.f32 %v1018, %v3519
  %v3620 = vmul.f32 %v1019, %v3520
  %v3621 = vmul.f32 %v1020, %v3521
  %v3622 = vmul.f32 %v1021, %v3522
  %v3623 = vmul.f32 %v1022, %v3523
  %v3624 = vmul.f32 %v1023, %v3524
  %v3625 = vmul.f32 %v1024, %v3525
  %v3626 = vmul.f32 %v1025, %v3526
  %v3627 = vmul.f32 %v1026, %v3527
  %v3628 = vmul.f32 %v1027, %v3528
  %v3629 = vmul.f32 %v1028, %v3529
  %v3630 = vmul.f32 %v1029, %v3530
  %v3631 = vmul.f32 %v1030, %v3531
  %v3632 = vmul.f32 %v1031, %v3532
  %v3633 = vmul.f32 %v1032, %v3533
  %v3634 = vmul.f32 %v1033, %v3534
  %v3635 = vmul.f32 %v1034, %v3535
  %v3636 = vmul.f32 %v1035, %v3536
  %v3637 = vmul.f32 %v1036, %v3537
  %v3638 = vmul.f32 %v1037, %v3538
  %v3639 = vmul.f32 %v1038, %v3539
  %v3640 = vmul.f32 %v1039, %v3540
  %v3641 = vmul.f32 %v1040, %v3541
  %v3642 = vmul.f32 %v1041, %v3542
  %v3643 = vmul.f32 %v1042, %v3543
  %v3644 = vmul.f32 %v1043, %v3544
  %v3645 = vmul.f32 %v1044, %v3545
  %v3646 = vmul.f32 %v1045, %v3546
  %v3647 = vmul.f32 %v1046, %v3547
  %v3648 = vmul.f32 %v1047, %v3548
  %v3649 = vmul.f32 %v1048, %v3549
  %v3650 = vmul.f32 %v1049, %v3550
  %v3651 = vmul.f32 %v1050, %v3551
  %v3652 = vmul.f32 %v1051, %v3552
  %v3653 = vmul.f32 %v1052, %v3553
  %v3654 = vmul.f32 %v1053, %v3554
  %v3655 = vmul.f32 %v1054, %v3555
  %v3656 = vmul.f32 %v1055, %v3556
  %v3657 = vmul.f32 %v1056, %v3557
  %v3658 = vmul.f32 %v1057, %v3558
  %v3659 = vmul.f32 %v1058, %v3559
  %v3660 = vmul.f32 %v1059, %v3560
  %v3661 = vmul.f32 %v1060, %v3561
  %v3662 = vmul.f32 %v1061, %v3562
  %v3663 = vmul.f32 %v1062, %v3563
  %v3664 = vmul.f32 %v1063, %v3564
  %v3665 = vmul.f32 %v1064, %v3565
  %v3666 = vmul.f32 %v1065, %v3566
  %v3667 = vmul.f32 %v1066, %v3567
  %v3668 = vmul.f32 %v1067, %v3568
  %v3669 = vmul.f32 %v1068, %v3569
  %v3670 = vmul.f32 %v1069, %v3570
  %v3671 = vmul.f32 %v1070, %v3571
  %v3672 = vmul.f32 %v1071, %v3572
  %v3673 = vmul.f32 %v1072, %v3573
  %v3674 = vmul.f32 %v1073, %v3574
  %v3675 = vmul.f32 %v1074, %v3575
  %v3676 = vmul.f32 %v1075, %v3576
  %v3677 = vmul.f32 %v1076, %v3577
  %v3678 = vmul.f32 %v1077, %v3578
  %v3679 = vmul.f32 %v1078, %v3579
  %v3680 = vmul.f32 %v1079, %v3580
  %v3681 = vmul.f32 %v1080, %v3581
  %v3682 = vmul.f32 %v1081, %v3582
  %v3683 = vmul.f32 %v1082, %v3583
  %v3684 = vmul.f32 %v1083, %v3584
  %v3685 = vmul.f32 %v1084, %v3585
  %v3686 = vmul.f32 %v1085, %v3586
  %v3687 = vmul.f32 %v1086, %v3587
  %v3688 = vmul.f32 %v1087, %v3588
  %v3689 = vmul.f32 %v1088, %v3589
  %v3690 = vmul.f32 %v1089, %v3590
  %v3691 = vmul.f32 %v1090, %v3591
  %v3692 = vmul.f32 %v1091, %v3592
  %v3693 = vmul.f32 %v1092, %v3593
  %v3694 = vmul.f32 %v1093, %v3594
  %v3695 = vmul.f32 %v1094, %v3595
  %v3696 = vmul.f32 %v1095, %v3596
  %v3697 = vmul.f32 %v1096, %v3597
  %v3698 = vld [vmem:[%s3] sm:$0xff]
  %v3699 = vld [vmem:[%s3 + $0x8] sm:$0xff]
  %v3700 = vld [vmem:[%s3 + $0x10] sm:$0xff]
  %v3701 = vld [vmem:[%s3 + $0x18] sm:$0xff]
  %v3702 = vld [vmem:[%s3 + $0x20] sm:$0xff]
  %v3703 = vld [vmem:[%s3 + $0x28] sm:$0xff]
  %v3704 = vld [vmem:[%s3 + $0x30] sm:$0xff]
  %v3705 = vld [vmem:[%s3 + $0x38] sm:$0xff]
  %v3706 = vld [vmem:[%s3 + $0x40] sm:$0xff]
  %v3707 = vld [vmem:[%s3 + $0x48] sm:$0xff]
  %v3708 = vld [vmem:[%s3 + $0x50] sm:$0xff]
  %v3709 = vld [vmem:[%s3 + $0x58] sm:$0xff]
  %v3710 = vld [vmem:[%s3 + $0x60] sm:$0xff]
  %v3711 = vld [vmem:[%s3 + $0x68] sm:$0xff]
  %v3712 = vld [vmem:[%s3 + $0x70] sm:$0xff]
  %v3713 = vld [vmem:[%s3 + $0x78] sm:$0xff]
  %v3714 = vld [vmem:[%s4] sm:$0x1]
  %v3716 = vlaneseq
  %v3717 = vshrl.u32 %v3716, 7
  %v3718 = vsub.s32 0, %v3717
  %v3719 = vrot.slane %v3714, %v3718
  %3721 = vmatprep.subr.mxu0 0.0
  %3722 = vmatpush1.msra.mxu0 %v3698
  %3723 = vmatprep.subr.mxu0 0.0
  %3724 = vmatpush1.msra.mxu0 %v3699
  %3725 = vmatprep.subr.mxu0 0.0
  %3726 = vmatpush1.msra.mxu0 %v3700
  %3727 = vmatprep.subr.mxu0 0.0
  %3728 = vmatpush1.msra.mxu0 %v3701
  %3729 = vmatprep.subr.mxu0 0.0
  %3730 = vmatpush1.msra.mxu0 %v3702
  %3731 = vmatprep.subr.mxu0 0.0
  %3732 = vmatpush1.msra.mxu0 %v3703
  %3733 = vmatprep.subr.mxu0 0.0
  %3734 = vmatpush1.msra.mxu0 %v3704
  %3735 = vmatprep.subr.mxu0 0.0
  %3736 = vmatpush1.msra.mxu0 %v3705
  %3737 = vmatprep.subr.mxu0 0.0
  %3738 = vmatpush1.msra.mxu0 %v3706
  %3739 = vmatprep.subr.mxu0 0.0
  %3740 = vmatpush1.msra.mxu0 %v3707
  %3741 = vmatprep.subr.mxu0 0.0
  %3742 = vmatpush1.msra.mxu0 %v3708
  %3743 = vmatprep.subr.mxu0 0.0
  %3744 = vmatpush1.msra.mxu0 %v3709
  %3745 = vmatprep.subr.mxu0 0.0
  %3746 = vmatpush1.msra.mxu0 %v3710
  %3747 = vmatprep.subr.mxu0 0.0
  %3748 = vmatpush1.msra.mxu0 %v3711
  %3749 = vmatprep.subr.mxu0 0.0
  %3750 = vmatpush1.msra.mxu0 %v3712
  %3751 = vmatprep.subr.mxu0 0.0
  %3752 = vmatpush1.msra.mxu0 %v3713
  %3753 = vmatprep.subr.mxu0 0.0
  %3754 = vmatpush1.msra.mxu0 0.0
  %3755 = vmatprep.subr.mxu0 0.0
  %3756 = vmatpush1.msra.mxu0 0.0
  %3757 = vmatprep.subr.mxu0 0.0
  %3758 = vmatpush1.msra.mxu0 0.0
  %3759 = vmatprep.subr.mxu0 0.0
  %3760 = vmatpush1.msra.mxu0 0.0
  %3761 = vmatprep.subr.mxu0 0.0
  %3762 = vmatpush1.msra.mxu0 0.0
  %3763 = vmatprep.subr.mxu0 0.0
  %3764 = vmatpush1.msra.mxu0 0.0
  %3765 = vmatprep.subr.mxu0 0.0
  %3766 = vmatpush1.msra.mxu0 0.0
  %3767 = vmatprep.subr.mxu0 0.0
  %3768 = vmatpush1.msra.mxu0 0.0
  %3769 = vmatprep.subr.mxu0 0.0
  %3770 = vmatpush1.msra.mxu0 0.0
  %3771 = vmatprep.subr.mxu0 0.0
  %3772 = vmatpush1.msra.mxu0 0.0
  %3773 = vmatprep.subr.mxu0 0.0
  %3774 = vmatpush1.msra.mxu0 0.0
  %3775 = vmatprep.subr.mxu0 0.0
  %3776 = vmatpush1.msra.mxu0 0.0
  %3777 = vmatprep.subr.mxu0 0.0
  %3778 = vmatpush1.msra.mxu0 0.0
  %3779 = vmatprep.subr.mxu0 0.0
  %3780 = vmatpush1.msra.mxu0 0.0
  %3781 = vmatprep.subr.mxu0 0.0
  %3782 = vmatpush1.msra.mxu0 0.0
  %3783 = vmatprep.subr.mxu0 0.0
  %3784 = vmatpush1.msra.mxu0 0.0
  %3785 = vmatprep.mubr.f32.mxu0 0.0
  %3786 = vmatmul.mubr.f32.gmra.mrb[0].mxu0 %v3598
  %v3787 = vpop.f32.mrb[0].mxu0
  %v3788 = vadd.f32 %v3719, %v3787
  %v3789 = vpop.f32.mrb[0].mxu0
  %3790 = vmatprep.mubr.f32.mxu0 0.0
  %3791 = vmatmul.mubr.f32.gmra.mrb[0].mxu0 %v3599
  %v3792 = vpop.f32.mrb[0].mxu0
  %v3793 = vadd.f32 %v3719, %v3792
  %v3794 = vpop.f32.mrb[0].mxu0
  %3795 = vmatprep.mubr.f32.mxu0 0.0
  %3796 = vmatmul.mubr.f32.gmra.mrb[0].mxu0 %v3600
  %v3797 = vpop.f32.mrb[0].mxu0
  %v3798 = vadd.f32 %v3719, %v3797
  %v3799 = vpop.f32.mrb[0].mxu0
  %3800 = vmatprep.mubr.f32.mxu0 0.0
  %3801 = vmatmul.mubr.f32.gmra.mrb[0].mxu0 %v3601
  %v3802 = vpop.f32.mrb[0].mxu0
  %v3803 = vadd.f32 %v3719, %v3802
  %v3804 = vpop.f32.mrb[0].mxu0
  %3805 = vmatprep.mubr.f32.mxu0 0.0
  %3806 = vmatmul.mubr.f32.gmra.mrb[0].mxu0 %v3602
  %v3807 = vpop.f32.mrb[0].mxu0
  %v3808 = vadd.f32 %v3719, %v3807
  %v3809 = vpop.f32.mrb[0].mxu0
  %3810 = vmatprep.mubr.f32.mxu0 0.0
  %3811 = vmatmul.mubr.f32.gmra.mrb[0].mxu0 %v3603
  %v3812 = vpop.f32.mrb[0].mxu0
  %v3813 = vadd.f32 %v3719, %v3812
  %v3814 = vpop.f32.mrb[0].mxu0
  %3815 = vmatprep.mubr.f32.mxu0 0.0
  %3816 = vmatmul.mubr.f32.gmra.mrb[0].mxu0 %v3604
  %v3817 = vpop.f32.mrb[0].mxu0
  %v3818 = vadd.f32 %v3719, %v3817
  %v3819 = vpop.f32.mrb[0].mxu0
  %3820 = vmatprep.mubr.f32.mxu0 0.0
  %3821 = vmatmul.mubr.f32.gmra.mrb[0].mxu0 %v3605
  %v3822 = vpop.f32.mrb[0].mxu0
  %v3823 = vadd.f32 %v3719, %v3822
  %v3824 = vpop.f32.mrb[0].mxu0
  %3825 = vmatprep.mubr.f32.mxu0 0.0
  %3826 = vmatmul.mubr.f32.gmra.mrb[0].mxu0 %v3606
  %v3827 = vpop.f32.mrb[0].mxu0
  %v3828 = vadd.f32 %v3719, %v3827
  %v3829 = vpop.f32.mrb[0].mxu0
  %3830 = vmatprep.mubr.f32.mxu0 0.0
  %3831 = vmatmul.mubr.f32.gmra.mrb[0].mxu0 %v3607
  %v3832 = vpop.f32.mrb[0].mxu0
  %v3833 = vadd.f32 %v3719, %v3832
  %v3834 = vpop.f32.mrb[0].mxu0
  %3835 = vmatprep.mubr.f32.mxu0 0.0
  %3836 = vmatmul.mubr.f32.gmra.mrb[0].mxu0 %v3608
  %v3837 = vpop.f32.mrb[0].mxu0
  %v3838 = vadd.f32 %v3719, %v3837
  %v3839 = vpop.f32.mrb[0].mxu0
  %3840 = vmatprep.mubr.f32.mxu0 0.0
  %3841 = vmatmul.mubr.f32.gmra.mrb[0].mxu0 %v3609
  %v3842 = vpop.f32.mrb[0].mxu0
  %v3843 = vadd.f32 %v3719, %v3842
  %v3844 = vpop.f32.mrb[0].mxu0
  %3845 = vmatprep.mubr.f32.mxu0 0.0
  %3846 = vmatmul.mubr.f32.gmra.mrb[0].mxu0 %v3610
  %v3847 = vpop.f32.mrb[0].mxu0
  %v3848 = vadd.f32 %v3719, %v3847
  %v3849 = vpop.f32.mrb[0].mxu0
  %3850 = vmatprep.mubr.f32.mxu0 0.0
  %3851 = vmatmul.mubr.f32.gmra.mrb[0].mxu0 %v3611
  %v3852 = vpop.f32.mrb[0].mxu0
  %v3853 = vadd.f32 %v3719, %v3852
  %v3854 = vpop.f32.mrb[0].mxu0
  %3855 = vmatprep.mubr.f32.mxu0 0.0
  %3856 = vmatmul.mubr.f32.gmra.mrb[0].mxu0 %v3612
  %v3857 = vpop.f32.mrb[0].mxu0
  %v3858 = vadd.f32 %v3719, %v3857
  %v3859 = vpop.f32.mrb[0].mxu0
  %3860 = vmatprep.mubr.f32.mxu0 0.0
  %3861 = vmatmul.mubr.f32.gmra.mrb[0].mxu0 %v3613
  %v3862 = vpop.f32.mrb[0].mxu0
  %v3863 = vadd.f32 %v3719, %v3862
  %v3864 = vpop.f32.mrb[0].mxu0
  %3865 = vmatprep.mubr.f32.mxu0 0.0
  %3866 = vmatmul.mubr.f32.gmra.mrb[0].mxu0 %v3614
  %v3867 = vpop.f32.mrb[0].mxu0
  %v3868 = vadd.f32 %v3719, %v3867
  %v3869 = vpop.f32.mrb[0].mxu0
  %3870 = vmatprep.mubr.f32.mxu0 0.0
  %3871 = vmatmul.mubr.f32.gmra.mrb[0].mxu0 %v3615
  %v3872 = vpop.f32.mrb[0].mxu0
  %v3873 = vadd.f32 %v3719, %v3872
  %v3874 = vpop.f32.mrb[0].mxu0
  %3875 = vmatprep.mubr.f32.mxu0 0.0
  %3876 = vmatmul.mubr.f32.gmra.mrb[0].mxu0 %v3616
  %v3877 = vpop.f32.mrb[0].mxu0
  %v3878 = vadd.f32 %v3719, %v3877
  %v3879 = vpop.f32.mrb[0].mxu0
  %3880 = vmatprep.mubr.f32.mxu0 0.0
  %3881 = vmatmul.mubr.f32.gmra.mrb[0].mxu0 %v3617
  %v3882 = vpop.f32.mrb[0].mxu0
  %v3883 = vadd.f32 %v3719, %v3882
  %v3884 = vpop.f32.mrb[0].mxu0
  %3885 = vmatprep.mubr.f32.mxu0 0.0
  %3886 = vmatmul.mubr.f32.gmra.mrb[0].mxu0 %v3618
  %v3887 = vpop.f32.mrb[0].mxu0
  %v3888 = vadd.f32 %v3719, %v3887
  %v3889 = vpop.f32.mrb[0].mxu0
  %3890 = vmatprep.mubr.f32.mxu0 0.0
  %3891 = vmatmul.mubr.f32.gmra.mrb[0].mxu0 %v3619
  %v3892 = vpop.f32.mrb[0].mxu0
  %v3893 = vadd.f32 %v3719, %v3892
  %v3894 = vpop.f32.mrb[0].mxu0
  %3895 = vmatprep.mubr.f32.mxu0 0.0
  %3896 = vmatmul.mubr.f32.gmra.mrb[0].mxu0 %v3620
  %v3897 = vpop.f32.mrb[0].mxu0
  %v3898 = vadd.f32 %v3719, %v3897
  %v3899 = vpop.f32.mrb[0].mxu0
  %3900 = vmatprep.mubr.f32.mxu0 0.0
  %3901 = vmatmul.mubr.f32.gmra.mrb[0].mxu0 %v3621
  %v3902 = vpop.f32.mrb[0].mxu0
  %v3903 = vadd.f32 %v3719, %v3902
  %v3904 = vpop.f32.mrb[0].mxu0
  %3905 = vmatprep.mubr.f32.mxu0 0.0
  %3906 = vmatmul.mubr.f32.gmra.mrb[0].mxu0 %v3622
  %v3907 = vpop.f32.mrb[0].mxu0
  %v3908 = vadd.f32 %v3719, %v3907
  %v3909 = vpop.f32.mrb[0].mxu0
  %3910 = vmatprep.mubr.f32.mxu0 0.0
  %3911 = vmatmul.mubr.f32.gmra.mrb[0].mxu0 %v3623
  %v3912 = vpop.f32.mrb[0].mxu0
  %v3913 = vadd.f32 %v3719, %v3912
  %v3914 = vpop.f32.mrb[0].mxu0
  %3915 = vmatprep.mubr.f32.mxu0 0.0
  %3916 = vmatmul.mubr.f32.gmra.mrb[0].mxu0 %v3624
  %v3917 = vpop.f32.mrb[0].mxu0
  %v3918 = vadd.f32 %v3719, %v3917
  %v3919 = vpop.f32.mrb[0].mxu0
  %3920 = vmatprep.mubr.f32.mxu0 0.0
  %3921 = vmatmul.mubr.f32.gmra.mrb[0].mxu0 %v3625
  %v3922 = vpop.f32.mrb[0].mxu0
  %v3923 = vadd.f32 %v3719, %v3922
  %v3924 = vpop.f32.mrb[0].mxu0
  %3925 = vmatprep.mubr.f32.mxu0 0.0
  %3926 = vmatmul.mubr.f32.gmra.mrb[0].mxu0 %v3626
  %v3927 = vpop.f32.mrb[0].mxu0
  %v3928 = vadd.f32 %v3719, %v3927
  %v3929 = vpop.f32.mrb[0].mxu0
  %3930 = vmatprep.mubr.f32.mxu0 0.0
  %3931 = vmatmul.mubr.f32.gmra.mrb[0].mxu0 %v3627
  %v3932 = vpop.f32.mrb[0].mxu0
  %v3933 = vadd.f32 %v3719, %v3932
  %v3934 = vpop.f32.mrb[0].mxu0
  %3935 = vmatprep.mubr.f32.mxu0 0.0
  %3936 = vmatmul.mubr.f32.gmra.mrb[0].mxu0 %v3628
  %v3937 = vpop.f32.mrb[0].mxu0
  %v3938 = vadd.f32 %v3719, %v3937
  %v3939 = vpop.f32.mrb[0].mxu0
  %3940 = vmatprep.mubr.f32.mxu0 0.0
  %3941 = vmatmul.mubr.f32.gmra.mrb[0].mxu0 %v3629
  %v3942 = vpop.f32.mrb[0].mxu0
  %v3943 = vadd.f32 %v3719, %v3942
  %v3944 = vpop.f32.mrb[0].mxu0
  %3945 = vmatprep.mubr.f32.mxu0 0.0
  %3946 = vmatmul.mubr.f32.gmra.mrb[0].mxu0 %v3630
  %v3947 = vpop.f32.mrb[0].mxu0
  %v3948 = vadd.f32 %v3719, %v3947
  %v3949 = vpop.f32.mrb[0].mxu0
  %3950 = vmatprep.mubr.f32.mxu0 0.0
  %3951 = vmatmul.mubr.f32.gmra.mrb[0].mxu0 %v3631
  %v3952 = vpop.f32.mrb[0].mxu0
  %v3953 = vadd.f32 %v3719, %v3952
  %v3954 = vpop.f32.mrb[0].mxu0
  %3955 = vmatprep.mubr.f32.mxu0 0.0
  %3956 = vmatmul.mubr.f32.gmra.mrb[0].mxu0 %v3632
  %v3957 = vpop.f32.mrb[0].mxu0
  %v3958 = vadd.f32 %v3719, %v3957
  %v3959 = vpop.f32.mrb[0].mxu0
  %3960 = vmatprep.mubr.f32.mxu0 0.0
  %3961 = vmatmul.mubr.f32.gmra.mrb[0].mxu0 %v3633
  %v3962 = vpop.f32.mrb[0].mxu0
  %v3963 = vadd.f32 %v3719, %v3962
  %v3964 = vpop.f32.mrb[0].mxu0
  %3965 = vmatprep.mubr.f32.mxu0 0.0
  %3966 = vmatmul.mubr.f32.gmra.mrb[0].mxu0 %v3634
  %v3967 = vpop.f32.mrb[0].mxu0
  %v3968 = vadd.f32 %v3719, %v3967
  %v3969 = vpop.f32.mrb[0].mxu0
  %3970 = vmatprep.mubr.f32.mxu0 0.0
  %3971 = vmatmul.mubr.f32.gmra.mrb[0].mxu0 %v3635
  %v3972 = vpop.f32.mrb[0].mxu0
  %v3973 = vadd.f32 %v3719, %v3972
  %v3974 = vpop.f32.mrb[0].mxu0
  %3975 = vmatprep.mubr.f32.mxu0 0.0
  %3976 = vmatmul.mubr.f32.gmra.mrb[0].mxu0 %v3636
  %v3977 = vpop.f32.mrb[0].mxu0
  %v3978 = vadd.f32 %v3719, %v3977
  %v3979 = vpop.f32.mrb[0].mxu0
  %3980 = vmatprep.mubr.f32.mxu0 0.0
  %3981 = vmatmul.mubr.f32.gmra.mrb[0].mxu0 %v3637
  %v3982 = vpop.f32.mrb[0].mxu0
  %v3983 = vadd.f32 %v3719, %v3982
  %v3984 = vpop.f32.mrb[0].mxu0
  %3985 = vmatprep.mubr.f32.mxu0 0.0
  %3986 = vmatmul.mubr.f32.gmra.mrb[0].mxu0 %v3638
  %v3987 = vpop.f32.mrb[0].mxu0
  %v3988 = vadd.f32 %v3719, %v3987
  %v3989 = vpop.f32.mrb[0].mxu0
  %3990 = vmatprep.mubr.f32.mxu0 0.0
  %3991 = vmatmul.mubr.f32.gmra.mrb[0].mxu0 %v3639
  %v3992 = vpop.f32.mrb[0].mxu0
  %v3993 = vadd.f32 %v3719, %v3992
  %v3994 = vpop.f32.mrb[0].mxu0
  %3995 = vmatprep.mubr.f32.mxu0 0.0
  %3996 = vmatmul.mubr.f32.gmra.mrb[0].mxu0 %v3640
  %v3997 = vpop.f32.mrb[0].mxu0
  %v3998 = vadd.f32 %v3719, %v3997
  %v3999 = vpop.f32.mrb[0].mxu0
  %4000 = vmatprep.mubr.f32.mxu0 0.0
  %4001 = vmatmul.mubr.f32.gmra.mrb[0].mxu0 %v3641
  %v4002 = vpop.f32.mrb[0].mxu0
  %v4003 = vadd.f32 %v3719, %v4002
  %v4004 = vpop.f32.mrb[0].mxu0
  %4005 = vmatprep.mubr.f32.mxu0 0.0
  %4006 = vmatmul.mubr.f32.gmra.mrb[0].mxu0 %v3642
  %v4007 = vpop.f32.mrb[0].mxu0
  %v4008 = vadd.f32 %v3719, %v4007
  %v4009 = vpop.f32.mrb[0].mxu0
  %4010 = vmatprep.mubr.f32.mxu0 0.0
  %4011 = vmatmul.mubr.f32.gmra.mrb[0].mxu0 %v3643
  %v4012 = vpop.f32.mrb[0].mxu0
  %v4013 = vadd.f32 %v3719, %v4012
  %v4014 = vpop.f32.mrb[0].mxu0
  %4015 = vmatprep.mubr.f32.mxu0 0.0
  %4016 = vmatmul.mubr.f32.gmra.mrb[0].mxu0 %v3644
  %v4017 = vpop.f32.mrb[0].mxu0
  %v4018 = vadd.f32 %v3719, %v4017
  %v4019 = vpop.f32.mrb[0].mxu0
  %4020 = vmatprep.mubr.f32.mxu0 0.0
  %4021 = vmatmul.mubr.f32.gmra.mrb[0].mxu0 %v3645
  %v4022 = vpop.f32.mrb[0].mxu0
  %v4023 = vadd.f32 %v3719, %v4022
  %v4024 = vpop.f32.mrb[0].mxu0
  %4025 = vmatprep.mubr.f32.mxu0 0.0
  %4026 = vmatmul.mubr.f32.gmra.mrb[0].mxu0 %v3646
  %v4027 = vpop.f32.mrb[0].mxu0
  %v4028 = vadd.f32 %v3719, %v4027
  %v4029 = vpop.f32.mrb[0].mxu0
  %4030 = vmatprep.mubr.f32.mxu0 0.0
  %4031 = vmatmul.mubr.f32.gmra.mrb[0].mxu0 %v3647
  %v4032 = vpop.f32.mrb[0].mxu0
  %v4033 = vadd.f32 %v3719, %v4032
  %v4034 = vpop.f32.mrb[0].mxu0
  %4035 = vmatprep.mubr.f32.mxu0 0.0
  %4036 = vmatmul.mubr.f32.gmra.mrb[0].mxu0 %v3648
  %v4037 = vpop.f32.mrb[0].mxu0
  %v4038 = vadd.f32 %v3719, %v4037
  %v4039 = vpop.f32.mrb[0].mxu0
  %4040 = vmatprep.mubr.f32.mxu0 0.0
  %4041 = vmatmul.mubr.f32.gmra.mrb[0].mxu0 %v3649
  %v4042 = vpop.f32.mrb[0].mxu0
  %v4043 = vadd.f32 %v3719, %v4042
  %v4044 = vpop.f32.mrb[0].mxu0
  %4045 = vmatprep.mubr.f32.mxu0 0.0
  %4046 = vmatmul.mubr.f32.gmra.mrb[0].mxu0 %v3650
  %v4047 = vpop.f32.mrb[0].mxu0
  %v4048 = vadd.f32 %v3719, %v4047
  %v4049 = vpop.f32.mrb[0].mxu0
  %4050 = vmatprep.mubr.f32.mxu0 0.0
  %4051 = vmatmul.mubr.f32.gmra.mrb[0].mxu0 %v3651
  %v4052 = vpop.f32.mrb[0].mxu0
  %v4053 = vadd.f32 %v3719, %v4052
  %v4054 = vpop.f32.mrb[0].mxu0
  %4055 = vmatprep.mubr.f32.mxu0 0.0
  %4056 = vmatmul.mubr.f32.gmra.mrb[0].mxu0 %v3652
  %v4057 = vpop.f32.mrb[0].mxu0
  %v4058 = vadd.f32 %v3719, %v4057
  %v4059 = vpop.f32.mrb[0].mxu0
  %4060 = vmatprep.mubr.f32.mxu0 0.0
  %4061 = vmatmul.mubr.f32.gmra.mrb[0].mxu0 %v3653
  %v4062 = vpop.f32.mrb[0].mxu0
  %v4063 = vadd.f32 %v3719, %v4062
  %v4064 = vpop.f32.mrb[0].mxu0
  %4065 = vmatprep.mubr.f32.mxu0 0.0
  %4066 = vmatmul.mubr.f32.gmra.mrb[0].mxu0 %v3654
  %v4067 = vpop.f32.mrb[0].mxu0
  %v4068 = vadd.f32 %v3719, %v4067
  %v4069 = vpop.f32.mrb[0].mxu0
  %4070 = vmatprep.mubr.f32.mxu0 0.0
  %4071 = vmatmul.mubr.f32.gmra.mrb[0].mxu0 %v3655
  %v4072 = vpop.f32.mrb[0].mxu0
  %v4073 = vadd.f32 %v3719, %v4072
  %v4074 = vpop.f32.mrb[0].mxu0
  %4075 = vmatprep.mubr.f32.mxu0 0.0
  %4076 = vmatmul.mubr.f32.gmra.mrb[0].mxu0 %v3656
  %v4077 = vpop.f32.mrb[0].mxu0
  %v4078 = vadd.f32 %v3719, %v4077
  %v4079 = vpop.f32.mrb[0].mxu0
  %4080 = vmatprep.mubr.f32.mxu0 0.0
  %4081 = vmatmul.mubr.f32.gmra.mrb[0].mxu0 %v3657
  %v4082 = vpop.f32.mrb[0].mxu0
  %v4083 = vadd.f32 %v3719, %v4082
  %v4084 = vpop.f32.mrb[0].mxu0
  %4085 = vmatprep.mubr.f32.mxu0 0.0
  %4086 = vmatmul.mubr.f32.gmra.mrb[0].mxu0 %v3658
  %v4087 = vpop.f32.mrb[0].mxu0
  %v4088 = vadd.f32 %v3719, %v4087
  %v4089 = vpop.f32.mrb[0].mxu0
  %4090 = vmatprep.mubr.f32.mxu0 0.0
  %4091 = vmatmul.mubr.f32.gmra.mrb[0].mxu0 %v3659
  %v4092 = vpop.f32.mrb[0].mxu0
  %v4093 = vadd.f32 %v3719, %v4092
  %v4094 = vpop.f32.mrb[0].mxu0
  %4095 = vmatprep.mubr.f32.mxu0 0.0
  %4096 = vmatmul.mubr.f32.gmra.mrb[0].mxu0 %v3660
  %v4097 = vpop.f32.mrb[0].mxu0
  %v4098 = vadd.f32 %v3719, %v4097
  %v4099 = vpop.f32.mrb[0].mxu0
  %4100 = vmatprep.mubr.f32.mxu0 0.0
  %4101 = vmatmul.mubr.f32.gmra.mrb[0].mxu0 %v3661
  %v4102 = vpop.f32.mrb[0].mxu0
  %v4103 = vadd.f32 %v3719, %v4102
  %v4104 = vpop.f32.mrb[0].mxu0
  %4105 = vmatprep.mubr.f32.mxu0 0.0
  %4106 = vmatmul.mubr.f32.gmra.mrb[0].mxu0 %v3662
  %v4107 = vpop.f32.mrb[0].mxu0
  %v4108 = vadd.f32 %v3719, %v4107
  %v4109 = vpop.f32.mrb[0].mxu0
  %4110 = vmatprep.mubr.f32.mxu0 0.0
  %4111 = vmatmul.mubr.f32.gmra.mrb[0].mxu0 %v3663
  %v4112 = vpop.f32.mrb[0].mxu0
  %v4113 = vadd.f32 %v3719, %v4112
  %v4114 = vpop.f32.mrb[0].mxu0
  %4115 = vmatprep.mubr.f32.mxu0 0.0
  %4116 = vmatmul.mubr.f32.gmra.mrb[0].mxu0 %v3664
  %v4117 = vpop.f32.mrb[0].mxu0
  %v4118 = vadd.f32 %v3719, %v4117
  %v4119 = vpop.f32.mrb[0].mxu0
  %4120 = vmatprep.mubr.f32.mxu0 0.0
  %4121 = vmatmul.mubr.f32.gmra.mrb[0].mxu0 %v3665
  %v4122 = vpop.f32.mrb[0].mxu0
  %v4123 = vadd.f32 %v3719, %v4122
  %v4124 = vpop.f32.mrb[0].mxu0
  %4125 = vmatprep.mubr.f32.mxu0 0.0
  %4126 = vmatmul.mubr.f32.gmra.mrb[0].mxu0 %v3666
  %v4127 = vpop.f32.mrb[0].mxu0
  %v4128 = vadd.f32 %v3719, %v4127
  %v4129 = vpop.f32.mrb[0].mxu0
  %4130 = vmatprep.mubr.f32.mxu0 0.0
  %4131 = vmatmul.mubr.f32.gmra.mrb[0].mxu0 %v3667
  %v4132 = vpop.f32.mrb[0].mxu0
  %v4133 = vadd.f32 %v3719, %v4132
  %v4134 = vpop.f32.mrb[0].mxu0
  %4135 = vmatprep.mubr.f32.mxu0 0.0
  %4136 = vmatmul.mubr.f32.gmra.mrb[0].mxu0 %v3668
  %v4137 = vpop.f32.mrb[0].mxu0
  %v4138 = vadd.f32 %v3719, %v4137
  %v4139 = vpop.f32.mrb[0].mxu0
  %4140 = vmatprep.mubr.f32.mxu0 0.0
  %4141 = vmatmul.mubr.f32.gmra.mrb[0].mxu0 %v3669
  %v4142 = vpop.f32.mrb[0].mxu0
  %v4143 = vadd.f32 %v3719, %v4142
  %v4144 = vpop.f32.mrb[0].mxu0
  %4145 = vmatprep.mubr.f32.mxu0 0.0
  %4146 = vmatmul.mubr.f32.gmra.mrb[0].mxu0 %v3670
  %v4147 = vpop.f32.mrb[0].mxu0
  %v4148 = vadd.f32 %v3719, %v4147
  %v4149 = vpop.f32.mrb[0].mxu0
  %4150 = vmatprep.mubr.f32.mxu0 0.0
  %4151 = vmatmul.mubr.f32.gmra.mrb[0].mxu0 %v3671
  %v4152 = vpop.f32.mrb[0].mxu0
  %v4153 = vadd.f32 %v3719, %v4152
  %v4154 = vpop.f32.mrb[0].mxu0
  %4155 = vmatprep.mubr.f32.mxu0 0.0
  %4156 = vmatmul.mubr.f32.gmra.mrb[0].mxu0 %v3672
  %v4157 = vpop.f32.mrb[0].mxu0
  %v4158 = vadd.f32 %v3719, %v4157
  %v4159 = vpop.f32.mrb[0].mxu0
  %4160 = vmatprep.mubr.f32.mxu0 0.0
  %4161 = vmatmul.mubr.f32.gmra.mrb[0].mxu0 %v3673
  %v4162 = vpop.f32.mrb[0].mxu0
  %v4163 = vadd.f32 %v3719, %v4162
  %v4164 = vpop.f32.mrb[0].mxu0
  %4165 = vmatprep.mubr.f32.mxu0 0.0
  %4166 = vmatmul.mubr.f32.gmra.mrb[0].mxu0 %v3674
  %v4167 = vpop.f32.mrb[0].mxu0
  %v4168 = vadd.f32 %v3719, %v4167
  %v4169 = vpop.f32.mrb[0].mxu0
  %4170 = vmatprep.mubr.f32.mxu0 0.0
  %4171 = vmatmul.mubr.f32.gmra.mrb[0].mxu0 %v3675
  %v4172 = vpop.f32.mrb[0].mxu0
  %v4173 = vadd.f32 %v3719, %v4172
  %v4174 = vpop.f32.mrb[0].mxu0
  %4175 = vmatprep.mubr.f32.mxu0 0.0
  %4176 = vmatmul.mubr.f32.gmra.mrb[0].mxu0 %v3676
  %v4177 = vpop.f32.mrb[0].mxu0
  %v4178 = vadd.f32 %v3719, %v4177
  %v4179 = vpop.f32.mrb[0].mxu0
  %4180 = vmatprep.mubr.f32.mxu0 0.0
  %4181 = vmatmul.mubr.f32.gmra.mrb[0].mxu0 %v3677
  %v4182 = vpop.f32.mrb[0].mxu0
  %v4183 = vadd.f32 %v3719, %v4182
  %v4184 = vpop.f32.mrb[0].mxu0
  %4185 = vmatprep.mubr.f32.mxu0 0.0
  %4186 = vmatmul.mubr.f32.gmra.mrb[0].mxu0 %v3678
  %v4187 = vpop.f32.mrb[0].mxu0
  %v4188 = vadd.f32 %v3719, %v4187
  %v4189 = vpop.f32.mrb[0].mxu0
  %4190 = vmatprep.mubr.f32.mxu0 0.0
  %4191 = vmatmul.mubr.f32.gmra.mrb[0].mxu0 %v3679
  %v4192 = vpop.f32.mrb[0].mxu0
  %v4193 = vadd.f32 %v3719, %v4192
  %v4194 = vpop.f32.mrb[0].mxu0
  %4195 = vmatprep.mubr.f32.mxu0 0.0
  %4196 = vmatmul.mubr.f32.gmra.mrb[0].mxu0 %v3680
  %v4197 = vpop.f32.mrb[0].mxu0
  %v4198 = vadd.f32 %v3719, %v4197
  %v4199 = vpop.f32.mrb[0].mxu0
  %4200 = vmatprep.mubr.f32.mxu0 0.0
  %4201 = vmatmul.mubr.f32.gmra.mrb[0].mxu0 %v3681
  %v4202 = vpop.f32.mrb[0].mxu0
  %v4203 = vadd.f32 %v3719, %v4202
  %v4204 = vpop.f32.mrb[0].mxu0
  %4205 = vmatprep.mubr.f32.mxu0 0.0
  %4206 = vmatmul.mubr.f32.gmra.mrb[0].mxu0 %v3682
  %v4207 = vpop.f32.mrb[0].mxu0
  %v4208 = vadd.f32 %v3719, %v4207
  %v4209 = vpop.f32.mrb[0].mxu0
  %4210 = vmatprep.mubr.f32.mxu0 0.0
  %4211 = vmatmul.mubr.f32.gmra.mrb[0].mxu0 %v3683
  %v4212 = vpop.f32.mrb[0].mxu0
  %v4213 = vadd.f32 %v3719, %v4212
  %v4214 = vpop.f32.mrb[0].mxu0
  %4215 = vmatprep.mubr.f32.mxu0 0.0
  %4216 = vmatmul.mubr.f32.gmra.mrb[0].mxu0 %v3684
  %v4217 = vpop.f32.mrb[0].mxu0
  %v4218 = vadd.f32 %v3719, %v4217
  %v4219 = vpop.f32.mrb[0].mxu0
  %4220 = vmatprep.mubr.f32.mxu0 0.0
  %4221 = vmatmul.mubr.f32.gmra.mrb[0].mxu0 %v3685
  %v4222 = vpop.f32.mrb[0].mxu0
  %v4223 = vadd.f32 %v3719, %v4222
  %v4224 = vpop.f32.mrb[0].mxu0
  %4225 = vmatprep.mubr.f32.mxu0 0.0
  %4226 = vmatmul.mubr.f32.gmra.mrb[0].mxu0 %v3686
  %v4227 = vpop.f32.mrb[0].mxu0
  %v4228 = vadd.f32 %v3719, %v4227
  %v4229 = vpop.f32.mrb[0].mxu0
  %4230 = vmatprep.mubr.f32.mxu0 0.0
  %4231 = vmatmul.mubr.f32.gmra.mrb[0].mxu0 %v3687
  %v4232 = vpop.f32.mrb[0].mxu0
  %v4233 = vadd.f32 %v3719, %v4232
  %v4234 = vpop.f32.mrb[0].mxu0
  %4235 = vmatprep.mubr.f32.mxu0 0.0
  %4236 = vmatmul.mubr.f32.gmra.mrb[0].mxu0 %v3688
  %v4237 = vpop.f32.mrb[0].mxu0
  %v4238 = vadd.f32 %v3719, %v4237
  %v4239 = vpop.f32.mrb[0].mxu0
  %4240 = vmatprep.mubr.f32.mxu0 0.0
  %4241 = vmatmul.mubr.f32.gmra.mrb[0].mxu0 %v3689
  %v4242 = vpop.f32.mrb[0].mxu0
  %v4243 = vadd.f32 %v3719, %v4242
  %v4244 = vpop.f32.mrb[0].mxu0
  %4245 = vmatprep.mubr.f32.mxu0 0.0
  %4246 = vmatmul.mubr.f32.gmra.mrb[0].mxu0 %v3690
  %v4247 = vpop.f32.mrb[0].mxu0
  %v4248 = vadd.f32 %v3719, %v4247
  %v4249 = vpop.f32.mrb[0].mxu0
  %4250 = vmatprep.mubr.f32.mxu0 0.0
  %4251 = vmatmul.mubr.f32.gmra.mrb[0].mxu0 %v3691
  %v4252 = vpop.f32.mrb[0].mxu0
  %v4253 = vadd.f32 %v3719, %v4252
  %v4254 = vpop.f32.mrb[0].mxu0
  %4255 = vmatprep.mubr.f32.mxu0 0.0
  %4256 = vmatmul.mubr.f32.gmra.mrb[0].mxu0 %v3692
  %v4257 = vpop.f32.mrb[0].mxu0
  %v4258 = vadd.f32 %v3719, %v4257
  %v4259 = vpop.f32.mrb[0].mxu0
  %4260 = vmatprep.mubr.f32.mxu0 0.0
  %4261 = vmatmul.mubr.f32.gmra.mrb[0].mxu0 %v3693
  %v4262 = vpop.f32.mrb[0].mxu0
  %v4263 = vadd.f32 %v3719, %v4262
  %v4264 = vpop.f32.mrb[0].mxu0
  %4265 = vmatprep.mubr.f32.mxu0 0.0
  %4266 = vmatmul.mubr.f32.gmra.mrb[0].mxu0 %v3694
  %v4267 = vpop.f32.mrb[0].mxu0
  %v4268 = vadd.f32 %v3719, %v4267
  %v4269 = vpop.f32.mrb[0].mxu0
  %4270 = vmatprep.mubr.f32.mxu0 0.0
  %4271 = vmatmul.mubr.f32.gmra.mrb[0].mxu0 %v3695
  %v4272 = vpop.f32.mrb[0].mxu0
  %v4273 = vadd.f32 %v3719, %v4272
  %v4274 = vpop.f32.mrb[0].mxu0
  %4275 = vmatprep.mubr.f32.mxu0 0.0
  %4276 = vmatmul.mubr.f32.gmra.mrb[0].mxu0 %v3696
  %v4277 = vpop.f32.mrb[0].mxu0
  %v4278 = vadd.f32 %v3719, %v4277
  %v4279 = vpop.f32.mrb[0].mxu0
  %4280 = vmatprep.mubr.f32.mxu0 0.0
  %4281 = vmatmul.mubr.f32.gmra.mrb[0].mxu0 %v3697
  %v4282 = vpop.f32.mrb[0].mxu0
  %v4283 = vadd.f32 %v3719, %v4282
  %v4284 = vpop.f32.mrb[0].mxu0
  %4285 = vdwg.mxu0
  %4286 = vst.msk [vmem:[%s5] sm:$0xff] %vm131, %v3788
  %4287 = vst.msk [vmem:[%s5 + $0x8] sm:$0xff] %vm131, %v3793
  %4288 = vst.msk [vmem:[%s5 + $0x10] sm:$0xff] %vm131, %v3798
  %4289 = vst.msk [vmem:[%s5 + $0x18] sm:$0xff] %vm131, %v3803
  %4290 = vst.msk [vmem:[%s5 + $0x20] sm:$0xff] %vm131, %v3808
  %4291 = vst.msk [vmem:[%s5 + $0x28] sm:$0xff] %vm131, %v3813
  %4292 = vst.msk [vmem:[%s5 + $0x30] sm:$0xff] %vm131, %v3818
  %4293 = vst.msk [vmem:[%s5 + $0x38] sm:$0xff] %vm131, %v3823
  %4294 = vst.msk [vmem:[%s5 + $0x40] sm:$0xff] %vm131, %v3828
  %4295 = vst.msk [vmem:[%s5 + $0x48] sm:$0xff] %vm131, %v3833
  %4296 = vst.msk [vmem:[%s5 + $0x50] sm:$0xff] %vm131, %v3838
  %4297 = vst.msk [vmem:[%s5 + $0x58] sm:$0xff] %vm131, %v3843
  %4298 = vst.msk [vmem:[%s5 + $0x60] sm:$0xff] %vm131, %v3848
  %4299 = vst.msk [vmem:[%s5 + $0x68] sm:$0xff] %vm131, %v3853
  %4300 = vst.msk [vmem:[%s5 + $0x70] sm:$0xff] %vm131, %v3858
  %4301 = vst.msk [vmem:[%s5 + $0x78] sm:$0xff] %vm131, %v3863
  %4302 = vst.msk [vmem:[%s5 + $0x80] sm:$0xff] %vm131, %v3868
  %4303 = vst.msk [vmem:[%s5 + $0x88] sm:$0xff] %vm131, %v3873
  %4304 = vst.msk [vmem:[%s5 + $0x90] sm:$0xff] %vm131, %v3878
  %4305 = vst.msk [vmem:[%s5 + $0x98] sm:$0xff] %vm131, %v3883
  %4306 = vst.msk [vmem:[%s5 + $0xa0] sm:$0xff] %vm131, %v3888
  %4307 = vst.msk [vmem:[%s5 + $0xa8] sm:$0xff] %vm131, %v3893
  %4308 = vst.msk [vmem:[%s5 + $0xb0] sm:$0xff] %vm131, %v3898
  %4309 = vst.msk [vmem:[%s5 + $0xb8] sm:$0xff] %vm131, %v3903
  %4310 = vst.msk [vmem:[%s5 + $0xc0] sm:$0xff] %vm131, %v3908
  %4311 = vst.msk [vmem:[%s5 + $0xc8] sm:$0xff] %vm131, %v3913
  %4312 = vst.msk [vmem:[%s5 + $0xd0] sm:$0xff] %vm131, %v3918
  %4313 = vst.msk [vmem:[%s5 + $0xd8] sm:$0xff] %vm131, %v3923
  %4314 = vst.msk [vmem:[%s5 + $0xe0] sm:$0xff] %vm131, %v3928
  %4315 = vst.msk [vmem:[%s5 + $0xe8] sm:$0xff] %vm131, %v3933
  %4316 = vst.msk [vmem:[%s5 + $0xf0] sm:$0xff] %vm131, %v3938
  %4317 = vst.msk [vmem:[%s5 + $0xf8] sm:$0xff] %vm131, %v3943
  %4318 = vst.msk [vmem:[%s5 + $0x100] sm:$0xff] %vm131, %v3948
  %4319 = vst.msk [vmem:[%s5 + $0x108] sm:$0xff] %vm131, %v3953
  %4320 = vst.msk [vmem:[%s5 + $0x110] sm:$0xff] %vm131, %v3958
  %4321 = vst.msk [vmem:[%s5 + $0x118] sm:$0xff] %vm131, %v3963
  %4322 = vst.msk [vmem:[%s5 + $0x120] sm:$0xff] %vm131, %v3968
  %4323 = vst.msk [vmem:[%s5 + $0x128] sm:$0xff] %vm131, %v3973
  %4324 = vst.msk [vmem:[%s5 + $0x130] sm:$0xff] %vm131, %v3978
  %4325 = vst.msk [vmem:[%s5 + $0x138] sm:$0xff] %vm131, %v3983
  %4326 = vst.msk [vmem:[%s5 + $0x140] sm:$0xff] %vm131, %v3988
  %4327 = vst.msk [vmem:[%s5 + $0x148] sm:$0xff] %vm131, %v3993
  %4328 = vst.msk [vmem:[%s5 + $0x150] sm:$0xff] %vm131, %v3998
  %4329 = vst.msk [vmem:[%s5 + $0x158] sm:$0xff] %vm131, %v4003
  %4330 = vst.msk [vmem:[%s5 + $0x160] sm:$0xff] %vm131, %v4008
  %4331 = vst.msk [vmem:[%s5 + $0x168] sm:$0xff] %vm131, %v4013
  %4332 = vst.msk [vmem:[%s5 + $0x170] sm:$0xff] %vm131, %v4018
  %4333 = vst.msk [vmem:[%s5 + $0x178] sm:$0xff] %vm131, %v4023
  %4334 = vst.msk [vmem:[%s5 + $0x180] sm:$0xff] %vm131, %v4028
  %4335 = vst.msk [vmem:[%s5 + $0x188] sm:$0xff] %vm131, %v4033
  %4336 = vst.msk [vmem:[%s5 + $0x190] sm:$0xff] %vm131, %v4038
  %4337 = vst.msk [vmem:[%s5 + $0x198] sm:$0xff] %vm131, %v4043
  %4338 = vst.msk [vmem:[%s5 + $0x1a0] sm:$0xff] %vm131, %v4048
  %4339 = vst.msk [vmem:[%s5 + $0x1a8] sm:$0xff] %vm131, %v4053
  %4340 = vst.msk [vmem:[%s5 + $0x1b0] sm:$0xff] %vm131, %v4058
  %4341 = vst.msk [vmem:[%s5 + $0x1b8] sm:$0xff] %vm131, %v4063
  %4342 = vst.msk [vmem:[%s5 + $0x1c0] sm:$0xff] %vm131, %v4068
  %4343 = vst.msk [vmem:[%s5 + $0x1c8] sm:$0xff] %vm131, %v4073
  %4344 = vst.msk [vmem:[%s5 + $0x1d0] sm:$0xff] %vm131, %v4078
  %4345 = vst.msk [vmem:[%s5 + $0x1d8] sm:$0xff] %vm131, %v4083
  %4346 = vst.msk [vmem:[%s5 + $0x1e0] sm:$0xff] %vm131, %v4088
  %4347 = vst.msk [vmem:[%s5 + $0x1e8] sm:$0xff] %vm131, %v4093
  %4348 = vst.msk [vmem:[%s5 + $0x1f0] sm:$0xff] %vm131, %v4098
  %4349 = vst.msk [vmem:[%s5 + $0x1f8] sm:$0xff] %vm131, %v4103
  %4350 = vst.msk [vmem:[%s5 + $0x200] sm:$0xff] %vm131, %v4108
  %4351 = vst.msk [vmem:[%s5 + $0x208] sm:$0xff] %vm131, %v4113
  %4352 = vst.msk [vmem:[%s5 + $0x210] sm:$0xff] %vm131, %v4118
  %4353 = vst.msk [vmem:[%s5 + $0x218] sm:$0xff] %vm131, %v4123
  %4354 = vst.msk [vmem:[%s5 + $0x220] sm:$0xff] %vm131, %v4128
  %4355 = vst.msk [vmem:[%s5 + $0x228] sm:$0xff] %vm131, %v4133
  %4356 = vst.msk [vmem:[%s5 + $0x230] sm:$0xff] %vm131, %v4138
  %4357 = vst.msk [vmem:[%s5 + $0x238] sm:$0xff] %vm131, %v4143
  %4358 = vst.msk [vmem:[%s5 + $0x240] sm:$0xff] %vm131, %v4148
  %4359 = vst.msk [vmem:[%s5 + $0x248] sm:$0xff] %vm131, %v4153
  %4360 = vst.msk [vmem:[%s5 + $0x250] sm:$0xff] %vm131, %v4158
  %4361 = vst.msk [vmem:[%s5 + $0x258] sm:$0xff] %vm131, %v4163
  %4362 = vst.msk [vmem:[%s5 + $0x260] sm:$0xff] %vm131, %v4168
  %4363 = vst.msk [vmem:[%s5 + $0x268] sm:$0xff] %vm131, %v4173
  %4364 = vst.msk [vmem:[%s5 + $0x270] sm:$0xff] %vm131, %v4178
  %4365 = vst.msk [vmem:[%s5 + $0x278] sm:$0xff] %vm131, %v4183
  %4366 = vst.msk [vmem:[%s5 + $0x280] sm:$0xff] %vm131, %v4188
  %4367 = vst.msk [vmem:[%s5 + $0x288] sm:$0xff] %vm131, %v4193
  %4368 = vst.msk [vmem:[%s5 + $0x290] sm:$0xff] %vm131, %v4198
  %4369 = vst.msk [vmem:[%s5 + $0x298] sm:$0xff] %vm131, %v4203
  %4370 = vst.msk [vmem:[%s5 + $0x2a0] sm:$0xff] %vm131, %v4208
  %4371 = vst.msk [vmem:[%s5 + $0x2a8] sm:$0xff] %vm131, %v4213
  %4372 = vst.msk [vmem:[%s5 + $0x2b0] sm:$0xff] %vm131, %v4218
  %4373 = vst.msk [vmem:[%s5 + $0x2b8] sm:$0xff] %vm131, %v4223
  %4374 = vst.msk [vmem:[%s5 + $0x2c0] sm:$0xff] %vm131, %v4228
  %4375 = vst.msk [vmem:[%s5 + $0x2c8] sm:$0xff] %vm131, %v4233
  %4376 = vst.msk [vmem:[%s5 + $0x2d0] sm:$0xff] %vm131, %v4238
  %4377 = vst.msk [vmem:[%s5 + $0x2d8] sm:$0xff] %vm131, %v4243
  %4378 = vst.msk [vmem:[%s5 + $0x2e0] sm:$0xff] %vm131, %v4248
  %4379 = vst.msk [vmem:[%s5 + $0x2e8] sm:$0xff] %vm131, %v4253
  %4380 = vst.msk [vmem:[%s5 + $0x2f0] sm:$0xff] %vm131, %v4258
  %4381 = vst.msk [vmem:[%s5 + $0x2f8] sm:$0xff] %vm131, %v4263
  %4382 = vst.msk [vmem:[%s5 + $0x300] sm:$0xff] %vm131, %v4268
  %4383 = vst.msk [vmem:[%s5 + $0x308] sm:$0xff] %vm131, %v4273
  %4384 = vst.msk [vmem:[%s5 + $0x310] sm:$0xff] %vm131, %v4278
  %4385 = vst.msk [vmem:[%s5 + $0x318] sm:$0xff] %vm131, %v4283
  // Predicated region
  $region22: #{fno2d_encoder_forward.10} parent=0 // pred_check
    _
  $region23: #{fno2d_encoder_forward.10} parent=0 // pred_check_branch
    %4387 = sbr.rel (0) target = $region25
  $region24: #{fno2d_encoder_forward.10} parent=0 // pred_region
    _
  $region25: #{fno2d_encoder_forward.10} parent=0 // pred_fallthru
    _
  // Predicated region
  $region26: #{fno2d_encoder_forward.10} parent=0 // pred_check
    _
  $region27: #{fno2d_encoder_forward.10} parent=0 // pred_check_branch
    %4389 = sbr.rel (0) target = $region29
  $region28: #{fno2d_encoder_forward.10} parent=0 // pred_region
    _
  $region29: #{fno2d_encoder_forward.10} parent=0 // pred_fallthru
    _

</llo_original>
